<compile_context>
chip_gen: v7x
topology: tpu7x:2x2x1
jax: 0.10.0
libtpu: 0.0.40
codegen_flags: <defaults>
</compile_context>

<pallas_src>
import functools
from dataclasses import dataclass

import jax
import jax.numpy as jnp
from jax import lax
from jax.experimental import pallas as pl
from jax.experimental.pallas import tpu as pltpu


@dataclass(frozen=True)
class Cfg:
    feature_samples: int = 16
    neg_samples: int = 2
    pointwise: bool = True
    zero_clamp: bool = True
    stabalize: bool = False
    pos_intra_shift: float = 0.18
    pos_inter_shift: float = 0.12
    neg_inter_shift: float = 0.46


# ------------------------------ Pallas kernel --------------------------------

def _fused_corr_loss_kernel(shifts_ref,            # SMEM f32[num_pairs]  (scalar prefetch)
                            f1_ref, c1_ref,        # (N, P, Cf) / (N, P, Cc)   shared lhs
                            f2_ref, c2_ref,        # (1, N, Cf, P) / (1, N, Cc, P)  per-pair rhs
                            loss_ref, cd_ref,      # (1, N, P, P) each
                            *, pointwise, zero_clamp, stabalize):
    """One grid step == one correlation pair over the full batch.

    fd[n,p,q] = <nf1[n,p,:], nf2[n,:,q]>   (== torch einsum 'nchw,ncij->nhwij'),
    pointwise-centered + global-mean corrected, then loss = -clamp(cd)*(fd-shift).
    fd lives entirely in VMEM/vregs; only loss and cd are written back to HBM.
    """
    shift = shifts_ref[pl.program_id(0)]
    eps2 = 1e-20   # == (F.normalize eps = 1e-10) ** 2

    def norm_lanes(x):      # channels on the last (lane) axis
        ss = jnp.sum(x * x, axis=-1, keepdims=True)
        return x * lax.rsqrt(jnp.maximum(ss, eps2))

    def norm_sublanes(x):   # channels on axis -2 (pixels on lanes)
        ss = jnp.sum(x * x, axis=-2, keepdims=True)
        return x * lax.rsqrt(jnp.maximum(ss, eps2))

    nf1 = norm_lanes(f1_ref[...]).astype(jnp.bfloat16)      # (N, P, Cf)
    nc1 = norm_lanes(c1_ref[...]).astype(jnp.bfloat16)      # (N, P, Cc)
    nf2 = norm_sublanes(f2_ref[0]).astype(jnp.bfloat16)     # (N, Cf, P)
    nc2 = norm_sublanes(c2_ref[0]).astype(jnp.bfloat16)     # (N, Cc, P)

    # Batched (P,C)@(C,P) matmuls on the MXU, f32 accumulation.
    fd = jnp.einsum('npc,ncq->npq', nf1, nf2,
                    preferred_element_type=jnp.float32)      # (N, P, P)
    cd = jnp.einsum('npc,ncq->npq', nc1, nc2,
                    preferred_element_type=jnp.float32)      # (N, P, P)

    if pointwise:
        # torch: fd - rowmean(fd) - mean(fd - rowmean(fd)) + mean(fd)
        # identities: mean(fd - rowmean(fd)) == 0 and mean(fd) == mean(rowmean(fd)),
        # so the global correction is just the mean of the (N,P,1) rowmean.
        row_mean = jnp.mean(fd, axis=-1, keepdims=True)      # (N, P, 1)
        fd = fd - row_mean + jnp.mean(row_mean)

    min_val = 0.0 if zero_clamp else -9999.0
    cd_c = jnp.clip(cd, min_val, 0.8) if stabalize else jnp.maximum(cd, min_val)

    loss_ref[0] = -cd_c * (fd - shift)
    cd_ref[0] = cd


def fused_correlation_loss(shifts, f1, c1, f2_t, c2_t, cfg):
    """shifts: f32[num_pairs]; f1/c1: (N,P,C) shared lhs; f2_t/c2_t: (num_pairs,N,C,P)."""
    num_pairs = f2_t.shape[0]
    N, P, Cf = f1.shape
    Cc = c1.shape[-1]
    kernel = functools.partial(_fused_corr_loss_kernel,
                               pointwise=cfg.pointwise,
                               zero_clamp=cfg.zero_clamp,
                               stabalize=cfg.stabalize)
    lhs_map = lambda p, shifts_ref: (0, 0, 0)          # same block every step (DMA'd once)
    pair_map = lambda p, shifts_ref: (p, 0, 0, 0)
    return pl.pallas_call(
        kernel,
        out_shape=(jax.ShapeDtypeStruct((num_pairs, N, P, P), jnp.float32),
                   jax.ShapeDtypeStruct((num_pairs, N, P, P), jnp.float32)),
        grid_spec=pltpu.PrefetchScalarGridSpec(
            num_scalar_prefetch=1,
            grid=(num_pairs,),
            in_specs=[pl.BlockSpec((N, P, Cf), lhs_map),
                      pl.BlockSpec((N, P, Cc), lhs_map),
                      pl.BlockSpec((1, N, Cf, P), pair_map),
                      pl.BlockSpec((1, N, Cc, P), pair_map)],
            out_specs=(pl.BlockSpec((1, N, P, P), pair_map),
                       pl.BlockSpec((1, N, P, P), pair_map))),
        compiler_params=pltpu.CompilerParams(
            dimension_semantics=("parallel",),
            vmem_limit_bytes=32 * 1024 * 1024),
    )(shifts, f1, c1, f2_t, c2_t)


# ------------------------------ JAX glue --------------------------------------
# TODO(synk): random coordinate generation, bilinear grid_sample (gather) and the
# batch permutation have no clean Pallas equivalent here and stay in plain JAX.

def grid_sample_border(img, grid):
    """torch.nn.functional.grid_sample(img, grid, mode='bilinear',
    padding_mode='border', align_corners=True).
    img: (N, C, H, W); grid: (N, Ho, Wo, 2) with (x, y) in [-1, 1]."""
    N, C, H, W = img.shape
    x = (grid[..., 0] + 1.0) * 0.5 * (W - 1)
    y = (grid[..., 1] + 1.0) * 0.5 * (H - 1)
    x = jnp.clip(x, 0.0, float(W - 1))
    y = jnp.clip(y, 0.0, float(H - 1))
    x0 = jnp.floor(x)
    y0 = jnp.floor(y)
    wx = (x - x0)[:, None, :, :]
    wy = (y - y0)[:, None, :, :]
    x0i = x0.astype(jnp.int32)
    y0i = y0.astype(jnp.int32)
    x1i = jnp.minimum(x0i + 1, W - 1)
    y1i = jnp.minimum(y0i + 1, H - 1)

    def gather_one(im, yy, xx):          # im (C,H,W), yy/xx (Ho,Wo) -> (C,Ho,Wo)
        return im[:, yy, xx]

    gather = jax.vmap(gather_one)
    Ia = gather(img, y0i, x0i)
    Ib = gather(img, y0i, x1i)
    Ic = gather(img, y1i, x0i)
    Id = gather(img, y1i, x1i)
    return (Ia * (1 - wx) * (1 - wy) + Ib * wx * (1 - wy)
            + Ic * (1 - wx) * wy + Id * wx * wy)


def sample(t, coords):
    # matches: F.grid_sample(t, coords.permute(0, 2, 1, 3), 'border', align_corners=True)
    return grid_sample_border(t, jnp.transpose(coords, (0, 2, 1, 3)))


def super_perm(key, size):
    perm = jax.random.permutation(key, size)
    perm = jnp.where(perm == jnp.arange(size), perm + 1, perm)
    return perm % size


def _flat_pc(t):
    # (N, C, S, S) -> (N, P, C)   pixels on sublanes, channels on lanes  (lhs layout)
    N, C, Sh, Sw = t.shape
    return jnp.transpose(t, (0, 2, 3, 1)).reshape(N, Sh * Sw, C)


def _flat_cp(t):
    # (N, C, S, S) -> (N, C, P)   free reshape; pixels lane-dense  (rhs layout)
    N, C, Sh, Sw = t.shape
    return t.reshape(N, C, Sh * Sw)


def _ref_helper(f1, f2, c1, c2, shift, cfg):
    # pure-JAX reference, faithful to the torch module (operands are (N, P, C))
    def l2n(x):
        n = jnp.sqrt(jnp.sum(x * x, axis=-1, keepdims=True))
        return x / jnp.maximum(n, 1e-10)
    hp = 'highest'
    fd = jnp.einsum('npc,nqc->npq', l2n(f1), l2n(f2), precision=hp)
    cd = jnp.einsum('npc,nqc->npq', l2n(c1), l2n(c2), precision=hp)
    if cfg.pointwise:
        old_mean = fd.mean()
        fd = fd - fd.mean(axis=-1, keepdims=True)
        fd = fd - fd.mean() + old_mean
    min_val = 0.0 if cfg.zero_clamp else -9999.0
    cd_c = jnp.clip(cd, min_val, 0.8) if cfg.stabalize else jnp.maximum(cd, min_val)
    return -cd_c * (fd - shift), cd


def contrastive_correlation_loss(cfg, key, orig_feats, orig_feats_pos,
                                 orig_salience, orig_salience_pos,
                                 orig_code, orig_code_pos, use_pallas=True):
    del orig_salience, orig_salience_pos  # unused by the torch forward as well
    N = orig_feats.shape[0]
    S = cfg.feature_samples
    P = S * S
    keys = jax.random.split(key, 2 + cfg.neg_samples)
    coords1 = jax.random.uniform(keys[0], (N, S, S, 2), jnp.float32) * 2 - 1
    coords2 = jax.random.uniform(keys[1], (N, S, S, 2), jnp.float32) * 2 - 1

    feats = sample(orig_feats, coords1)          # (N, Cf, S, S)
    code = sample(orig_code, coords1)            # (N, Cc, S, S)
    feats_pos = sample(orig_feats_pos, coords2)
    code_pos = sample(orig_code_pos, coords2)

    feats_negs, code_negs = [], []
    for i in range(cfg.neg_samples):
        perm = super_perm(keys[2 + i], N)
        feats_negs.append(sample(orig_feats[perm], coords2))
        code_negs.append(sample(orig_code[perm], coords2))

    shifts = ([cfg.pos_intra_shift, cfg.pos_inter_shift]
              + [cfg.neg_inter_shift] * cfg.neg_samples)

    if use_pallas:
        f1 = _flat_pc(feats)                     # shared lhs, (N, P, Cf)
        c1 = _flat_pc(code)                      # shared lhs, (N, P, Cc)
        rhs_f = [feats, feats_pos] + feats_negs
        rhs_c = [code, code_pos] + code_negs
        f2_t = jnp.stack([_flat_cp(t) for t in rhs_f], axis=0)   # (pairs, N, Cf, P)
        c2_t = jnp.stack([_flat_cp(t) for t in rhs_c], axis=0)   # (pairs, N, Cc, P)
        shift_arr = jnp.asarray(shifts, dtype=jnp.float32)

        loss, cd = fused_correlation_loss(shift_arr, f1, c1, f2_t, c2_t, cfg)

        pos_intra_loss, pos_inter_loss = loss[0], loss[1]
        pos_intra_cd, pos_inter_cd = cd[0], cd[1]
        neg_inter_loss = loss[2:].reshape(cfg.neg_samples * N, P, P)
        neg_inter_cd = cd[2:].reshape(cfg.neg_samples * N, P, P)
    else:
        f = _flat_pc(feats)
        c = _flat_pc(code)
        fp_ = _flat_pc(feats_pos)
        cp_ = _flat_pc(code_pos)
        pos_intra_loss, pos_intra_cd = _ref_helper(f, f, c, c, shifts[0], cfg)
        pos_inter_loss, pos_inter_cd = _ref_helper(f, fp_, c, cp_, shifts[1], cfg)
        nls, ncds = [], []
        for i in range(cfg.neg_samples):
            fn = _flat_pc(feats_negs[i])
            cn = _flat_pc(code_negs[i])
            l, cdv = _ref_helper(f, fn, c, cn, shifts[2 + i], cfg)
            nls.append(l)
            ncds.append(cdv)
        neg_inter_loss = jnp.concatenate(nls, axis=0)
        neg_inter_cd = jnp.concatenate(ncds, axis=0)

    def unflat(t):  # (B, P, P) -> (B, S, S, S, S)  == torch 'nhwij'
        return t.reshape(t.shape[0], S, S, S, S)

    return (pos_intra_loss.mean(), unflat(pos_intra_cd),
            pos_inter_loss.mean(), unflat(pos_inter_cd),
            unflat(neg_inter_loss), unflat(neg_inter_cd))


if __name__ == "__main__":
    cfg = Cfg()
    key = jax.random.PRNGKey(0)
    ks = jax.random.split(key, 7)

    N, Cf, Cc, H, W = 2, 32, 16, 16, 16
    orig_feats = jax.random.normal(ks[0], (N, Cf, H, W), jnp.float32)
    orig_feats_pos = jax.random.normal(ks[1], (N, Cf, H, W), jnp.float32)
    orig_salience = jax.random.uniform(ks[2], (N, 1, H, W), jnp.float32)
    orig_salience_pos = jax.random.uniform(ks[3], (N, 1, H, W), jnp.float32)
    orig_code = jax.random.normal(ks[4], (N, Cc, H, W), jnp.float32)
    orig_code_pos = jax.random.normal(ks[5], (N, Cc, H, W), jnp.float32)

    fwd_pallas = jax.jit(functools.partial(contrastive_correlation_loss, cfg,
                                           use_pallas=True))
    fwd_ref = jax.jit(functools.partial(contrastive_correlation_loss, cfg,
                                        use_pallas=False))

    out = fwd_pallas(ks[6], orig_feats, orig_feats_pos, orig_salience,
                     orig_salience_pos, orig_code, orig_code_pos)
    out = jax.block_until_ready(out)

    ref = fwd_ref(ks[6], orig_feats, orig_feats_pos, orig_salience,
                  orig_salience_pos, orig_code, orig_code_pos)
    ref = jax.block_until_ready(ref)

    # sanity check kernel vs pure-JAX reference
    # (loose tolerance: kernel uses bf16 MXU operands with f32 accumulation)
    assert abs(float(out[0]) - float(ref[0])) < 1e-2
    assert abs(float(out[2]) - float(ref[2])) < 1e-2
    assert float(jnp.max(jnp.abs(out[1] - ref[1]))) < 5e-2
    assert float(jnp.max(jnp.abs(out[4] - ref[4]))) < 5e-2
    assert float(jnp.max(jnp.abs(out[5] - ref[5]))) < 5e-2
    assert out[4].shape == (cfg.neg_samples * N, cfg.feature_samples,
                            cfg.feature_samples, cfg.feature_samples,
                            cfg.feature_samples)

    print("KERNEL_OK")
</pallas_src>

<mosaic_0001>
module attributes {stable_mosaic.version = 11 : i64} {
  func.func @_fused_corr_loss_kernel(%arg0: i32, %arg1: memref<4xf32, #tpu.memory_space<smem>>, %arg2: memref<2x256x32xf32, #tpu.memory_space<vmem>>, %arg3: memref<2x256x16xf32, #tpu.memory_space<vmem>>, %arg4: memref<1x2x32x256xf32, #tpu.memory_space<vmem>>, %arg5: memref<1x2x16x256xf32, #tpu.memory_space<vmem>>, %arg6: memref<1x2x256x256xf32, #tpu.memory_space<vmem>>, %arg7: memref<1x2x256x256xf32, #tpu.memory_space<vmem>>) attributes {dimension_semantics = [#tpu.dimension_semantics<parallel>], iteration_bounds = array<i64: 4>, scalar_prefetch = 1 : i64, scratch_operands = 0 : i64, tpu.core_type = #tpu.core_type<tc>, window_params = [{pipeline_mode = #tpu.pipeline_mode<synchronous>, transform_indices = @transform_0, window_bounds = array<i64: 2, 256, 32>}, {pipeline_mode = #tpu.pipeline_mode<synchronous>, transform_indices = @transform_1, window_bounds = array<i64: 2, 256, 16>}, {transform_indices = @transform_2, window_bounds = array<i64: 1, 2, 32, 256>}, {transform_indices = @transform_3, window_bounds = array<i64: 1, 2, 16, 256>}, {transform_indices = @transform_4, window_bounds = array<i64: 1, 2, 256, 256>}, {transform_indices = @transform_5, window_bounds = array<i64: 1, 2, 256, 256>}]} {
    %0 = arith.index_cast %arg0 : i32 to index
    %1 = memref.load %arg1[%0] : memref<4xf32, #tpu.memory_space<smem>>
    %c0 = arith.constant 0 : index
    %c0_0 = arith.constant 0 : index
    %c0_1 = arith.constant 0 : index
    %2 = vector.load %arg2[%c0, %c0_0, %c0_1] : memref<2x256x32xf32, #tpu.memory_space<vmem>>, vector<2x256x32xf32>
    %3 = arith.mulf %2, %2 : vector<2x256x32xf32>
    %cst = arith.constant dense<0.000000e+00> : vector<2x256xf32>
    %4 = vector.multi_reduction <add>, %3, %cst [2] : vector<2x256x32xf32> to vector<2x256xf32>
    %5 = vector.shape_cast %4 : vector<2x256xf32> to vector<2x256x1xf32>
    %cst_2 = arith.constant 9.99999968E-21 : f32
    %6 = vector.broadcast %cst_2 : f32 to vector<2x256x1xf32>
    %7 = arith.maximumf %5, %6 : vector<2x256x1xf32>
    %8 = math.rsqrt %7 : vector<2x256x1xf32>
    %9 = vector.broadcast %8 : vector<2x256x1xf32> to vector<2x256x32xf32>
    %10 = arith.mulf %2, %9 : vector<2x256x32xf32>
    %11 = arith.truncf %10 : vector<2x256x32xf32> to vector<2x256x32xbf16>
    %c0_3 = arith.constant 0 : index
    %c0_4 = arith.constant 0 : index
    %c0_5 = arith.constant 0 : index
    %12 = vector.load %arg3[%c0_3, %c0_4, %c0_5] : memref<2x256x16xf32, #tpu.memory_space<vmem>>, vector<2x256x16xf32>
    %13 = arith.mulf %12, %12 : vector<2x256x16xf32>
    %cst_6 = arith.constant dense<0.000000e+00> : vector<2x256xf32>
    %14 = vector.multi_reduction <add>, %13, %cst_6 [2] : vector<2x256x16xf32> to vector<2x256xf32>
    %15 = vector.shape_cast %14 : vector<2x256xf32> to vector<2x256x1xf32>
    %cst_7 = arith.constant 9.99999968E-21 : f32
    %16 = vector.broadcast %cst_7 : f32 to vector<2x256x1xf32>
    %17 = arith.maximumf %15, %16 : vector<2x256x1xf32>
    %18 = math.rsqrt %17 : vector<2x256x1xf32>
    %19 = vector.broadcast %18 : vector<2x256x1xf32> to vector<2x256x16xf32>
    %20 = arith.mulf %12, %19 : vector<2x256x16xf32>
    %21 = arith.truncf %20 : vector<2x256x16xf32> to vector<2x256x16xbf16>
    %c0_8 = arith.constant 0 : index
    %c0_9 = arith.constant 0 : index
    %c0_10 = arith.constant 0 : index
    %c0_11 = arith.constant 0 : index
    %22 = vector.load %arg4[%c0_8, %c0_9, %c0_10, %c0_11] : memref<1x2x32x256xf32, #tpu.memory_space<vmem>>, vector<1x2x32x256xf32>
    %23 = vector.shape_cast %22 : vector<1x2x32x256xf32> to vector<2x32x256xf32>
    %24 = arith.mulf %23, %23 : vector<2x32x256xf32>
    %cst_12 = arith.constant dense<0.000000e+00> : vector<2x256xf32>
    %25 = vector.multi_reduction <add>, %24, %cst_12 [1] : vector<2x32x256xf32> to vector<2x256xf32>
    %26 = vector.shape_cast %25 : vector<2x256xf32> to vector<2x1x256xf32>
    %cst_13 = arith.constant 9.99999968E-21 : f32
    %27 = vector.broadcast %cst_13 : f32 to vector<2x1x256xf32>
    %28 = arith.maximumf %26, %27 : vector<2x1x256xf32>
    %29 = math.rsqrt %28 : vector<2x1x256xf32>
    %30 = vector.broadcast %29 : vector<2x1x256xf32> to vector<2x32x256xf32>
    %31 = arith.mulf %23, %30 : vector<2x32x256xf32>
    %32 = arith.truncf %31 : vector<2x32x256xf32> to vector<2x32x256xbf16>
    %c0_14 = arith.constant 0 : index
    %c0_15 = arith.constant 0 : index
    %c0_16 = arith.constant 0 : index
    %c0_17 = arith.constant 0 : index
    %33 = vector.load %arg5[%c0_14, %c0_15, %c0_16, %c0_17] : memref<1x2x16x256xf32, #tpu.memory_space<vmem>>, vector<1x2x16x256xf32>
    %34 = vector.shape_cast %33 : vector<1x2x16x256xf32> to vector<2x16x256xf32>
    %35 = arith.mulf %34, %34 : vector<2x16x256xf32>
    %cst_18 = arith.constant dense<0.000000e+00> : vector<2x256xf32>
    %36 = vector.multi_reduction <add>, %35, %cst_18 [1] : vector<2x16x256xf32> to vector<2x256xf32>
    %37 = vector.shape_cast %36 : vector<2x256xf32> to vector<2x1x256xf32>
    %cst_19 = arith.constant 9.99999968E-21 : f32
    %38 = vector.broadcast %cst_19 : f32 to vector<2x1x256xf32>
    %39 = arith.maximumf %37, %38 : vector<2x1x256xf32>
    %40 = math.rsqrt %39 : vector<2x1x256xf32>
    %41 = vector.broadcast %40 : vector<2x1x256xf32> to vector<2x16x256xf32>
    %42 = arith.mulf %34, %41 : vector<2x16x256xf32>
    %43 = arith.truncf %42 : vector<2x16x256xf32> to vector<2x16x256xbf16>
    "tpu.trace_start"() <{level = 10 : i32, message = "npc,ncq->npq"}> : () -> ()
    %cst_20 = arith.constant dense<0.000000e+00> : vector<2x256x256xf32>
    %44 = tpu.matmul %11, %32, %cst_20 {dimension_numbers = #tpu.dot_dimension_numbers<[2], [1], [1], [2], [0, 0, 0, 1, 1, 2], [0], [0]>} : vector<2x256x32xbf16>, vector<2x32x256xbf16>, vector<2x256x256xf32> -> vector<2x256x256xf32>
    %cst_21 = arith.constant dense<0.000000e+00> : vector<2x256x256xf32>
    %45 = tpu.matmul %21, %43, %cst_21 {dimension_numbers = #tpu.dot_dimension_numbers<[2], [1], [1], [2], [0, 0, 0, 1, 1, 2], [0], [0]>} : vector<2x256x16xbf16>, vector<2x16x256xbf16>, vector<2x256x256xf32> -> vector<2x256x256xf32>
    "tpu.trace_stop"() : () -> ()
    %cst_22 = arith.constant dense<0.000000e+00> : vector<2x256xf32>
    %46 = vector.multi_reduction <add>, %44, %cst_22 [2] : vector<2x256x256xf32> to vector<2x256xf32>
    %47 = vector.shape_cast %46 : vector<2x256xf32> to vector<2x256x1xf32>
    %cst_23 = arith.constant 2.560000e+02 : f32
    %48 = vector.broadcast %cst_23 : f32 to vector<2x256x1xf32>
    %49 = arith.divf %47, %48 : vector<2x256x1xf32>
    %50 = vector.broadcast %49 : vector<2x256x1xf32> to vector<2x256x256xf32>
    %51 = arith.subf %44, %50 : vector<2x256x256xf32>
    %52 = vector.shape_cast %49 : vector<2x256x1xf32> to vector<1x2x256x1xf32>
    %cst_24 = arith.constant dense<0.000000e+00> : vector<1xf32>
    %53 = vector.multi_reduction <add>, %52, %cst_24 [1, 2, 3] : vector<1x2x256x1xf32> to vector<1xf32>
    %54 = vector.shape_cast %53 : vector<1xf32> to vector<1x1x1x1xf32>
    %55 = vector.extract %54[0, 0, 0, 0] : f32 from vector<1x1x1x1xf32>
    %cst_25 = arith.constant 5.120000e+02 : f32
    %56 = arith.divf %55, %cst_25 : f32
    %57 = vector.broadcast %56 : f32 to vector<2x256x256xf32>
    %58 = arith.addf %51, %57 : vector<2x256x256xf32>
    %cst_26 = arith.constant 0.000000e+00 : f32
    %59 = vector.broadcast %cst_26 : f32 to vector<2x256x256xf32>
    %60 = arith.maximumf %45, %59 : vector<2x256x256xf32>
    %cst_27 = arith.constant 0.000000e+00 : f32
    %61 = vector.broadcast %cst_27 : f32 to vector<2x256x256xf32>
    %62 = arith.subf %61, %60 : vector<2x256x256xf32>
    %63 = vector.broadcast %1 : f32 to vector<2x256x256xf32>
    %64 = arith.subf %58, %63 : vector<2x256x256xf32>
    %65 = arith.mulf %62, %64 : vector<2x256x256xf32>
    %c0_28 = arith.constant 0 : index
    %c0_29 = arith.constant 0 : index
    %c0_30 = arith.constant 0 : index
    %c0_31 = arith.constant 0 : index
    %66 = vector.load %arg6[%c0_28, %c0_29, %c0_30, %c0_31] : memref<1x2x256x256xf32, #tpu.memory_space<vmem>>, vector<1x2x256x256xf32>
    %67 = vector.shape_cast %66 : vector<1x2x256x256xf32> to vector<2x256x256xf32>
    %68 = vector.shape_cast %65 : vector<2x256x256xf32> to vector<1x2x256x256xf32>
    tpu.vector_store %arg6[%c0_28, %c0_29, %c0_30, %c0_31], %68 {strides = array<i32>} : memref<1x2x256x256xf32, #tpu.memory_space<vmem>>, vector<1x2x256x256xf32>,
    %c0_32 = arith.constant 0 : index
    %c0_33 = arith.constant 0 : index
    %c0_34 = arith.constant 0 : index
    %c0_35 = arith.constant 0 : index
    %69 = vector.load %arg7[%c0_32, %c0_33, %c0_34, %c0_35] : memref<1x2x256x256xf32, #tpu.memory_space<vmem>>, vector<1x2x256x256xf32>
    %70 = vector.shape_cast %69 : vector<1x2x256x256xf32> to vector<2x256x256xf32>
    %71 = vector.shape_cast %45 : vector<2x256x256xf32> to vector<1x2x256x256xf32>
    tpu.vector_store %arg7[%c0_32, %c0_33, %c0_34, %c0_35], %71 {strides = array<i32>} : memref<1x2x256x256xf32, #tpu.memory_space<vmem>>, vector<1x2x256x256xf32>,
    return
  }
  func.func @transform_0(%arg0: i32, %arg1: memref<4xf32, #tpu.memory_space<smem>>) -> (i32, i32, i32) {
    %c0_i32 = arith.constant 0 : i32
    %c0_i32_0 = arith.constant 0 : i32
    %c0_i32_1 = arith.constant 0 : i32
    %c0_i32_2 = arith.constant 0 : i32
    return %c0_i32, %c0_i32_0, %c0_i32_1 : i32, i32, i32
  }
  func.func @transform_1(%arg0: i32, %arg1: memref<4xf32, #tpu.memory_space<smem>>) -> (i32, i32, i32) {
    %c0_i32 = arith.constant 0 : i32
    %c0_i32_0 = arith.constant 0 : i32
    %c0_i32_1 = arith.constant 0 : i32
    %c0_i32_2 = arith.constant 0 : i32
    return %c0_i32, %c0_i32_0, %c0_i32_1 : i32, i32, i32
  }
  func.func @transform_2(%arg0: i32, %arg1: memref<4xf32, #tpu.memory_space<smem>>) -> (i32, i32, i32, i32) {
    %c0_i32 = arith.constant 0 : i32
    %c0_i32_0 = arith.constant 0 : i32
    %c0_i32_1 = arith.constant 0 : i32
    %c0_i32_2 = arith.constant 0 : i32
    return %arg0, %c0_i32, %c0_i32_0, %c0_i32_1 : i32, i32, i32, i32
  }
  func.func @transform_3(%arg0: i32, %arg1: memref<4xf32, #tpu.memory_space<smem>>) -> (i32, i32, i32, i32) {
    %c0_i32 = arith.constant 0 : i32
    %c0_i32_0 = arith.constant 0 : i32
    %c0_i32_1 = arith.constant 0 : i32
    %c0_i32_2 = arith.constant 0 : i32
    return %arg0, %c0_i32, %c0_i32_0, %c0_i32_1 : i32, i32, i32, i32
  }
  func.func @transform_4(%arg0: i32, %arg1: memref<4xf32, #tpu.memory_space<smem>>) -> (i32, i32, i32, i32) {
    %c0_i32 = arith.constant 0 : i32
    %c0_i32_0 = arith.constant 0 : i32
    %c0_i32_1 = arith.constant 0 : i32
    %c0_i32_2 = arith.constant 0 : i32
    return %arg0, %c0_i32, %c0_i32_0, %c0_i32_1 : i32, i32, i32, i32
  }
  func.func @transform_5(%arg0: i32, %arg1: memref<4xf32, #tpu.memory_space<smem>>) -> (i32, i32, i32, i32) {
    %c0_i32 = arith.constant 0 : i32
    %c0_i32_0 = arith.constant 0 : i32
    %c0_i32_1 = arith.constant 0 : i32
    %c0_i32_2 = arith.constant 0 : i32
    return %arg0, %c0_i32, %c0_i32_0, %c0_i32_1 : i32, i32, i32, i32
  }
}

</mosaic_0001>

<llo_original>
// kernel: squeeze.65
$region0: #{squeeze.65}
  %s0 = inlined_call_operand.vmem [shape: f32[1,2,256,256], index: 0, kind: input, shape index: {}]
  %s1 = inlined_call_operand.hbm [shape: f32[2,16,16,16,16], index: 1, kind: output, shape index: {}]
  $region1: #{squeeze.65} parent=0
    #allocation0 [shape = 'u8[4194304]{0}', space=vmem, size = 0x400000, scoped, tag = 'operand span for operand 1']
    #allocation1 [shape = 's32[2]{0}', space=sflag, size = 0x8, scoped, tag = 'scoped memory for squeeze.65']
    %2 = vsyncpa [#allocation1], 0
    %s3 = scalar_lea.sflag [#allocation1], 1
    %4 = vsyncpa %s3, 0
    loop: start=0, step=1, limit=4
    $region2: #{squeeze.65} parent=1 // loop_pre_header
      _
    $region3: #{squeeze.65} parent=1 // loop_header
      %s6 = sphi 0, %s10
      %p7 = scmp.ge.s32.totalorder %s6, 4
    $region4: #{squeeze.65} parent=1 // loop_header_branch
      %9 = sbr.rel (%p7) target = $region8
    $region5: #{squeeze.65} parent=1 // loop_body
      %s11 = ssub.s32 %s6, 1
      %s12 = ssub.s32 %s6, 2
      %s13 = sadd.s32 %s6, 1
      %p14 = scmp.le.s32.totalorder 1, %s6
      %p15 = scmp.lt.s32.totalorder %s6, 3
      %p16 = pnand %p14, %p15
      %p17 = pneg %p16
      // Predicated region
      $region9: #{squeeze.65} parent=5 // pred_check
        _
      $region10: #{squeeze.65} parent=5 // pred_check_branch
        %19 = sbr.rel (%p16) target = $region12
      $region11: #{squeeze.65} parent=5 // pred_region
        %s20 = ssub.s32 %s6, 1
      $region12: #{squeeze.65} parent=5 // pred_fallthru
        _
      %p21 = scmp.lt.s32.totalorder %s6, 2
      // Predicated region
      $region13: #{squeeze.65} parent=5 // pred_check
        %p22 = pneg %p21
      $region14: #{squeeze.65} parent=5 // pred_check_branch
        %24 = sbr.rel (%p22) target = $region16
      $region15: #{squeeze.65} parent=5 // pred_region
        %s25 = smul.u32 512, %s6
        %p26 = scmp.lt.s32.totalorder %s25, 1023
        %s27 = scalar_select %p26, %s25, 1023
        %s28 = scalar_lea.vmem %s0, %s27
        %s29 = smul.u32 512, %s6
      $region16: #{squeeze.65} parent=5 // pred_fallthru
        _
      %p30 = scmp.le.s32.totalorder 1, %s6
      %p31 = scmp.lt.s32.totalorder %s6, 3
      %p32 = pnand %p30, %p31
      %p33 = pneg %p32
      // Predicated region
      $region17: #{squeeze.65} parent=5 // pred_check
        _
      $region18: #{squeeze.65} parent=5 // pred_check_branch
        %35 = sbr.rel (%p32) target = $region20
      $region19: #{squeeze.65} parent=5 // pred_region
        %s36 = ssub.s32 %s6, 1
        %s37 = smul.u32 512, %s11
        %p38 = scmp.lt.s32.totalorder %s37, 1023
        %s39 = scalar_select %p38, %s37, 1023
        %s40 = scalar_lea.vmem %s0, %s39
        %s41 = sand.u32 %s11, 1
        %s42 = scalar_lea.sflag [#allocation1], %s41
        %s43 = sand.u32 %s11, 1
        %s44 = smul.addr %s43, 4096
        %s45 = scalar_lea.vmem [#allocation0], %s44
        %s46 = smul.u32 4096, %s11
        %s47 = smul.u32 512, %s11
        %p48 = scmp.lt.s32.totalorder %s47, 1023
        %s49 = scalar_select %p48, %s47, 1023
        %s50 = scalar_lea.vmem %s0, %s49
        %s51 = smul.u32 512, %s11
        %p52 = scmp.lt.s32.totalorder %s11, 1
        %p53 = scmp.eq.s32.totalorder %s11, 1
        %v54 = vld [vmem:[%s50] sm:$0xff]
        %vm55 = vcmask 130048
        %56 = vst.msk [vmem:[%s45] ss:$16 sm:$0x3] %vm55, %v54
        %57 = vst.msk [vmem:[%s45] ss:$16 sm:$0xc] %vm55, %v54
        %58 = vst.msk [vmem:[%s45] ss:$16 sm:$0x30] %vm55, %v54
        %59 = vst.msk [vmem:[%s45] ss:$16 sm:$0xc0] %vm55, %v54
        %s60 = scalar_lea.vmem %s50, 8
        %v61 = vld [vmem:[%s60] sm:$0xff]
        %vm62 = vcmask 130048
        %s63 = scalar_lea.vmem %s45, 8 [#allocation0]
        %64 = vst.msk [vmem:[%s63] ss:$16 sm:$0x3] %vm62, %v61
        %s65 = scalar_lea.vmem %s45, 8 [#allocation0]
        %66 = vst.msk [vmem:[%s65] ss:$16 sm:$0xc] %vm62, %v61
        %s67 = scalar_lea.vmem %s45, 8 [#allocation0]
        %68 = vst.msk [vmem:[%s67] ss:$16 sm:$0x30] %vm62, %v61
        %s69 = scalar_lea.vmem %s45, 8 [#allocation0]
        %70 = vst.msk [vmem:[%s69] ss:$16 sm:$0xc0] %vm62, %v61
        %s71 = scalar_lea.vmem %s50, 16
        %v72 = vld [vmem:[%s71] sm:$0xff]
        %vm73 = vcmask 130048
        %s74 = scalar_lea.vmem %s45, 128 [#allocation0]
        %75 = vst.msk [vmem:[%s74] ss:$16 sm:$0x3] %vm73, %v72
        %s76 = scalar_lea.vmem %s45, 128 [#allocation0]
        %77 = vst.msk [vmem:[%s76] ss:$16 sm:$0xc] %vm73, %v72
        %s78 = scalar_lea.vmem %s45, 128 [#allocation0]
        %79 = vst.msk [vmem:[%s78] ss:$16 sm:$0x30] %vm73, %v72
        %s80 = scalar_lea.vmem %s45, 128 [#allocation0]
        %81 = vst.msk [vmem:[%s80] ss:$16 sm:$0xc0] %vm73, %v72
        %s82 = scalar_lea.vmem %s50, 24
        %v83 = vld [vmem:[%s82] sm:$0xff]
        %vm84 = vcmask 130048
        %s85 = scalar_lea.vmem %s45, 136 [#allocation0]
        %86 = vst.msk [vmem:[%s85] ss:$16 sm:$0x3] %vm84, %v83
        %s87 = scalar_lea.vmem %s45, 136 [#allocation0]
        %88 = vst.msk [vmem:[%s87] ss:$16 sm:$0xc] %vm84, %v83
        %s89 = scalar_lea.vmem %s45, 136 [#allocation0]
        %90 = vst.msk [vmem:[%s89] ss:$16 sm:$0x30] %vm84, %v83
        %s91 = scalar_lea.vmem %s45, 136 [#allocation0]
        %92 = vst.msk [vmem:[%s91] ss:$16 sm:$0xc0] %vm84, %v83
        %s93 = scalar_lea.vmem %s50, 32
        %v94 = vld [vmem:[%s93] sm:$0xff]
        %vm95 = vcmask 130048
        %s96 = scalar_lea.vmem %s45, 256 [#allocation0]
        %97 = vst.msk [vmem:[%s96] ss:$16 sm:$0x3] %vm95, %v94
        %s98 = scalar_lea.vmem %s45, 256 [#allocation0]
        %99 = vst.msk [vmem:[%s98] ss:$16 sm:$0xc] %vm95, %v94
        %s100 = scalar_lea.vmem %s45, 256 [#allocation0]
        %101 = vst.msk [vmem:[%s100] ss:$16 sm:$0x30] %vm95, %v94
        %s102 = scalar_lea.vmem %s45, 256 [#allocation0]
        %103 = vst.msk [vmem:[%s102] ss:$16 sm:$0xc0] %vm95, %v94
        %s104 = scalar_lea.vmem %s50, 40
        %v105 = vld [vmem:[%s104] sm:$0xff]
        %vm106 = vcmask 130048
        %s107 = scalar_lea.vmem %s45, 264 [#allocation0]
        %108 = vst.msk [vmem:[%s107] ss:$16 sm:$0x3] %vm106, %v105
        %s109 = scalar_lea.vmem %s45, 264 [#allocation0]
        %110 = vst.msk [vmem:[%s109] ss:$16 sm:$0xc] %vm106, %v105
        %s111 = scalar_lea.vmem %s45, 264 [#allocation0]
        %112 = vst.msk [vmem:[%s111] ss:$16 sm:$0x30] %vm106, %v105
        %s113 = scalar_lea.vmem %s45, 264 [#allocation0]
        %114 = vst.msk [vmem:[%s113] ss:$16 sm:$0xc0] %vm106, %v105
        %s115 = scalar_lea.vmem %s50, 48
        %v116 = vld [vmem:[%s115] sm:$0xff]
        %vm117 = vcmask 130048
        %s118 = scalar_lea.vmem %s45, 384 [#allocation0]
        %119 = vst.msk [vmem:[%s118] ss:$16 sm:$0x3] %vm117, %v116
        %s120 = scalar_lea.vmem %s45, 384 [#allocation0]
        %121 = vst.msk [vmem:[%s120] ss:$16 sm:$0xc] %vm117, %v116
        %s122 = scalar_lea.vmem %s45, 384 [#allocation0]
        %123 = vst.msk [vmem:[%s122] ss:$16 sm:$0x30] %vm117, %v116
        %s124 = scalar_lea.vmem %s45, 384 [#allocation0]
        %125 = vst.msk [vmem:[%s124] ss:$16 sm:$0xc0] %vm117, %v116
        %s126 = scalar_lea.vmem %s50, 56
        %v127 = vld [vmem:[%s126] sm:$0xff]
        %vm128 = vcmask 130048
        %s129 = scalar_lea.vmem %s45, 392 [#allocation0]
        %130 = vst.msk [vmem:[%s129] ss:$16 sm:$0x3] %vm128, %v127
        %s131 = scalar_lea.vmem %s45, 392 [#allocation0]
        %132 = vst.msk [vmem:[%s131] ss:$16 sm:$0xc] %vm128, %v127
        %s133 = scalar_lea.vmem %s45, 392 [#allocation0]
        %134 = vst.msk [vmem:[%s133] ss:$16 sm:$0x30] %vm128, %v127
        %s135 = scalar_lea.vmem %s45, 392 [#allocation0]
        %136 = vst.msk [vmem:[%s135] ss:$16 sm:$0xc0] %vm128, %v127
        %s137 = scalar_lea.vmem %s50, 64
        %v138 = vld [vmem:[%s137] sm:$0xff]
        %vm139 = vcmask 130048
        %s140 = scalar_lea.vmem %s45, 512 [#allocation0]
        %141 = vst.msk [vmem:[%s140] ss:$16 sm:$0x3] %vm139, %v138
        %s142 = scalar_lea.vmem %s45, 512 [#allocation0]
        %143 = vst.msk [vmem:[%s142] ss:$16 sm:$0xc] %vm139, %v138
        %s144 = scalar_lea.vmem %s45, 512 [#allocation0]
        %145 = vst.msk [vmem:[%s144] ss:$16 sm:$0x30] %vm139, %v138
        %s146 = scalar_lea.vmem %s45, 512 [#allocation0]
        %147 = vst.msk [vmem:[%s146] ss:$16 sm:$0xc0] %vm139, %v138
        %s148 = scalar_lea.vmem %s50, 72
        %v149 = vld [vmem:[%s148] sm:$0xff]
        %vm150 = vcmask 130048
        %s151 = scalar_lea.vmem %s45, 520 [#allocation0]
        %152 = vst.msk [vmem:[%s151] ss:$16 sm:$0x3] %vm150, %v149
        %s153 = scalar_lea.vmem %s45, 520 [#allocation0]
        %154 = vst.msk [vmem:[%s153] ss:$16 sm:$0xc] %vm150, %v149
        %s155 = scalar_lea.vmem %s45, 520 [#allocation0]
        %156 = vst.msk [vmem:[%s155] ss:$16 sm:$0x30] %vm150, %v149
        %s157 = scalar_lea.vmem %s45, 520 [#allocation0]
        %158 = vst.msk [vmem:[%s157] ss:$16 sm:$0xc0] %vm150, %v149
        %s159 = scalar_lea.vmem %s50, 80
        %v160 = vld [vmem:[%s159] sm:$0xff]
        %vm161 = vcmask 130048
        %s162 = scalar_lea.vmem %s45, 640 [#allocation0]
        %163 = vst.msk [vmem:[%s162] ss:$16 sm:$0x3] %vm161, %v160
        %s164 = scalar_lea.vmem %s45, 640 [#allocation0]
        %165 = vst.msk [vmem:[%s164] ss:$16 sm:$0xc] %vm161, %v160
        %s166 = scalar_lea.vmem %s45, 640 [#allocation0]
        %167 = vst.msk [vmem:[%s166] ss:$16 sm:$0x30] %vm161, %v160
        %s168 = scalar_lea.vmem %s45, 640 [#allocation0]
        %169 = vst.msk [vmem:[%s168] ss:$16 sm:$0xc0] %vm161, %v160
        %s170 = scalar_lea.vmem %s50, 88
        %v171 = vld [vmem:[%s170] sm:$0xff]
        %vm172 = vcmask 130048
        %s173 = scalar_lea.vmem %s45, 648 [#allocation0]
        %174 = vst.msk [vmem:[%s173] ss:$16 sm:$0x3] %vm172, %v171
        %s175 = scalar_lea.vmem %s45, 648 [#allocation0]
        %176 = vst.msk [vmem:[%s175] ss:$16 sm:$0xc] %vm172, %v171
        %s177 = scalar_lea.vmem %s45, 648 [#allocation0]
        %178 = vst.msk [vmem:[%s177] ss:$16 sm:$0x30] %vm172, %v171
        %s179 = scalar_lea.vmem %s45, 648 [#allocation0]
        %180 = vst.msk [vmem:[%s179] ss:$16 sm:$0xc0] %vm172, %v171
        %s181 = scalar_lea.vmem %s50, 96
        %v182 = vld [vmem:[%s181] sm:$0xff]
        %vm183 = vcmask 130048
        %s184 = scalar_lea.vmem %s45, 768 [#allocation0]
        %185 = vst.msk [vmem:[%s184] ss:$16 sm:$0x3] %vm183, %v182
        %s186 = scalar_lea.vmem %s45, 768 [#allocation0]
        %187 = vst.msk [vmem:[%s186] ss:$16 sm:$0xc] %vm183, %v182
        %s188 = scalar_lea.vmem %s45, 768 [#allocation0]
        %189 = vst.msk [vmem:[%s188] ss:$16 sm:$0x30] %vm183, %v182
        %s190 = scalar_lea.vmem %s45, 768 [#allocation0]
        %191 = vst.msk [vmem:[%s190] ss:$16 sm:$0xc0] %vm183, %v182
        %s192 = scalar_lea.vmem %s50, 104
        %v193 = vld [vmem:[%s192] sm:$0xff]
        %vm194 = vcmask 130048
        %s195 = scalar_lea.vmem %s45, 776 [#allocation0]
        %196 = vst.msk [vmem:[%s195] ss:$16 sm:$0x3] %vm194, %v193
        %s197 = scalar_lea.vmem %s45, 776 [#allocation0]
        %198 = vst.msk [vmem:[%s197] ss:$16 sm:$0xc] %vm194, %v193
        %s199 = scalar_lea.vmem %s45, 776 [#allocation0]
        %200 = vst.msk [vmem:[%s199] ss:$16 sm:$0x30] %vm194, %v193
        %s201 = scalar_lea.vmem %s45, 776 [#allocation0]
        %202 = vst.msk [vmem:[%s201] ss:$16 sm:$0xc0] %vm194, %v193
        %s203 = scalar_lea.vmem %s50, 112
        %v204 = vld [vmem:[%s203] sm:$0xff]
        %vm205 = vcmask 130048
        %s206 = scalar_lea.vmem %s45, 896 [#allocation0]
        %207 = vst.msk [vmem:[%s206] ss:$16 sm:$0x3] %vm205, %v204
        %s208 = scalar_lea.vmem %s45, 896 [#allocation0]
        %209 = vst.msk [vmem:[%s208] ss:$16 sm:$0xc] %vm205, %v204
        %s210 = scalar_lea.vmem %s45, 896 [#allocation0]
        %211 = vst.msk [vmem:[%s210] ss:$16 sm:$0x30] %vm205, %v204
        %s212 = scalar_lea.vmem %s45, 896 [#allocation0]
        %213 = vst.msk [vmem:[%s212] ss:$16 sm:$0xc0] %vm205, %v204
        %s214 = scalar_lea.vmem %s50, 120
        %v215 = vld [vmem:[%s214] sm:$0xff]
        %vm216 = vcmask 130048
        %s217 = scalar_lea.vmem %s45, 904 [#allocation0]
        %218 = vst.msk [vmem:[%s217] ss:$16 sm:$0x3] %vm216, %v215
        %s219 = scalar_lea.vmem %s45, 904 [#allocation0]
        %220 = vst.msk [vmem:[%s219] ss:$16 sm:$0xc] %vm216, %v215
        %s221 = scalar_lea.vmem %s45, 904 [#allocation0]
        %222 = vst.msk [vmem:[%s221] ss:$16 sm:$0x30] %vm216, %v215
        %s223 = scalar_lea.vmem %s45, 904 [#allocation0]
        %224 = vst.msk [vmem:[%s223] ss:$16 sm:$0xc0] %vm216, %v215
        %s225 = scalar_lea.vmem %s50, 128
        %v226 = vld [vmem:[%s225] sm:$0xff]
        %vm227 = vcmask 130048
        %s228 = scalar_lea.vmem %s45, 1024 [#allocation0]
        %229 = vst.msk [vmem:[%s228] ss:$16 sm:$0x3] %vm227, %v226
        %s230 = scalar_lea.vmem %s45, 1024 [#allocation0]
        %231 = vst.msk [vmem:[%s230] ss:$16 sm:$0xc] %vm227, %v226
        %s232 = scalar_lea.vmem %s45, 1024 [#allocation0]
        %233 = vst.msk [vmem:[%s232] ss:$16 sm:$0x30] %vm227, %v226
        %s234 = scalar_lea.vmem %s45, 1024 [#allocation0]
        %235 = vst.msk [vmem:[%s234] ss:$16 sm:$0xc0] %vm227, %v226
        %s236 = scalar_lea.vmem %s50, 136
        %v237 = vld [vmem:[%s236] sm:$0xff]
        %vm238 = vcmask 130048
        %s239 = scalar_lea.vmem %s45, 1032 [#allocation0]
        %240 = vst.msk [vmem:[%s239] ss:$16 sm:$0x3] %vm238, %v237
        %s241 = scalar_lea.vmem %s45, 1032 [#allocation0]
        %242 = vst.msk [vmem:[%s241] ss:$16 sm:$0xc] %vm238, %v237
        %s243 = scalar_lea.vmem %s45, 1032 [#allocation0]
        %244 = vst.msk [vmem:[%s243] ss:$16 sm:$0x30] %vm238, %v237
        %s245 = scalar_lea.vmem %s45, 1032 [#allocation0]
        %246 = vst.msk [vmem:[%s245] ss:$16 sm:$0xc0] %vm238, %v237
        %s247 = scalar_lea.vmem %s50, 144
        %v248 = vld [vmem:[%s247] sm:$0xff]
        %vm249 = vcmask 130048
        %s250 = scalar_lea.vmem %s45, 1152 [#allocation0]
        %251 = vst.msk [vmem:[%s250] ss:$16 sm:$0x3] %vm249, %v248
        %s252 = scalar_lea.vmem %s45, 1152 [#allocation0]
        %253 = vst.msk [vmem:[%s252] ss:$16 sm:$0xc] %vm249, %v248
        %s254 = scalar_lea.vmem %s45, 1152 [#allocation0]
        %255 = vst.msk [vmem:[%s254] ss:$16 sm:$0x30] %vm249, %v248
        %s256 = scalar_lea.vmem %s45, 1152 [#allocation0]
        %257 = vst.msk [vmem:[%s256] ss:$16 sm:$0xc0] %vm249, %v248
        %s258 = scalar_lea.vmem %s50, 152
        %v259 = vld [vmem:[%s258] sm:$0xff]
        %vm260 = vcmask 130048
        %s261 = scalar_lea.vmem %s45, 1160 [#allocation0]
        %262 = vst.msk [vmem:[%s261] ss:$16 sm:$0x3] %vm260, %v259
        %s263 = scalar_lea.vmem %s45, 1160 [#allocation0]
        %264 = vst.msk [vmem:[%s263] ss:$16 sm:$0xc] %vm260, %v259
        %s265 = scalar_lea.vmem %s45, 1160 [#allocation0]
        %266 = vst.msk [vmem:[%s265] ss:$16 sm:$0x30] %vm260, %v259
        %s267 = scalar_lea.vmem %s45, 1160 [#allocation0]
        %268 = vst.msk [vmem:[%s267] ss:$16 sm:$0xc0] %vm260, %v259
        %s269 = scalar_lea.vmem %s50, 160
        %v270 = vld [vmem:[%s269] sm:$0xff]
        %vm271 = vcmask 130048
        %s272 = scalar_lea.vmem %s45, 1280 [#allocation0]
        %273 = vst.msk [vmem:[%s272] ss:$16 sm:$0x3] %vm271, %v270
        %s274 = scalar_lea.vmem %s45, 1280 [#allocation0]
        %275 = vst.msk [vmem:[%s274] ss:$16 sm:$0xc] %vm271, %v270
        %s276 = scalar_lea.vmem %s45, 1280 [#allocation0]
        %277 = vst.msk [vmem:[%s276] ss:$16 sm:$0x30] %vm271, %v270
        %s278 = scalar_lea.vmem %s45, 1280 [#allocation0]
        %279 = vst.msk [vmem:[%s278] ss:$16 sm:$0xc0] %vm271, %v270
        %s280 = scalar_lea.vmem %s50, 168
        %v281 = vld [vmem:[%s280] sm:$0xff]
        %vm282 = vcmask 130048
        %s283 = scalar_lea.vmem %s45, 1288 [#allocation0]
        %284 = vst.msk [vmem:[%s283] ss:$16 sm:$0x3] %vm282, %v281
        %s285 = scalar_lea.vmem %s45, 1288 [#allocation0]
        %286 = vst.msk [vmem:[%s285] ss:$16 sm:$0xc] %vm282, %v281
        %s287 = scalar_lea.vmem %s45, 1288 [#allocation0]
        %288 = vst.msk [vmem:[%s287] ss:$16 sm:$0x30] %vm282, %v281
        %s289 = scalar_lea.vmem %s45, 1288 [#allocation0]
        %290 = vst.msk [vmem:[%s289] ss:$16 sm:$0xc0] %vm282, %v281
        %s291 = scalar_lea.vmem %s50, 176
        %v292 = vld [vmem:[%s291] sm:$0xff]
        %vm293 = vcmask 130048
        %s294 = scalar_lea.vmem %s45, 1408 [#allocation0]
        %295 = vst.msk [vmem:[%s294] ss:$16 sm:$0x3] %vm293, %v292
        %s296 = scalar_lea.vmem %s45, 1408 [#allocation0]
        %297 = vst.msk [vmem:[%s296] ss:$16 sm:$0xc] %vm293, %v292
        %s298 = scalar_lea.vmem %s45, 1408 [#allocation0]
        %299 = vst.msk [vmem:[%s298] ss:$16 sm:$0x30] %vm293, %v292
        %s300 = scalar_lea.vmem %s45, 1408 [#allocation0]
        %301 = vst.msk [vmem:[%s300] ss:$16 sm:$0xc0] %vm293, %v292
        %s302 = scalar_lea.vmem %s50, 184
        %v303 = vld [vmem:[%s302] sm:$0xff]
        %vm304 = vcmask 130048
        %s305 = scalar_lea.vmem %s45, 1416 [#allocation0]
        %306 = vst.msk [vmem:[%s305] ss:$16 sm:$0x3] %vm304, %v303
        %s307 = scalar_lea.vmem %s45, 1416 [#allocation0]
        %308 = vst.msk [vmem:[%s307] ss:$16 sm:$0xc] %vm304, %v303
        %s309 = scalar_lea.vmem %s45, 1416 [#allocation0]
        %310 = vst.msk [vmem:[%s309] ss:$16 sm:$0x30] %vm304, %v303
        %s311 = scalar_lea.vmem %s45, 1416 [#allocation0]
        %312 = vst.msk [vmem:[%s311] ss:$16 sm:$0xc0] %vm304, %v303
        %s313 = scalar_lea.vmem %s50, 192
        %v314 = vld [vmem:[%s313] sm:$0xff]
        %vm315 = vcmask 130048
        %s316 = scalar_lea.vmem %s45, 1536 [#allocation0]
        %317 = vst.msk [vmem:[%s316] ss:$16 sm:$0x3] %vm315, %v314
        %s318 = scalar_lea.vmem %s45, 1536 [#allocation0]
        %319 = vst.msk [vmem:[%s318] ss:$16 sm:$0xc] %vm315, %v314
        %s320 = scalar_lea.vmem %s45, 1536 [#allocation0]
        %321 = vst.msk [vmem:[%s320] ss:$16 sm:$0x30] %vm315, %v314
        %s322 = scalar_lea.vmem %s45, 1536 [#allocation0]
        %323 = vst.msk [vmem:[%s322] ss:$16 sm:$0xc0] %vm315, %v314
        %s324 = scalar_lea.vmem %s50, 200
        %v325 = vld [vmem:[%s324] sm:$0xff]
        %vm326 = vcmask 130048
        %s327 = scalar_lea.vmem %s45, 1544 [#allocation0]
        %328 = vst.msk [vmem:[%s327] ss:$16 sm:$0x3] %vm326, %v325
        %s329 = scalar_lea.vmem %s45, 1544 [#allocation0]
        %330 = vst.msk [vmem:[%s329] ss:$16 sm:$0xc] %vm326, %v325
        %s331 = scalar_lea.vmem %s45, 1544 [#allocation0]
        %332 = vst.msk [vmem:[%s331] ss:$16 sm:$0x30] %vm326, %v325
        %s333 = scalar_lea.vmem %s45, 1544 [#allocation0]
        %334 = vst.msk [vmem:[%s333] ss:$16 sm:$0xc0] %vm326, %v325
        %s335 = scalar_lea.vmem %s50, 208
        %v336 = vld [vmem:[%s335] sm:$0xff]
        %vm337 = vcmask 130048
        %s338 = scalar_lea.vmem %s45, 1664 [#allocation0]
        %339 = vst.msk [vmem:[%s338] ss:$16 sm:$0x3] %vm337, %v336
        %s340 = scalar_lea.vmem %s45, 1664 [#allocation0]
        %341 = vst.msk [vmem:[%s340] ss:$16 sm:$0xc] %vm337, %v336
        %s342 = scalar_lea.vmem %s45, 1664 [#allocation0]
        %343 = vst.msk [vmem:[%s342] ss:$16 sm:$0x30] %vm337, %v336
        %s344 = scalar_lea.vmem %s45, 1664 [#allocation0]
        %345 = vst.msk [vmem:[%s344] ss:$16 sm:$0xc0] %vm337, %v336
        %s346 = scalar_lea.vmem %s50, 216
        %v347 = vld [vmem:[%s346] sm:$0xff]
        %vm348 = vcmask 130048
        %s349 = scalar_lea.vmem %s45, 1672 [#allocation0]
        %350 = vst.msk [vmem:[%s349] ss:$16 sm:$0x3] %vm348, %v347
        %s351 = scalar_lea.vmem %s45, 1672 [#allocation0]
        %352 = vst.msk [vmem:[%s351] ss:$16 sm:$0xc] %vm348, %v347
        %s353 = scalar_lea.vmem %s45, 1672 [#allocation0]
        %354 = vst.msk [vmem:[%s353] ss:$16 sm:$0x30] %vm348, %v347
        %s355 = scalar_lea.vmem %s45, 1672 [#allocation0]
        %356 = vst.msk [vmem:[%s355] ss:$16 sm:$0xc0] %vm348, %v347
        %s357 = scalar_lea.vmem %s50, 224
        %v358 = vld [vmem:[%s357] sm:$0xff]
        %vm359 = vcmask 130048
        %s360 = scalar_lea.vmem %s45, 1792 [#allocation0]
        %361 = vst.msk [vmem:[%s360] ss:$16 sm:$0x3] %vm359, %v358
        %s362 = scalar_lea.vmem %s45, 1792 [#allocation0]
        %363 = vst.msk [vmem:[%s362] ss:$16 sm:$0xc] %vm359, %v358
        %s364 = scalar_lea.vmem %s45, 1792 [#allocation0]
        %365 = vst.msk [vmem:[%s364] ss:$16 sm:$0x30] %vm359, %v358
        %s366 = scalar_lea.vmem %s45, 1792 [#allocation0]
        %367 = vst.msk [vmem:[%s366] ss:$16 sm:$0xc0] %vm359, %v358
        %s368 = scalar_lea.vmem %s50, 232
        %v369 = vld [vmem:[%s368] sm:$0xff]
        %vm370 = vcmask 130048
        %s371 = scalar_lea.vmem %s45, 1800 [#allocation0]
        %372 = vst.msk [vmem:[%s371] ss:$16 sm:$0x3] %vm370, %v369
        %s373 = scalar_lea.vmem %s45, 1800 [#allocation0]
        %374 = vst.msk [vmem:[%s373] ss:$16 sm:$0xc] %vm370, %v369
        %s375 = scalar_lea.vmem %s45, 1800 [#allocation0]
        %376 = vst.msk [vmem:[%s375] ss:$16 sm:$0x30] %vm370, %v369
        %s377 = scalar_lea.vmem %s45, 1800 [#allocation0]
        %378 = vst.msk [vmem:[%s377] ss:$16 sm:$0xc0] %vm370, %v369
        %s379 = scalar_lea.vmem %s50, 240
        %v380 = vld [vmem:[%s379] sm:$0xff]
        %vm381 = vcmask 130048
        %s382 = scalar_lea.vmem %s45, 1920 [#allocation0]
        %383 = vst.msk [vmem:[%s382] ss:$16 sm:$0x3] %vm381, %v380
        %s384 = scalar_lea.vmem %s45, 1920 [#allocation0]
        %385 = vst.msk [vmem:[%s384] ss:$16 sm:$0xc] %vm381, %v380
        %s386 = scalar_lea.vmem %s45, 1920 [#allocation0]
        %387 = vst.msk [vmem:[%s386] ss:$16 sm:$0x30] %vm381, %v380
        %s388 = scalar_lea.vmem %s45, 1920 [#allocation0]
        %389 = vst.msk [vmem:[%s388] ss:$16 sm:$0xc0] %vm381, %v380
        %s390 = scalar_lea.vmem %s50, 248
        %v391 = vld [vmem:[%s390] sm:$0xff]
        %vm392 = vcmask 130048
        %s393 = scalar_lea.vmem %s45, 1928 [#allocation0]
        %394 = vst.msk [vmem:[%s393] ss:$16 sm:$0x3] %vm392, %v391
        %s395 = scalar_lea.vmem %s45, 1928 [#allocation0]
        %396 = vst.msk [vmem:[%s395] ss:$16 sm:$0xc] %vm392, %v391
        %s397 = scalar_lea.vmem %s45, 1928 [#allocation0]
        %398 = vst.msk [vmem:[%s397] ss:$16 sm:$0x30] %vm392, %v391
        %s399 = scalar_lea.vmem %s45, 1928 [#allocation0]
        %400 = vst.msk [vmem:[%s399] ss:$16 sm:$0xc0] %vm392, %v391
        %s401 = scalar_lea.vmem %s50, 256
        %v402 = vld [vmem:[%s401] sm:$0xff]
        %vm403 = vcmask 130048
        %s404 = scalar_lea.vmem %s45, 2048 [#allocation0]
        %405 = vst.msk [vmem:[%s404] ss:$16 sm:$0x3] %vm403, %v402
        %s406 = scalar_lea.vmem %s45, 2048 [#allocation0]
        %407 = vst.msk [vmem:[%s406] ss:$16 sm:$0xc] %vm403, %v402
        %s408 = scalar_lea.vmem %s45, 2048 [#allocation0]
        %409 = vst.msk [vmem:[%s408] ss:$16 sm:$0x30] %vm403, %v402
        %s410 = scalar_lea.vmem %s45, 2048 [#allocation0]
        %411 = vst.msk [vmem:[%s410] ss:$16 sm:$0xc0] %vm403, %v402
        %s412 = scalar_lea.vmem %s50, 264
        %v413 = vld [vmem:[%s412] sm:$0xff]
        %vm414 = vcmask 130048
        %s415 = scalar_lea.vmem %s45, 2056 [#allocation0]
        %416 = vst.msk [vmem:[%s415] ss:$16 sm:$0x3] %vm414, %v413
        %s417 = scalar_lea.vmem %s45, 2056 [#allocation0]
        %418 = vst.msk [vmem:[%s417] ss:$16 sm:$0xc] %vm414, %v413
        %s419 = scalar_lea.vmem %s45, 2056 [#allocation0]
        %420 = vst.msk [vmem:[%s419] ss:$16 sm:$0x30] %vm414, %v413
        %s421 = scalar_lea.vmem %s45, 2056 [#allocation0]
        %422 = vst.msk [vmem:[%s421] ss:$16 sm:$0xc0] %vm414, %v413
        %s423 = scalar_lea.vmem %s50, 272
        %v424 = vld [vmem:[%s423] sm:$0xff]
        %vm425 = vcmask 130048
        %s426 = scalar_lea.vmem %s45, 2176 [#allocation0]
        %427 = vst.msk [vmem:[%s426] ss:$16 sm:$0x3] %vm425, %v424
        %s428 = scalar_lea.vmem %s45, 2176 [#allocation0]
        %429 = vst.msk [vmem:[%s428] ss:$16 sm:$0xc] %vm425, %v424
        %s430 = scalar_lea.vmem %s45, 2176 [#allocation0]
        %431 = vst.msk [vmem:[%s430] ss:$16 sm:$0x30] %vm425, %v424
        %s432 = scalar_lea.vmem %s45, 2176 [#allocation0]
        %433 = vst.msk [vmem:[%s432] ss:$16 sm:$0xc0] %vm425, %v424
        %s434 = scalar_lea.vmem %s50, 280
        %v435 = vld [vmem:[%s434] sm:$0xff]
        %vm436 = vcmask 130048
        %s437 = scalar_lea.vmem %s45, 2184 [#allocation0]
        %438 = vst.msk [vmem:[%s437] ss:$16 sm:$0x3] %vm436, %v435
        %s439 = scalar_lea.vmem %s45, 2184 [#allocation0]
        %440 = vst.msk [vmem:[%s439] ss:$16 sm:$0xc] %vm436, %v435
        %s441 = scalar_lea.vmem %s45, 2184 [#allocation0]
        %442 = vst.msk [vmem:[%s441] ss:$16 sm:$0x30] %vm436, %v435
        %s443 = scalar_lea.vmem %s45, 2184 [#allocation0]
        %444 = vst.msk [vmem:[%s443] ss:$16 sm:$0xc0] %vm436, %v435
        %s445 = scalar_lea.vmem %s50, 288
        %v446 = vld [vmem:[%s445] sm:$0xff]
        %vm447 = vcmask 130048
        %s448 = scalar_lea.vmem %s45, 2304 [#allocation0]
        %449 = vst.msk [vmem:[%s448] ss:$16 sm:$0x3] %vm447, %v446
        %s450 = scalar_lea.vmem %s45, 2304 [#allocation0]
        %451 = vst.msk [vmem:[%s450] ss:$16 sm:$0xc] %vm447, %v446
        %s452 = scalar_lea.vmem %s45, 2304 [#allocation0]
        %453 = vst.msk [vmem:[%s452] ss:$16 sm:$0x30] %vm447, %v446
        %s454 = scalar_lea.vmem %s45, 2304 [#allocation0]
        %455 = vst.msk [vmem:[%s454] ss:$16 sm:$0xc0] %vm447, %v446
        %s456 = scalar_lea.vmem %s50, 296
        %v457 = vld [vmem:[%s456] sm:$0xff]
        %vm458 = vcmask 130048
        %s459 = scalar_lea.vmem %s45, 2312 [#allocation0]
        %460 = vst.msk [vmem:[%s459] ss:$16 sm:$0x3] %vm458, %v457
        %s461 = scalar_lea.vmem %s45, 2312 [#allocation0]
        %462 = vst.msk [vmem:[%s461] ss:$16 sm:$0xc] %vm458, %v457
        %s463 = scalar_lea.vmem %s45, 2312 [#allocation0]
        %464 = vst.msk [vmem:[%s463] ss:$16 sm:$0x30] %vm458, %v457
        %s465 = scalar_lea.vmem %s45, 2312 [#allocation0]
        %466 = vst.msk [vmem:[%s465] ss:$16 sm:$0xc0] %vm458, %v457
        %s467 = scalar_lea.vmem %s50, 304
        %v468 = vld [vmem:[%s467] sm:$0xff]
        %vm469 = vcmask 130048
        %s470 = scalar_lea.vmem %s45, 2432 [#allocation0]
        %471 = vst.msk [vmem:[%s470] ss:$16 sm:$0x3] %vm469, %v468
        %s472 = scalar_lea.vmem %s45, 2432 [#allocation0]
        %473 = vst.msk [vmem:[%s472] ss:$16 sm:$0xc] %vm469, %v468
        %s474 = scalar_lea.vmem %s45, 2432 [#allocation0]
        %475 = vst.msk [vmem:[%s474] ss:$16 sm:$0x30] %vm469, %v468
        %s476 = scalar_lea.vmem %s45, 2432 [#allocation0]
        %477 = vst.msk [vmem:[%s476] ss:$16 sm:$0xc0] %vm469, %v468
        %s478 = scalar_lea.vmem %s50, 312
        %v479 = vld [vmem:[%s478] sm:$0xff]
        %vm480 = vcmask 130048
        %s481 = scalar_lea.vmem %s45, 2440 [#allocation0]
        %482 = vst.msk [vmem:[%s481] ss:$16 sm:$0x3] %vm480, %v479
        %s483 = scalar_lea.vmem %s45, 2440 [#allocation0]
        %484 = vst.msk [vmem:[%s483] ss:$16 sm:$0xc] %vm480, %v479
        %s485 = scalar_lea.vmem %s45, 2440 [#allocation0]
        %486 = vst.msk [vmem:[%s485] ss:$16 sm:$0x30] %vm480, %v479
        %s487 = scalar_lea.vmem %s45, 2440 [#allocation0]
        %488 = vst.msk [vmem:[%s487] ss:$16 sm:$0xc0] %vm480, %v479
        %s489 = scalar_lea.vmem %s50, 320
        %v490 = vld [vmem:[%s489] sm:$0xff]
        %vm491 = vcmask 130048
        %s492 = scalar_lea.vmem %s45, 2560 [#allocation0]
        %493 = vst.msk [vmem:[%s492] ss:$16 sm:$0x3] %vm491, %v490
        %s494 = scalar_lea.vmem %s45, 2560 [#allocation0]
        %495 = vst.msk [vmem:[%s494] ss:$16 sm:$0xc] %vm491, %v490
        %s496 = scalar_lea.vmem %s45, 2560 [#allocation0]
        %497 = vst.msk [vmem:[%s496] ss:$16 sm:$0x30] %vm491, %v490
        %s498 = scalar_lea.vmem %s45, 2560 [#allocation0]
        %499 = vst.msk [vmem:[%s498] ss:$16 sm:$0xc0] %vm491, %v490
        %s500 = scalar_lea.vmem %s50, 328
        %v501 = vld [vmem:[%s500] sm:$0xff]
        %vm502 = vcmask 130048
        %s503 = scalar_lea.vmem %s45, 2568 [#allocation0]
        %504 = vst.msk [vmem:[%s503] ss:$16 sm:$0x3] %vm502, %v501
        %s505 = scalar_lea.vmem %s45, 2568 [#allocation0]
        %506 = vst.msk [vmem:[%s505] ss:$16 sm:$0xc] %vm502, %v501
        %s507 = scalar_lea.vmem %s45, 2568 [#allocation0]
        %508 = vst.msk [vmem:[%s507] ss:$16 sm:$0x30] %vm502, %v501
        %s509 = scalar_lea.vmem %s45, 2568 [#allocation0]
        %510 = vst.msk [vmem:[%s509] ss:$16 sm:$0xc0] %vm502, %v501
        %s511 = scalar_lea.vmem %s50, 336
        %v512 = vld [vmem:[%s511] sm:$0xff]
        %vm513 = vcmask 130048
        %s514 = scalar_lea.vmem %s45, 2688 [#allocation0]
        %515 = vst.msk [vmem:[%s514] ss:$16 sm:$0x3] %vm513, %v512
        %s516 = scalar_lea.vmem %s45, 2688 [#allocation0]
        %517 = vst.msk [vmem:[%s516] ss:$16 sm:$0xc] %vm513, %v512
        %s518 = scalar_lea.vmem %s45, 2688 [#allocation0]
        %519 = vst.msk [vmem:[%s518] ss:$16 sm:$0x30] %vm513, %v512
        %s520 = scalar_lea.vmem %s45, 2688 [#allocation0]
        %521 = vst.msk [vmem:[%s520] ss:$16 sm:$0xc0] %vm513, %v512
        %s522 = scalar_lea.vmem %s50, 344
        %v523 = vld [vmem:[%s522] sm:$0xff]
        %vm524 = vcmask 130048
        %s525 = scalar_lea.vmem %s45, 2696 [#allocation0]
        %526 = vst.msk [vmem:[%s525] ss:$16 sm:$0x3] %vm524, %v523
        %s527 = scalar_lea.vmem %s45, 2696 [#allocation0]
        %528 = vst.msk [vmem:[%s527] ss:$16 sm:$0xc] %vm524, %v523
        %s529 = scalar_lea.vmem %s45, 2696 [#allocation0]
        %530 = vst.msk [vmem:[%s529] ss:$16 sm:$0x30] %vm524, %v523
        %s531 = scalar_lea.vmem %s45, 2696 [#allocation0]
        %532 = vst.msk [vmem:[%s531] ss:$16 sm:$0xc0] %vm524, %v523
        %s533 = scalar_lea.vmem %s50, 352
        %v534 = vld [vmem:[%s533] sm:$0xff]
        %vm535 = vcmask 130048
        %s536 = scalar_lea.vmem %s45, 2816 [#allocation0]
        %537 = vst.msk [vmem:[%s536] ss:$16 sm:$0x3] %vm535, %v534
        %s538 = scalar_lea.vmem %s45, 2816 [#allocation0]
        %539 = vst.msk [vmem:[%s538] ss:$16 sm:$0xc] %vm535, %v534
        %s540 = scalar_lea.vmem %s45, 2816 [#allocation0]
        %541 = vst.msk [vmem:[%s540] ss:$16 sm:$0x30] %vm535, %v534
        %s542 = scalar_lea.vmem %s45, 2816 [#allocation0]
        %543 = vst.msk [vmem:[%s542] ss:$16 sm:$0xc0] %vm535, %v534
        %s544 = scalar_lea.vmem %s50, 360
        %v545 = vld [vmem:[%s544] sm:$0xff]
        %vm546 = vcmask 130048
        %s547 = scalar_lea.vmem %s45, 2824 [#allocation0]
        %548 = vst.msk [vmem:[%s547] ss:$16 sm:$0x3] %vm546, %v545
        %s549 = scalar_lea.vmem %s45, 2824 [#allocation0]
        %550 = vst.msk [vmem:[%s549] ss:$16 sm:$0xc] %vm546, %v545
        %s551 = scalar_lea.vmem %s45, 2824 [#allocation0]
        %552 = vst.msk [vmem:[%s551] ss:$16 sm:$0x30] %vm546, %v545
        %s553 = scalar_lea.vmem %s45, 2824 [#allocation0]
        %554 = vst.msk [vmem:[%s553] ss:$16 sm:$0xc0] %vm546, %v545
        %s555 = scalar_lea.vmem %s50, 368
        %v556 = vld [vmem:[%s555] sm:$0xff]
        %vm557 = vcmask 130048
        %s558 = scalar_lea.vmem %s45, 2944 [#allocation0]
        %559 = vst.msk [vmem:[%s558] ss:$16 sm:$0x3] %vm557, %v556
        %s560 = scalar_lea.vmem %s45, 2944 [#allocation0]
        %561 = vst.msk [vmem:[%s560] ss:$16 sm:$0xc] %vm557, %v556
        %s562 = scalar_lea.vmem %s45, 2944 [#allocation0]
        %563 = vst.msk [vmem:[%s562] ss:$16 sm:$0x30] %vm557, %v556
        %s564 = scalar_lea.vmem %s45, 2944 [#allocation0]
        %565 = vst.msk [vmem:[%s564] ss:$16 sm:$0xc0] %vm557, %v556
        %s566 = scalar_lea.vmem %s50, 376
        %v567 = vld [vmem:[%s566] sm:$0xff]
        %vm568 = vcmask 130048
        %s569 = scalar_lea.vmem %s45, 2952 [#allocation0]
        %570 = vst.msk [vmem:[%s569] ss:$16 sm:$0x3] %vm568, %v567
        %s571 = scalar_lea.vmem %s45, 2952 [#allocation0]
        %572 = vst.msk [vmem:[%s571] ss:$16 sm:$0xc] %vm568, %v567
        %s573 = scalar_lea.vmem %s45, 2952 [#allocation0]
        %574 = vst.msk [vmem:[%s573] ss:$16 sm:$0x30] %vm568, %v567
        %s575 = scalar_lea.vmem %s45, 2952 [#allocation0]
        %576 = vst.msk [vmem:[%s575] ss:$16 sm:$0xc0] %vm568, %v567
        %s577 = scalar_lea.vmem %s50, 384
        %v578 = vld [vmem:[%s577] sm:$0xff]
        %vm579 = vcmask 130048
        %s580 = scalar_lea.vmem %s45, 3072 [#allocation0]
        %581 = vst.msk [vmem:[%s580] ss:$16 sm:$0x3] %vm579, %v578
        %s582 = scalar_lea.vmem %s45, 3072 [#allocation0]
        %583 = vst.msk [vmem:[%s582] ss:$16 sm:$0xc] %vm579, %v578
        %s584 = scalar_lea.vmem %s45, 3072 [#allocation0]
        %585 = vst.msk [vmem:[%s584] ss:$16 sm:$0x30] %vm579, %v578
        %s586 = scalar_lea.vmem %s45, 3072 [#allocation0]
        %587 = vst.msk [vmem:[%s586] ss:$16 sm:$0xc0] %vm579, %v578
        %s588 = scalar_lea.vmem %s50, 392
        %v589 = vld [vmem:[%s588] sm:$0xff]
        %vm590 = vcmask 130048
        %s591 = scalar_lea.vmem %s45, 3080 [#allocation0]
        %592 = vst.msk [vmem:[%s591] ss:$16 sm:$0x3] %vm590, %v589
        %s593 = scalar_lea.vmem %s45, 3080 [#allocation0]
        %594 = vst.msk [vmem:[%s593] ss:$16 sm:$0xc] %vm590, %v589
        %s595 = scalar_lea.vmem %s45, 3080 [#allocation0]
        %596 = vst.msk [vmem:[%s595] ss:$16 sm:$0x30] %vm590, %v589
        %s597 = scalar_lea.vmem %s45, 3080 [#allocation0]
        %598 = vst.msk [vmem:[%s597] ss:$16 sm:$0xc0] %vm590, %v589
        %s599 = scalar_lea.vmem %s50, 400
        %v600 = vld [vmem:[%s599] sm:$0xff]
        %vm601 = vcmask 130048
        %s602 = scalar_lea.vmem %s45, 3200 [#allocation0]
        %603 = vst.msk [vmem:[%s602] ss:$16 sm:$0x3] %vm601, %v600
        %s604 = scalar_lea.vmem %s45, 3200 [#allocation0]
        %605 = vst.msk [vmem:[%s604] ss:$16 sm:$0xc] %vm601, %v600
        %s606 = scalar_lea.vmem %s45, 3200 [#allocation0]
        %607 = vst.msk [vmem:[%s606] ss:$16 sm:$0x30] %vm601, %v600
        %s608 = scalar_lea.vmem %s45, 3200 [#allocation0]
        %609 = vst.msk [vmem:[%s608] ss:$16 sm:$0xc0] %vm601, %v600
        %s610 = scalar_lea.vmem %s50, 408
        %v611 = vld [vmem:[%s610] sm:$0xff]
        %vm612 = vcmask 130048
        %s613 = scalar_lea.vmem %s45, 3208 [#allocation0]
        %614 = vst.msk [vmem:[%s613] ss:$16 sm:$0x3] %vm612, %v611
        %s615 = scalar_lea.vmem %s45, 3208 [#allocation0]
        %616 = vst.msk [vmem:[%s615] ss:$16 sm:$0xc] %vm612, %v611
        %s617 = scalar_lea.vmem %s45, 3208 [#allocation0]
        %618 = vst.msk [vmem:[%s617] ss:$16 sm:$0x30] %vm612, %v611
        %s619 = scalar_lea.vmem %s45, 3208 [#allocation0]
        %620 = vst.msk [vmem:[%s619] ss:$16 sm:$0xc0] %vm612, %v611
        %s621 = scalar_lea.vmem %s50, 416
        %v622 = vld [vmem:[%s621] sm:$0xff]
        %vm623 = vcmask 130048
        %s624 = scalar_lea.vmem %s45, 3328 [#allocation0]
        %625 = vst.msk [vmem:[%s624] ss:$16 sm:$0x3] %vm623, %v622
        %s626 = scalar_lea.vmem %s45, 3328 [#allocation0]
        %627 = vst.msk [vmem:[%s626] ss:$16 sm:$0xc] %vm623, %v622
        %s628 = scalar_lea.vmem %s45, 3328 [#allocation0]
        %629 = vst.msk [vmem:[%s628] ss:$16 sm:$0x30] %vm623, %v622
        %s630 = scalar_lea.vmem %s45, 3328 [#allocation0]
        %631 = vst.msk [vmem:[%s630] ss:$16 sm:$0xc0] %vm623, %v622
        %s632 = scalar_lea.vmem %s50, 424
        %v633 = vld [vmem:[%s632] sm:$0xff]
        %vm634 = vcmask 130048
        %s635 = scalar_lea.vmem %s45, 3336 [#allocation0]
        %636 = vst.msk [vmem:[%s635] ss:$16 sm:$0x3] %vm634, %v633
        %s637 = scalar_lea.vmem %s45, 3336 [#allocation0]
        %638 = vst.msk [vmem:[%s637] ss:$16 sm:$0xc] %vm634, %v633
        %s639 = scalar_lea.vmem %s45, 3336 [#allocation0]
        %640 = vst.msk [vmem:[%s639] ss:$16 sm:$0x30] %vm634, %v633
        %s641 = scalar_lea.vmem %s45, 3336 [#allocation0]
        %642 = vst.msk [vmem:[%s641] ss:$16 sm:$0xc0] %vm634, %v633
        %s643 = scalar_lea.vmem %s50, 432
        %v644 = vld [vmem:[%s643] sm:$0xff]
        %vm645 = vcmask 130048
        %s646 = scalar_lea.vmem %s45, 3456 [#allocation0]
        %647 = vst.msk [vmem:[%s646] ss:$16 sm:$0x3] %vm645, %v644
        %s648 = scalar_lea.vmem %s45, 3456 [#allocation0]
        %649 = vst.msk [vmem:[%s648] ss:$16 sm:$0xc] %vm645, %v644
        %s650 = scalar_lea.vmem %s45, 3456 [#allocation0]
        %651 = vst.msk [vmem:[%s650] ss:$16 sm:$0x30] %vm645, %v644
        %s652 = scalar_lea.vmem %s45, 3456 [#allocation0]
        %653 = vst.msk [vmem:[%s652] ss:$16 sm:$0xc0] %vm645, %v644
        %s654 = scalar_lea.vmem %s50, 440
        %v655 = vld [vmem:[%s654] sm:$0xff]
        %vm656 = vcmask 130048
        %s657 = scalar_lea.vmem %s45, 3464 [#allocation0]
        %658 = vst.msk [vmem:[%s657] ss:$16 sm:$0x3] %vm656, %v655
        %s659 = scalar_lea.vmem %s45, 3464 [#allocation0]
        %660 = vst.msk [vmem:[%s659] ss:$16 sm:$0xc] %vm656, %v655
        %s661 = scalar_lea.vmem %s45, 3464 [#allocation0]
        %662 = vst.msk [vmem:[%s661] ss:$16 sm:$0x30] %vm656, %v655
        %s663 = scalar_lea.vmem %s45, 3464 [#allocation0]
        %664 = vst.msk [vmem:[%s663] ss:$16 sm:$0xc0] %vm656, %v655
        %s665 = scalar_lea.vmem %s50, 448
        %v666 = vld [vmem:[%s665] sm:$0xff]
        %vm667 = vcmask 130048
        %s668 = scalar_lea.vmem %s45, 3584 [#allocation0]
        %669 = vst.msk [vmem:[%s668] ss:$16 sm:$0x3] %vm667, %v666
        %s670 = scalar_lea.vmem %s45, 3584 [#allocation0]
        %671 = vst.msk [vmem:[%s670] ss:$16 sm:$0xc] %vm667, %v666
        %s672 = scalar_lea.vmem %s45, 3584 [#allocation0]
        %673 = vst.msk [vmem:[%s672] ss:$16 sm:$0x30] %vm667, %v666
        %s674 = scalar_lea.vmem %s45, 3584 [#allocation0]
        %675 = vst.msk [vmem:[%s674] ss:$16 sm:$0xc0] %vm667, %v666
        %s676 = scalar_lea.vmem %s50, 456
        %v677 = vld [vmem:[%s676] sm:$0xff]
        %vm678 = vcmask 130048
        %s679 = scalar_lea.vmem %s45, 3592 [#allocation0]
        %680 = vst.msk [vmem:[%s679] ss:$16 sm:$0x3] %vm678, %v677
        %s681 = scalar_lea.vmem %s45, 3592 [#allocation0]
        %682 = vst.msk [vmem:[%s681] ss:$16 sm:$0xc] %vm678, %v677
        %s683 = scalar_lea.vmem %s45, 3592 [#allocation0]
        %684 = vst.msk [vmem:[%s683] ss:$16 sm:$0x30] %vm678, %v677
        %s685 = scalar_lea.vmem %s45, 3592 [#allocation0]
        %686 = vst.msk [vmem:[%s685] ss:$16 sm:$0xc0] %vm678, %v677
        %s687 = scalar_lea.vmem %s50, 464
        %v688 = vld [vmem:[%s687] sm:$0xff]
        %vm689 = vcmask 130048
        %s690 = scalar_lea.vmem %s45, 3712 [#allocation0]
        %691 = vst.msk [vmem:[%s690] ss:$16 sm:$0x3] %vm689, %v688
        %s692 = scalar_lea.vmem %s45, 3712 [#allocation0]
        %693 = vst.msk [vmem:[%s692] ss:$16 sm:$0xc] %vm689, %v688
        %s694 = scalar_lea.vmem %s45, 3712 [#allocation0]
        %695 = vst.msk [vmem:[%s694] ss:$16 sm:$0x30] %vm689, %v688
        %s696 = scalar_lea.vmem %s45, 3712 [#allocation0]
        %697 = vst.msk [vmem:[%s696] ss:$16 sm:$0xc0] %vm689, %v688
        %s698 = scalar_lea.vmem %s50, 472
        %v699 = vld [vmem:[%s698] sm:$0xff]
        %vm700 = vcmask 130048
        %s701 = scalar_lea.vmem %s45, 3720 [#allocation0]
        %702 = vst.msk [vmem:[%s701] ss:$16 sm:$0x3] %vm700, %v699
        %s703 = scalar_lea.vmem %s45, 3720 [#allocation0]
        %704 = vst.msk [vmem:[%s703] ss:$16 sm:$0xc] %vm700, %v699
        %s705 = scalar_lea.vmem %s45, 3720 [#allocation0]
        %706 = vst.msk [vmem:[%s705] ss:$16 sm:$0x30] %vm700, %v699
        %s707 = scalar_lea.vmem %s45, 3720 [#allocation0]
        %708 = vst.msk [vmem:[%s707] ss:$16 sm:$0xc0] %vm700, %v699
        %s709 = scalar_lea.vmem %s50, 480
        %v710 = vld [vmem:[%s709] sm:$0xff]
        %vm711 = vcmask 130048
        %s712 = scalar_lea.vmem %s45, 3840 [#allocation0]
        %713 = vst.msk [vmem:[%s712] ss:$16 sm:$0x3] %vm711, %v710
        %s714 = scalar_lea.vmem %s45, 3840 [#allocation0]
        %715 = vst.msk [vmem:[%s714] ss:$16 sm:$0xc] %vm711, %v710
        %s716 = scalar_lea.vmem %s45, 3840 [#allocation0]
        %717 = vst.msk [vmem:[%s716] ss:$16 sm:$0x30] %vm711, %v710
        %s718 = scalar_lea.vmem %s45, 3840 [#allocation0]
        %719 = vst.msk [vmem:[%s718] ss:$16 sm:$0xc0] %vm711, %v710
        %s720 = scalar_lea.vmem %s50, 488
        %v721 = vld [vmem:[%s720] sm:$0xff]
        %vm722 = vcmask 130048
        %s723 = scalar_lea.vmem %s45, 3848 [#allocation0]
        %724 = vst.msk [vmem:[%s723] ss:$16 sm:$0x3] %vm722, %v721
        %s725 = scalar_lea.vmem %s45, 3848 [#allocation0]
        %726 = vst.msk [vmem:[%s725] ss:$16 sm:$0xc] %vm722, %v721
        %s727 = scalar_lea.vmem %s45, 3848 [#allocation0]
        %728 = vst.msk [vmem:[%s727] ss:$16 sm:$0x30] %vm722, %v721
        %s729 = scalar_lea.vmem %s45, 3848 [#allocation0]
        %730 = vst.msk [vmem:[%s729] ss:$16 sm:$0xc0] %vm722, %v721
        %s731 = scalar_lea.vmem %s50, 496
        %v732 = vld [vmem:[%s731] sm:$0xff]
        %vm733 = vcmask 130048
        %s734 = scalar_lea.vmem %s45, 3968 [#allocation0]
        %735 = vst.msk [vmem:[%s734] ss:$16 sm:$0x3] %vm733, %v732
        %s736 = scalar_lea.vmem %s45, 3968 [#allocation0]
        %737 = vst.msk [vmem:[%s736] ss:$16 sm:$0xc] %vm733, %v732
        %s738 = scalar_lea.vmem %s45, 3968 [#allocation0]
        %739 = vst.msk [vmem:[%s738] ss:$16 sm:$0x30] %vm733, %v732
        %s740 = scalar_lea.vmem %s45, 3968 [#allocation0]
        %741 = vst.msk [vmem:[%s740] ss:$16 sm:$0xc0] %vm733, %v732
        %s742 = scalar_lea.vmem %s50, 504
        %v743 = vld [vmem:[%s742] sm:$0xff]
        %vm744 = vcmask 130048
        %s745 = scalar_lea.vmem %s45, 3976 [#allocation0]
        %746 = vst.msk [vmem:[%s745] ss:$16 sm:$0x3] %vm744, %v743
        %s747 = scalar_lea.vmem %s45, 3976 [#allocation0]
        %748 = vst.msk [vmem:[%s747] ss:$16 sm:$0xc] %vm744, %v743
        %s749 = scalar_lea.vmem %s45, 3976 [#allocation0]
        %750 = vst.msk [vmem:[%s749] ss:$16 sm:$0x30] %vm744, %v743
        %s751 = scalar_lea.vmem %s45, 3976 [#allocation0]
        %752 = vst.msk [vmem:[%s751] ss:$16 sm:$0xc0] %vm744, %v743
        %v753 = vld.sshfl [vmem:[%s50] sm:$0xff pattern:$0xb3a29180]
        %754 = vrot.lane.b32.xlu0 %v753, 112
        %v755 = vpop.permute.xlu0 %754
        %vm756 = vcmask 130048
        %s757 = scalar_lea.vmem %s45, 1 [#allocation0]
        %758 = vst.msk [vmem:[%s757] ss:$8 sm:$0xf] %vm756, %v755
        %s759 = scalar_lea.vmem %s45, 1 [#allocation0]
        %760 = vst.msk [vmem:[%s759] ss:$8 sm:$0xf0] %vm756, %v755
        %s761 = scalar_lea.vmem %s50, 4
        %v762 = vld.sshfl [vmem:[%s761] sm:$0xff pattern:$0xb3a29180]
        %763 = vrot.lane.b32.xlu0 %v762, 112
        %v764 = vpop.permute.xlu0 %763
        %vm765 = vcmask 130048
        %s766 = scalar_lea.vmem %s45, 65 [#allocation0]
        %767 = vst.msk [vmem:[%s766] ss:$8 sm:$0xf] %vm765, %v764
        %s768 = scalar_lea.vmem %s45, 65 [#allocation0]
        %769 = vst.msk [vmem:[%s768] ss:$8 sm:$0xf0] %vm765, %v764
        %s770 = scalar_lea.vmem %s50, 16
        %v771 = vld.sshfl [vmem:[%s770] sm:$0xff pattern:$0xb3a29180]
        %772 = vrot.lane.b32.xlu0 %v771, 112
        %v773 = vpop.permute.xlu0 %772
        %vm774 = vcmask 130048
        %s775 = scalar_lea.vmem %s45, 129 [#allocation0]
        %776 = vst.msk [vmem:[%s775] ss:$8 sm:$0xf] %vm774, %v773
        %s777 = scalar_lea.vmem %s45, 129 [#allocation0]
        %778 = vst.msk [vmem:[%s777] ss:$8 sm:$0xf0] %vm774, %v773
        %s779 = scalar_lea.vmem %s50, 20
        %v780 = vld.sshfl [vmem:[%s779] sm:$0xff pattern:$0xb3a29180]
        %781 = vrot.lane.b32.xlu0 %v780, 112
        %v782 = vpop.permute.xlu0 %781
        %vm783 = vcmask 130048
        %s784 = scalar_lea.vmem %s45, 193 [#allocation0]
        %785 = vst.msk [vmem:[%s784] ss:$8 sm:$0xf] %vm783, %v782
        %s786 = scalar_lea.vmem %s45, 193 [#allocation0]
        %787 = vst.msk [vmem:[%s786] ss:$8 sm:$0xf0] %vm783, %v782
        %s788 = scalar_lea.vmem %s50, 32
        %v789 = vld.sshfl [vmem:[%s788] sm:$0xff pattern:$0xb3a29180]
        %790 = vrot.lane.b32.xlu0 %v789, 112
        %v791 = vpop.permute.xlu0 %790
        %vm792 = vcmask 130048
        %s793 = scalar_lea.vmem %s45, 257 [#allocation0]
        %794 = vst.msk [vmem:[%s793] ss:$8 sm:$0xf] %vm792, %v791
        %s795 = scalar_lea.vmem %s45, 257 [#allocation0]
        %796 = vst.msk [vmem:[%s795] ss:$8 sm:$0xf0] %vm792, %v791
        %s797 = scalar_lea.vmem %s50, 36
        %v798 = vld.sshfl [vmem:[%s797] sm:$0xff pattern:$0xb3a29180]
        %799 = vrot.lane.b32.xlu0 %v798, 112
        %v800 = vpop.permute.xlu0 %799
        %vm801 = vcmask 130048
        %s802 = scalar_lea.vmem %s45, 321 [#allocation0]
        %803 = vst.msk [vmem:[%s802] ss:$8 sm:$0xf] %vm801, %v800
        %s804 = scalar_lea.vmem %s45, 321 [#allocation0]
        %805 = vst.msk [vmem:[%s804] ss:$8 sm:$0xf0] %vm801, %v800
        %s806 = scalar_lea.vmem %s50, 48
        %v807 = vld.sshfl [vmem:[%s806] sm:$0xff pattern:$0xb3a29180]
        %808 = vrot.lane.b32.xlu0 %v807, 112
        %v809 = vpop.permute.xlu0 %808
        %vm810 = vcmask 130048
        %s811 = scalar_lea.vmem %s45, 385 [#allocation0]
        %812 = vst.msk [vmem:[%s811] ss:$8 sm:$0xf] %vm810, %v809
        %s813 = scalar_lea.vmem %s45, 385 [#allocation0]
        %814 = vst.msk [vmem:[%s813] ss:$8 sm:$0xf0] %vm810, %v809
        %s815 = scalar_lea.vmem %s50, 52
        %v816 = vld.sshfl [vmem:[%s815] sm:$0xff pattern:$0xb3a29180]
        %817 = vrot.lane.b32.xlu0 %v816, 112
        %v818 = vpop.permute.xlu0 %817
        %vm819 = vcmask 130048
        %s820 = scalar_lea.vmem %s45, 449 [#allocation0]
        %821 = vst.msk [vmem:[%s820] ss:$8 sm:$0xf] %vm819, %v818
        %s822 = scalar_lea.vmem %s45, 449 [#allocation0]
        %823 = vst.msk [vmem:[%s822] ss:$8 sm:$0xf0] %vm819, %v818
        %s824 = scalar_lea.vmem %s50, 64
        %v825 = vld.sshfl [vmem:[%s824] sm:$0xff pattern:$0xb3a29180]
        %826 = vrot.lane.b32.xlu0 %v825, 112
        %v827 = vpop.permute.xlu0 %826
        %vm828 = vcmask 130048
        %s829 = scalar_lea.vmem %s45, 513 [#allocation0]
        %830 = vst.msk [vmem:[%s829] ss:$8 sm:$0xf] %vm828, %v827
        %s831 = scalar_lea.vmem %s45, 513 [#allocation0]
        %832 = vst.msk [vmem:[%s831] ss:$8 sm:$0xf0] %vm828, %v827
        %s833 = scalar_lea.vmem %s50, 68
        %v834 = vld.sshfl [vmem:[%s833] sm:$0xff pattern:$0xb3a29180]
        %835 = vrot.lane.b32.xlu0 %v834, 112
        %v836 = vpop.permute.xlu0 %835
        %vm837 = vcmask 130048
        %s838 = scalar_lea.vmem %s45, 577 [#allocation0]
        %839 = vst.msk [vmem:[%s838] ss:$8 sm:$0xf] %vm837, %v836
        %s840 = scalar_lea.vmem %s45, 577 [#allocation0]
        %841 = vst.msk [vmem:[%s840] ss:$8 sm:$0xf0] %vm837, %v836
        %s842 = scalar_lea.vmem %s50, 80
        %v843 = vld.sshfl [vmem:[%s842] sm:$0xff pattern:$0xb3a29180]
        %844 = vrot.lane.b32.xlu0 %v843, 112
        %v845 = vpop.permute.xlu0 %844
        %vm846 = vcmask 130048
        %s847 = scalar_lea.vmem %s45, 641 [#allocation0]
        %848 = vst.msk [vmem:[%s847] ss:$8 sm:$0xf] %vm846, %v845
        %s849 = scalar_lea.vmem %s45, 641 [#allocation0]
        %850 = vst.msk [vmem:[%s849] ss:$8 sm:$0xf0] %vm846, %v845
        %s851 = scalar_lea.vmem %s50, 84
        %v852 = vld.sshfl [vmem:[%s851] sm:$0xff pattern:$0xb3a29180]
        %853 = vrot.lane.b32.xlu0 %v852, 112
        %v854 = vpop.permute.xlu0 %853
        %vm855 = vcmask 130048
        %s856 = scalar_lea.vmem %s45, 705 [#allocation0]
        %857 = vst.msk [vmem:[%s856] ss:$8 sm:$0xf] %vm855, %v854
        %s858 = scalar_lea.vmem %s45, 705 [#allocation0]
        %859 = vst.msk [vmem:[%s858] ss:$8 sm:$0xf0] %vm855, %v854
        %s860 = scalar_lea.vmem %s50, 96
        %v861 = vld.sshfl [vmem:[%s860] sm:$0xff pattern:$0xb3a29180]
        %862 = vrot.lane.b32.xlu0 %v861, 112
        %v863 = vpop.permute.xlu0 %862
        %vm864 = vcmask 130048
        %s865 = scalar_lea.vmem %s45, 769 [#allocation0]
        %866 = vst.msk [vmem:[%s865] ss:$8 sm:$0xf] %vm864, %v863
        %s867 = scalar_lea.vmem %s45, 769 [#allocation0]
        %868 = vst.msk [vmem:[%s867] ss:$8 sm:$0xf0] %vm864, %v863
        %s869 = scalar_lea.vmem %s50, 100
        %v870 = vld.sshfl [vmem:[%s869] sm:$0xff pattern:$0xb3a29180]
        %871 = vrot.lane.b32.xlu0 %v870, 112
        %v872 = vpop.permute.xlu0 %871
        %vm873 = vcmask 130048
        %s874 = scalar_lea.vmem %s45, 833 [#allocation0]
        %875 = vst.msk [vmem:[%s874] ss:$8 sm:$0xf] %vm873, %v872
        %s876 = scalar_lea.vmem %s45, 833 [#allocation0]
        %877 = vst.msk [vmem:[%s876] ss:$8 sm:$0xf0] %vm873, %v872
        %s878 = scalar_lea.vmem %s50, 112
        %v879 = vld.sshfl [vmem:[%s878] sm:$0xff pattern:$0xb3a29180]
        %880 = vrot.lane.b32.xlu0 %v879, 112
        %v881 = vpop.permute.xlu0 %880
        %vm882 = vcmask 130048
        %s883 = scalar_lea.vmem %s45, 897 [#allocation0]
        %884 = vst.msk [vmem:[%s883] ss:$8 sm:$0xf] %vm882, %v881
        %s885 = scalar_lea.vmem %s45, 897 [#allocation0]
        %886 = vst.msk [vmem:[%s885] ss:$8 sm:$0xf0] %vm882, %v881
        %s887 = scalar_lea.vmem %s50, 116
        %v888 = vld.sshfl [vmem:[%s887] sm:$0xff pattern:$0xb3a29180]
        %889 = vrot.lane.b32.xlu0 %v888, 112
        %v890 = vpop.permute.xlu0 %889
        %vm891 = vcmask 130048
        %s892 = scalar_lea.vmem %s45, 961 [#allocation0]
        %893 = vst.msk [vmem:[%s892] ss:$8 sm:$0xf] %vm891, %v890
        %s894 = scalar_lea.vmem %s45, 961 [#allocation0]
        %895 = vst.msk [vmem:[%s894] ss:$8 sm:$0xf0] %vm891, %v890
        %s896 = scalar_lea.vmem %s50, 128
        %v897 = vld.sshfl [vmem:[%s896] sm:$0xff pattern:$0xb3a29180]
        %898 = vrot.lane.b32.xlu0 %v897, 112
        %v899 = vpop.permute.xlu0 %898
        %vm900 = vcmask 130048
        %s901 = scalar_lea.vmem %s45, 1025 [#allocation0]
        %902 = vst.msk [vmem:[%s901] ss:$8 sm:$0xf] %vm900, %v899
        %s903 = scalar_lea.vmem %s45, 1025 [#allocation0]
        %904 = vst.msk [vmem:[%s903] ss:$8 sm:$0xf0] %vm900, %v899
        %s905 = scalar_lea.vmem %s50, 132
        %v906 = vld.sshfl [vmem:[%s905] sm:$0xff pattern:$0xb3a29180]
        %907 = vrot.lane.b32.xlu0 %v906, 112
        %v908 = vpop.permute.xlu0 %907
        %vm909 = vcmask 130048
        %s910 = scalar_lea.vmem %s45, 1089 [#allocation0]
        %911 = vst.msk [vmem:[%s910] ss:$8 sm:$0xf] %vm909, %v908
        %s912 = scalar_lea.vmem %s45, 1089 [#allocation0]
        %913 = vst.msk [vmem:[%s912] ss:$8 sm:$0xf0] %vm909, %v908
        %s914 = scalar_lea.vmem %s50, 144
        %v915 = vld.sshfl [vmem:[%s914] sm:$0xff pattern:$0xb3a29180]
        %916 = vrot.lane.b32.xlu0 %v915, 112
        %v917 = vpop.permute.xlu0 %916
        %vm918 = vcmask 130048
        %s919 = scalar_lea.vmem %s45, 1153 [#allocation0]
        %920 = vst.msk [vmem:[%s919] ss:$8 sm:$0xf] %vm918, %v917
        %s921 = scalar_lea.vmem %s45, 1153 [#allocation0]
        %922 = vst.msk [vmem:[%s921] ss:$8 sm:$0xf0] %vm918, %v917
        %s923 = scalar_lea.vmem %s50, 148
        %v924 = vld.sshfl [vmem:[%s923] sm:$0xff pattern:$0xb3a29180]
        %925 = vrot.lane.b32.xlu0 %v924, 112
        %v926 = vpop.permute.xlu0 %925
        %vm927 = vcmask 130048
        %s928 = scalar_lea.vmem %s45, 1217 [#allocation0]
        %929 = vst.msk [vmem:[%s928] ss:$8 sm:$0xf] %vm927, %v926
        %s930 = scalar_lea.vmem %s45, 1217 [#allocation0]
        %931 = vst.msk [vmem:[%s930] ss:$8 sm:$0xf0] %vm927, %v926
        %s932 = scalar_lea.vmem %s50, 160
        %v933 = vld.sshfl [vmem:[%s932] sm:$0xff pattern:$0xb3a29180]
        %934 = vrot.lane.b32.xlu0 %v933, 112
        %v935 = vpop.permute.xlu0 %934
        %vm936 = vcmask 130048
        %s937 = scalar_lea.vmem %s45, 1281 [#allocation0]
        %938 = vst.msk [vmem:[%s937] ss:$8 sm:$0xf] %vm936, %v935
        %s939 = scalar_lea.vmem %s45, 1281 [#allocation0]
        %940 = vst.msk [vmem:[%s939] ss:$8 sm:$0xf0] %vm936, %v935
        %s941 = scalar_lea.vmem %s50, 164
        %v942 = vld.sshfl [vmem:[%s941] sm:$0xff pattern:$0xb3a29180]
        %943 = vrot.lane.b32.xlu0 %v942, 112
        %v944 = vpop.permute.xlu0 %943
        %vm945 = vcmask 130048
        %s946 = scalar_lea.vmem %s45, 1345 [#allocation0]
        %947 = vst.msk [vmem:[%s946] ss:$8 sm:$0xf] %vm945, %v944
        %s948 = scalar_lea.vmem %s45, 1345 [#allocation0]
        %949 = vst.msk [vmem:[%s948] ss:$8 sm:$0xf0] %vm945, %v944
        %s950 = scalar_lea.vmem %s50, 176
        %v951 = vld.sshfl [vmem:[%s950] sm:$0xff pattern:$0xb3a29180]
        %952 = vrot.lane.b32.xlu0 %v951, 112
        %v953 = vpop.permute.xlu0 %952
        %vm954 = vcmask 130048
        %s955 = scalar_lea.vmem %s45, 1409 [#allocation0]
        %956 = vst.msk [vmem:[%s955] ss:$8 sm:$0xf] %vm954, %v953
        %s957 = scalar_lea.vmem %s45, 1409 [#allocation0]
        %958 = vst.msk [vmem:[%s957] ss:$8 sm:$0xf0] %vm954, %v953
        %s959 = scalar_lea.vmem %s50, 180
        %v960 = vld.sshfl [vmem:[%s959] sm:$0xff pattern:$0xb3a29180]
        %961 = vrot.lane.b32.xlu0 %v960, 112
        %v962 = vpop.permute.xlu0 %961
        %vm963 = vcmask 130048
        %s964 = scalar_lea.vmem %s45, 1473 [#allocation0]
        %965 = vst.msk [vmem:[%s964] ss:$8 sm:$0xf] %vm963, %v962
        %s966 = scalar_lea.vmem %s45, 1473 [#allocation0]
        %967 = vst.msk [vmem:[%s966] ss:$8 sm:$0xf0] %vm963, %v962
        %s968 = scalar_lea.vmem %s50, 192
        %v969 = vld.sshfl [vmem:[%s968] sm:$0xff pattern:$0xb3a29180]
        %970 = vrot.lane.b32.xlu0 %v969, 112
        %v971 = vpop.permute.xlu0 %970
        %vm972 = vcmask 130048
        %s973 = scalar_lea.vmem %s45, 1537 [#allocation0]
        %974 = vst.msk [vmem:[%s973] ss:$8 sm:$0xf] %vm972, %v971
        %s975 = scalar_lea.vmem %s45, 1537 [#allocation0]
        %976 = vst.msk [vmem:[%s975] ss:$8 sm:$0xf0] %vm972, %v971
        %s977 = scalar_lea.vmem %s50, 196
        %v978 = vld.sshfl [vmem:[%s977] sm:$0xff pattern:$0xb3a29180]
        %979 = vrot.lane.b32.xlu0 %v978, 112
        %v980 = vpop.permute.xlu0 %979
        %vm981 = vcmask 130048
        %s982 = scalar_lea.vmem %s45, 1601 [#allocation0]
        %983 = vst.msk [vmem:[%s982] ss:$8 sm:$0xf] %vm981, %v980
        %s984 = scalar_lea.vmem %s45, 1601 [#allocation0]
        %985 = vst.msk [vmem:[%s984] ss:$8 sm:$0xf0] %vm981, %v980
        %s986 = scalar_lea.vmem %s50, 208
        %v987 = vld.sshfl [vmem:[%s986] sm:$0xff pattern:$0xb3a29180]
        %988 = vrot.lane.b32.xlu0 %v987, 112
        %v989 = vpop.permute.xlu0 %988
        %vm990 = vcmask 130048
        %s991 = scalar_lea.vmem %s45, 1665 [#allocation0]
        %992 = vst.msk [vmem:[%s991] ss:$8 sm:$0xf] %vm990, %v989
        %s993 = scalar_lea.vmem %s45, 1665 [#allocation0]
        %994 = vst.msk [vmem:[%s993] ss:$8 sm:$0xf0] %vm990, %v989
        %s995 = scalar_lea.vmem %s50, 212
        %v996 = vld.sshfl [vmem:[%s995] sm:$0xff pattern:$0xb3a29180]
        %997 = vrot.lane.b32.xlu0 %v996, 112
        %v998 = vpop.permute.xlu0 %997
        %vm999 = vcmask 130048
        %s1000 = scalar_lea.vmem %s45, 1729 [#allocation0]
        %1001 = vst.msk [vmem:[%s1000] ss:$8 sm:$0xf] %vm999, %v998
        %s1002 = scalar_lea.vmem %s45, 1729 [#allocation0]
        %1003 = vst.msk [vmem:[%s1002] ss:$8 sm:$0xf0] %vm999, %v998
        %s1004 = scalar_lea.vmem %s50, 224
        %v1005 = vld.sshfl [vmem:[%s1004] sm:$0xff pattern:$0xb3a29180]
        %1006 = vrot.lane.b32.xlu0 %v1005, 112
        %v1007 = vpop.permute.xlu0 %1006
        %vm1008 = vcmask 130048
        %s1009 = scalar_lea.vmem %s45, 1793 [#allocation0]
        %1010 = vst.msk [vmem:[%s1009] ss:$8 sm:$0xf] %vm1008, %v1007
        %s1011 = scalar_lea.vmem %s45, 1793 [#allocation0]
        %1012 = vst.msk [vmem:[%s1011] ss:$8 sm:$0xf0] %vm1008, %v1007
        %s1013 = scalar_lea.vmem %s50, 228
        %v1014 = vld.sshfl [vmem:[%s1013] sm:$0xff pattern:$0xb3a29180]
        %1015 = vrot.lane.b32.xlu0 %v1014, 112
        %v1016 = vpop.permute.xlu0 %1015
        %vm1017 = vcmask 130048
        %s1018 = scalar_lea.vmem %s45, 1857 [#allocation0]
        %1019 = vst.msk [vmem:[%s1018] ss:$8 sm:$0xf] %vm1017, %v1016
        %s1020 = scalar_lea.vmem %s45, 1857 [#allocation0]
        %1021 = vst.msk [vmem:[%s1020] ss:$8 sm:$0xf0] %vm1017, %v1016
        %s1022 = scalar_lea.vmem %s50, 240
        %v1023 = vld.sshfl [vmem:[%s1022] sm:$0xff pattern:$0xb3a29180]
        %1024 = vrot.lane.b32.xlu0 %v1023, 112
        %v1025 = vpop.permute.xlu0 %1024
        %vm1026 = vcmask 130048
        %s1027 = scalar_lea.vmem %s45, 1921 [#allocation0]
        %1028 = vst.msk [vmem:[%s1027] ss:$8 sm:$0xf] %vm1026, %v1025
        %s1029 = scalar_lea.vmem %s45, 1921 [#allocation0]
        %1030 = vst.msk [vmem:[%s1029] ss:$8 sm:$0xf0] %vm1026, %v1025
        %s1031 = scalar_lea.vmem %s50, 244
        %v1032 = vld.sshfl [vmem:[%s1031] sm:$0xff pattern:$0xb3a29180]
        %1033 = vrot.lane.b32.xlu0 %v1032, 112
        %v1034 = vpop.permute.xlu0 %1033
        %vm1035 = vcmask 130048
        %s1036 = scalar_lea.vmem %s45, 1985 [#allocation0]
        %1037 = vst.msk [vmem:[%s1036] ss:$8 sm:$0xf] %vm1035, %v1034
        %s1038 = scalar_lea.vmem %s45, 1985 [#allocation0]
        %1039 = vst.msk [vmem:[%s1038] ss:$8 sm:$0xf0] %vm1035, %v1034
        %s1040 = scalar_lea.vmem %s50, 256
        %v1041 = vld.sshfl [vmem:[%s1040] sm:$0xff pattern:$0xb3a29180]
        %1042 = vrot.lane.b32.xlu0 %v1041, 112
        %v1043 = vpop.permute.xlu0 %1042
        %vm1044 = vcmask 130048
        %s1045 = scalar_lea.vmem %s45, 2049 [#allocation0]
        %1046 = vst.msk [vmem:[%s1045] ss:$8 sm:$0xf] %vm1044, %v1043
        %s1047 = scalar_lea.vmem %s45, 2049 [#allocation0]
        %1048 = vst.msk [vmem:[%s1047] ss:$8 sm:$0xf0] %vm1044, %v1043
        %s1049 = scalar_lea.vmem %s50, 260
        %v1050 = vld.sshfl [vmem:[%s1049] sm:$0xff pattern:$0xb3a29180]
        %1051 = vrot.lane.b32.xlu0 %v1050, 112
        %v1052 = vpop.permute.xlu0 %1051
        %vm1053 = vcmask 130048
        %s1054 = scalar_lea.vmem %s45, 2113 [#allocation0]
        %1055 = vst.msk [vmem:[%s1054] ss:$8 sm:$0xf] %vm1053, %v1052
        %s1056 = scalar_lea.vmem %s45, 2113 [#allocation0]
        %1057 = vst.msk [vmem:[%s1056] ss:$8 sm:$0xf0] %vm1053, %v1052
        %s1058 = scalar_lea.vmem %s50, 272
        %v1059 = vld.sshfl [vmem:[%s1058] sm:$0xff pattern:$0xb3a29180]
        %1060 = vrot.lane.b32.xlu0 %v1059, 112
        %v1061 = vpop.permute.xlu0 %1060
        %vm1062 = vcmask 130048
        %s1063 = scalar_lea.vmem %s45, 2177 [#allocation0]
        %1064 = vst.msk [vmem:[%s1063] ss:$8 sm:$0xf] %vm1062, %v1061
        %s1065 = scalar_lea.vmem %s45, 2177 [#allocation0]
        %1066 = vst.msk [vmem:[%s1065] ss:$8 sm:$0xf0] %vm1062, %v1061
        %s1067 = scalar_lea.vmem %s50, 276
        %v1068 = vld.sshfl [vmem:[%s1067] sm:$0xff pattern:$0xb3a29180]
        %1069 = vrot.lane.b32.xlu0 %v1068, 112
        %v1070 = vpop.permute.xlu0 %1069
        %vm1071 = vcmask 130048
        %s1072 = scalar_lea.vmem %s45, 2241 [#allocation0]
        %1073 = vst.msk [vmem:[%s1072] ss:$8 sm:$0xf] %vm1071, %v1070
        %s1074 = scalar_lea.vmem %s45, 2241 [#allocation0]
        %1075 = vst.msk [vmem:[%s1074] ss:$8 sm:$0xf0] %vm1071, %v1070
        %s1076 = scalar_lea.vmem %s50, 288
        %v1077 = vld.sshfl [vmem:[%s1076] sm:$0xff pattern:$0xb3a29180]
        %1078 = vrot.lane.b32.xlu0 %v1077, 112
        %v1079 = vpop.permute.xlu0 %1078
        %vm1080 = vcmask 130048
        %s1081 = scalar_lea.vmem %s45, 2305 [#allocation0]
        %1082 = vst.msk [vmem:[%s1081] ss:$8 sm:$0xf] %vm1080, %v1079
        %s1083 = scalar_lea.vmem %s45, 2305 [#allocation0]
        %1084 = vst.msk [vmem:[%s1083] ss:$8 sm:$0xf0] %vm1080, %v1079
        %s1085 = scalar_lea.vmem %s50, 292
        %v1086 = vld.sshfl [vmem:[%s1085] sm:$0xff pattern:$0xb3a29180]
        %1087 = vrot.lane.b32.xlu0 %v1086, 112
        %v1088 = vpop.permute.xlu0 %1087
        %vm1089 = vcmask 130048
        %s1090 = scalar_lea.vmem %s45, 2369 [#allocation0]
        %1091 = vst.msk [vmem:[%s1090] ss:$8 sm:$0xf] %vm1089, %v1088
        %s1092 = scalar_lea.vmem %s45, 2369 [#allocation0]
        %1093 = vst.msk [vmem:[%s1092] ss:$8 sm:$0xf0] %vm1089, %v1088
        %s1094 = scalar_lea.vmem %s50, 304
        %v1095 = vld.sshfl [vmem:[%s1094] sm:$0xff pattern:$0xb3a29180]
        %1096 = vrot.lane.b32.xlu0 %v1095, 112
        %v1097 = vpop.permute.xlu0 %1096
        %vm1098 = vcmask 130048
        %s1099 = scalar_lea.vmem %s45, 2433 [#allocation0]
        %1100 = vst.msk [vmem:[%s1099] ss:$8 sm:$0xf] %vm1098, %v1097
        %s1101 = scalar_lea.vmem %s45, 2433 [#allocation0]
        %1102 = vst.msk [vmem:[%s1101] ss:$8 sm:$0xf0] %vm1098, %v1097
        %s1103 = scalar_lea.vmem %s50, 308
        %v1104 = vld.sshfl [vmem:[%s1103] sm:$0xff pattern:$0xb3a29180]
        %1105 = vrot.lane.b32.xlu0 %v1104, 112
        %v1106 = vpop.permute.xlu0 %1105
        %vm1107 = vcmask 130048
        %s1108 = scalar_lea.vmem %s45, 2497 [#allocation0]
        %1109 = vst.msk [vmem:[%s1108] ss:$8 sm:$0xf] %vm1107, %v1106
        %s1110 = scalar_lea.vmem %s45, 2497 [#allocation0]
        %1111 = vst.msk [vmem:[%s1110] ss:$8 sm:$0xf0] %vm1107, %v1106
        %s1112 = scalar_lea.vmem %s50, 320
        %v1113 = vld.sshfl [vmem:[%s1112] sm:$0xff pattern:$0xb3a29180]
        %1114 = vrot.lane.b32.xlu0 %v1113, 112
        %v1115 = vpop.permute.xlu0 %1114
        %vm1116 = vcmask 130048
        %s1117 = scalar_lea.vmem %s45, 2561 [#allocation0]
        %1118 = vst.msk [vmem:[%s1117] ss:$8 sm:$0xf] %vm1116, %v1115
        %s1119 = scalar_lea.vmem %s45, 2561 [#allocation0]
        %1120 = vst.msk [vmem:[%s1119] ss:$8 sm:$0xf0] %vm1116, %v1115
        %s1121 = scalar_lea.vmem %s50, 324
        %v1122 = vld.sshfl [vmem:[%s1121] sm:$0xff pattern:$0xb3a29180]
        %1123 = vrot.lane.b32.xlu0 %v1122, 112
        %v1124 = vpop.permute.xlu0 %1123
        %vm1125 = vcmask 130048
        %s1126 = scalar_lea.vmem %s45, 2625 [#allocation0]
        %1127 = vst.msk [vmem:[%s1126] ss:$8 sm:$0xf] %vm1125, %v1124
        %s1128 = scalar_lea.vmem %s45, 2625 [#allocation0]
        %1129 = vst.msk [vmem:[%s1128] ss:$8 sm:$0xf0] %vm1125, %v1124
        %s1130 = scalar_lea.vmem %s50, 336
        %v1131 = vld.sshfl [vmem:[%s1130] sm:$0xff pattern:$0xb3a29180]
        %1132 = vrot.lane.b32.xlu0 %v1131, 112
        %v1133 = vpop.permute.xlu0 %1132
        %vm1134 = vcmask 130048
        %s1135 = scalar_lea.vmem %s45, 2689 [#allocation0]
        %1136 = vst.msk [vmem:[%s1135] ss:$8 sm:$0xf] %vm1134, %v1133
        %s1137 = scalar_lea.vmem %s45, 2689 [#allocation0]
        %1138 = vst.msk [vmem:[%s1137] ss:$8 sm:$0xf0] %vm1134, %v1133
        %s1139 = scalar_lea.vmem %s50, 340
        %v1140 = vld.sshfl [vmem:[%s1139] sm:$0xff pattern:$0xb3a29180]
        %1141 = vrot.lane.b32.xlu0 %v1140, 112
        %v1142 = vpop.permute.xlu0 %1141
        %vm1143 = vcmask 130048
        %s1144 = scalar_lea.vmem %s45, 2753 [#allocation0]
        %1145 = vst.msk [vmem:[%s1144] ss:$8 sm:$0xf] %vm1143, %v1142
        %s1146 = scalar_lea.vmem %s45, 2753 [#allocation0]
        %1147 = vst.msk [vmem:[%s1146] ss:$8 sm:$0xf0] %vm1143, %v1142
        %s1148 = scalar_lea.vmem %s50, 352
        %v1149 = vld.sshfl [vmem:[%s1148] sm:$0xff pattern:$0xb3a29180]
        %1150 = vrot.lane.b32.xlu0 %v1149, 112
        %v1151 = vpop.permute.xlu0 %1150
        %vm1152 = vcmask 130048
        %s1153 = scalar_lea.vmem %s45, 2817 [#allocation0]
        %1154 = vst.msk [vmem:[%s1153] ss:$8 sm:$0xf] %vm1152, %v1151
        %s1155 = scalar_lea.vmem %s45, 2817 [#allocation0]
        %1156 = vst.msk [vmem:[%s1155] ss:$8 sm:$0xf0] %vm1152, %v1151
        %s1157 = scalar_lea.vmem %s50, 356
        %v1158 = vld.sshfl [vmem:[%s1157] sm:$0xff pattern:$0xb3a29180]
        %1159 = vrot.lane.b32.xlu0 %v1158, 112
        %v1160 = vpop.permute.xlu0 %1159
        %vm1161 = vcmask 130048
        %s1162 = scalar_lea.vmem %s45, 2881 [#allocation0]
        %1163 = vst.msk [vmem:[%s1162] ss:$8 sm:$0xf] %vm1161, %v1160
        %s1164 = scalar_lea.vmem %s45, 2881 [#allocation0]
        %1165 = vst.msk [vmem:[%s1164] ss:$8 sm:$0xf0] %vm1161, %v1160
        %s1166 = scalar_lea.vmem %s50, 368
        %v1167 = vld.sshfl [vmem:[%s1166] sm:$0xff pattern:$0xb3a29180]
        %1168 = vrot.lane.b32.xlu0 %v1167, 112
        %v1169 = vpop.permute.xlu0 %1168
        %vm1170 = vcmask 130048
        %s1171 = scalar_lea.vmem %s45, 2945 [#allocation0]
        %1172 = vst.msk [vmem:[%s1171] ss:$8 sm:$0xf] %vm1170, %v1169
        %s1173 = scalar_lea.vmem %s45, 2945 [#allocation0]
        %1174 = vst.msk [vmem:[%s1173] ss:$8 sm:$0xf0] %vm1170, %v1169
        %s1175 = scalar_lea.vmem %s50, 372
        %v1176 = vld.sshfl [vmem:[%s1175] sm:$0xff pattern:$0xb3a29180]
        %1177 = vrot.lane.b32.xlu0 %v1176, 112
        %v1178 = vpop.permute.xlu0 %1177
        %vm1179 = vcmask 130048
        %s1180 = scalar_lea.vmem %s45, 3009 [#allocation0]
        %1181 = vst.msk [vmem:[%s1180] ss:$8 sm:$0xf] %vm1179, %v1178
        %s1182 = scalar_lea.vmem %s45, 3009 [#allocation0]
        %1183 = vst.msk [vmem:[%s1182] ss:$8 sm:$0xf0] %vm1179, %v1178
        %s1184 = scalar_lea.vmem %s50, 384
        %v1185 = vld.sshfl [vmem:[%s1184] sm:$0xff pattern:$0xb3a29180]
        %1186 = vrot.lane.b32.xlu0 %v1185, 112
        %v1187 = vpop.permute.xlu0 %1186
        %vm1188 = vcmask 130048
        %s1189 = scalar_lea.vmem %s45, 3073 [#allocation0]
        %1190 = vst.msk [vmem:[%s1189] ss:$8 sm:$0xf] %vm1188, %v1187
        %s1191 = scalar_lea.vmem %s45, 3073 [#allocation0]
        %1192 = vst.msk [vmem:[%s1191] ss:$8 sm:$0xf0] %vm1188, %v1187
        %s1193 = scalar_lea.vmem %s50, 388
        %v1194 = vld.sshfl [vmem:[%s1193] sm:$0xff pattern:$0xb3a29180]
        %1195 = vrot.lane.b32.xlu0 %v1194, 112
        %v1196 = vpop.permute.xlu0 %1195
        %vm1197 = vcmask 130048
        %s1198 = scalar_lea.vmem %s45, 3137 [#allocation0]
        %1199 = vst.msk [vmem:[%s1198] ss:$8 sm:$0xf] %vm1197, %v1196
        %s1200 = scalar_lea.vmem %s45, 3137 [#allocation0]
        %1201 = vst.msk [vmem:[%s1200] ss:$8 sm:$0xf0] %vm1197, %v1196
        %s1202 = scalar_lea.vmem %s50, 400
        %v1203 = vld.sshfl [vmem:[%s1202] sm:$0xff pattern:$0xb3a29180]
        %1204 = vrot.lane.b32.xlu0 %v1203, 112
        %v1205 = vpop.permute.xlu0 %1204
        %vm1206 = vcmask 130048
        %s1207 = scalar_lea.vmem %s45, 3201 [#allocation0]
        %1208 = vst.msk [vmem:[%s1207] ss:$8 sm:$0xf] %vm1206, %v1205
        %s1209 = scalar_lea.vmem %s45, 3201 [#allocation0]
        %1210 = vst.msk [vmem:[%s1209] ss:$8 sm:$0xf0] %vm1206, %v1205
        %s1211 = scalar_lea.vmem %s50, 404
        %v1212 = vld.sshfl [vmem:[%s1211] sm:$0xff pattern:$0xb3a29180]
        %1213 = vrot.lane.b32.xlu0 %v1212, 112
        %v1214 = vpop.permute.xlu0 %1213
        %vm1215 = vcmask 130048
        %s1216 = scalar_lea.vmem %s45, 3265 [#allocation0]
        %1217 = vst.msk [vmem:[%s1216] ss:$8 sm:$0xf] %vm1215, %v1214
        %s1218 = scalar_lea.vmem %s45, 3265 [#allocation0]
        %1219 = vst.msk [vmem:[%s1218] ss:$8 sm:$0xf0] %vm1215, %v1214
        %s1220 = scalar_lea.vmem %s50, 416
        %v1221 = vld.sshfl [vmem:[%s1220] sm:$0xff pattern:$0xb3a29180]
        %1222 = vrot.lane.b32.xlu0 %v1221, 112
        %v1223 = vpop.permute.xlu0 %1222
        %vm1224 = vcmask 130048
        %s1225 = scalar_lea.vmem %s45, 3329 [#allocation0]
        %1226 = vst.msk [vmem:[%s1225] ss:$8 sm:$0xf] %vm1224, %v1223
        %s1227 = scalar_lea.vmem %s45, 3329 [#allocation0]
        %1228 = vst.msk [vmem:[%s1227] ss:$8 sm:$0xf0] %vm1224, %v1223
        %s1229 = scalar_lea.vmem %s50, 420
        %v1230 = vld.sshfl [vmem:[%s1229] sm:$0xff pattern:$0xb3a29180]
        %1231 = vrot.lane.b32.xlu0 %v1230, 112
        %v1232 = vpop.permute.xlu0 %1231
        %vm1233 = vcmask 130048
        %s1234 = scalar_lea.vmem %s45, 3393 [#allocation0]
        %1235 = vst.msk [vmem:[%s1234] ss:$8 sm:$0xf] %vm1233, %v1232
        %s1236 = scalar_lea.vmem %s45, 3393 [#allocation0]
        %1237 = vst.msk [vmem:[%s1236] ss:$8 sm:$0xf0] %vm1233, %v1232
        %s1238 = scalar_lea.vmem %s50, 432
        %v1239 = vld.sshfl [vmem:[%s1238] sm:$0xff pattern:$0xb3a29180]
        %1240 = vrot.lane.b32.xlu0 %v1239, 112
        %v1241 = vpop.permute.xlu0 %1240
        %vm1242 = vcmask 130048
        %s1243 = scalar_lea.vmem %s45, 3457 [#allocation0]
        %1244 = vst.msk [vmem:[%s1243] ss:$8 sm:$0xf] %vm1242, %v1241
        %s1245 = scalar_lea.vmem %s45, 3457 [#allocation0]
        %1246 = vst.msk [vmem:[%s1245] ss:$8 sm:$0xf0] %vm1242, %v1241
        %s1247 = scalar_lea.vmem %s50, 436
        %v1248 = vld.sshfl [vmem:[%s1247] sm:$0xff pattern:$0xb3a29180]
        %1249 = vrot.lane.b32.xlu0 %v1248, 112
        %v1250 = vpop.permute.xlu0 %1249
        %vm1251 = vcmask 130048
        %s1252 = scalar_lea.vmem %s45, 3521 [#allocation0]
        %1253 = vst.msk [vmem:[%s1252] ss:$8 sm:$0xf] %vm1251, %v1250
        %s1254 = scalar_lea.vmem %s45, 3521 [#allocation0]
        %1255 = vst.msk [vmem:[%s1254] ss:$8 sm:$0xf0] %vm1251, %v1250
        %s1256 = scalar_lea.vmem %s50, 448
        %v1257 = vld.sshfl [vmem:[%s1256] sm:$0xff pattern:$0xb3a29180]
        %1258 = vrot.lane.b32.xlu0 %v1257, 112
        %v1259 = vpop.permute.xlu0 %1258
        %vm1260 = vcmask 130048
        %s1261 = scalar_lea.vmem %s45, 3585 [#allocation0]
        %1262 = vst.msk [vmem:[%s1261] ss:$8 sm:$0xf] %vm1260, %v1259
        %s1263 = scalar_lea.vmem %s45, 3585 [#allocation0]
        %1264 = vst.msk [vmem:[%s1263] ss:$8 sm:$0xf0] %vm1260, %v1259
        %s1265 = scalar_lea.vmem %s50, 452
        %v1266 = vld.sshfl [vmem:[%s1265] sm:$0xff pattern:$0xb3a29180]
        %1267 = vrot.lane.b32.xlu0 %v1266, 112
        %v1268 = vpop.permute.xlu0 %1267
        %vm1269 = vcmask 130048
        %s1270 = scalar_lea.vmem %s45, 3649 [#allocation0]
        %1271 = vst.msk [vmem:[%s1270] ss:$8 sm:$0xf] %vm1269, %v1268
        %s1272 = scalar_lea.vmem %s45, 3649 [#allocation0]
        %1273 = vst.msk [vmem:[%s1272] ss:$8 sm:$0xf0] %vm1269, %v1268
        %s1274 = scalar_lea.vmem %s50, 464
        %v1275 = vld.sshfl [vmem:[%s1274] sm:$0xff pattern:$0xb3a29180]
        %1276 = vrot.lane.b32.xlu0 %v1275, 112
        %v1277 = vpop.permute.xlu0 %1276
        %vm1278 = vcmask 130048
        %s1279 = scalar_lea.vmem %s45, 3713 [#allocation0]
        %1280 = vst.msk [vmem:[%s1279] ss:$8 sm:$0xf] %vm1278, %v1277
        %s1281 = scalar_lea.vmem %s45, 3713 [#allocation0]
        %1282 = vst.msk [vmem:[%s1281] ss:$8 sm:$0xf0] %vm1278, %v1277
        %s1283 = scalar_lea.vmem %s50, 468
        %v1284 = vld.sshfl [vmem:[%s1283] sm:$0xff pattern:$0xb3a29180]
        %1285 = vrot.lane.b32.xlu0 %v1284, 112
        %v1286 = vpop.permute.xlu0 %1285
        %vm1287 = vcmask 130048
        %s1288 = scalar_lea.vmem %s45, 3777 [#allocation0]
        %1289 = vst.msk [vmem:[%s1288] ss:$8 sm:$0xf] %vm1287, %v1286
        %s1290 = scalar_lea.vmem %s45, 3777 [#allocation0]
        %1291 = vst.msk [vmem:[%s1290] ss:$8 sm:$0xf0] %vm1287, %v1286
        %s1292 = scalar_lea.vmem %s50, 480
        %v1293 = vld.sshfl [vmem:[%s1292] sm:$0xff pattern:$0xb3a29180]
        %1294 = vrot.lane.b32.xlu0 %v1293, 112
        %v1295 = vpop.permute.xlu0 %1294
        %vm1296 = vcmask 130048
        %s1297 = scalar_lea.vmem %s45, 3841 [#allocation0]
        %1298 = vst.msk [vmem:[%s1297] ss:$8 sm:$0xf] %vm1296, %v1295
        %s1299 = scalar_lea.vmem %s45, 3841 [#allocation0]
        %1300 = vst.msk [vmem:[%s1299] ss:$8 sm:$0xf0] %vm1296, %v1295
        %s1301 = scalar_lea.vmem %s50, 484
        %v1302 = vld.sshfl [vmem:[%s1301] sm:$0xff pattern:$0xb3a29180]
        %1303 = vrot.lane.b32.xlu0 %v1302, 112
        %v1304 = vpop.permute.xlu0 %1303
        %vm1305 = vcmask 130048
        %s1306 = scalar_lea.vmem %s45, 3905 [#allocation0]
        %1307 = vst.msk [vmem:[%s1306] ss:$8 sm:$0xf] %vm1305, %v1304
        %s1308 = scalar_lea.vmem %s45, 3905 [#allocation0]
        %1309 = vst.msk [vmem:[%s1308] ss:$8 sm:$0xf0] %vm1305, %v1304
        %s1310 = scalar_lea.vmem %s50, 496
        %v1311 = vld.sshfl [vmem:[%s1310] sm:$0xff pattern:$0xb3a29180]
        %1312 = vrot.lane.b32.xlu0 %v1311, 112
        %v1313 = vpop.permute.xlu0 %1312
        %vm1314 = vcmask 130048
        %s1315 = scalar_lea.vmem %s45, 3969 [#allocation0]
        %1316 = vst.msk [vmem:[%s1315] ss:$8 sm:$0xf] %vm1314, %v1313
        %s1317 = scalar_lea.vmem %s45, 3969 [#allocation0]
        %1318 = vst.msk [vmem:[%s1317] ss:$8 sm:$0xf0] %vm1314, %v1313
        %s1319 = scalar_lea.vmem %s50, 500
        %v1320 = vld.sshfl [vmem:[%s1319] sm:$0xff pattern:$0xb3a29180]
        %1321 = vrot.lane.b32.xlu0 %v1320, 112
        %v1322 = vpop.permute.xlu0 %1321
        %vm1323 = vcmask 130048
        %s1324 = scalar_lea.vmem %s45, 4033 [#allocation0]
        %1325 = vst.msk [vmem:[%s1324] ss:$8 sm:$0xf] %vm1323, %v1322
        %s1326 = scalar_lea.vmem %s45, 4033 [#allocation0]
        %1327 = vst.msk [vmem:[%s1326] ss:$8 sm:$0xf0] %vm1323, %v1322
        %v1328 = vld.sshfl [vmem:[%s50] sm:$0xff pattern:$0xb3a29180]
        %1329 = vrot.lane.b32.xlu0 %v1328, 96
        %v1330 = vpop.permute.xlu0 %1329
        %vm1331 = vcmask 130048
        %s1332 = scalar_lea.vmem %s45, 2 [#allocation0]
        %1333 = vst.msk [vmem:[%s1332] ss:$8 sm:$0xf] %vm1331, %v1330
        %s1334 = scalar_lea.vmem %s45, 2 [#allocation0]
        %1335 = vst.msk [vmem:[%s1334] ss:$8 sm:$0xf0] %vm1331, %v1330
        %s1336 = scalar_lea.vmem %s50, 4
        %v1337 = vld.sshfl [vmem:[%s1336] sm:$0xff pattern:$0xb3a29180]
        %1338 = vrot.lane.b32.xlu0 %v1337, 96
        %v1339 = vpop.permute.xlu0 %1338
        %vm1340 = vcmask 130048
        %s1341 = scalar_lea.vmem %s45, 66 [#allocation0]
        %1342 = vst.msk [vmem:[%s1341] ss:$8 sm:$0xf] %vm1340, %v1339
        %s1343 = scalar_lea.vmem %s45, 66 [#allocation0]
        %1344 = vst.msk [vmem:[%s1343] ss:$8 sm:$0xf0] %vm1340, %v1339
        %s1345 = scalar_lea.vmem %s50, 16
        %v1346 = vld.sshfl [vmem:[%s1345] sm:$0xff pattern:$0xb3a29180]
        %1347 = vrot.lane.b32.xlu0 %v1346, 96
        %v1348 = vpop.permute.xlu0 %1347
        %vm1349 = vcmask 130048
        %s1350 = scalar_lea.vmem %s45, 130 [#allocation0]
        %1351 = vst.msk [vmem:[%s1350] ss:$8 sm:$0xf] %vm1349, %v1348
        %s1352 = scalar_lea.vmem %s45, 130 [#allocation0]
        %1353 = vst.msk [vmem:[%s1352] ss:$8 sm:$0xf0] %vm1349, %v1348
        %s1354 = scalar_lea.vmem %s50, 20
        %v1355 = vld.sshfl [vmem:[%s1354] sm:$0xff pattern:$0xb3a29180]
        %1356 = vrot.lane.b32.xlu0 %v1355, 96
        %v1357 = vpop.permute.xlu0 %1356
        %vm1358 = vcmask 130048
        %s1359 = scalar_lea.vmem %s45, 194 [#allocation0]
        %1360 = vst.msk [vmem:[%s1359] ss:$8 sm:$0xf] %vm1358, %v1357
        %s1361 = scalar_lea.vmem %s45, 194 [#allocation0]
        %1362 = vst.msk [vmem:[%s1361] ss:$8 sm:$0xf0] %vm1358, %v1357
        %s1363 = scalar_lea.vmem %s50, 32
        %v1364 = vld.sshfl [vmem:[%s1363] sm:$0xff pattern:$0xb3a29180]
        %1365 = vrot.lane.b32.xlu0 %v1364, 96
        %v1366 = vpop.permute.xlu0 %1365
        %vm1367 = vcmask 130048
        %s1368 = scalar_lea.vmem %s45, 258 [#allocation0]
        %1369 = vst.msk [vmem:[%s1368] ss:$8 sm:$0xf] %vm1367, %v1366
        %s1370 = scalar_lea.vmem %s45, 258 [#allocation0]
        %1371 = vst.msk [vmem:[%s1370] ss:$8 sm:$0xf0] %vm1367, %v1366
        %s1372 = scalar_lea.vmem %s50, 36
        %v1373 = vld.sshfl [vmem:[%s1372] sm:$0xff pattern:$0xb3a29180]
        %1374 = vrot.lane.b32.xlu0 %v1373, 96
        %v1375 = vpop.permute.xlu0 %1374
        %vm1376 = vcmask 130048
        %s1377 = scalar_lea.vmem %s45, 322 [#allocation0]
        %1378 = vst.msk [vmem:[%s1377] ss:$8 sm:$0xf] %vm1376, %v1375
        %s1379 = scalar_lea.vmem %s45, 322 [#allocation0]
        %1380 = vst.msk [vmem:[%s1379] ss:$8 sm:$0xf0] %vm1376, %v1375
        %s1381 = scalar_lea.vmem %s50, 48
        %v1382 = vld.sshfl [vmem:[%s1381] sm:$0xff pattern:$0xb3a29180]
        %1383 = vrot.lane.b32.xlu0 %v1382, 96
        %v1384 = vpop.permute.xlu0 %1383
        %vm1385 = vcmask 130048
        %s1386 = scalar_lea.vmem %s45, 386 [#allocation0]
        %1387 = vst.msk [vmem:[%s1386] ss:$8 sm:$0xf] %vm1385, %v1384
        %s1388 = scalar_lea.vmem %s45, 386 [#allocation0]
        %1389 = vst.msk [vmem:[%s1388] ss:$8 sm:$0xf0] %vm1385, %v1384
        %s1390 = scalar_lea.vmem %s50, 52
        %v1391 = vld.sshfl [vmem:[%s1390] sm:$0xff pattern:$0xb3a29180]
        %1392 = vrot.lane.b32.xlu0 %v1391, 96
        %v1393 = vpop.permute.xlu0 %1392
        %vm1394 = vcmask 130048
        %s1395 = scalar_lea.vmem %s45, 450 [#allocation0]
        %1396 = vst.msk [vmem:[%s1395] ss:$8 sm:$0xf] %vm1394, %v1393
        %s1397 = scalar_lea.vmem %s45, 450 [#allocation0]
        %1398 = vst.msk [vmem:[%s1397] ss:$8 sm:$0xf0] %vm1394, %v1393
        %s1399 = scalar_lea.vmem %s50, 64
        %v1400 = vld.sshfl [vmem:[%s1399] sm:$0xff pattern:$0xb3a29180]
        %1401 = vrot.lane.b32.xlu0 %v1400, 96
        %v1402 = vpop.permute.xlu0 %1401
        %vm1403 = vcmask 130048
        %s1404 = scalar_lea.vmem %s45, 514 [#allocation0]
        %1405 = vst.msk [vmem:[%s1404] ss:$8 sm:$0xf] %vm1403, %v1402
        %s1406 = scalar_lea.vmem %s45, 514 [#allocation0]
        %1407 = vst.msk [vmem:[%s1406] ss:$8 sm:$0xf0] %vm1403, %v1402
        %s1408 = scalar_lea.vmem %s50, 68
        %v1409 = vld.sshfl [vmem:[%s1408] sm:$0xff pattern:$0xb3a29180]
        %1410 = vrot.lane.b32.xlu0 %v1409, 96
        %v1411 = vpop.permute.xlu0 %1410
        %vm1412 = vcmask 130048
        %s1413 = scalar_lea.vmem %s45, 578 [#allocation0]
        %1414 = vst.msk [vmem:[%s1413] ss:$8 sm:$0xf] %vm1412, %v1411
        %s1415 = scalar_lea.vmem %s45, 578 [#allocation0]
        %1416 = vst.msk [vmem:[%s1415] ss:$8 sm:$0xf0] %vm1412, %v1411
        %s1417 = scalar_lea.vmem %s50, 80
        %v1418 = vld.sshfl [vmem:[%s1417] sm:$0xff pattern:$0xb3a29180]
        %1419 = vrot.lane.b32.xlu0 %v1418, 96
        %v1420 = vpop.permute.xlu0 %1419
        %vm1421 = vcmask 130048
        %s1422 = scalar_lea.vmem %s45, 642 [#allocation0]
        %1423 = vst.msk [vmem:[%s1422] ss:$8 sm:$0xf] %vm1421, %v1420
        %s1424 = scalar_lea.vmem %s45, 642 [#allocation0]
        %1425 = vst.msk [vmem:[%s1424] ss:$8 sm:$0xf0] %vm1421, %v1420
        %s1426 = scalar_lea.vmem %s50, 84
        %v1427 = vld.sshfl [vmem:[%s1426] sm:$0xff pattern:$0xb3a29180]
        %1428 = vrot.lane.b32.xlu0 %v1427, 96
        %v1429 = vpop.permute.xlu0 %1428
        %vm1430 = vcmask 130048
        %s1431 = scalar_lea.vmem %s45, 706 [#allocation0]
        %1432 = vst.msk [vmem:[%s1431] ss:$8 sm:$0xf] %vm1430, %v1429
        %s1433 = scalar_lea.vmem %s45, 706 [#allocation0]
        %1434 = vst.msk [vmem:[%s1433] ss:$8 sm:$0xf0] %vm1430, %v1429
        %s1435 = scalar_lea.vmem %s50, 96
        %v1436 = vld.sshfl [vmem:[%s1435] sm:$0xff pattern:$0xb3a29180]
        %1437 = vrot.lane.b32.xlu0 %v1436, 96
        %v1438 = vpop.permute.xlu0 %1437
        %vm1439 = vcmask 130048
        %s1440 = scalar_lea.vmem %s45, 770 [#allocation0]
        %1441 = vst.msk [vmem:[%s1440] ss:$8 sm:$0xf] %vm1439, %v1438
        %s1442 = scalar_lea.vmem %s45, 770 [#allocation0]
        %1443 = vst.msk [vmem:[%s1442] ss:$8 sm:$0xf0] %vm1439, %v1438
        %s1444 = scalar_lea.vmem %s50, 100
        %v1445 = vld.sshfl [vmem:[%s1444] sm:$0xff pattern:$0xb3a29180]
        %1446 = vrot.lane.b32.xlu0 %v1445, 96
        %v1447 = vpop.permute.xlu0 %1446
        %vm1448 = vcmask 130048
        %s1449 = scalar_lea.vmem %s45, 834 [#allocation0]
        %1450 = vst.msk [vmem:[%s1449] ss:$8 sm:$0xf] %vm1448, %v1447
        %s1451 = scalar_lea.vmem %s45, 834 [#allocation0]
        %1452 = vst.msk [vmem:[%s1451] ss:$8 sm:$0xf0] %vm1448, %v1447
        %s1453 = scalar_lea.vmem %s50, 112
        %v1454 = vld.sshfl [vmem:[%s1453] sm:$0xff pattern:$0xb3a29180]
        %1455 = vrot.lane.b32.xlu0 %v1454, 96
        %v1456 = vpop.permute.xlu0 %1455
        %vm1457 = vcmask 130048
        %s1458 = scalar_lea.vmem %s45, 898 [#allocation0]
        %1459 = vst.msk [vmem:[%s1458] ss:$8 sm:$0xf] %vm1457, %v1456
        %s1460 = scalar_lea.vmem %s45, 898 [#allocation0]
        %1461 = vst.msk [vmem:[%s1460] ss:$8 sm:$0xf0] %vm1457, %v1456
        %s1462 = scalar_lea.vmem %s50, 116
        %v1463 = vld.sshfl [vmem:[%s1462] sm:$0xff pattern:$0xb3a29180]
        %1464 = vrot.lane.b32.xlu0 %v1463, 96
        %v1465 = vpop.permute.xlu0 %1464
        %vm1466 = vcmask 130048
        %s1467 = scalar_lea.vmem %s45, 962 [#allocation0]
        %1468 = vst.msk [vmem:[%s1467] ss:$8 sm:$0xf] %vm1466, %v1465
        %s1469 = scalar_lea.vmem %s45, 962 [#allocation0]
        %1470 = vst.msk [vmem:[%s1469] ss:$8 sm:$0xf0] %vm1466, %v1465
        %s1471 = scalar_lea.vmem %s50, 128
        %v1472 = vld.sshfl [vmem:[%s1471] sm:$0xff pattern:$0xb3a29180]
        %1473 = vrot.lane.b32.xlu0 %v1472, 96
        %v1474 = vpop.permute.xlu0 %1473
        %vm1475 = vcmask 130048
        %s1476 = scalar_lea.vmem %s45, 1026 [#allocation0]
        %1477 = vst.msk [vmem:[%s1476] ss:$8 sm:$0xf] %vm1475, %v1474
        %s1478 = scalar_lea.vmem %s45, 1026 [#allocation0]
        %1479 = vst.msk [vmem:[%s1478] ss:$8 sm:$0xf0] %vm1475, %v1474
        %s1480 = scalar_lea.vmem %s50, 132
        %v1481 = vld.sshfl [vmem:[%s1480] sm:$0xff pattern:$0xb3a29180]
        %1482 = vrot.lane.b32.xlu0 %v1481, 96
        %v1483 = vpop.permute.xlu0 %1482
        %vm1484 = vcmask 130048
        %s1485 = scalar_lea.vmem %s45, 1090 [#allocation0]
        %1486 = vst.msk [vmem:[%s1485] ss:$8 sm:$0xf] %vm1484, %v1483
        %s1487 = scalar_lea.vmem %s45, 1090 [#allocation0]
        %1488 = vst.msk [vmem:[%s1487] ss:$8 sm:$0xf0] %vm1484, %v1483
        %s1489 = scalar_lea.vmem %s50, 144
        %v1490 = vld.sshfl [vmem:[%s1489] sm:$0xff pattern:$0xb3a29180]
        %1491 = vrot.lane.b32.xlu0 %v1490, 96
        %v1492 = vpop.permute.xlu0 %1491
        %vm1493 = vcmask 130048
        %s1494 = scalar_lea.vmem %s45, 1154 [#allocation0]
        %1495 = vst.msk [vmem:[%s1494] ss:$8 sm:$0xf] %vm1493, %v1492
        %s1496 = scalar_lea.vmem %s45, 1154 [#allocation0]
        %1497 = vst.msk [vmem:[%s1496] ss:$8 sm:$0xf0] %vm1493, %v1492
        %s1498 = scalar_lea.vmem %s50, 148
        %v1499 = vld.sshfl [vmem:[%s1498] sm:$0xff pattern:$0xb3a29180]
        %1500 = vrot.lane.b32.xlu0 %v1499, 96
        %v1501 = vpop.permute.xlu0 %1500
        %vm1502 = vcmask 130048
        %s1503 = scalar_lea.vmem %s45, 1218 [#allocation0]
        %1504 = vst.msk [vmem:[%s1503] ss:$8 sm:$0xf] %vm1502, %v1501
        %s1505 = scalar_lea.vmem %s45, 1218 [#allocation0]
        %1506 = vst.msk [vmem:[%s1505] ss:$8 sm:$0xf0] %vm1502, %v1501
        %s1507 = scalar_lea.vmem %s50, 160
        %v1508 = vld.sshfl [vmem:[%s1507] sm:$0xff pattern:$0xb3a29180]
        %1509 = vrot.lane.b32.xlu0 %v1508, 96
        %v1510 = vpop.permute.xlu0 %1509
        %vm1511 = vcmask 130048
        %s1512 = scalar_lea.vmem %s45, 1282 [#allocation0]
        %1513 = vst.msk [vmem:[%s1512] ss:$8 sm:$0xf] %vm1511, %v1510
        %s1514 = scalar_lea.vmem %s45, 1282 [#allocation0]
        %1515 = vst.msk [vmem:[%s1514] ss:$8 sm:$0xf0] %vm1511, %v1510
        %s1516 = scalar_lea.vmem %s50, 164
        %v1517 = vld.sshfl [vmem:[%s1516] sm:$0xff pattern:$0xb3a29180]
        %1518 = vrot.lane.b32.xlu0 %v1517, 96
        %v1519 = vpop.permute.xlu0 %1518
        %vm1520 = vcmask 130048
        %s1521 = scalar_lea.vmem %s45, 1346 [#allocation0]
        %1522 = vst.msk [vmem:[%s1521] ss:$8 sm:$0xf] %vm1520, %v1519
        %s1523 = scalar_lea.vmem %s45, 1346 [#allocation0]
        %1524 = vst.msk [vmem:[%s1523] ss:$8 sm:$0xf0] %vm1520, %v1519
        %s1525 = scalar_lea.vmem %s50, 176
        %v1526 = vld.sshfl [vmem:[%s1525] sm:$0xff pattern:$0xb3a29180]
        %1527 = vrot.lane.b32.xlu0 %v1526, 96
        %v1528 = vpop.permute.xlu0 %1527
        %vm1529 = vcmask 130048
        %s1530 = scalar_lea.vmem %s45, 1410 [#allocation0]
        %1531 = vst.msk [vmem:[%s1530] ss:$8 sm:$0xf] %vm1529, %v1528
        %s1532 = scalar_lea.vmem %s45, 1410 [#allocation0]
        %1533 = vst.msk [vmem:[%s1532] ss:$8 sm:$0xf0] %vm1529, %v1528
        %s1534 = scalar_lea.vmem %s50, 180
        %v1535 = vld.sshfl [vmem:[%s1534] sm:$0xff pattern:$0xb3a29180]
        %1536 = vrot.lane.b32.xlu0 %v1535, 96
        %v1537 = vpop.permute.xlu0 %1536
        %vm1538 = vcmask 130048
        %s1539 = scalar_lea.vmem %s45, 1474 [#allocation0]
        %1540 = vst.msk [vmem:[%s1539] ss:$8 sm:$0xf] %vm1538, %v1537
        %s1541 = scalar_lea.vmem %s45, 1474 [#allocation0]
        %1542 = vst.msk [vmem:[%s1541] ss:$8 sm:$0xf0] %vm1538, %v1537
        %s1543 = scalar_lea.vmem %s50, 192
        %v1544 = vld.sshfl [vmem:[%s1543] sm:$0xff pattern:$0xb3a29180]
        %1545 = vrot.lane.b32.xlu0 %v1544, 96
        %v1546 = vpop.permute.xlu0 %1545
        %vm1547 = vcmask 130048
        %s1548 = scalar_lea.vmem %s45, 1538 [#allocation0]
        %1549 = vst.msk [vmem:[%s1548] ss:$8 sm:$0xf] %vm1547, %v1546
        %s1550 = scalar_lea.vmem %s45, 1538 [#allocation0]
        %1551 = vst.msk [vmem:[%s1550] ss:$8 sm:$0xf0] %vm1547, %v1546
        %s1552 = scalar_lea.vmem %s50, 196
        %v1553 = vld.sshfl [vmem:[%s1552] sm:$0xff pattern:$0xb3a29180]
        %1554 = vrot.lane.b32.xlu0 %v1553, 96
        %v1555 = vpop.permute.xlu0 %1554
        %vm1556 = vcmask 130048
        %s1557 = scalar_lea.vmem %s45, 1602 [#allocation0]
        %1558 = vst.msk [vmem:[%s1557] ss:$8 sm:$0xf] %vm1556, %v1555
        %s1559 = scalar_lea.vmem %s45, 1602 [#allocation0]
        %1560 = vst.msk [vmem:[%s1559] ss:$8 sm:$0xf0] %vm1556, %v1555
        %s1561 = scalar_lea.vmem %s50, 208
        %v1562 = vld.sshfl [vmem:[%s1561] sm:$0xff pattern:$0xb3a29180]
        %1563 = vrot.lane.b32.xlu0 %v1562, 96
        %v1564 = vpop.permute.xlu0 %1563
        %vm1565 = vcmask 130048
        %s1566 = scalar_lea.vmem %s45, 1666 [#allocation0]
        %1567 = vst.msk [vmem:[%s1566] ss:$8 sm:$0xf] %vm1565, %v1564
        %s1568 = scalar_lea.vmem %s45, 1666 [#allocation0]
        %1569 = vst.msk [vmem:[%s1568] ss:$8 sm:$0xf0] %vm1565, %v1564
        %s1570 = scalar_lea.vmem %s50, 212
        %v1571 = vld.sshfl [vmem:[%s1570] sm:$0xff pattern:$0xb3a29180]
        %1572 = vrot.lane.b32.xlu0 %v1571, 96
        %v1573 = vpop.permute.xlu0 %1572
        %vm1574 = vcmask 130048
        %s1575 = scalar_lea.vmem %s45, 1730 [#allocation0]
        %1576 = vst.msk [vmem:[%s1575] ss:$8 sm:$0xf] %vm1574, %v1573
        %s1577 = scalar_lea.vmem %s45, 1730 [#allocation0]
        %1578 = vst.msk [vmem:[%s1577] ss:$8 sm:$0xf0] %vm1574, %v1573
        %s1579 = scalar_lea.vmem %s50, 224
        %v1580 = vld.sshfl [vmem:[%s1579] sm:$0xff pattern:$0xb3a29180]
        %1581 = vrot.lane.b32.xlu0 %v1580, 96
        %v1582 = vpop.permute.xlu0 %1581
        %vm1583 = vcmask 130048
        %s1584 = scalar_lea.vmem %s45, 1794 [#allocation0]
        %1585 = vst.msk [vmem:[%s1584] ss:$8 sm:$0xf] %vm1583, %v1582
        %s1586 = scalar_lea.vmem %s45, 1794 [#allocation0]
        %1587 = vst.msk [vmem:[%s1586] ss:$8 sm:$0xf0] %vm1583, %v1582
        %s1588 = scalar_lea.vmem %s50, 228
        %v1589 = vld.sshfl [vmem:[%s1588] sm:$0xff pattern:$0xb3a29180]
        %1590 = vrot.lane.b32.xlu0 %v1589, 96
        %v1591 = vpop.permute.xlu0 %1590
        %vm1592 = vcmask 130048
        %s1593 = scalar_lea.vmem %s45, 1858 [#allocation0]
        %1594 = vst.msk [vmem:[%s1593] ss:$8 sm:$0xf] %vm1592, %v1591
        %s1595 = scalar_lea.vmem %s45, 1858 [#allocation0]
        %1596 = vst.msk [vmem:[%s1595] ss:$8 sm:$0xf0] %vm1592, %v1591
        %s1597 = scalar_lea.vmem %s50, 240
        %v1598 = vld.sshfl [vmem:[%s1597] sm:$0xff pattern:$0xb3a29180]
        %1599 = vrot.lane.b32.xlu0 %v1598, 96
        %v1600 = vpop.permute.xlu0 %1599
        %vm1601 = vcmask 130048
        %s1602 = scalar_lea.vmem %s45, 1922 [#allocation0]
        %1603 = vst.msk [vmem:[%s1602] ss:$8 sm:$0xf] %vm1601, %v1600
        %s1604 = scalar_lea.vmem %s45, 1922 [#allocation0]
        %1605 = vst.msk [vmem:[%s1604] ss:$8 sm:$0xf0] %vm1601, %v1600
        %s1606 = scalar_lea.vmem %s50, 244
        %v1607 = vld.sshfl [vmem:[%s1606] sm:$0xff pattern:$0xb3a29180]
        %1608 = vrot.lane.b32.xlu0 %v1607, 96
        %v1609 = vpop.permute.xlu0 %1608
        %vm1610 = vcmask 130048
        %s1611 = scalar_lea.vmem %s45, 1986 [#allocation0]
        %1612 = vst.msk [vmem:[%s1611] ss:$8 sm:$0xf] %vm1610, %v1609
        %s1613 = scalar_lea.vmem %s45, 1986 [#allocation0]
        %1614 = vst.msk [vmem:[%s1613] ss:$8 sm:$0xf0] %vm1610, %v1609
        %s1615 = scalar_lea.vmem %s50, 256
        %v1616 = vld.sshfl [vmem:[%s1615] sm:$0xff pattern:$0xb3a29180]
        %1617 = vrot.lane.b32.xlu0 %v1616, 96
        %v1618 = vpop.permute.xlu0 %1617
        %vm1619 = vcmask 130048
        %s1620 = scalar_lea.vmem %s45, 2050 [#allocation0]
        %1621 = vst.msk [vmem:[%s1620] ss:$8 sm:$0xf] %vm1619, %v1618
        %s1622 = scalar_lea.vmem %s45, 2050 [#allocation0]
        %1623 = vst.msk [vmem:[%s1622] ss:$8 sm:$0xf0] %vm1619, %v1618
        %s1624 = scalar_lea.vmem %s50, 260
        %v1625 = vld.sshfl [vmem:[%s1624] sm:$0xff pattern:$0xb3a29180]
        %1626 = vrot.lane.b32.xlu0 %v1625, 96
        %v1627 = vpop.permute.xlu0 %1626
        %vm1628 = vcmask 130048
        %s1629 = scalar_lea.vmem %s45, 2114 [#allocation0]
        %1630 = vst.msk [vmem:[%s1629] ss:$8 sm:$0xf] %vm1628, %v1627
        %s1631 = scalar_lea.vmem %s45, 2114 [#allocation0]
        %1632 = vst.msk [vmem:[%s1631] ss:$8 sm:$0xf0] %vm1628, %v1627
        %s1633 = scalar_lea.vmem %s50, 272
        %v1634 = vld.sshfl [vmem:[%s1633] sm:$0xff pattern:$0xb3a29180]
        %1635 = vrot.lane.b32.xlu0 %v1634, 96
        %v1636 = vpop.permute.xlu0 %1635
        %vm1637 = vcmask 130048
        %s1638 = scalar_lea.vmem %s45, 2178 [#allocation0]
        %1639 = vst.msk [vmem:[%s1638] ss:$8 sm:$0xf] %vm1637, %v1636
        %s1640 = scalar_lea.vmem %s45, 2178 [#allocation0]
        %1641 = vst.msk [vmem:[%s1640] ss:$8 sm:$0xf0] %vm1637, %v1636
        %s1642 = scalar_lea.vmem %s50, 276
        %v1643 = vld.sshfl [vmem:[%s1642] sm:$0xff pattern:$0xb3a29180]
        %1644 = vrot.lane.b32.xlu0 %v1643, 96
        %v1645 = vpop.permute.xlu0 %1644
        %vm1646 = vcmask 130048
        %s1647 = scalar_lea.vmem %s45, 2242 [#allocation0]
        %1648 = vst.msk [vmem:[%s1647] ss:$8 sm:$0xf] %vm1646, %v1645
        %s1649 = scalar_lea.vmem %s45, 2242 [#allocation0]
        %1650 = vst.msk [vmem:[%s1649] ss:$8 sm:$0xf0] %vm1646, %v1645
        %s1651 = scalar_lea.vmem %s50, 288
        %v1652 = vld.sshfl [vmem:[%s1651] sm:$0xff pattern:$0xb3a29180]
        %1653 = vrot.lane.b32.xlu0 %v1652, 96
        %v1654 = vpop.permute.xlu0 %1653
        %vm1655 = vcmask 130048
        %s1656 = scalar_lea.vmem %s45, 2306 [#allocation0]
        %1657 = vst.msk [vmem:[%s1656] ss:$8 sm:$0xf] %vm1655, %v1654
        %s1658 = scalar_lea.vmem %s45, 2306 [#allocation0]
        %1659 = vst.msk [vmem:[%s1658] ss:$8 sm:$0xf0] %vm1655, %v1654
        %s1660 = scalar_lea.vmem %s50, 292
        %v1661 = vld.sshfl [vmem:[%s1660] sm:$0xff pattern:$0xb3a29180]
        %1662 = vrot.lane.b32.xlu0 %v1661, 96
        %v1663 = vpop.permute.xlu0 %1662
        %vm1664 = vcmask 130048
        %s1665 = scalar_lea.vmem %s45, 2370 [#allocation0]
        %1666 = vst.msk [vmem:[%s1665] ss:$8 sm:$0xf] %vm1664, %v1663
        %s1667 = scalar_lea.vmem %s45, 2370 [#allocation0]
        %1668 = vst.msk [vmem:[%s1667] ss:$8 sm:$0xf0] %vm1664, %v1663
        %s1669 = scalar_lea.vmem %s50, 304
        %v1670 = vld.sshfl [vmem:[%s1669] sm:$0xff pattern:$0xb3a29180]
        %1671 = vrot.lane.b32.xlu0 %v1670, 96
        %v1672 = vpop.permute.xlu0 %1671
        %vm1673 = vcmask 130048
        %s1674 = scalar_lea.vmem %s45, 2434 [#allocation0]
        %1675 = vst.msk [vmem:[%s1674] ss:$8 sm:$0xf] %vm1673, %v1672
        %s1676 = scalar_lea.vmem %s45, 2434 [#allocation0]
        %1677 = vst.msk [vmem:[%s1676] ss:$8 sm:$0xf0] %vm1673, %v1672
        %s1678 = scalar_lea.vmem %s50, 308
        %v1679 = vld.sshfl [vmem:[%s1678] sm:$0xff pattern:$0xb3a29180]
        %1680 = vrot.lane.b32.xlu0 %v1679, 96
        %v1681 = vpop.permute.xlu0 %1680
        %vm1682 = vcmask 130048
        %s1683 = scalar_lea.vmem %s45, 2498 [#allocation0]
        %1684 = vst.msk [vmem:[%s1683] ss:$8 sm:$0xf] %vm1682, %v1681
        %s1685 = scalar_lea.vmem %s45, 2498 [#allocation0]
        %1686 = vst.msk [vmem:[%s1685] ss:$8 sm:$0xf0] %vm1682, %v1681
        %s1687 = scalar_lea.vmem %s50, 320
        %v1688 = vld.sshfl [vmem:[%s1687] sm:$0xff pattern:$0xb3a29180]
        %1689 = vrot.lane.b32.xlu0 %v1688, 96
        %v1690 = vpop.permute.xlu0 %1689
        %vm1691 = vcmask 130048
        %s1692 = scalar_lea.vmem %s45, 2562 [#allocation0]
        %1693 = vst.msk [vmem:[%s1692] ss:$8 sm:$0xf] %vm1691, %v1690
        %s1694 = scalar_lea.vmem %s45, 2562 [#allocation0]
        %1695 = vst.msk [vmem:[%s1694] ss:$8 sm:$0xf0] %vm1691, %v1690
        %s1696 = scalar_lea.vmem %s50, 324
        %v1697 = vld.sshfl [vmem:[%s1696] sm:$0xff pattern:$0xb3a29180]
        %1698 = vrot.lane.b32.xlu0 %v1697, 96
        %v1699 = vpop.permute.xlu0 %1698
        %vm1700 = vcmask 130048
        %s1701 = scalar_lea.vmem %s45, 2626 [#allocation0]
        %1702 = vst.msk [vmem:[%s1701] ss:$8 sm:$0xf] %vm1700, %v1699
        %s1703 = scalar_lea.vmem %s45, 2626 [#allocation0]
        %1704 = vst.msk [vmem:[%s1703] ss:$8 sm:$0xf0] %vm1700, %v1699
        %s1705 = scalar_lea.vmem %s50, 336
        %v1706 = vld.sshfl [vmem:[%s1705] sm:$0xff pattern:$0xb3a29180]
        %1707 = vrot.lane.b32.xlu0 %v1706, 96
        %v1708 = vpop.permute.xlu0 %1707
        %vm1709 = vcmask 130048
        %s1710 = scalar_lea.vmem %s45, 2690 [#allocation0]
        %1711 = vst.msk [vmem:[%s1710] ss:$8 sm:$0xf] %vm1709, %v1708
        %s1712 = scalar_lea.vmem %s45, 2690 [#allocation0]
        %1713 = vst.msk [vmem:[%s1712] ss:$8 sm:$0xf0] %vm1709, %v1708
        %s1714 = scalar_lea.vmem %s50, 340
        %v1715 = vld.sshfl [vmem:[%s1714] sm:$0xff pattern:$0xb3a29180]
        %1716 = vrot.lane.b32.xlu0 %v1715, 96
        %v1717 = vpop.permute.xlu0 %1716
        %vm1718 = vcmask 130048
        %s1719 = scalar_lea.vmem %s45, 2754 [#allocation0]
        %1720 = vst.msk [vmem:[%s1719] ss:$8 sm:$0xf] %vm1718, %v1717
        %s1721 = scalar_lea.vmem %s45, 2754 [#allocation0]
        %1722 = vst.msk [vmem:[%s1721] ss:$8 sm:$0xf0] %vm1718, %v1717
        %s1723 = scalar_lea.vmem %s50, 352
        %v1724 = vld.sshfl [vmem:[%s1723] sm:$0xff pattern:$0xb3a29180]
        %1725 = vrot.lane.b32.xlu0 %v1724, 96
        %v1726 = vpop.permute.xlu0 %1725
        %vm1727 = vcmask 130048
        %s1728 = scalar_lea.vmem %s45, 2818 [#allocation0]
        %1729 = vst.msk [vmem:[%s1728] ss:$8 sm:$0xf] %vm1727, %v1726
        %s1730 = scalar_lea.vmem %s45, 2818 [#allocation0]
        %1731 = vst.msk [vmem:[%s1730] ss:$8 sm:$0xf0] %vm1727, %v1726
        %s1732 = scalar_lea.vmem %s50, 356
        %v1733 = vld.sshfl [vmem:[%s1732] sm:$0xff pattern:$0xb3a29180]
        %1734 = vrot.lane.b32.xlu0 %v1733, 96
        %v1735 = vpop.permute.xlu0 %1734
        %vm1736 = vcmask 130048
        %s1737 = scalar_lea.vmem %s45, 2882 [#allocation0]
        %1738 = vst.msk [vmem:[%s1737] ss:$8 sm:$0xf] %vm1736, %v1735
        %s1739 = scalar_lea.vmem %s45, 2882 [#allocation0]
        %1740 = vst.msk [vmem:[%s1739] ss:$8 sm:$0xf0] %vm1736, %v1735
        %s1741 = scalar_lea.vmem %s50, 368
        %v1742 = vld.sshfl [vmem:[%s1741] sm:$0xff pattern:$0xb3a29180]
        %1743 = vrot.lane.b32.xlu0 %v1742, 96
        %v1744 = vpop.permute.xlu0 %1743
        %vm1745 = vcmask 130048
        %s1746 = scalar_lea.vmem %s45, 2946 [#allocation0]
        %1747 = vst.msk [vmem:[%s1746] ss:$8 sm:$0xf] %vm1745, %v1744
        %s1748 = scalar_lea.vmem %s45, 2946 [#allocation0]
        %1749 = vst.msk [vmem:[%s1748] ss:$8 sm:$0xf0] %vm1745, %v1744
        %s1750 = scalar_lea.vmem %s50, 372
        %v1751 = vld.sshfl [vmem:[%s1750] sm:$0xff pattern:$0xb3a29180]
        %1752 = vrot.lane.b32.xlu0 %v1751, 96
        %v1753 = vpop.permute.xlu0 %1752
        %vm1754 = vcmask 130048
        %s1755 = scalar_lea.vmem %s45, 3010 [#allocation0]
        %1756 = vst.msk [vmem:[%s1755] ss:$8 sm:$0xf] %vm1754, %v1753
        %s1757 = scalar_lea.vmem %s45, 3010 [#allocation0]
        %1758 = vst.msk [vmem:[%s1757] ss:$8 sm:$0xf0] %vm1754, %v1753
        %s1759 = scalar_lea.vmem %s50, 384
        %v1760 = vld.sshfl [vmem:[%s1759] sm:$0xff pattern:$0xb3a29180]
        %1761 = vrot.lane.b32.xlu0 %v1760, 96
        %v1762 = vpop.permute.xlu0 %1761
        %vm1763 = vcmask 130048
        %s1764 = scalar_lea.vmem %s45, 3074 [#allocation0]
        %1765 = vst.msk [vmem:[%s1764] ss:$8 sm:$0xf] %vm1763, %v1762
        %s1766 = scalar_lea.vmem %s45, 3074 [#allocation0]
        %1767 = vst.msk [vmem:[%s1766] ss:$8 sm:$0xf0] %vm1763, %v1762
        %s1768 = scalar_lea.vmem %s50, 388
        %v1769 = vld.sshfl [vmem:[%s1768] sm:$0xff pattern:$0xb3a29180]
        %1770 = vrot.lane.b32.xlu0 %v1769, 96
        %v1771 = vpop.permute.xlu0 %1770
        %vm1772 = vcmask 130048
        %s1773 = scalar_lea.vmem %s45, 3138 [#allocation0]
        %1774 = vst.msk [vmem:[%s1773] ss:$8 sm:$0xf] %vm1772, %v1771
        %s1775 = scalar_lea.vmem %s45, 3138 [#allocation0]
        %1776 = vst.msk [vmem:[%s1775] ss:$8 sm:$0xf0] %vm1772, %v1771
        %s1777 = scalar_lea.vmem %s50, 400
        %v1778 = vld.sshfl [vmem:[%s1777] sm:$0xff pattern:$0xb3a29180]
        %1779 = vrot.lane.b32.xlu0 %v1778, 96
        %v1780 = vpop.permute.xlu0 %1779
        %vm1781 = vcmask 130048
        %s1782 = scalar_lea.vmem %s45, 3202 [#allocation0]
        %1783 = vst.msk [vmem:[%s1782] ss:$8 sm:$0xf] %vm1781, %v1780
        %s1784 = scalar_lea.vmem %s45, 3202 [#allocation0]
        %1785 = vst.msk [vmem:[%s1784] ss:$8 sm:$0xf0] %vm1781, %v1780
        %s1786 = scalar_lea.vmem %s50, 404
        %v1787 = vld.sshfl [vmem:[%s1786] sm:$0xff pattern:$0xb3a29180]
        %1788 = vrot.lane.b32.xlu0 %v1787, 96
        %v1789 = vpop.permute.xlu0 %1788
        %vm1790 = vcmask 130048
        %s1791 = scalar_lea.vmem %s45, 3266 [#allocation0]
        %1792 = vst.msk [vmem:[%s1791] ss:$8 sm:$0xf] %vm1790, %v1789
        %s1793 = scalar_lea.vmem %s45, 3266 [#allocation0]
        %1794 = vst.msk [vmem:[%s1793] ss:$8 sm:$0xf0] %vm1790, %v1789
        %s1795 = scalar_lea.vmem %s50, 416
        %v1796 = vld.sshfl [vmem:[%s1795] sm:$0xff pattern:$0xb3a29180]
        %1797 = vrot.lane.b32.xlu0 %v1796, 96
        %v1798 = vpop.permute.xlu0 %1797
        %vm1799 = vcmask 130048
        %s1800 = scalar_lea.vmem %s45, 3330 [#allocation0]
        %1801 = vst.msk [vmem:[%s1800] ss:$8 sm:$0xf] %vm1799, %v1798
        %s1802 = scalar_lea.vmem %s45, 3330 [#allocation0]
        %1803 = vst.msk [vmem:[%s1802] ss:$8 sm:$0xf0] %vm1799, %v1798
        %s1804 = scalar_lea.vmem %s50, 420
        %v1805 = vld.sshfl [vmem:[%s1804] sm:$0xff pattern:$0xb3a29180]
        %1806 = vrot.lane.b32.xlu0 %v1805, 96
        %v1807 = vpop.permute.xlu0 %1806
        %vm1808 = vcmask 130048
        %s1809 = scalar_lea.vmem %s45, 3394 [#allocation0]
        %1810 = vst.msk [vmem:[%s1809] ss:$8 sm:$0xf] %vm1808, %v1807
        %s1811 = scalar_lea.vmem %s45, 3394 [#allocation0]
        %1812 = vst.msk [vmem:[%s1811] ss:$8 sm:$0xf0] %vm1808, %v1807
        %s1813 = scalar_lea.vmem %s50, 432
        %v1814 = vld.sshfl [vmem:[%s1813] sm:$0xff pattern:$0xb3a29180]
        %1815 = vrot.lane.b32.xlu0 %v1814, 96
        %v1816 = vpop.permute.xlu0 %1815
        %vm1817 = vcmask 130048
        %s1818 = scalar_lea.vmem %s45, 3458 [#allocation0]
        %1819 = vst.msk [vmem:[%s1818] ss:$8 sm:$0xf] %vm1817, %v1816
        %s1820 = scalar_lea.vmem %s45, 3458 [#allocation0]
        %1821 = vst.msk [vmem:[%s1820] ss:$8 sm:$0xf0] %vm1817, %v1816
        %s1822 = scalar_lea.vmem %s50, 436
        %v1823 = vld.sshfl [vmem:[%s1822] sm:$0xff pattern:$0xb3a29180]
        %1824 = vrot.lane.b32.xlu0 %v1823, 96
        %v1825 = vpop.permute.xlu0 %1824
        %vm1826 = vcmask 130048
        %s1827 = scalar_lea.vmem %s45, 3522 [#allocation0]
        %1828 = vst.msk [vmem:[%s1827] ss:$8 sm:$0xf] %vm1826, %v1825
        %s1829 = scalar_lea.vmem %s45, 3522 [#allocation0]
        %1830 = vst.msk [vmem:[%s1829] ss:$8 sm:$0xf0] %vm1826, %v1825
        %s1831 = scalar_lea.vmem %s50, 448
        %v1832 = vld.sshfl [vmem:[%s1831] sm:$0xff pattern:$0xb3a29180]
        %1833 = vrot.lane.b32.xlu0 %v1832, 96
        %v1834 = vpop.permute.xlu0 %1833
        %vm1835 = vcmask 130048
        %s1836 = scalar_lea.vmem %s45, 3586 [#allocation0]
        %1837 = vst.msk [vmem:[%s1836] ss:$8 sm:$0xf] %vm1835, %v1834
        %s1838 = scalar_lea.vmem %s45, 3586 [#allocation0]
        %1839 = vst.msk [vmem:[%s1838] ss:$8 sm:$0xf0] %vm1835, %v1834
        %s1840 = scalar_lea.vmem %s50, 452
        %v1841 = vld.sshfl [vmem:[%s1840] sm:$0xff pattern:$0xb3a29180]
        %1842 = vrot.lane.b32.xlu0 %v1841, 96
        %v1843 = vpop.permute.xlu0 %1842
        %vm1844 = vcmask 130048
        %s1845 = scalar_lea.vmem %s45, 3650 [#allocation0]
        %1846 = vst.msk [vmem:[%s1845] ss:$8 sm:$0xf] %vm1844, %v1843
        %s1847 = scalar_lea.vmem %s45, 3650 [#allocation0]
        %1848 = vst.msk [vmem:[%s1847] ss:$8 sm:$0xf0] %vm1844, %v1843
        %s1849 = scalar_lea.vmem %s50, 464
        %v1850 = vld.sshfl [vmem:[%s1849] sm:$0xff pattern:$0xb3a29180]
        %1851 = vrot.lane.b32.xlu0 %v1850, 96
        %v1852 = vpop.permute.xlu0 %1851
        %vm1853 = vcmask 130048
        %s1854 = scalar_lea.vmem %s45, 3714 [#allocation0]
        %1855 = vst.msk [vmem:[%s1854] ss:$8 sm:$0xf] %vm1853, %v1852
        %s1856 = scalar_lea.vmem %s45, 3714 [#allocation0]
        %1857 = vst.msk [vmem:[%s1856] ss:$8 sm:$0xf0] %vm1853, %v1852
        %s1858 = scalar_lea.vmem %s50, 468
        %v1859 = vld.sshfl [vmem:[%s1858] sm:$0xff pattern:$0xb3a29180]
        %1860 = vrot.lane.b32.xlu0 %v1859, 96
        %v1861 = vpop.permute.xlu0 %1860
        %vm1862 = vcmask 130048
        %s1863 = scalar_lea.vmem %s45, 3778 [#allocation0]
        %1864 = vst.msk [vmem:[%s1863] ss:$8 sm:$0xf] %vm1862, %v1861
        %s1865 = scalar_lea.vmem %s45, 3778 [#allocation0]
        %1866 = vst.msk [vmem:[%s1865] ss:$8 sm:$0xf0] %vm1862, %v1861
        %s1867 = scalar_lea.vmem %s50, 480
        %v1868 = vld.sshfl [vmem:[%s1867] sm:$0xff pattern:$0xb3a29180]
        %1869 = vrot.lane.b32.xlu0 %v1868, 96
        %v1870 = vpop.permute.xlu0 %1869
        %vm1871 = vcmask 130048
        %s1872 = scalar_lea.vmem %s45, 3842 [#allocation0]
        %1873 = vst.msk [vmem:[%s1872] ss:$8 sm:$0xf] %vm1871, %v1870
        %s1874 = scalar_lea.vmem %s45, 3842 [#allocation0]
        %1875 = vst.msk [vmem:[%s1874] ss:$8 sm:$0xf0] %vm1871, %v1870
        %s1876 = scalar_lea.vmem %s50, 484
        %v1877 = vld.sshfl [vmem:[%s1876] sm:$0xff pattern:$0xb3a29180]
        %1878 = vrot.lane.b32.xlu0 %v1877, 96
        %v1879 = vpop.permute.xlu0 %1878
        %vm1880 = vcmask 130048
        %s1881 = scalar_lea.vmem %s45, 3906 [#allocation0]
        %1882 = vst.msk [vmem:[%s1881] ss:$8 sm:$0xf] %vm1880, %v1879
        %s1883 = scalar_lea.vmem %s45, 3906 [#allocation0]
        %1884 = vst.msk [vmem:[%s1883] ss:$8 sm:$0xf0] %vm1880, %v1879
        %s1885 = scalar_lea.vmem %s50, 496
        %v1886 = vld.sshfl [vmem:[%s1885] sm:$0xff pattern:$0xb3a29180]
        %1887 = vrot.lane.b32.xlu0 %v1886, 96
        %v1888 = vpop.permute.xlu0 %1887
        %vm1889 = vcmask 130048
        %s1890 = scalar_lea.vmem %s45, 3970 [#allocation0]
        %1891 = vst.msk [vmem:[%s1890] ss:$8 sm:$0xf] %vm1889, %v1888
        %s1892 = scalar_lea.vmem %s45, 3970 [#allocation0]
        %1893 = vst.msk [vmem:[%s1892] ss:$8 sm:$0xf0] %vm1889, %v1888
        %s1894 = scalar_lea.vmem %s50, 500
        %v1895 = vld.sshfl [vmem:[%s1894] sm:$0xff pattern:$0xb3a29180]
        %1896 = vrot.lane.b32.xlu0 %v1895, 96
        %v1897 = vpop.permute.xlu0 %1896
        %vm1898 = vcmask 130048
        %s1899 = scalar_lea.vmem %s45, 4034 [#allocation0]
        %1900 = vst.msk [vmem:[%s1899] ss:$8 sm:$0xf] %vm1898, %v1897
        %s1901 = scalar_lea.vmem %s45, 4034 [#allocation0]
        %1902 = vst.msk [vmem:[%s1901] ss:$8 sm:$0xf0] %vm1898, %v1897
        %v1903 = vld.sshfl [vmem:[%s50] sm:$0xff pattern:$0xb3a29180]
        %1904 = vrot.lane.b32.xlu0 %v1903, 80
        %v1905 = vpop.permute.xlu0 %1904
        %vm1906 = vcmask 130048
        %s1907 = scalar_lea.vmem %s45, 3 [#allocation0]
        %1908 = vst.msk [vmem:[%s1907] ss:$8 sm:$0xf] %vm1906, %v1905
        %s1909 = scalar_lea.vmem %s45, 3 [#allocation0]
        %1910 = vst.msk [vmem:[%s1909] ss:$8 sm:$0xf0] %vm1906, %v1905
        %s1911 = scalar_lea.vmem %s50, 4
        %v1912 = vld.sshfl [vmem:[%s1911] sm:$0xff pattern:$0xb3a29180]
        %1913 = vrot.lane.b32.xlu0 %v1912, 80
        %v1914 = vpop.permute.xlu0 %1913
        %vm1915 = vcmask 130048
        %s1916 = scalar_lea.vmem %s45, 67 [#allocation0]
        %1917 = vst.msk [vmem:[%s1916] ss:$8 sm:$0xf] %vm1915, %v1914
        %s1918 = scalar_lea.vmem %s45, 67 [#allocation0]
        %1919 = vst.msk [vmem:[%s1918] ss:$8 sm:$0xf0] %vm1915, %v1914
        %s1920 = scalar_lea.vmem %s50, 16
        %v1921 = vld.sshfl [vmem:[%s1920] sm:$0xff pattern:$0xb3a29180]
        %1922 = vrot.lane.b32.xlu0 %v1921, 80
        %v1923 = vpop.permute.xlu0 %1922
        %vm1924 = vcmask 130048
        %s1925 = scalar_lea.vmem %s45, 131 [#allocation0]
        %1926 = vst.msk [vmem:[%s1925] ss:$8 sm:$0xf] %vm1924, %v1923
        %s1927 = scalar_lea.vmem %s45, 131 [#allocation0]
        %1928 = vst.msk [vmem:[%s1927] ss:$8 sm:$0xf0] %vm1924, %v1923
        %s1929 = scalar_lea.vmem %s50, 20
        %v1930 = vld.sshfl [vmem:[%s1929] sm:$0xff pattern:$0xb3a29180]
        %1931 = vrot.lane.b32.xlu0 %v1930, 80
        %v1932 = vpop.permute.xlu0 %1931
        %vm1933 = vcmask 130048
        %s1934 = scalar_lea.vmem %s45, 195 [#allocation0]
        %1935 = vst.msk [vmem:[%s1934] ss:$8 sm:$0xf] %vm1933, %v1932
        %s1936 = scalar_lea.vmem %s45, 195 [#allocation0]
        %1937 = vst.msk [vmem:[%s1936] ss:$8 sm:$0xf0] %vm1933, %v1932
        %s1938 = scalar_lea.vmem %s50, 32
        %v1939 = vld.sshfl [vmem:[%s1938] sm:$0xff pattern:$0xb3a29180]
        %1940 = vrot.lane.b32.xlu0 %v1939, 80
        %v1941 = vpop.permute.xlu0 %1940
        %vm1942 = vcmask 130048
        %s1943 = scalar_lea.vmem %s45, 259 [#allocation0]
        %1944 = vst.msk [vmem:[%s1943] ss:$8 sm:$0xf] %vm1942, %v1941
        %s1945 = scalar_lea.vmem %s45, 259 [#allocation0]
        %1946 = vst.msk [vmem:[%s1945] ss:$8 sm:$0xf0] %vm1942, %v1941
        %s1947 = scalar_lea.vmem %s50, 36
        %v1948 = vld.sshfl [vmem:[%s1947] sm:$0xff pattern:$0xb3a29180]
        %1949 = vrot.lane.b32.xlu0 %v1948, 80
        %v1950 = vpop.permute.xlu0 %1949
        %vm1951 = vcmask 130048
        %s1952 = scalar_lea.vmem %s45, 323 [#allocation0]
        %1953 = vst.msk [vmem:[%s1952] ss:$8 sm:$0xf] %vm1951, %v1950
        %s1954 = scalar_lea.vmem %s45, 323 [#allocation0]
        %1955 = vst.msk [vmem:[%s1954] ss:$8 sm:$0xf0] %vm1951, %v1950
        %s1956 = scalar_lea.vmem %s50, 48
        %v1957 = vld.sshfl [vmem:[%s1956] sm:$0xff pattern:$0xb3a29180]
        %1958 = vrot.lane.b32.xlu0 %v1957, 80
        %v1959 = vpop.permute.xlu0 %1958
        %vm1960 = vcmask 130048
        %s1961 = scalar_lea.vmem %s45, 387 [#allocation0]
        %1962 = vst.msk [vmem:[%s1961] ss:$8 sm:$0xf] %vm1960, %v1959
        %s1963 = scalar_lea.vmem %s45, 387 [#allocation0]
        %1964 = vst.msk [vmem:[%s1963] ss:$8 sm:$0xf0] %vm1960, %v1959
        %s1965 = scalar_lea.vmem %s50, 52
        %v1966 = vld.sshfl [vmem:[%s1965] sm:$0xff pattern:$0xb3a29180]
        %1967 = vrot.lane.b32.xlu0 %v1966, 80
        %v1968 = vpop.permute.xlu0 %1967
        %vm1969 = vcmask 130048
        %s1970 = scalar_lea.vmem %s45, 451 [#allocation0]
        %1971 = vst.msk [vmem:[%s1970] ss:$8 sm:$0xf] %vm1969, %v1968
        %s1972 = scalar_lea.vmem %s45, 451 [#allocation0]
        %1973 = vst.msk [vmem:[%s1972] ss:$8 sm:$0xf0] %vm1969, %v1968
        %s1974 = scalar_lea.vmem %s50, 64
        %v1975 = vld.sshfl [vmem:[%s1974] sm:$0xff pattern:$0xb3a29180]
        %1976 = vrot.lane.b32.xlu0 %v1975, 80
        %v1977 = vpop.permute.xlu0 %1976
        %vm1978 = vcmask 130048
        %s1979 = scalar_lea.vmem %s45, 515 [#allocation0]
        %1980 = vst.msk [vmem:[%s1979] ss:$8 sm:$0xf] %vm1978, %v1977
        %s1981 = scalar_lea.vmem %s45, 515 [#allocation0]
        %1982 = vst.msk [vmem:[%s1981] ss:$8 sm:$0xf0] %vm1978, %v1977
        %s1983 = scalar_lea.vmem %s50, 68
        %v1984 = vld.sshfl [vmem:[%s1983] sm:$0xff pattern:$0xb3a29180]
        %1985 = vrot.lane.b32.xlu0 %v1984, 80
        %v1986 = vpop.permute.xlu0 %1985
        %vm1987 = vcmask 130048
        %s1988 = scalar_lea.vmem %s45, 579 [#allocation0]
        %1989 = vst.msk [vmem:[%s1988] ss:$8 sm:$0xf] %vm1987, %v1986
        %s1990 = scalar_lea.vmem %s45, 579 [#allocation0]
        %1991 = vst.msk [vmem:[%s1990] ss:$8 sm:$0xf0] %vm1987, %v1986
        %s1992 = scalar_lea.vmem %s50, 80
        %v1993 = vld.sshfl [vmem:[%s1992] sm:$0xff pattern:$0xb3a29180]
        %1994 = vrot.lane.b32.xlu0 %v1993, 80
        %v1995 = vpop.permute.xlu0 %1994
        %vm1996 = vcmask 130048
        %s1997 = scalar_lea.vmem %s45, 643 [#allocation0]
        %1998 = vst.msk [vmem:[%s1997] ss:$8 sm:$0xf] %vm1996, %v1995
        %s1999 = scalar_lea.vmem %s45, 643 [#allocation0]
        %2000 = vst.msk [vmem:[%s1999] ss:$8 sm:$0xf0] %vm1996, %v1995
        %s2001 = scalar_lea.vmem %s50, 84
        %v2002 = vld.sshfl [vmem:[%s2001] sm:$0xff pattern:$0xb3a29180]
        %2003 = vrot.lane.b32.xlu0 %v2002, 80
        %v2004 = vpop.permute.xlu0 %2003
        %vm2005 = vcmask 130048
        %s2006 = scalar_lea.vmem %s45, 707 [#allocation0]
        %2007 = vst.msk [vmem:[%s2006] ss:$8 sm:$0xf] %vm2005, %v2004
        %s2008 = scalar_lea.vmem %s45, 707 [#allocation0]
        %2009 = vst.msk [vmem:[%s2008] ss:$8 sm:$0xf0] %vm2005, %v2004
        %s2010 = scalar_lea.vmem %s50, 96
        %v2011 = vld.sshfl [vmem:[%s2010] sm:$0xff pattern:$0xb3a29180]
        %2012 = vrot.lane.b32.xlu0 %v2011, 80
        %v2013 = vpop.permute.xlu0 %2012
        %vm2014 = vcmask 130048
        %s2015 = scalar_lea.vmem %s45, 771 [#allocation0]
        %2016 = vst.msk [vmem:[%s2015] ss:$8 sm:$0xf] %vm2014, %v2013
        %s2017 = scalar_lea.vmem %s45, 771 [#allocation0]
        %2018 = vst.msk [vmem:[%s2017] ss:$8 sm:$0xf0] %vm2014, %v2013
        %s2019 = scalar_lea.vmem %s50, 100
        %v2020 = vld.sshfl [vmem:[%s2019] sm:$0xff pattern:$0xb3a29180]
        %2021 = vrot.lane.b32.xlu0 %v2020, 80
        %v2022 = vpop.permute.xlu0 %2021
        %vm2023 = vcmask 130048
        %s2024 = scalar_lea.vmem %s45, 835 [#allocation0]
        %2025 = vst.msk [vmem:[%s2024] ss:$8 sm:$0xf] %vm2023, %v2022
        %s2026 = scalar_lea.vmem %s45, 835 [#allocation0]
        %2027 = vst.msk [vmem:[%s2026] ss:$8 sm:$0xf0] %vm2023, %v2022
        %s2028 = scalar_lea.vmem %s50, 112
        %v2029 = vld.sshfl [vmem:[%s2028] sm:$0xff pattern:$0xb3a29180]
        %2030 = vrot.lane.b32.xlu0 %v2029, 80
        %v2031 = vpop.permute.xlu0 %2030
        %vm2032 = vcmask 130048
        %s2033 = scalar_lea.vmem %s45, 899 [#allocation0]
        %2034 = vst.msk [vmem:[%s2033] ss:$8 sm:$0xf] %vm2032, %v2031
        %s2035 = scalar_lea.vmem %s45, 899 [#allocation0]
        %2036 = vst.msk [vmem:[%s2035] ss:$8 sm:$0xf0] %vm2032, %v2031
        %s2037 = scalar_lea.vmem %s50, 116
        %v2038 = vld.sshfl [vmem:[%s2037] sm:$0xff pattern:$0xb3a29180]
        %2039 = vrot.lane.b32.xlu0 %v2038, 80
        %v2040 = vpop.permute.xlu0 %2039
        %vm2041 = vcmask 130048
        %s2042 = scalar_lea.vmem %s45, 963 [#allocation0]
        %2043 = vst.msk [vmem:[%s2042] ss:$8 sm:$0xf] %vm2041, %v2040
        %s2044 = scalar_lea.vmem %s45, 963 [#allocation0]
        %2045 = vst.msk [vmem:[%s2044] ss:$8 sm:$0xf0] %vm2041, %v2040
        %s2046 = scalar_lea.vmem %s50, 128
        %v2047 = vld.sshfl [vmem:[%s2046] sm:$0xff pattern:$0xb3a29180]
        %2048 = vrot.lane.b32.xlu0 %v2047, 80
        %v2049 = vpop.permute.xlu0 %2048
        %vm2050 = vcmask 130048
        %s2051 = scalar_lea.vmem %s45, 1027 [#allocation0]
        %2052 = vst.msk [vmem:[%s2051] ss:$8 sm:$0xf] %vm2050, %v2049
        %s2053 = scalar_lea.vmem %s45, 1027 [#allocation0]
        %2054 = vst.msk [vmem:[%s2053] ss:$8 sm:$0xf0] %vm2050, %v2049
        %s2055 = scalar_lea.vmem %s50, 132
        %v2056 = vld.sshfl [vmem:[%s2055] sm:$0xff pattern:$0xb3a29180]
        %2057 = vrot.lane.b32.xlu0 %v2056, 80
        %v2058 = vpop.permute.xlu0 %2057
        %vm2059 = vcmask 130048
        %s2060 = scalar_lea.vmem %s45, 1091 [#allocation0]
        %2061 = vst.msk [vmem:[%s2060] ss:$8 sm:$0xf] %vm2059, %v2058
        %s2062 = scalar_lea.vmem %s45, 1091 [#allocation0]
        %2063 = vst.msk [vmem:[%s2062] ss:$8 sm:$0xf0] %vm2059, %v2058
        %s2064 = scalar_lea.vmem %s50, 144
        %v2065 = vld.sshfl [vmem:[%s2064] sm:$0xff pattern:$0xb3a29180]
        %2066 = vrot.lane.b32.xlu0 %v2065, 80
        %v2067 = vpop.permute.xlu0 %2066
        %vm2068 = vcmask 130048
        %s2069 = scalar_lea.vmem %s45, 1155 [#allocation0]
        %2070 = vst.msk [vmem:[%s2069] ss:$8 sm:$0xf] %vm2068, %v2067
        %s2071 = scalar_lea.vmem %s45, 1155 [#allocation0]
        %2072 = vst.msk [vmem:[%s2071] ss:$8 sm:$0xf0] %vm2068, %v2067
        %s2073 = scalar_lea.vmem %s50, 148
        %v2074 = vld.sshfl [vmem:[%s2073] sm:$0xff pattern:$0xb3a29180]
        %2075 = vrot.lane.b32.xlu0 %v2074, 80
        %v2076 = vpop.permute.xlu0 %2075
        %vm2077 = vcmask 130048
        %s2078 = scalar_lea.vmem %s45, 1219 [#allocation0]
        %2079 = vst.msk [vmem:[%s2078] ss:$8 sm:$0xf] %vm2077, %v2076
        %s2080 = scalar_lea.vmem %s45, 1219 [#allocation0]
        %2081 = vst.msk [vmem:[%s2080] ss:$8 sm:$0xf0] %vm2077, %v2076
        %s2082 = scalar_lea.vmem %s50, 160
        %v2083 = vld.sshfl [vmem:[%s2082] sm:$0xff pattern:$0xb3a29180]
        %2084 = vrot.lane.b32.xlu0 %v2083, 80
        %v2085 = vpop.permute.xlu0 %2084
        %vm2086 = vcmask 130048
        %s2087 = scalar_lea.vmem %s45, 1283 [#allocation0]
        %2088 = vst.msk [vmem:[%s2087] ss:$8 sm:$0xf] %vm2086, %v2085
        %s2089 = scalar_lea.vmem %s45, 1283 [#allocation0]
        %2090 = vst.msk [vmem:[%s2089] ss:$8 sm:$0xf0] %vm2086, %v2085
        %s2091 = scalar_lea.vmem %s50, 164
        %v2092 = vld.sshfl [vmem:[%s2091] sm:$0xff pattern:$0xb3a29180]
        %2093 = vrot.lane.b32.xlu0 %v2092, 80
        %v2094 = vpop.permute.xlu0 %2093
        %vm2095 = vcmask 130048
        %s2096 = scalar_lea.vmem %s45, 1347 [#allocation0]
        %2097 = vst.msk [vmem:[%s2096] ss:$8 sm:$0xf] %vm2095, %v2094
        %s2098 = scalar_lea.vmem %s45, 1347 [#allocation0]
        %2099 = vst.msk [vmem:[%s2098] ss:$8 sm:$0xf0] %vm2095, %v2094
        %s2100 = scalar_lea.vmem %s50, 176
        %v2101 = vld.sshfl [vmem:[%s2100] sm:$0xff pattern:$0xb3a29180]
        %2102 = vrot.lane.b32.xlu0 %v2101, 80
        %v2103 = vpop.permute.xlu0 %2102
        %vm2104 = vcmask 130048
        %s2105 = scalar_lea.vmem %s45, 1411 [#allocation0]
        %2106 = vst.msk [vmem:[%s2105] ss:$8 sm:$0xf] %vm2104, %v2103
        %s2107 = scalar_lea.vmem %s45, 1411 [#allocation0]
        %2108 = vst.msk [vmem:[%s2107] ss:$8 sm:$0xf0] %vm2104, %v2103
        %s2109 = scalar_lea.vmem %s50, 180
        %v2110 = vld.sshfl [vmem:[%s2109] sm:$0xff pattern:$0xb3a29180]
        %2111 = vrot.lane.b32.xlu0 %v2110, 80
        %v2112 = vpop.permute.xlu0 %2111
        %vm2113 = vcmask 130048
        %s2114 = scalar_lea.vmem %s45, 1475 [#allocation0]
        %2115 = vst.msk [vmem:[%s2114] ss:$8 sm:$0xf] %vm2113, %v2112
        %s2116 = scalar_lea.vmem %s45, 1475 [#allocation0]
        %2117 = vst.msk [vmem:[%s2116] ss:$8 sm:$0xf0] %vm2113, %v2112
        %s2118 = scalar_lea.vmem %s50, 192
        %v2119 = vld.sshfl [vmem:[%s2118] sm:$0xff pattern:$0xb3a29180]
        %2120 = vrot.lane.b32.xlu0 %v2119, 80
        %v2121 = vpop.permute.xlu0 %2120
        %vm2122 = vcmask 130048
        %s2123 = scalar_lea.vmem %s45, 1539 [#allocation0]
        %2124 = vst.msk [vmem:[%s2123] ss:$8 sm:$0xf] %vm2122, %v2121
        %s2125 = scalar_lea.vmem %s45, 1539 [#allocation0]
        %2126 = vst.msk [vmem:[%s2125] ss:$8 sm:$0xf0] %vm2122, %v2121
        %s2127 = scalar_lea.vmem %s50, 196
        %v2128 = vld.sshfl [vmem:[%s2127] sm:$0xff pattern:$0xb3a29180]
        %2129 = vrot.lane.b32.xlu0 %v2128, 80
        %v2130 = vpop.permute.xlu0 %2129
        %vm2131 = vcmask 130048
        %s2132 = scalar_lea.vmem %s45, 1603 [#allocation0]
        %2133 = vst.msk [vmem:[%s2132] ss:$8 sm:$0xf] %vm2131, %v2130
        %s2134 = scalar_lea.vmem %s45, 1603 [#allocation0]
        %2135 = vst.msk [vmem:[%s2134] ss:$8 sm:$0xf0] %vm2131, %v2130
        %s2136 = scalar_lea.vmem %s50, 208
        %v2137 = vld.sshfl [vmem:[%s2136] sm:$0xff pattern:$0xb3a29180]
        %2138 = vrot.lane.b32.xlu0 %v2137, 80
        %v2139 = vpop.permute.xlu0 %2138
        %vm2140 = vcmask 130048
        %s2141 = scalar_lea.vmem %s45, 1667 [#allocation0]
        %2142 = vst.msk [vmem:[%s2141] ss:$8 sm:$0xf] %vm2140, %v2139
        %s2143 = scalar_lea.vmem %s45, 1667 [#allocation0]
        %2144 = vst.msk [vmem:[%s2143] ss:$8 sm:$0xf0] %vm2140, %v2139
        %s2145 = scalar_lea.vmem %s50, 212
        %v2146 = vld.sshfl [vmem:[%s2145] sm:$0xff pattern:$0xb3a29180]
        %2147 = vrot.lane.b32.xlu0 %v2146, 80
        %v2148 = vpop.permute.xlu0 %2147
        %vm2149 = vcmask 130048
        %s2150 = scalar_lea.vmem %s45, 1731 [#allocation0]
        %2151 = vst.msk [vmem:[%s2150] ss:$8 sm:$0xf] %vm2149, %v2148
        %s2152 = scalar_lea.vmem %s45, 1731 [#allocation0]
        %2153 = vst.msk [vmem:[%s2152] ss:$8 sm:$0xf0] %vm2149, %v2148
        %s2154 = scalar_lea.vmem %s50, 224
        %v2155 = vld.sshfl [vmem:[%s2154] sm:$0xff pattern:$0xb3a29180]
        %2156 = vrot.lane.b32.xlu0 %v2155, 80
        %v2157 = vpop.permute.xlu0 %2156
        %vm2158 = vcmask 130048
        %s2159 = scalar_lea.vmem %s45, 1795 [#allocation0]
        %2160 = vst.msk [vmem:[%s2159] ss:$8 sm:$0xf] %vm2158, %v2157
        %s2161 = scalar_lea.vmem %s45, 1795 [#allocation0]
        %2162 = vst.msk [vmem:[%s2161] ss:$8 sm:$0xf0] %vm2158, %v2157
        %s2163 = scalar_lea.vmem %s50, 228
        %v2164 = vld.sshfl [vmem:[%s2163] sm:$0xff pattern:$0xb3a29180]
        %2165 = vrot.lane.b32.xlu0 %v2164, 80
        %v2166 = vpop.permute.xlu0 %2165
        %vm2167 = vcmask 130048
        %s2168 = scalar_lea.vmem %s45, 1859 [#allocation0]
        %2169 = vst.msk [vmem:[%s2168] ss:$8 sm:$0xf] %vm2167, %v2166
        %s2170 = scalar_lea.vmem %s45, 1859 [#allocation0]
        %2171 = vst.msk [vmem:[%s2170] ss:$8 sm:$0xf0] %vm2167, %v2166
        %s2172 = scalar_lea.vmem %s50, 240
        %v2173 = vld.sshfl [vmem:[%s2172] sm:$0xff pattern:$0xb3a29180]
        %2174 = vrot.lane.b32.xlu0 %v2173, 80
        %v2175 = vpop.permute.xlu0 %2174
        %vm2176 = vcmask 130048
        %s2177 = scalar_lea.vmem %s45, 1923 [#allocation0]
        %2178 = vst.msk [vmem:[%s2177] ss:$8 sm:$0xf] %vm2176, %v2175
        %s2179 = scalar_lea.vmem %s45, 1923 [#allocation0]
        %2180 = vst.msk [vmem:[%s2179] ss:$8 sm:$0xf0] %vm2176, %v2175
        %s2181 = scalar_lea.vmem %s50, 244
        %v2182 = vld.sshfl [vmem:[%s2181] sm:$0xff pattern:$0xb3a29180]
        %2183 = vrot.lane.b32.xlu0 %v2182, 80
        %v2184 = vpop.permute.xlu0 %2183
        %vm2185 = vcmask 130048
        %s2186 = scalar_lea.vmem %s45, 1987 [#allocation0]
        %2187 = vst.msk [vmem:[%s2186] ss:$8 sm:$0xf] %vm2185, %v2184
        %s2188 = scalar_lea.vmem %s45, 1987 [#allocation0]
        %2189 = vst.msk [vmem:[%s2188] ss:$8 sm:$0xf0] %vm2185, %v2184
        %s2190 = scalar_lea.vmem %s50, 256
        %v2191 = vld.sshfl [vmem:[%s2190] sm:$0xff pattern:$0xb3a29180]
        %2192 = vrot.lane.b32.xlu0 %v2191, 80
        %v2193 = vpop.permute.xlu0 %2192
        %vm2194 = vcmask 130048
        %s2195 = scalar_lea.vmem %s45, 2051 [#allocation0]
        %2196 = vst.msk [vmem:[%s2195] ss:$8 sm:$0xf] %vm2194, %v2193
        %s2197 = scalar_lea.vmem %s45, 2051 [#allocation0]
        %2198 = vst.msk [vmem:[%s2197] ss:$8 sm:$0xf0] %vm2194, %v2193
        %s2199 = scalar_lea.vmem %s50, 260
        %v2200 = vld.sshfl [vmem:[%s2199] sm:$0xff pattern:$0xb3a29180]
        %2201 = vrot.lane.b32.xlu0 %v2200, 80
        %v2202 = vpop.permute.xlu0 %2201
        %vm2203 = vcmask 130048
        %s2204 = scalar_lea.vmem %s45, 2115 [#allocation0]
        %2205 = vst.msk [vmem:[%s2204] ss:$8 sm:$0xf] %vm2203, %v2202
        %s2206 = scalar_lea.vmem %s45, 2115 [#allocation0]
        %2207 = vst.msk [vmem:[%s2206] ss:$8 sm:$0xf0] %vm2203, %v2202
        %s2208 = scalar_lea.vmem %s50, 272
        %v2209 = vld.sshfl [vmem:[%s2208] sm:$0xff pattern:$0xb3a29180]
        %2210 = vrot.lane.b32.xlu0 %v2209, 80
        %v2211 = vpop.permute.xlu0 %2210
        %vm2212 = vcmask 130048
        %s2213 = scalar_lea.vmem %s45, 2179 [#allocation0]
        %2214 = vst.msk [vmem:[%s2213] ss:$8 sm:$0xf] %vm2212, %v2211
        %s2215 = scalar_lea.vmem %s45, 2179 [#allocation0]
        %2216 = vst.msk [vmem:[%s2215] ss:$8 sm:$0xf0] %vm2212, %v2211
        %s2217 = scalar_lea.vmem %s50, 276
        %v2218 = vld.sshfl [vmem:[%s2217] sm:$0xff pattern:$0xb3a29180]
        %2219 = vrot.lane.b32.xlu0 %v2218, 80
        %v2220 = vpop.permute.xlu0 %2219
        %vm2221 = vcmask 130048
        %s2222 = scalar_lea.vmem %s45, 2243 [#allocation0]
        %2223 = vst.msk [vmem:[%s2222] ss:$8 sm:$0xf] %vm2221, %v2220
        %s2224 = scalar_lea.vmem %s45, 2243 [#allocation0]
        %2225 = vst.msk [vmem:[%s2224] ss:$8 sm:$0xf0] %vm2221, %v2220
        %s2226 = scalar_lea.vmem %s50, 288
        %v2227 = vld.sshfl [vmem:[%s2226] sm:$0xff pattern:$0xb3a29180]
        %2228 = vrot.lane.b32.xlu0 %v2227, 80
        %v2229 = vpop.permute.xlu0 %2228
        %vm2230 = vcmask 130048
        %s2231 = scalar_lea.vmem %s45, 2307 [#allocation0]
        %2232 = vst.msk [vmem:[%s2231] ss:$8 sm:$0xf] %vm2230, %v2229
        %s2233 = scalar_lea.vmem %s45, 2307 [#allocation0]
        %2234 = vst.msk [vmem:[%s2233] ss:$8 sm:$0xf0] %vm2230, %v2229
        %s2235 = scalar_lea.vmem %s50, 292
        %v2236 = vld.sshfl [vmem:[%s2235] sm:$0xff pattern:$0xb3a29180]
        %2237 = vrot.lane.b32.xlu0 %v2236, 80
        %v2238 = vpop.permute.xlu0 %2237
        %vm2239 = vcmask 130048
        %s2240 = scalar_lea.vmem %s45, 2371 [#allocation0]
        %2241 = vst.msk [vmem:[%s2240] ss:$8 sm:$0xf] %vm2239, %v2238
        %s2242 = scalar_lea.vmem %s45, 2371 [#allocation0]
        %2243 = vst.msk [vmem:[%s2242] ss:$8 sm:$0xf0] %vm2239, %v2238
        %s2244 = scalar_lea.vmem %s50, 304
        %v2245 = vld.sshfl [vmem:[%s2244] sm:$0xff pattern:$0xb3a29180]
        %2246 = vrot.lane.b32.xlu0 %v2245, 80
        %v2247 = vpop.permute.xlu0 %2246
        %vm2248 = vcmask 130048
        %s2249 = scalar_lea.vmem %s45, 2435 [#allocation0]
        %2250 = vst.msk [vmem:[%s2249] ss:$8 sm:$0xf] %vm2248, %v2247
        %s2251 = scalar_lea.vmem %s45, 2435 [#allocation0]
        %2252 = vst.msk [vmem:[%s2251] ss:$8 sm:$0xf0] %vm2248, %v2247
        %s2253 = scalar_lea.vmem %s50, 308
        %v2254 = vld.sshfl [vmem:[%s2253] sm:$0xff pattern:$0xb3a29180]
        %2255 = vrot.lane.b32.xlu0 %v2254, 80
        %v2256 = vpop.permute.xlu0 %2255
        %vm2257 = vcmask 130048
        %s2258 = scalar_lea.vmem %s45, 2499 [#allocation0]
        %2259 = vst.msk [vmem:[%s2258] ss:$8 sm:$0xf] %vm2257, %v2256
        %s2260 = scalar_lea.vmem %s45, 2499 [#allocation0]
        %2261 = vst.msk [vmem:[%s2260] ss:$8 sm:$0xf0] %vm2257, %v2256
        %s2262 = scalar_lea.vmem %s50, 320
        %v2263 = vld.sshfl [vmem:[%s2262] sm:$0xff pattern:$0xb3a29180]
        %2264 = vrot.lane.b32.xlu0 %v2263, 80
        %v2265 = vpop.permute.xlu0 %2264
        %vm2266 = vcmask 130048
        %s2267 = scalar_lea.vmem %s45, 2563 [#allocation0]
        %2268 = vst.msk [vmem:[%s2267] ss:$8 sm:$0xf] %vm2266, %v2265
        %s2269 = scalar_lea.vmem %s45, 2563 [#allocation0]
        %2270 = vst.msk [vmem:[%s2269] ss:$8 sm:$0xf0] %vm2266, %v2265
        %s2271 = scalar_lea.vmem %s50, 324
        %v2272 = vld.sshfl [vmem:[%s2271] sm:$0xff pattern:$0xb3a29180]
        %2273 = vrot.lane.b32.xlu0 %v2272, 80
        %v2274 = vpop.permute.xlu0 %2273
        %vm2275 = vcmask 130048
        %s2276 = scalar_lea.vmem %s45, 2627 [#allocation0]
        %2277 = vst.msk [vmem:[%s2276] ss:$8 sm:$0xf] %vm2275, %v2274
        %s2278 = scalar_lea.vmem %s45, 2627 [#allocation0]
        %2279 = vst.msk [vmem:[%s2278] ss:$8 sm:$0xf0] %vm2275, %v2274
        %s2280 = scalar_lea.vmem %s50, 336
        %v2281 = vld.sshfl [vmem:[%s2280] sm:$0xff pattern:$0xb3a29180]
        %2282 = vrot.lane.b32.xlu0 %v2281, 80
        %v2283 = vpop.permute.xlu0 %2282
        %vm2284 = vcmask 130048
        %s2285 = scalar_lea.vmem %s45, 2691 [#allocation0]
        %2286 = vst.msk [vmem:[%s2285] ss:$8 sm:$0xf] %vm2284, %v2283
        %s2287 = scalar_lea.vmem %s45, 2691 [#allocation0]
        %2288 = vst.msk [vmem:[%s2287] ss:$8 sm:$0xf0] %vm2284, %v2283
        %s2289 = scalar_lea.vmem %s50, 340
        %v2290 = vld.sshfl [vmem:[%s2289] sm:$0xff pattern:$0xb3a29180]
        %2291 = vrot.lane.b32.xlu0 %v2290, 80
        %v2292 = vpop.permute.xlu0 %2291
        %vm2293 = vcmask 130048
        %s2294 = scalar_lea.vmem %s45, 2755 [#allocation0]
        %2295 = vst.msk [vmem:[%s2294] ss:$8 sm:$0xf] %vm2293, %v2292
        %s2296 = scalar_lea.vmem %s45, 2755 [#allocation0]
        %2297 = vst.msk [vmem:[%s2296] ss:$8 sm:$0xf0] %vm2293, %v2292
        %s2298 = scalar_lea.vmem %s50, 352
        %v2299 = vld.sshfl [vmem:[%s2298] sm:$0xff pattern:$0xb3a29180]
        %2300 = vrot.lane.b32.xlu0 %v2299, 80
        %v2301 = vpop.permute.xlu0 %2300
        %vm2302 = vcmask 130048
        %s2303 = scalar_lea.vmem %s45, 2819 [#allocation0]
        %2304 = vst.msk [vmem:[%s2303] ss:$8 sm:$0xf] %vm2302, %v2301
        %s2305 = scalar_lea.vmem %s45, 2819 [#allocation0]
        %2306 = vst.msk [vmem:[%s2305] ss:$8 sm:$0xf0] %vm2302, %v2301
        %s2307 = scalar_lea.vmem %s50, 356
        %v2308 = vld.sshfl [vmem:[%s2307] sm:$0xff pattern:$0xb3a29180]
        %2309 = vrot.lane.b32.xlu0 %v2308, 80
        %v2310 = vpop.permute.xlu0 %2309
        %vm2311 = vcmask 130048
        %s2312 = scalar_lea.vmem %s45, 2883 [#allocation0]
        %2313 = vst.msk [vmem:[%s2312] ss:$8 sm:$0xf] %vm2311, %v2310
        %s2314 = scalar_lea.vmem %s45, 2883 [#allocation0]
        %2315 = vst.msk [vmem:[%s2314] ss:$8 sm:$0xf0] %vm2311, %v2310
        %s2316 = scalar_lea.vmem %s50, 368
        %v2317 = vld.sshfl [vmem:[%s2316] sm:$0xff pattern:$0xb3a29180]
        %2318 = vrot.lane.b32.xlu0 %v2317, 80
        %v2319 = vpop.permute.xlu0 %2318
        %vm2320 = vcmask 130048
        %s2321 = scalar_lea.vmem %s45, 2947 [#allocation0]
        %2322 = vst.msk [vmem:[%s2321] ss:$8 sm:$0xf] %vm2320, %v2319
        %s2323 = scalar_lea.vmem %s45, 2947 [#allocation0]
        %2324 = vst.msk [vmem:[%s2323] ss:$8 sm:$0xf0] %vm2320, %v2319
        %s2325 = scalar_lea.vmem %s50, 372
        %v2326 = vld.sshfl [vmem:[%s2325] sm:$0xff pattern:$0xb3a29180]
        %2327 = vrot.lane.b32.xlu0 %v2326, 80
        %v2328 = vpop.permute.xlu0 %2327
        %vm2329 = vcmask 130048
        %s2330 = scalar_lea.vmem %s45, 3011 [#allocation0]
        %2331 = vst.msk [vmem:[%s2330] ss:$8 sm:$0xf] %vm2329, %v2328
        %s2332 = scalar_lea.vmem %s45, 3011 [#allocation0]
        %2333 = vst.msk [vmem:[%s2332] ss:$8 sm:$0xf0] %vm2329, %v2328
        %s2334 = scalar_lea.vmem %s50, 384
        %v2335 = vld.sshfl [vmem:[%s2334] sm:$0xff pattern:$0xb3a29180]
        %2336 = vrot.lane.b32.xlu0 %v2335, 80
        %v2337 = vpop.permute.xlu0 %2336
        %vm2338 = vcmask 130048
        %s2339 = scalar_lea.vmem %s45, 3075 [#allocation0]
        %2340 = vst.msk [vmem:[%s2339] ss:$8 sm:$0xf] %vm2338, %v2337
        %s2341 = scalar_lea.vmem %s45, 3075 [#allocation0]
        %2342 = vst.msk [vmem:[%s2341] ss:$8 sm:$0xf0] %vm2338, %v2337
        %s2343 = scalar_lea.vmem %s50, 388
        %v2344 = vld.sshfl [vmem:[%s2343] sm:$0xff pattern:$0xb3a29180]
        %2345 = vrot.lane.b32.xlu0 %v2344, 80
        %v2346 = vpop.permute.xlu0 %2345
        %vm2347 = vcmask 130048
        %s2348 = scalar_lea.vmem %s45, 3139 [#allocation0]
        %2349 = vst.msk [vmem:[%s2348] ss:$8 sm:$0xf] %vm2347, %v2346
        %s2350 = scalar_lea.vmem %s45, 3139 [#allocation0]
        %2351 = vst.msk [vmem:[%s2350] ss:$8 sm:$0xf0] %vm2347, %v2346
        %s2352 = scalar_lea.vmem %s50, 400
        %v2353 = vld.sshfl [vmem:[%s2352] sm:$0xff pattern:$0xb3a29180]
        %2354 = vrot.lane.b32.xlu0 %v2353, 80
        %v2355 = vpop.permute.xlu0 %2354
        %vm2356 = vcmask 130048
        %s2357 = scalar_lea.vmem %s45, 3203 [#allocation0]
        %2358 = vst.msk [vmem:[%s2357] ss:$8 sm:$0xf] %vm2356, %v2355
        %s2359 = scalar_lea.vmem %s45, 3203 [#allocation0]
        %2360 = vst.msk [vmem:[%s2359] ss:$8 sm:$0xf0] %vm2356, %v2355
        %s2361 = scalar_lea.vmem %s50, 404
        %v2362 = vld.sshfl [vmem:[%s2361] sm:$0xff pattern:$0xb3a29180]
        %2363 = vrot.lane.b32.xlu0 %v2362, 80
        %v2364 = vpop.permute.xlu0 %2363
        %vm2365 = vcmask 130048
        %s2366 = scalar_lea.vmem %s45, 3267 [#allocation0]
        %2367 = vst.msk [vmem:[%s2366] ss:$8 sm:$0xf] %vm2365, %v2364
        %s2368 = scalar_lea.vmem %s45, 3267 [#allocation0]
        %2369 = vst.msk [vmem:[%s2368] ss:$8 sm:$0xf0] %vm2365, %v2364
        %s2370 = scalar_lea.vmem %s50, 416
        %v2371 = vld.sshfl [vmem:[%s2370] sm:$0xff pattern:$0xb3a29180]
        %2372 = vrot.lane.b32.xlu0 %v2371, 80
        %v2373 = vpop.permute.xlu0 %2372
        %vm2374 = vcmask 130048
        %s2375 = scalar_lea.vmem %s45, 3331 [#allocation0]
        %2376 = vst.msk [vmem:[%s2375] ss:$8 sm:$0xf] %vm2374, %v2373
        %s2377 = scalar_lea.vmem %s45, 3331 [#allocation0]
        %2378 = vst.msk [vmem:[%s2377] ss:$8 sm:$0xf0] %vm2374, %v2373
        %s2379 = scalar_lea.vmem %s50, 420
        %v2380 = vld.sshfl [vmem:[%s2379] sm:$0xff pattern:$0xb3a29180]
        %2381 = vrot.lane.b32.xlu0 %v2380, 80
        %v2382 = vpop.permute.xlu0 %2381
        %vm2383 = vcmask 130048
        %s2384 = scalar_lea.vmem %s45, 3395 [#allocation0]
        %2385 = vst.msk [vmem:[%s2384] ss:$8 sm:$0xf] %vm2383, %v2382
        %s2386 = scalar_lea.vmem %s45, 3395 [#allocation0]
        %2387 = vst.msk [vmem:[%s2386] ss:$8 sm:$0xf0] %vm2383, %v2382
        %s2388 = scalar_lea.vmem %s50, 432
        %v2389 = vld.sshfl [vmem:[%s2388] sm:$0xff pattern:$0xb3a29180]
        %2390 = vrot.lane.b32.xlu0 %v2389, 80
        %v2391 = vpop.permute.xlu0 %2390
        %vm2392 = vcmask 130048
        %s2393 = scalar_lea.vmem %s45, 3459 [#allocation0]
        %2394 = vst.msk [vmem:[%s2393] ss:$8 sm:$0xf] %vm2392, %v2391
        %s2395 = scalar_lea.vmem %s45, 3459 [#allocation0]
        %2396 = vst.msk [vmem:[%s2395] ss:$8 sm:$0xf0] %vm2392, %v2391
        %s2397 = scalar_lea.vmem %s50, 436
        %v2398 = vld.sshfl [vmem:[%s2397] sm:$0xff pattern:$0xb3a29180]
        %2399 = vrot.lane.b32.xlu0 %v2398, 80
        %v2400 = vpop.permute.xlu0 %2399
        %vm2401 = vcmask 130048
        %s2402 = scalar_lea.vmem %s45, 3523 [#allocation0]
        %2403 = vst.msk [vmem:[%s2402] ss:$8 sm:$0xf] %vm2401, %v2400
        %s2404 = scalar_lea.vmem %s45, 3523 [#allocation0]
        %2405 = vst.msk [vmem:[%s2404] ss:$8 sm:$0xf0] %vm2401, %v2400
        %s2406 = scalar_lea.vmem %s50, 448
        %v2407 = vld.sshfl [vmem:[%s2406] sm:$0xff pattern:$0xb3a29180]
        %2408 = vrot.lane.b32.xlu0 %v2407, 80
        %v2409 = vpop.permute.xlu0 %2408
        %vm2410 = vcmask 130048
        %s2411 = scalar_lea.vmem %s45, 3587 [#allocation0]
        %2412 = vst.msk [vmem:[%s2411] ss:$8 sm:$0xf] %vm2410, %v2409
        %s2413 = scalar_lea.vmem %s45, 3587 [#allocation0]
        %2414 = vst.msk [vmem:[%s2413] ss:$8 sm:$0xf0] %vm2410, %v2409
        %s2415 = scalar_lea.vmem %s50, 452
        %v2416 = vld.sshfl [vmem:[%s2415] sm:$0xff pattern:$0xb3a29180]
        %2417 = vrot.lane.b32.xlu0 %v2416, 80
        %v2418 = vpop.permute.xlu0 %2417
        %vm2419 = vcmask 130048
        %s2420 = scalar_lea.vmem %s45, 3651 [#allocation0]
        %2421 = vst.msk [vmem:[%s2420] ss:$8 sm:$0xf] %vm2419, %v2418
        %s2422 = scalar_lea.vmem %s45, 3651 [#allocation0]
        %2423 = vst.msk [vmem:[%s2422] ss:$8 sm:$0xf0] %vm2419, %v2418
        %s2424 = scalar_lea.vmem %s50, 464
        %v2425 = vld.sshfl [vmem:[%s2424] sm:$0xff pattern:$0xb3a29180]
        %2426 = vrot.lane.b32.xlu0 %v2425, 80
        %v2427 = vpop.permute.xlu0 %2426
        %vm2428 = vcmask 130048
        %s2429 = scalar_lea.vmem %s45, 3715 [#allocation0]
        %2430 = vst.msk [vmem:[%s2429] ss:$8 sm:$0xf] %vm2428, %v2427
        %s2431 = scalar_lea.vmem %s45, 3715 [#allocation0]
        %2432 = vst.msk [vmem:[%s2431] ss:$8 sm:$0xf0] %vm2428, %v2427
        %s2433 = scalar_lea.vmem %s50, 468
        %v2434 = vld.sshfl [vmem:[%s2433] sm:$0xff pattern:$0xb3a29180]
        %2435 = vrot.lane.b32.xlu0 %v2434, 80
        %v2436 = vpop.permute.xlu0 %2435
        %vm2437 = vcmask 130048
        %s2438 = scalar_lea.vmem %s45, 3779 [#allocation0]
        %2439 = vst.msk [vmem:[%s2438] ss:$8 sm:$0xf] %vm2437, %v2436
        %s2440 = scalar_lea.vmem %s45, 3779 [#allocation0]
        %2441 = vst.msk [vmem:[%s2440] ss:$8 sm:$0xf0] %vm2437, %v2436
        %s2442 = scalar_lea.vmem %s50, 480
        %v2443 = vld.sshfl [vmem:[%s2442] sm:$0xff pattern:$0xb3a29180]
        %2444 = vrot.lane.b32.xlu0 %v2443, 80
        %v2445 = vpop.permute.xlu0 %2444
        %vm2446 = vcmask 130048
        %s2447 = scalar_lea.vmem %s45, 3843 [#allocation0]
        %2448 = vst.msk [vmem:[%s2447] ss:$8 sm:$0xf] %vm2446, %v2445
        %s2449 = scalar_lea.vmem %s45, 3843 [#allocation0]
        %2450 = vst.msk [vmem:[%s2449] ss:$8 sm:$0xf0] %vm2446, %v2445
        %s2451 = scalar_lea.vmem %s50, 484
        %v2452 = vld.sshfl [vmem:[%s2451] sm:$0xff pattern:$0xb3a29180]
        %2453 = vrot.lane.b32.xlu0 %v2452, 80
        %v2454 = vpop.permute.xlu0 %2453
        %vm2455 = vcmask 130048
        %s2456 = scalar_lea.vmem %s45, 3907 [#allocation0]
        %2457 = vst.msk [vmem:[%s2456] ss:$8 sm:$0xf] %vm2455, %v2454
        %s2458 = scalar_lea.vmem %s45, 3907 [#allocation0]
        %2459 = vst.msk [vmem:[%s2458] ss:$8 sm:$0xf0] %vm2455, %v2454
        %s2460 = scalar_lea.vmem %s50, 496
        %v2461 = vld.sshfl [vmem:[%s2460] sm:$0xff pattern:$0xb3a29180]
        %2462 = vrot.lane.b32.xlu0 %v2461, 80
        %v2463 = vpop.permute.xlu0 %2462
        %vm2464 = vcmask 130048
        %s2465 = scalar_lea.vmem %s45, 3971 [#allocation0]
        %2466 = vst.msk [vmem:[%s2465] ss:$8 sm:$0xf] %vm2464, %v2463
        %s2467 = scalar_lea.vmem %s45, 3971 [#allocation0]
        %2468 = vst.msk [vmem:[%s2467] ss:$8 sm:$0xf0] %vm2464, %v2463
        %s2469 = scalar_lea.vmem %s50, 500
        %v2470 = vld.sshfl [vmem:[%s2469] sm:$0xff pattern:$0xb3a29180]
        %2471 = vrot.lane.b32.xlu0 %v2470, 80
        %v2472 = vpop.permute.xlu0 %2471
        %vm2473 = vcmask 130048
        %s2474 = scalar_lea.vmem %s45, 4035 [#allocation0]
        %2475 = vst.msk [vmem:[%s2474] ss:$8 sm:$0xf] %vm2473, %v2472
        %s2476 = scalar_lea.vmem %s45, 4035 [#allocation0]
        %2477 = vst.msk [vmem:[%s2476] ss:$8 sm:$0xf0] %vm2473, %v2472
        %v2478 = vld.sshfl [vmem:[%s50] sm:$0xff pattern:$0xb3a29180]
        %2479 = vrot.lane.b32.xlu0 %v2478, 64
        %v2480 = vpop.permute.xlu0 %2479
        %vm2481 = vcmask 130048
        %s2482 = scalar_lea.vmem %s45, 4 [#allocation0]
        %2483 = vst.msk [vmem:[%s2482] ss:$8 sm:$0xf] %vm2481, %v2480
        %s2484 = scalar_lea.vmem %s45, 4 [#allocation0]
        %2485 = vst.msk [vmem:[%s2484] ss:$8 sm:$0xf0] %vm2481, %v2480
        %s2486 = scalar_lea.vmem %s50, 4
        %v2487 = vld.sshfl [vmem:[%s2486] sm:$0xff pattern:$0xb3a29180]
        %2488 = vrot.lane.b32.xlu0 %v2487, 64
        %v2489 = vpop.permute.xlu0 %2488
        %vm2490 = vcmask 130048
        %s2491 = scalar_lea.vmem %s45, 68 [#allocation0]
        %2492 = vst.msk [vmem:[%s2491] ss:$8 sm:$0xf] %vm2490, %v2489
        %s2493 = scalar_lea.vmem %s45, 68 [#allocation0]
        %2494 = vst.msk [vmem:[%s2493] ss:$8 sm:$0xf0] %vm2490, %v2489
        %s2495 = scalar_lea.vmem %s50, 16
        %v2496 = vld.sshfl [vmem:[%s2495] sm:$0xff pattern:$0xb3a29180]
        %2497 = vrot.lane.b32.xlu0 %v2496, 64
        %v2498 = vpop.permute.xlu0 %2497
        %vm2499 = vcmask 130048
        %s2500 = scalar_lea.vmem %s45, 132 [#allocation0]
        %2501 = vst.msk [vmem:[%s2500] ss:$8 sm:$0xf] %vm2499, %v2498
        %s2502 = scalar_lea.vmem %s45, 132 [#allocation0]
        %2503 = vst.msk [vmem:[%s2502] ss:$8 sm:$0xf0] %vm2499, %v2498
        %s2504 = scalar_lea.vmem %s50, 20
        %v2505 = vld.sshfl [vmem:[%s2504] sm:$0xff pattern:$0xb3a29180]
        %2506 = vrot.lane.b32.xlu0 %v2505, 64
        %v2507 = vpop.permute.xlu0 %2506
        %vm2508 = vcmask 130048
        %s2509 = scalar_lea.vmem %s45, 196 [#allocation0]
        %2510 = vst.msk [vmem:[%s2509] ss:$8 sm:$0xf] %vm2508, %v2507
        %s2511 = scalar_lea.vmem %s45, 196 [#allocation0]
        %2512 = vst.msk [vmem:[%s2511] ss:$8 sm:$0xf0] %vm2508, %v2507
        %s2513 = scalar_lea.vmem %s50, 32
        %v2514 = vld.sshfl [vmem:[%s2513] sm:$0xff pattern:$0xb3a29180]
        %2515 = vrot.lane.b32.xlu0 %v2514, 64
        %v2516 = vpop.permute.xlu0 %2515
        %vm2517 = vcmask 130048
        %s2518 = scalar_lea.vmem %s45, 260 [#allocation0]
        %2519 = vst.msk [vmem:[%s2518] ss:$8 sm:$0xf] %vm2517, %v2516
        %s2520 = scalar_lea.vmem %s45, 260 [#allocation0]
        %2521 = vst.msk [vmem:[%s2520] ss:$8 sm:$0xf0] %vm2517, %v2516
        %s2522 = scalar_lea.vmem %s50, 36
        %v2523 = vld.sshfl [vmem:[%s2522] sm:$0xff pattern:$0xb3a29180]
        %2524 = vrot.lane.b32.xlu0 %v2523, 64
        %v2525 = vpop.permute.xlu0 %2524
        %vm2526 = vcmask 130048
        %s2527 = scalar_lea.vmem %s45, 324 [#allocation0]
        %2528 = vst.msk [vmem:[%s2527] ss:$8 sm:$0xf] %vm2526, %v2525
        %s2529 = scalar_lea.vmem %s45, 324 [#allocation0]
        %2530 = vst.msk [vmem:[%s2529] ss:$8 sm:$0xf0] %vm2526, %v2525
        %s2531 = scalar_lea.vmem %s50, 48
        %v2532 = vld.sshfl [vmem:[%s2531] sm:$0xff pattern:$0xb3a29180]
        %2533 = vrot.lane.b32.xlu0 %v2532, 64
        %v2534 = vpop.permute.xlu0 %2533
        %vm2535 = vcmask 130048
        %s2536 = scalar_lea.vmem %s45, 388 [#allocation0]
        %2537 = vst.msk [vmem:[%s2536] ss:$8 sm:$0xf] %vm2535, %v2534
        %s2538 = scalar_lea.vmem %s45, 388 [#allocation0]
        %2539 = vst.msk [vmem:[%s2538] ss:$8 sm:$0xf0] %vm2535, %v2534
        %s2540 = scalar_lea.vmem %s50, 52
        %v2541 = vld.sshfl [vmem:[%s2540] sm:$0xff pattern:$0xb3a29180]
        %2542 = vrot.lane.b32.xlu0 %v2541, 64
        %v2543 = vpop.permute.xlu0 %2542
        %vm2544 = vcmask 130048
        %s2545 = scalar_lea.vmem %s45, 452 [#allocation0]
        %2546 = vst.msk [vmem:[%s2545] ss:$8 sm:$0xf] %vm2544, %v2543
        %s2547 = scalar_lea.vmem %s45, 452 [#allocation0]
        %2548 = vst.msk [vmem:[%s2547] ss:$8 sm:$0xf0] %vm2544, %v2543
        %s2549 = scalar_lea.vmem %s50, 64
        %v2550 = vld.sshfl [vmem:[%s2549] sm:$0xff pattern:$0xb3a29180]
        %2551 = vrot.lane.b32.xlu0 %v2550, 64
        %v2552 = vpop.permute.xlu0 %2551
        %vm2553 = vcmask 130048
        %s2554 = scalar_lea.vmem %s45, 516 [#allocation0]
        %2555 = vst.msk [vmem:[%s2554] ss:$8 sm:$0xf] %vm2553, %v2552
        %s2556 = scalar_lea.vmem %s45, 516 [#allocation0]
        %2557 = vst.msk [vmem:[%s2556] ss:$8 sm:$0xf0] %vm2553, %v2552
        %s2558 = scalar_lea.vmem %s50, 68
        %v2559 = vld.sshfl [vmem:[%s2558] sm:$0xff pattern:$0xb3a29180]
        %2560 = vrot.lane.b32.xlu0 %v2559, 64
        %v2561 = vpop.permute.xlu0 %2560
        %vm2562 = vcmask 130048
        %s2563 = scalar_lea.vmem %s45, 580 [#allocation0]
        %2564 = vst.msk [vmem:[%s2563] ss:$8 sm:$0xf] %vm2562, %v2561
        %s2565 = scalar_lea.vmem %s45, 580 [#allocation0]
        %2566 = vst.msk [vmem:[%s2565] ss:$8 sm:$0xf0] %vm2562, %v2561
        %s2567 = scalar_lea.vmem %s50, 80
        %v2568 = vld.sshfl [vmem:[%s2567] sm:$0xff pattern:$0xb3a29180]
        %2569 = vrot.lane.b32.xlu0 %v2568, 64
        %v2570 = vpop.permute.xlu0 %2569
        %vm2571 = vcmask 130048
        %s2572 = scalar_lea.vmem %s45, 644 [#allocation0]
        %2573 = vst.msk [vmem:[%s2572] ss:$8 sm:$0xf] %vm2571, %v2570
        %s2574 = scalar_lea.vmem %s45, 644 [#allocation0]
        %2575 = vst.msk [vmem:[%s2574] ss:$8 sm:$0xf0] %vm2571, %v2570
        %s2576 = scalar_lea.vmem %s50, 84
        %v2577 = vld.sshfl [vmem:[%s2576] sm:$0xff pattern:$0xb3a29180]
        %2578 = vrot.lane.b32.xlu0 %v2577, 64
        %v2579 = vpop.permute.xlu0 %2578
        %vm2580 = vcmask 130048
        %s2581 = scalar_lea.vmem %s45, 708 [#allocation0]
        %2582 = vst.msk [vmem:[%s2581] ss:$8 sm:$0xf] %vm2580, %v2579
        %s2583 = scalar_lea.vmem %s45, 708 [#allocation0]
        %2584 = vst.msk [vmem:[%s2583] ss:$8 sm:$0xf0] %vm2580, %v2579
        %s2585 = scalar_lea.vmem %s50, 96
        %v2586 = vld.sshfl [vmem:[%s2585] sm:$0xff pattern:$0xb3a29180]
        %2587 = vrot.lane.b32.xlu0 %v2586, 64
        %v2588 = vpop.permute.xlu0 %2587
        %vm2589 = vcmask 130048
        %s2590 = scalar_lea.vmem %s45, 772 [#allocation0]
        %2591 = vst.msk [vmem:[%s2590] ss:$8 sm:$0xf] %vm2589, %v2588
        %s2592 = scalar_lea.vmem %s45, 772 [#allocation0]
        %2593 = vst.msk [vmem:[%s2592] ss:$8 sm:$0xf0] %vm2589, %v2588
        %s2594 = scalar_lea.vmem %s50, 100
        %v2595 = vld.sshfl [vmem:[%s2594] sm:$0xff pattern:$0xb3a29180]
        %2596 = vrot.lane.b32.xlu0 %v2595, 64
        %v2597 = vpop.permute.xlu0 %2596
        %vm2598 = vcmask 130048
        %s2599 = scalar_lea.vmem %s45, 836 [#allocation0]
        %2600 = vst.msk [vmem:[%s2599] ss:$8 sm:$0xf] %vm2598, %v2597
        %s2601 = scalar_lea.vmem %s45, 836 [#allocation0]
        %2602 = vst.msk [vmem:[%s2601] ss:$8 sm:$0xf0] %vm2598, %v2597
        %s2603 = scalar_lea.vmem %s50, 112
        %v2604 = vld.sshfl [vmem:[%s2603] sm:$0xff pattern:$0xb3a29180]
        %2605 = vrot.lane.b32.xlu0 %v2604, 64
        %v2606 = vpop.permute.xlu0 %2605
        %vm2607 = vcmask 130048
        %s2608 = scalar_lea.vmem %s45, 900 [#allocation0]
        %2609 = vst.msk [vmem:[%s2608] ss:$8 sm:$0xf] %vm2607, %v2606
        %s2610 = scalar_lea.vmem %s45, 900 [#allocation0]
        %2611 = vst.msk [vmem:[%s2610] ss:$8 sm:$0xf0] %vm2607, %v2606
        %s2612 = scalar_lea.vmem %s50, 116
        %v2613 = vld.sshfl [vmem:[%s2612] sm:$0xff pattern:$0xb3a29180]
        %2614 = vrot.lane.b32.xlu0 %v2613, 64
        %v2615 = vpop.permute.xlu0 %2614
        %vm2616 = vcmask 130048
        %s2617 = scalar_lea.vmem %s45, 964 [#allocation0]
        %2618 = vst.msk [vmem:[%s2617] ss:$8 sm:$0xf] %vm2616, %v2615
        %s2619 = scalar_lea.vmem %s45, 964 [#allocation0]
        %2620 = vst.msk [vmem:[%s2619] ss:$8 sm:$0xf0] %vm2616, %v2615
        %s2621 = scalar_lea.vmem %s50, 128
        %v2622 = vld.sshfl [vmem:[%s2621] sm:$0xff pattern:$0xb3a29180]
        %2623 = vrot.lane.b32.xlu0 %v2622, 64
        %v2624 = vpop.permute.xlu0 %2623
        %vm2625 = vcmask 130048
        %s2626 = scalar_lea.vmem %s45, 1028 [#allocation0]
        %2627 = vst.msk [vmem:[%s2626] ss:$8 sm:$0xf] %vm2625, %v2624
        %s2628 = scalar_lea.vmem %s45, 1028 [#allocation0]
        %2629 = vst.msk [vmem:[%s2628] ss:$8 sm:$0xf0] %vm2625, %v2624
        %s2630 = scalar_lea.vmem %s50, 132
        %v2631 = vld.sshfl [vmem:[%s2630] sm:$0xff pattern:$0xb3a29180]
        %2632 = vrot.lane.b32.xlu0 %v2631, 64
        %v2633 = vpop.permute.xlu0 %2632
        %vm2634 = vcmask 130048
        %s2635 = scalar_lea.vmem %s45, 1092 [#allocation0]
        %2636 = vst.msk [vmem:[%s2635] ss:$8 sm:$0xf] %vm2634, %v2633
        %s2637 = scalar_lea.vmem %s45, 1092 [#allocation0]
        %2638 = vst.msk [vmem:[%s2637] ss:$8 sm:$0xf0] %vm2634, %v2633
        %s2639 = scalar_lea.vmem %s50, 144
        %v2640 = vld.sshfl [vmem:[%s2639] sm:$0xff pattern:$0xb3a29180]
        %2641 = vrot.lane.b32.xlu0 %v2640, 64
        %v2642 = vpop.permute.xlu0 %2641
        %vm2643 = vcmask 130048
        %s2644 = scalar_lea.vmem %s45, 1156 [#allocation0]
        %2645 = vst.msk [vmem:[%s2644] ss:$8 sm:$0xf] %vm2643, %v2642
        %s2646 = scalar_lea.vmem %s45, 1156 [#allocation0]
        %2647 = vst.msk [vmem:[%s2646] ss:$8 sm:$0xf0] %vm2643, %v2642
        %s2648 = scalar_lea.vmem %s50, 148
        %v2649 = vld.sshfl [vmem:[%s2648] sm:$0xff pattern:$0xb3a29180]
        %2650 = vrot.lane.b32.xlu0 %v2649, 64
        %v2651 = vpop.permute.xlu0 %2650
        %vm2652 = vcmask 130048
        %s2653 = scalar_lea.vmem %s45, 1220 [#allocation0]
        %2654 = vst.msk [vmem:[%s2653] ss:$8 sm:$0xf] %vm2652, %v2651
        %s2655 = scalar_lea.vmem %s45, 1220 [#allocation0]
        %2656 = vst.msk [vmem:[%s2655] ss:$8 sm:$0xf0] %vm2652, %v2651
        %s2657 = scalar_lea.vmem %s50, 160
        %v2658 = vld.sshfl [vmem:[%s2657] sm:$0xff pattern:$0xb3a29180]
        %2659 = vrot.lane.b32.xlu0 %v2658, 64
        %v2660 = vpop.permute.xlu0 %2659
        %vm2661 = vcmask 130048
        %s2662 = scalar_lea.vmem %s45, 1284 [#allocation0]
        %2663 = vst.msk [vmem:[%s2662] ss:$8 sm:$0xf] %vm2661, %v2660
        %s2664 = scalar_lea.vmem %s45, 1284 [#allocation0]
        %2665 = vst.msk [vmem:[%s2664] ss:$8 sm:$0xf0] %vm2661, %v2660
        %s2666 = scalar_lea.vmem %s50, 164
        %v2667 = vld.sshfl [vmem:[%s2666] sm:$0xff pattern:$0xb3a29180]
        %2668 = vrot.lane.b32.xlu0 %v2667, 64
        %v2669 = vpop.permute.xlu0 %2668
        %vm2670 = vcmask 130048
        %s2671 = scalar_lea.vmem %s45, 1348 [#allocation0]
        %2672 = vst.msk [vmem:[%s2671] ss:$8 sm:$0xf] %vm2670, %v2669
        %s2673 = scalar_lea.vmem %s45, 1348 [#allocation0]
        %2674 = vst.msk [vmem:[%s2673] ss:$8 sm:$0xf0] %vm2670, %v2669
        %s2675 = scalar_lea.vmem %s50, 176
        %v2676 = vld.sshfl [vmem:[%s2675] sm:$0xff pattern:$0xb3a29180]
        %2677 = vrot.lane.b32.xlu0 %v2676, 64
        %v2678 = vpop.permute.xlu0 %2677
        %vm2679 = vcmask 130048
        %s2680 = scalar_lea.vmem %s45, 1412 [#allocation0]
        %2681 = vst.msk [vmem:[%s2680] ss:$8 sm:$0xf] %vm2679, %v2678
        %s2682 = scalar_lea.vmem %s45, 1412 [#allocation0]
        %2683 = vst.msk [vmem:[%s2682] ss:$8 sm:$0xf0] %vm2679, %v2678
        %s2684 = scalar_lea.vmem %s50, 180
        %v2685 = vld.sshfl [vmem:[%s2684] sm:$0xff pattern:$0xb3a29180]
        %2686 = vrot.lane.b32.xlu0 %v2685, 64
        %v2687 = vpop.permute.xlu0 %2686
        %vm2688 = vcmask 130048
        %s2689 = scalar_lea.vmem %s45, 1476 [#allocation0]
        %2690 = vst.msk [vmem:[%s2689] ss:$8 sm:$0xf] %vm2688, %v2687
        %s2691 = scalar_lea.vmem %s45, 1476 [#allocation0]
        %2692 = vst.msk [vmem:[%s2691] ss:$8 sm:$0xf0] %vm2688, %v2687
        %s2693 = scalar_lea.vmem %s50, 192
        %v2694 = vld.sshfl [vmem:[%s2693] sm:$0xff pattern:$0xb3a29180]
        %2695 = vrot.lane.b32.xlu0 %v2694, 64
        %v2696 = vpop.permute.xlu0 %2695
        %vm2697 = vcmask 130048
        %s2698 = scalar_lea.vmem %s45, 1540 [#allocation0]
        %2699 = vst.msk [vmem:[%s2698] ss:$8 sm:$0xf] %vm2697, %v2696
        %s2700 = scalar_lea.vmem %s45, 1540 [#allocation0]
        %2701 = vst.msk [vmem:[%s2700] ss:$8 sm:$0xf0] %vm2697, %v2696
        %s2702 = scalar_lea.vmem %s50, 196
        %v2703 = vld.sshfl [vmem:[%s2702] sm:$0xff pattern:$0xb3a29180]
        %2704 = vrot.lane.b32.xlu0 %v2703, 64
        %v2705 = vpop.permute.xlu0 %2704
        %vm2706 = vcmask 130048
        %s2707 = scalar_lea.vmem %s45, 1604 [#allocation0]
        %2708 = vst.msk [vmem:[%s2707] ss:$8 sm:$0xf] %vm2706, %v2705
        %s2709 = scalar_lea.vmem %s45, 1604 [#allocation0]
        %2710 = vst.msk [vmem:[%s2709] ss:$8 sm:$0xf0] %vm2706, %v2705
        %s2711 = scalar_lea.vmem %s50, 208
        %v2712 = vld.sshfl [vmem:[%s2711] sm:$0xff pattern:$0xb3a29180]
        %2713 = vrot.lane.b32.xlu0 %v2712, 64
        %v2714 = vpop.permute.xlu0 %2713
        %vm2715 = vcmask 130048
        %s2716 = scalar_lea.vmem %s45, 1668 [#allocation0]
        %2717 = vst.msk [vmem:[%s2716] ss:$8 sm:$0xf] %vm2715, %v2714
        %s2718 = scalar_lea.vmem %s45, 1668 [#allocation0]
        %2719 = vst.msk [vmem:[%s2718] ss:$8 sm:$0xf0] %vm2715, %v2714
        %s2720 = scalar_lea.vmem %s50, 212
        %v2721 = vld.sshfl [vmem:[%s2720] sm:$0xff pattern:$0xb3a29180]
        %2722 = vrot.lane.b32.xlu0 %v2721, 64
        %v2723 = vpop.permute.xlu0 %2722
        %vm2724 = vcmask 130048
        %s2725 = scalar_lea.vmem %s45, 1732 [#allocation0]
        %2726 = vst.msk [vmem:[%s2725] ss:$8 sm:$0xf] %vm2724, %v2723
        %s2727 = scalar_lea.vmem %s45, 1732 [#allocation0]
        %2728 = vst.msk [vmem:[%s2727] ss:$8 sm:$0xf0] %vm2724, %v2723
        %s2729 = scalar_lea.vmem %s50, 224
        %v2730 = vld.sshfl [vmem:[%s2729] sm:$0xff pattern:$0xb3a29180]
        %2731 = vrot.lane.b32.xlu0 %v2730, 64
        %v2732 = vpop.permute.xlu0 %2731
        %vm2733 = vcmask 130048
        %s2734 = scalar_lea.vmem %s45, 1796 [#allocation0]
        %2735 = vst.msk [vmem:[%s2734] ss:$8 sm:$0xf] %vm2733, %v2732
        %s2736 = scalar_lea.vmem %s45, 1796 [#allocation0]
        %2737 = vst.msk [vmem:[%s2736] ss:$8 sm:$0xf0] %vm2733, %v2732
        %s2738 = scalar_lea.vmem %s50, 228
        %v2739 = vld.sshfl [vmem:[%s2738] sm:$0xff pattern:$0xb3a29180]
        %2740 = vrot.lane.b32.xlu0 %v2739, 64
        %v2741 = vpop.permute.xlu0 %2740
        %vm2742 = vcmask 130048
        %s2743 = scalar_lea.vmem %s45, 1860 [#allocation0]
        %2744 = vst.msk [vmem:[%s2743] ss:$8 sm:$0xf] %vm2742, %v2741
        %s2745 = scalar_lea.vmem %s45, 1860 [#allocation0]
        %2746 = vst.msk [vmem:[%s2745] ss:$8 sm:$0xf0] %vm2742, %v2741
        %s2747 = scalar_lea.vmem %s50, 240
        %v2748 = vld.sshfl [vmem:[%s2747] sm:$0xff pattern:$0xb3a29180]
        %2749 = vrot.lane.b32.xlu0 %v2748, 64
        %v2750 = vpop.permute.xlu0 %2749
        %vm2751 = vcmask 130048
        %s2752 = scalar_lea.vmem %s45, 1924 [#allocation0]
        %2753 = vst.msk [vmem:[%s2752] ss:$8 sm:$0xf] %vm2751, %v2750
        %s2754 = scalar_lea.vmem %s45, 1924 [#allocation0]
        %2755 = vst.msk [vmem:[%s2754] ss:$8 sm:$0xf0] %vm2751, %v2750
        %s2756 = scalar_lea.vmem %s50, 244
        %v2757 = vld.sshfl [vmem:[%s2756] sm:$0xff pattern:$0xb3a29180]
        %2758 = vrot.lane.b32.xlu0 %v2757, 64
        %v2759 = vpop.permute.xlu0 %2758
        %vm2760 = vcmask 130048
        %s2761 = scalar_lea.vmem %s45, 1988 [#allocation0]
        %2762 = vst.msk [vmem:[%s2761] ss:$8 sm:$0xf] %vm2760, %v2759
        %s2763 = scalar_lea.vmem %s45, 1988 [#allocation0]
        %2764 = vst.msk [vmem:[%s2763] ss:$8 sm:$0xf0] %vm2760, %v2759
        %s2765 = scalar_lea.vmem %s50, 256
        %v2766 = vld.sshfl [vmem:[%s2765] sm:$0xff pattern:$0xb3a29180]
        %2767 = vrot.lane.b32.xlu0 %v2766, 64
        %v2768 = vpop.permute.xlu0 %2767
        %vm2769 = vcmask 130048
        %s2770 = scalar_lea.vmem %s45, 2052 [#allocation0]
        %2771 = vst.msk [vmem:[%s2770] ss:$8 sm:$0xf] %vm2769, %v2768
        %s2772 = scalar_lea.vmem %s45, 2052 [#allocation0]
        %2773 = vst.msk [vmem:[%s2772] ss:$8 sm:$0xf0] %vm2769, %v2768
        %s2774 = scalar_lea.vmem %s50, 260
        %v2775 = vld.sshfl [vmem:[%s2774] sm:$0xff pattern:$0xb3a29180]
        %2776 = vrot.lane.b32.xlu0 %v2775, 64
        %v2777 = vpop.permute.xlu0 %2776
        %vm2778 = vcmask 130048
        %s2779 = scalar_lea.vmem %s45, 2116 [#allocation0]
        %2780 = vst.msk [vmem:[%s2779] ss:$8 sm:$0xf] %vm2778, %v2777
        %s2781 = scalar_lea.vmem %s45, 2116 [#allocation0]
        %2782 = vst.msk [vmem:[%s2781] ss:$8 sm:$0xf0] %vm2778, %v2777
        %s2783 = scalar_lea.vmem %s50, 272
        %v2784 = vld.sshfl [vmem:[%s2783] sm:$0xff pattern:$0xb3a29180]
        %2785 = vrot.lane.b32.xlu0 %v2784, 64
        %v2786 = vpop.permute.xlu0 %2785
        %vm2787 = vcmask 130048
        %s2788 = scalar_lea.vmem %s45, 2180 [#allocation0]
        %2789 = vst.msk [vmem:[%s2788] ss:$8 sm:$0xf] %vm2787, %v2786
        %s2790 = scalar_lea.vmem %s45, 2180 [#allocation0]
        %2791 = vst.msk [vmem:[%s2790] ss:$8 sm:$0xf0] %vm2787, %v2786
        %s2792 = scalar_lea.vmem %s50, 276
        %v2793 = vld.sshfl [vmem:[%s2792] sm:$0xff pattern:$0xb3a29180]
        %2794 = vrot.lane.b32.xlu0 %v2793, 64
        %v2795 = vpop.permute.xlu0 %2794
        %vm2796 = vcmask 130048
        %s2797 = scalar_lea.vmem %s45, 2244 [#allocation0]
        %2798 = vst.msk [vmem:[%s2797] ss:$8 sm:$0xf] %vm2796, %v2795
        %s2799 = scalar_lea.vmem %s45, 2244 [#allocation0]
        %2800 = vst.msk [vmem:[%s2799] ss:$8 sm:$0xf0] %vm2796, %v2795
        %s2801 = scalar_lea.vmem %s50, 288
        %v2802 = vld.sshfl [vmem:[%s2801] sm:$0xff pattern:$0xb3a29180]
        %2803 = vrot.lane.b32.xlu0 %v2802, 64
        %v2804 = vpop.permute.xlu0 %2803
        %vm2805 = vcmask 130048
        %s2806 = scalar_lea.vmem %s45, 2308 [#allocation0]
        %2807 = vst.msk [vmem:[%s2806] ss:$8 sm:$0xf] %vm2805, %v2804
        %s2808 = scalar_lea.vmem %s45, 2308 [#allocation0]
        %2809 = vst.msk [vmem:[%s2808] ss:$8 sm:$0xf0] %vm2805, %v2804
        %s2810 = scalar_lea.vmem %s50, 292
        %v2811 = vld.sshfl [vmem:[%s2810] sm:$0xff pattern:$0xb3a29180]
        %2812 = vrot.lane.b32.xlu0 %v2811, 64
        %v2813 = vpop.permute.xlu0 %2812
        %vm2814 = vcmask 130048
        %s2815 = scalar_lea.vmem %s45, 2372 [#allocation0]
        %2816 = vst.msk [vmem:[%s2815] ss:$8 sm:$0xf] %vm2814, %v2813
        %s2817 = scalar_lea.vmem %s45, 2372 [#allocation0]
        %2818 = vst.msk [vmem:[%s2817] ss:$8 sm:$0xf0] %vm2814, %v2813
        %s2819 = scalar_lea.vmem %s50, 304
        %v2820 = vld.sshfl [vmem:[%s2819] sm:$0xff pattern:$0xb3a29180]
        %2821 = vrot.lane.b32.xlu0 %v2820, 64
        %v2822 = vpop.permute.xlu0 %2821
        %vm2823 = vcmask 130048
        %s2824 = scalar_lea.vmem %s45, 2436 [#allocation0]
        %2825 = vst.msk [vmem:[%s2824] ss:$8 sm:$0xf] %vm2823, %v2822
        %s2826 = scalar_lea.vmem %s45, 2436 [#allocation0]
        %2827 = vst.msk [vmem:[%s2826] ss:$8 sm:$0xf0] %vm2823, %v2822
        %s2828 = scalar_lea.vmem %s50, 308
        %v2829 = vld.sshfl [vmem:[%s2828] sm:$0xff pattern:$0xb3a29180]
        %2830 = vrot.lane.b32.xlu0 %v2829, 64
        %v2831 = vpop.permute.xlu0 %2830
        %vm2832 = vcmask 130048
        %s2833 = scalar_lea.vmem %s45, 2500 [#allocation0]
        %2834 = vst.msk [vmem:[%s2833] ss:$8 sm:$0xf] %vm2832, %v2831
        %s2835 = scalar_lea.vmem %s45, 2500 [#allocation0]
        %2836 = vst.msk [vmem:[%s2835] ss:$8 sm:$0xf0] %vm2832, %v2831
        %s2837 = scalar_lea.vmem %s50, 320
        %v2838 = vld.sshfl [vmem:[%s2837] sm:$0xff pattern:$0xb3a29180]
        %2839 = vrot.lane.b32.xlu0 %v2838, 64
        %v2840 = vpop.permute.xlu0 %2839
        %vm2841 = vcmask 130048
        %s2842 = scalar_lea.vmem %s45, 2564 [#allocation0]
        %2843 = vst.msk [vmem:[%s2842] ss:$8 sm:$0xf] %vm2841, %v2840
        %s2844 = scalar_lea.vmem %s45, 2564 [#allocation0]
        %2845 = vst.msk [vmem:[%s2844] ss:$8 sm:$0xf0] %vm2841, %v2840
        %s2846 = scalar_lea.vmem %s50, 324
        %v2847 = vld.sshfl [vmem:[%s2846] sm:$0xff pattern:$0xb3a29180]
        %2848 = vrot.lane.b32.xlu0 %v2847, 64
        %v2849 = vpop.permute.xlu0 %2848
        %vm2850 = vcmask 130048
        %s2851 = scalar_lea.vmem %s45, 2628 [#allocation0]
        %2852 = vst.msk [vmem:[%s2851] ss:$8 sm:$0xf] %vm2850, %v2849
        %s2853 = scalar_lea.vmem %s45, 2628 [#allocation0]
        %2854 = vst.msk [vmem:[%s2853] ss:$8 sm:$0xf0] %vm2850, %v2849
        %s2855 = scalar_lea.vmem %s50, 336
        %v2856 = vld.sshfl [vmem:[%s2855] sm:$0xff pattern:$0xb3a29180]
        %2857 = vrot.lane.b32.xlu0 %v2856, 64
        %v2858 = vpop.permute.xlu0 %2857
        %vm2859 = vcmask 130048
        %s2860 = scalar_lea.vmem %s45, 2692 [#allocation0]
        %2861 = vst.msk [vmem:[%s2860] ss:$8 sm:$0xf] %vm2859, %v2858
        %s2862 = scalar_lea.vmem %s45, 2692 [#allocation0]
        %2863 = vst.msk [vmem:[%s2862] ss:$8 sm:$0xf0] %vm2859, %v2858
        %s2864 = scalar_lea.vmem %s50, 340
        %v2865 = vld.sshfl [vmem:[%s2864] sm:$0xff pattern:$0xb3a29180]
        %2866 = vrot.lane.b32.xlu0 %v2865, 64
        %v2867 = vpop.permute.xlu0 %2866
        %vm2868 = vcmask 130048
        %s2869 = scalar_lea.vmem %s45, 2756 [#allocation0]
        %2870 = vst.msk [vmem:[%s2869] ss:$8 sm:$0xf] %vm2868, %v2867
        %s2871 = scalar_lea.vmem %s45, 2756 [#allocation0]
        %2872 = vst.msk [vmem:[%s2871] ss:$8 sm:$0xf0] %vm2868, %v2867
        %s2873 = scalar_lea.vmem %s50, 352
        %v2874 = vld.sshfl [vmem:[%s2873] sm:$0xff pattern:$0xb3a29180]
        %2875 = vrot.lane.b32.xlu0 %v2874, 64
        %v2876 = vpop.permute.xlu0 %2875
        %vm2877 = vcmask 130048
        %s2878 = scalar_lea.vmem %s45, 2820 [#allocation0]
        %2879 = vst.msk [vmem:[%s2878] ss:$8 sm:$0xf] %vm2877, %v2876
        %s2880 = scalar_lea.vmem %s45, 2820 [#allocation0]
        %2881 = vst.msk [vmem:[%s2880] ss:$8 sm:$0xf0] %vm2877, %v2876
        %s2882 = scalar_lea.vmem %s50, 356
        %v2883 = vld.sshfl [vmem:[%s2882] sm:$0xff pattern:$0xb3a29180]
        %2884 = vrot.lane.b32.xlu0 %v2883, 64
        %v2885 = vpop.permute.xlu0 %2884
        %vm2886 = vcmask 130048
        %s2887 = scalar_lea.vmem %s45, 2884 [#allocation0]
        %2888 = vst.msk [vmem:[%s2887] ss:$8 sm:$0xf] %vm2886, %v2885
        %s2889 = scalar_lea.vmem %s45, 2884 [#allocation0]
        %2890 = vst.msk [vmem:[%s2889] ss:$8 sm:$0xf0] %vm2886, %v2885
        %s2891 = scalar_lea.vmem %s50, 368
        %v2892 = vld.sshfl [vmem:[%s2891] sm:$0xff pattern:$0xb3a29180]
        %2893 = vrot.lane.b32.xlu0 %v2892, 64
        %v2894 = vpop.permute.xlu0 %2893
        %vm2895 = vcmask 130048
        %s2896 = scalar_lea.vmem %s45, 2948 [#allocation0]
        %2897 = vst.msk [vmem:[%s2896] ss:$8 sm:$0xf] %vm2895, %v2894
        %s2898 = scalar_lea.vmem %s45, 2948 [#allocation0]
        %2899 = vst.msk [vmem:[%s2898] ss:$8 sm:$0xf0] %vm2895, %v2894
        %s2900 = scalar_lea.vmem %s50, 372
        %v2901 = vld.sshfl [vmem:[%s2900] sm:$0xff pattern:$0xb3a29180]
        %2902 = vrot.lane.b32.xlu0 %v2901, 64
        %v2903 = vpop.permute.xlu0 %2902
        %vm2904 = vcmask 130048
        %s2905 = scalar_lea.vmem %s45, 3012 [#allocation0]
        %2906 = vst.msk [vmem:[%s2905] ss:$8 sm:$0xf] %vm2904, %v2903
        %s2907 = scalar_lea.vmem %s45, 3012 [#allocation0]
        %2908 = vst.msk [vmem:[%s2907] ss:$8 sm:$0xf0] %vm2904, %v2903
        %s2909 = scalar_lea.vmem %s50, 384
        %v2910 = vld.sshfl [vmem:[%s2909] sm:$0xff pattern:$0xb3a29180]
        %2911 = vrot.lane.b32.xlu0 %v2910, 64
        %v2912 = vpop.permute.xlu0 %2911
        %vm2913 = vcmask 130048
        %s2914 = scalar_lea.vmem %s45, 3076 [#allocation0]
        %2915 = vst.msk [vmem:[%s2914] ss:$8 sm:$0xf] %vm2913, %v2912
        %s2916 = scalar_lea.vmem %s45, 3076 [#allocation0]
        %2917 = vst.msk [vmem:[%s2916] ss:$8 sm:$0xf0] %vm2913, %v2912
        %s2918 = scalar_lea.vmem %s50, 388
        %v2919 = vld.sshfl [vmem:[%s2918] sm:$0xff pattern:$0xb3a29180]
        %2920 = vrot.lane.b32.xlu0 %v2919, 64
        %v2921 = vpop.permute.xlu0 %2920
        %vm2922 = vcmask 130048
        %s2923 = scalar_lea.vmem %s45, 3140 [#allocation0]
        %2924 = vst.msk [vmem:[%s2923] ss:$8 sm:$0xf] %vm2922, %v2921
        %s2925 = scalar_lea.vmem %s45, 3140 [#allocation0]
        %2926 = vst.msk [vmem:[%s2925] ss:$8 sm:$0xf0] %vm2922, %v2921
        %s2927 = scalar_lea.vmem %s50, 400
        %v2928 = vld.sshfl [vmem:[%s2927] sm:$0xff pattern:$0xb3a29180]
        %2929 = vrot.lane.b32.xlu0 %v2928, 64
        %v2930 = vpop.permute.xlu0 %2929
        %vm2931 = vcmask 130048
        %s2932 = scalar_lea.vmem %s45, 3204 [#allocation0]
        %2933 = vst.msk [vmem:[%s2932] ss:$8 sm:$0xf] %vm2931, %v2930
        %s2934 = scalar_lea.vmem %s45, 3204 [#allocation0]
        %2935 = vst.msk [vmem:[%s2934] ss:$8 sm:$0xf0] %vm2931, %v2930
        %s2936 = scalar_lea.vmem %s50, 404
        %v2937 = vld.sshfl [vmem:[%s2936] sm:$0xff pattern:$0xb3a29180]
        %2938 = vrot.lane.b32.xlu0 %v2937, 64
        %v2939 = vpop.permute.xlu0 %2938
        %vm2940 = vcmask 130048
        %s2941 = scalar_lea.vmem %s45, 3268 [#allocation0]
        %2942 = vst.msk [vmem:[%s2941] ss:$8 sm:$0xf] %vm2940, %v2939
        %s2943 = scalar_lea.vmem %s45, 3268 [#allocation0]
        %2944 = vst.msk [vmem:[%s2943] ss:$8 sm:$0xf0] %vm2940, %v2939
        %s2945 = scalar_lea.vmem %s50, 416
        %v2946 = vld.sshfl [vmem:[%s2945] sm:$0xff pattern:$0xb3a29180]
        %2947 = vrot.lane.b32.xlu0 %v2946, 64
        %v2948 = vpop.permute.xlu0 %2947
        %vm2949 = vcmask 130048
        %s2950 = scalar_lea.vmem %s45, 3332 [#allocation0]
        %2951 = vst.msk [vmem:[%s2950] ss:$8 sm:$0xf] %vm2949, %v2948
        %s2952 = scalar_lea.vmem %s45, 3332 [#allocation0]
        %2953 = vst.msk [vmem:[%s2952] ss:$8 sm:$0xf0] %vm2949, %v2948
        %s2954 = scalar_lea.vmem %s50, 420
        %v2955 = vld.sshfl [vmem:[%s2954] sm:$0xff pattern:$0xb3a29180]
        %2956 = vrot.lane.b32.xlu0 %v2955, 64
        %v2957 = vpop.permute.xlu0 %2956
        %vm2958 = vcmask 130048
        %s2959 = scalar_lea.vmem %s45, 3396 [#allocation0]
        %2960 = vst.msk [vmem:[%s2959] ss:$8 sm:$0xf] %vm2958, %v2957
        %s2961 = scalar_lea.vmem %s45, 3396 [#allocation0]
        %2962 = vst.msk [vmem:[%s2961] ss:$8 sm:$0xf0] %vm2958, %v2957
        %s2963 = scalar_lea.vmem %s50, 432
        %v2964 = vld.sshfl [vmem:[%s2963] sm:$0xff pattern:$0xb3a29180]
        %2965 = vrot.lane.b32.xlu0 %v2964, 64
        %v2966 = vpop.permute.xlu0 %2965
        %vm2967 = vcmask 130048
        %s2968 = scalar_lea.vmem %s45, 3460 [#allocation0]
        %2969 = vst.msk [vmem:[%s2968] ss:$8 sm:$0xf] %vm2967, %v2966
        %s2970 = scalar_lea.vmem %s45, 3460 [#allocation0]
        %2971 = vst.msk [vmem:[%s2970] ss:$8 sm:$0xf0] %vm2967, %v2966
        %s2972 = scalar_lea.vmem %s50, 436
        %v2973 = vld.sshfl [vmem:[%s2972] sm:$0xff pattern:$0xb3a29180]
        %2974 = vrot.lane.b32.xlu0 %v2973, 64
        %v2975 = vpop.permute.xlu0 %2974
        %vm2976 = vcmask 130048
        %s2977 = scalar_lea.vmem %s45, 3524 [#allocation0]
        %2978 = vst.msk [vmem:[%s2977] ss:$8 sm:$0xf] %vm2976, %v2975
        %s2979 = scalar_lea.vmem %s45, 3524 [#allocation0]
        %2980 = vst.msk [vmem:[%s2979] ss:$8 sm:$0xf0] %vm2976, %v2975
        %s2981 = scalar_lea.vmem %s50, 448
        %v2982 = vld.sshfl [vmem:[%s2981] sm:$0xff pattern:$0xb3a29180]
        %2983 = vrot.lane.b32.xlu0 %v2982, 64
        %v2984 = vpop.permute.xlu0 %2983
        %vm2985 = vcmask 130048
        %s2986 = scalar_lea.vmem %s45, 3588 [#allocation0]
        %2987 = vst.msk [vmem:[%s2986] ss:$8 sm:$0xf] %vm2985, %v2984
        %s2988 = scalar_lea.vmem %s45, 3588 [#allocation0]
        %2989 = vst.msk [vmem:[%s2988] ss:$8 sm:$0xf0] %vm2985, %v2984
        %s2990 = scalar_lea.vmem %s50, 452
        %v2991 = vld.sshfl [vmem:[%s2990] sm:$0xff pattern:$0xb3a29180]
        %2992 = vrot.lane.b32.xlu0 %v2991, 64
        %v2993 = vpop.permute.xlu0 %2992
        %vm2994 = vcmask 130048
        %s2995 = scalar_lea.vmem %s45, 3652 [#allocation0]
        %2996 = vst.msk [vmem:[%s2995] ss:$8 sm:$0xf] %vm2994, %v2993
        %s2997 = scalar_lea.vmem %s45, 3652 [#allocation0]
        %2998 = vst.msk [vmem:[%s2997] ss:$8 sm:$0xf0] %vm2994, %v2993
        %s2999 = scalar_lea.vmem %s50, 464
        %v3000 = vld.sshfl [vmem:[%s2999] sm:$0xff pattern:$0xb3a29180]
        %3001 = vrot.lane.b32.xlu0 %v3000, 64
        %v3002 = vpop.permute.xlu0 %3001
        %vm3003 = vcmask 130048
        %s3004 = scalar_lea.vmem %s45, 3716 [#allocation0]
        %3005 = vst.msk [vmem:[%s3004] ss:$8 sm:$0xf] %vm3003, %v3002
        %s3006 = scalar_lea.vmem %s45, 3716 [#allocation0]
        %3007 = vst.msk [vmem:[%s3006] ss:$8 sm:$0xf0] %vm3003, %v3002
        %s3008 = scalar_lea.vmem %s50, 468
        %v3009 = vld.sshfl [vmem:[%s3008] sm:$0xff pattern:$0xb3a29180]
        %3010 = vrot.lane.b32.xlu0 %v3009, 64
        %v3011 = vpop.permute.xlu0 %3010
        %vm3012 = vcmask 130048
        %s3013 = scalar_lea.vmem %s45, 3780 [#allocation0]
        %3014 = vst.msk [vmem:[%s3013] ss:$8 sm:$0xf] %vm3012, %v3011
        %s3015 = scalar_lea.vmem %s45, 3780 [#allocation0]
        %3016 = vst.msk [vmem:[%s3015] ss:$8 sm:$0xf0] %vm3012, %v3011
        %s3017 = scalar_lea.vmem %s50, 480
        %v3018 = vld.sshfl [vmem:[%s3017] sm:$0xff pattern:$0xb3a29180]
        %3019 = vrot.lane.b32.xlu0 %v3018, 64
        %v3020 = vpop.permute.xlu0 %3019
        %vm3021 = vcmask 130048
        %s3022 = scalar_lea.vmem %s45, 3844 [#allocation0]
        %3023 = vst.msk [vmem:[%s3022] ss:$8 sm:$0xf] %vm3021, %v3020
        %s3024 = scalar_lea.vmem %s45, 3844 [#allocation0]
        %3025 = vst.msk [vmem:[%s3024] ss:$8 sm:$0xf0] %vm3021, %v3020
        %s3026 = scalar_lea.vmem %s50, 484
        %v3027 = vld.sshfl [vmem:[%s3026] sm:$0xff pattern:$0xb3a29180]
        %3028 = vrot.lane.b32.xlu0 %v3027, 64
        %v3029 = vpop.permute.xlu0 %3028
        %vm3030 = vcmask 130048
        %s3031 = scalar_lea.vmem %s45, 3908 [#allocation0]
        %3032 = vst.msk [vmem:[%s3031] ss:$8 sm:$0xf] %vm3030, %v3029
        %s3033 = scalar_lea.vmem %s45, 3908 [#allocation0]
        %3034 = vst.msk [vmem:[%s3033] ss:$8 sm:$0xf0] %vm3030, %v3029
        %s3035 = scalar_lea.vmem %s50, 496
        %v3036 = vld.sshfl [vmem:[%s3035] sm:$0xff pattern:$0xb3a29180]
        %3037 = vrot.lane.b32.xlu0 %v3036, 64
        %v3038 = vpop.permute.xlu0 %3037
        %vm3039 = vcmask 130048
        %s3040 = scalar_lea.vmem %s45, 3972 [#allocation0]
        %3041 = vst.msk [vmem:[%s3040] ss:$8 sm:$0xf] %vm3039, %v3038
        %s3042 = scalar_lea.vmem %s45, 3972 [#allocation0]
        %3043 = vst.msk [vmem:[%s3042] ss:$8 sm:$0xf0] %vm3039, %v3038
        %s3044 = scalar_lea.vmem %s50, 500
        %v3045 = vld.sshfl [vmem:[%s3044] sm:$0xff pattern:$0xb3a29180]
        %3046 = vrot.lane.b32.xlu0 %v3045, 64
        %v3047 = vpop.permute.xlu0 %3046
        %vm3048 = vcmask 130048
        %s3049 = scalar_lea.vmem %s45, 4036 [#allocation0]
        %3050 = vst.msk [vmem:[%s3049] ss:$8 sm:$0xf] %vm3048, %v3047
        %s3051 = scalar_lea.vmem %s45, 4036 [#allocation0]
        %3052 = vst.msk [vmem:[%s3051] ss:$8 sm:$0xf0] %vm3048, %v3047
        %v3053 = vld.sshfl [vmem:[%s50] sm:$0xff pattern:$0xb3a29180]
        %3054 = vrot.lane.b32.xlu0 %v3053, 48
        %v3055 = vpop.permute.xlu0 %3054
        %vm3056 = vcmask 130048
        %s3057 = scalar_lea.vmem %s45, 5 [#allocation0]
        %3058 = vst.msk [vmem:[%s3057] ss:$8 sm:$0xf] %vm3056, %v3055
        %s3059 = scalar_lea.vmem %s45, 5 [#allocation0]
        %3060 = vst.msk [vmem:[%s3059] ss:$8 sm:$0xf0] %vm3056, %v3055
        %s3061 = scalar_lea.vmem %s50, 4
        %v3062 = vld.sshfl [vmem:[%s3061] sm:$0xff pattern:$0xb3a29180]
        %3063 = vrot.lane.b32.xlu0 %v3062, 48
        %v3064 = vpop.permute.xlu0 %3063
        %vm3065 = vcmask 130048
        %s3066 = scalar_lea.vmem %s45, 69 [#allocation0]
        %3067 = vst.msk [vmem:[%s3066] ss:$8 sm:$0xf] %vm3065, %v3064
        %s3068 = scalar_lea.vmem %s45, 69 [#allocation0]
        %3069 = vst.msk [vmem:[%s3068] ss:$8 sm:$0xf0] %vm3065, %v3064
        %s3070 = scalar_lea.vmem %s50, 16
        %v3071 = vld.sshfl [vmem:[%s3070] sm:$0xff pattern:$0xb3a29180]
        %3072 = vrot.lane.b32.xlu0 %v3071, 48
        %v3073 = vpop.permute.xlu0 %3072
        %vm3074 = vcmask 130048
        %s3075 = scalar_lea.vmem %s45, 133 [#allocation0]
        %3076 = vst.msk [vmem:[%s3075] ss:$8 sm:$0xf] %vm3074, %v3073
        %s3077 = scalar_lea.vmem %s45, 133 [#allocation0]
        %3078 = vst.msk [vmem:[%s3077] ss:$8 sm:$0xf0] %vm3074, %v3073
        %s3079 = scalar_lea.vmem %s50, 20
        %v3080 = vld.sshfl [vmem:[%s3079] sm:$0xff pattern:$0xb3a29180]
        %3081 = vrot.lane.b32.xlu0 %v3080, 48
        %v3082 = vpop.permute.xlu0 %3081
        %vm3083 = vcmask 130048
        %s3084 = scalar_lea.vmem %s45, 197 [#allocation0]
        %3085 = vst.msk [vmem:[%s3084] ss:$8 sm:$0xf] %vm3083, %v3082
        %s3086 = scalar_lea.vmem %s45, 197 [#allocation0]
        %3087 = vst.msk [vmem:[%s3086] ss:$8 sm:$0xf0] %vm3083, %v3082
        %s3088 = scalar_lea.vmem %s50, 32
        %v3089 = vld.sshfl [vmem:[%s3088] sm:$0xff pattern:$0xb3a29180]
        %3090 = vrot.lane.b32.xlu0 %v3089, 48
        %v3091 = vpop.permute.xlu0 %3090
        %vm3092 = vcmask 130048
        %s3093 = scalar_lea.vmem %s45, 261 [#allocation0]
        %3094 = vst.msk [vmem:[%s3093] ss:$8 sm:$0xf] %vm3092, %v3091
        %s3095 = scalar_lea.vmem %s45, 261 [#allocation0]
        %3096 = vst.msk [vmem:[%s3095] ss:$8 sm:$0xf0] %vm3092, %v3091
        %s3097 = scalar_lea.vmem %s50, 36
        %v3098 = vld.sshfl [vmem:[%s3097] sm:$0xff pattern:$0xb3a29180]
        %3099 = vrot.lane.b32.xlu0 %v3098, 48
        %v3100 = vpop.permute.xlu0 %3099
        %vm3101 = vcmask 130048
        %s3102 = scalar_lea.vmem %s45, 325 [#allocation0]
        %3103 = vst.msk [vmem:[%s3102] ss:$8 sm:$0xf] %vm3101, %v3100
        %s3104 = scalar_lea.vmem %s45, 325 [#allocation0]
        %3105 = vst.msk [vmem:[%s3104] ss:$8 sm:$0xf0] %vm3101, %v3100
        %s3106 = scalar_lea.vmem %s50, 48
        %v3107 = vld.sshfl [vmem:[%s3106] sm:$0xff pattern:$0xb3a29180]
        %3108 = vrot.lane.b32.xlu0 %v3107, 48
        %v3109 = vpop.permute.xlu0 %3108
        %vm3110 = vcmask 130048
        %s3111 = scalar_lea.vmem %s45, 389 [#allocation0]
        %3112 = vst.msk [vmem:[%s3111] ss:$8 sm:$0xf] %vm3110, %v3109
        %s3113 = scalar_lea.vmem %s45, 389 [#allocation0]
        %3114 = vst.msk [vmem:[%s3113] ss:$8 sm:$0xf0] %vm3110, %v3109
        %s3115 = scalar_lea.vmem %s50, 52
        %v3116 = vld.sshfl [vmem:[%s3115] sm:$0xff pattern:$0xb3a29180]
        %3117 = vrot.lane.b32.xlu0 %v3116, 48
        %v3118 = vpop.permute.xlu0 %3117
        %vm3119 = vcmask 130048
        %s3120 = scalar_lea.vmem %s45, 453 [#allocation0]
        %3121 = vst.msk [vmem:[%s3120] ss:$8 sm:$0xf] %vm3119, %v3118
        %s3122 = scalar_lea.vmem %s45, 453 [#allocation0]
        %3123 = vst.msk [vmem:[%s3122] ss:$8 sm:$0xf0] %vm3119, %v3118
        %s3124 = scalar_lea.vmem %s50, 64
        %v3125 = vld.sshfl [vmem:[%s3124] sm:$0xff pattern:$0xb3a29180]
        %3126 = vrot.lane.b32.xlu0 %v3125, 48
        %v3127 = vpop.permute.xlu0 %3126
        %vm3128 = vcmask 130048
        %s3129 = scalar_lea.vmem %s45, 517 [#allocation0]
        %3130 = vst.msk [vmem:[%s3129] ss:$8 sm:$0xf] %vm3128, %v3127
        %s3131 = scalar_lea.vmem %s45, 517 [#allocation0]
        %3132 = vst.msk [vmem:[%s3131] ss:$8 sm:$0xf0] %vm3128, %v3127
        %s3133 = scalar_lea.vmem %s50, 68
        %v3134 = vld.sshfl [vmem:[%s3133] sm:$0xff pattern:$0xb3a29180]
        %3135 = vrot.lane.b32.xlu0 %v3134, 48
        %v3136 = vpop.permute.xlu0 %3135
        %vm3137 = vcmask 130048
        %s3138 = scalar_lea.vmem %s45, 581 [#allocation0]
        %3139 = vst.msk [vmem:[%s3138] ss:$8 sm:$0xf] %vm3137, %v3136
        %s3140 = scalar_lea.vmem %s45, 581 [#allocation0]
        %3141 = vst.msk [vmem:[%s3140] ss:$8 sm:$0xf0] %vm3137, %v3136
        %s3142 = scalar_lea.vmem %s50, 80
        %v3143 = vld.sshfl [vmem:[%s3142] sm:$0xff pattern:$0xb3a29180]
        %3144 = vrot.lane.b32.xlu0 %v3143, 48
        %v3145 = vpop.permute.xlu0 %3144
        %vm3146 = vcmask 130048
        %s3147 = scalar_lea.vmem %s45, 645 [#allocation0]
        %3148 = vst.msk [vmem:[%s3147] ss:$8 sm:$0xf] %vm3146, %v3145
        %s3149 = scalar_lea.vmem %s45, 645 [#allocation0]
        %3150 = vst.msk [vmem:[%s3149] ss:$8 sm:$0xf0] %vm3146, %v3145
        %s3151 = scalar_lea.vmem %s50, 84
        %v3152 = vld.sshfl [vmem:[%s3151] sm:$0xff pattern:$0xb3a29180]
        %3153 = vrot.lane.b32.xlu0 %v3152, 48
        %v3154 = vpop.permute.xlu0 %3153
        %vm3155 = vcmask 130048
        %s3156 = scalar_lea.vmem %s45, 709 [#allocation0]
        %3157 = vst.msk [vmem:[%s3156] ss:$8 sm:$0xf] %vm3155, %v3154
        %s3158 = scalar_lea.vmem %s45, 709 [#allocation0]
        %3159 = vst.msk [vmem:[%s3158] ss:$8 sm:$0xf0] %vm3155, %v3154
        %s3160 = scalar_lea.vmem %s50, 96
        %v3161 = vld.sshfl [vmem:[%s3160] sm:$0xff pattern:$0xb3a29180]
        %3162 = vrot.lane.b32.xlu0 %v3161, 48
        %v3163 = vpop.permute.xlu0 %3162
        %vm3164 = vcmask 130048
        %s3165 = scalar_lea.vmem %s45, 773 [#allocation0]
        %3166 = vst.msk [vmem:[%s3165] ss:$8 sm:$0xf] %vm3164, %v3163
        %s3167 = scalar_lea.vmem %s45, 773 [#allocation0]
        %3168 = vst.msk [vmem:[%s3167] ss:$8 sm:$0xf0] %vm3164, %v3163
        %s3169 = scalar_lea.vmem %s50, 100
        %v3170 = vld.sshfl [vmem:[%s3169] sm:$0xff pattern:$0xb3a29180]
        %3171 = vrot.lane.b32.xlu0 %v3170, 48
        %v3172 = vpop.permute.xlu0 %3171
        %vm3173 = vcmask 130048
        %s3174 = scalar_lea.vmem %s45, 837 [#allocation0]
        %3175 = vst.msk [vmem:[%s3174] ss:$8 sm:$0xf] %vm3173, %v3172
        %s3176 = scalar_lea.vmem %s45, 837 [#allocation0]
        %3177 = vst.msk [vmem:[%s3176] ss:$8 sm:$0xf0] %vm3173, %v3172
        %s3178 = scalar_lea.vmem %s50, 112
        %v3179 = vld.sshfl [vmem:[%s3178] sm:$0xff pattern:$0xb3a29180]
        %3180 = vrot.lane.b32.xlu0 %v3179, 48
        %v3181 = vpop.permute.xlu0 %3180
        %vm3182 = vcmask 130048
        %s3183 = scalar_lea.vmem %s45, 901 [#allocation0]
        %3184 = vst.msk [vmem:[%s3183] ss:$8 sm:$0xf] %vm3182, %v3181
        %s3185 = scalar_lea.vmem %s45, 901 [#allocation0]
        %3186 = vst.msk [vmem:[%s3185] ss:$8 sm:$0xf0] %vm3182, %v3181
        %s3187 = scalar_lea.vmem %s50, 116
        %v3188 = vld.sshfl [vmem:[%s3187] sm:$0xff pattern:$0xb3a29180]
        %3189 = vrot.lane.b32.xlu0 %v3188, 48
        %v3190 = vpop.permute.xlu0 %3189
        %vm3191 = vcmask 130048
        %s3192 = scalar_lea.vmem %s45, 965 [#allocation0]
        %3193 = vst.msk [vmem:[%s3192] ss:$8 sm:$0xf] %vm3191, %v3190
        %s3194 = scalar_lea.vmem %s45, 965 [#allocation0]
        %3195 = vst.msk [vmem:[%s3194] ss:$8 sm:$0xf0] %vm3191, %v3190
        %s3196 = scalar_lea.vmem %s50, 128
        %v3197 = vld.sshfl [vmem:[%s3196] sm:$0xff pattern:$0xb3a29180]
        %3198 = vrot.lane.b32.xlu0 %v3197, 48
        %v3199 = vpop.permute.xlu0 %3198
        %vm3200 = vcmask 130048
        %s3201 = scalar_lea.vmem %s45, 1029 [#allocation0]
        %3202 = vst.msk [vmem:[%s3201] ss:$8 sm:$0xf] %vm3200, %v3199
        %s3203 = scalar_lea.vmem %s45, 1029 [#allocation0]
        %3204 = vst.msk [vmem:[%s3203] ss:$8 sm:$0xf0] %vm3200, %v3199
        %s3205 = scalar_lea.vmem %s50, 132
        %v3206 = vld.sshfl [vmem:[%s3205] sm:$0xff pattern:$0xb3a29180]
        %3207 = vrot.lane.b32.xlu0 %v3206, 48
        %v3208 = vpop.permute.xlu0 %3207
        %vm3209 = vcmask 130048
        %s3210 = scalar_lea.vmem %s45, 1093 [#allocation0]
        %3211 = vst.msk [vmem:[%s3210] ss:$8 sm:$0xf] %vm3209, %v3208
        %s3212 = scalar_lea.vmem %s45, 1093 [#allocation0]
        %3213 = vst.msk [vmem:[%s3212] ss:$8 sm:$0xf0] %vm3209, %v3208
        %s3214 = scalar_lea.vmem %s50, 144
        %v3215 = vld.sshfl [vmem:[%s3214] sm:$0xff pattern:$0xb3a29180]
        %3216 = vrot.lane.b32.xlu0 %v3215, 48
        %v3217 = vpop.permute.xlu0 %3216
        %vm3218 = vcmask 130048
        %s3219 = scalar_lea.vmem %s45, 1157 [#allocation0]
        %3220 = vst.msk [vmem:[%s3219] ss:$8 sm:$0xf] %vm3218, %v3217
        %s3221 = scalar_lea.vmem %s45, 1157 [#allocation0]
        %3222 = vst.msk [vmem:[%s3221] ss:$8 sm:$0xf0] %vm3218, %v3217
        %s3223 = scalar_lea.vmem %s50, 148
        %v3224 = vld.sshfl [vmem:[%s3223] sm:$0xff pattern:$0xb3a29180]
        %3225 = vrot.lane.b32.xlu0 %v3224, 48
        %v3226 = vpop.permute.xlu0 %3225
        %vm3227 = vcmask 130048
        %s3228 = scalar_lea.vmem %s45, 1221 [#allocation0]
        %3229 = vst.msk [vmem:[%s3228] ss:$8 sm:$0xf] %vm3227, %v3226
        %s3230 = scalar_lea.vmem %s45, 1221 [#allocation0]
        %3231 = vst.msk [vmem:[%s3230] ss:$8 sm:$0xf0] %vm3227, %v3226
        %s3232 = scalar_lea.vmem %s50, 160
        %v3233 = vld.sshfl [vmem:[%s3232] sm:$0xff pattern:$0xb3a29180]
        %3234 = vrot.lane.b32.xlu0 %v3233, 48
        %v3235 = vpop.permute.xlu0 %3234
        %vm3236 = vcmask 130048
        %s3237 = scalar_lea.vmem %s45, 1285 [#allocation0]
        %3238 = vst.msk [vmem:[%s3237] ss:$8 sm:$0xf] %vm3236, %v3235
        %s3239 = scalar_lea.vmem %s45, 1285 [#allocation0]
        %3240 = vst.msk [vmem:[%s3239] ss:$8 sm:$0xf0] %vm3236, %v3235
        %s3241 = scalar_lea.vmem %s50, 164
        %v3242 = vld.sshfl [vmem:[%s3241] sm:$0xff pattern:$0xb3a29180]
        %3243 = vrot.lane.b32.xlu0 %v3242, 48
        %v3244 = vpop.permute.xlu0 %3243
        %vm3245 = vcmask 130048
        %s3246 = scalar_lea.vmem %s45, 1349 [#allocation0]
        %3247 = vst.msk [vmem:[%s3246] ss:$8 sm:$0xf] %vm3245, %v3244
        %s3248 = scalar_lea.vmem %s45, 1349 [#allocation0]
        %3249 = vst.msk [vmem:[%s3248] ss:$8 sm:$0xf0] %vm3245, %v3244
        %s3250 = scalar_lea.vmem %s50, 176
        %v3251 = vld.sshfl [vmem:[%s3250] sm:$0xff pattern:$0xb3a29180]
        %3252 = vrot.lane.b32.xlu0 %v3251, 48
        %v3253 = vpop.permute.xlu0 %3252
        %vm3254 = vcmask 130048
        %s3255 = scalar_lea.vmem %s45, 1413 [#allocation0]
        %3256 = vst.msk [vmem:[%s3255] ss:$8 sm:$0xf] %vm3254, %v3253
        %s3257 = scalar_lea.vmem %s45, 1413 [#allocation0]
        %3258 = vst.msk [vmem:[%s3257] ss:$8 sm:$0xf0] %vm3254, %v3253
        %s3259 = scalar_lea.vmem %s50, 180
        %v3260 = vld.sshfl [vmem:[%s3259] sm:$0xff pattern:$0xb3a29180]
        %3261 = vrot.lane.b32.xlu0 %v3260, 48
        %v3262 = vpop.permute.xlu0 %3261
        %vm3263 = vcmask 130048
        %s3264 = scalar_lea.vmem %s45, 1477 [#allocation0]
        %3265 = vst.msk [vmem:[%s3264] ss:$8 sm:$0xf] %vm3263, %v3262
        %s3266 = scalar_lea.vmem %s45, 1477 [#allocation0]
        %3267 = vst.msk [vmem:[%s3266] ss:$8 sm:$0xf0] %vm3263, %v3262
        %s3268 = scalar_lea.vmem %s50, 192
        %v3269 = vld.sshfl [vmem:[%s3268] sm:$0xff pattern:$0xb3a29180]
        %3270 = vrot.lane.b32.xlu0 %v3269, 48
        %v3271 = vpop.permute.xlu0 %3270
        %vm3272 = vcmask 130048
        %s3273 = scalar_lea.vmem %s45, 1541 [#allocation0]
        %3274 = vst.msk [vmem:[%s3273] ss:$8 sm:$0xf] %vm3272, %v3271
        %s3275 = scalar_lea.vmem %s45, 1541 [#allocation0]
        %3276 = vst.msk [vmem:[%s3275] ss:$8 sm:$0xf0] %vm3272, %v3271
        %s3277 = scalar_lea.vmem %s50, 196
        %v3278 = vld.sshfl [vmem:[%s3277] sm:$0xff pattern:$0xb3a29180]
        %3279 = vrot.lane.b32.xlu0 %v3278, 48
        %v3280 = vpop.permute.xlu0 %3279
        %vm3281 = vcmask 130048
        %s3282 = scalar_lea.vmem %s45, 1605 [#allocation0]
        %3283 = vst.msk [vmem:[%s3282] ss:$8 sm:$0xf] %vm3281, %v3280
        %s3284 = scalar_lea.vmem %s45, 1605 [#allocation0]
        %3285 = vst.msk [vmem:[%s3284] ss:$8 sm:$0xf0] %vm3281, %v3280
        %s3286 = scalar_lea.vmem %s50, 208
        %v3287 = vld.sshfl [vmem:[%s3286] sm:$0xff pattern:$0xb3a29180]
        %3288 = vrot.lane.b32.xlu0 %v3287, 48
        %v3289 = vpop.permute.xlu0 %3288
        %vm3290 = vcmask 130048
        %s3291 = scalar_lea.vmem %s45, 1669 [#allocation0]
        %3292 = vst.msk [vmem:[%s3291] ss:$8 sm:$0xf] %vm3290, %v3289
        %s3293 = scalar_lea.vmem %s45, 1669 [#allocation0]
        %3294 = vst.msk [vmem:[%s3293] ss:$8 sm:$0xf0] %vm3290, %v3289
        %s3295 = scalar_lea.vmem %s50, 212
        %v3296 = vld.sshfl [vmem:[%s3295] sm:$0xff pattern:$0xb3a29180]
        %3297 = vrot.lane.b32.xlu0 %v3296, 48
        %v3298 = vpop.permute.xlu0 %3297
        %vm3299 = vcmask 130048
        %s3300 = scalar_lea.vmem %s45, 1733 [#allocation0]
        %3301 = vst.msk [vmem:[%s3300] ss:$8 sm:$0xf] %vm3299, %v3298
        %s3302 = scalar_lea.vmem %s45, 1733 [#allocation0]
        %3303 = vst.msk [vmem:[%s3302] ss:$8 sm:$0xf0] %vm3299, %v3298
        %s3304 = scalar_lea.vmem %s50, 224
        %v3305 = vld.sshfl [vmem:[%s3304] sm:$0xff pattern:$0xb3a29180]
        %3306 = vrot.lane.b32.xlu0 %v3305, 48
        %v3307 = vpop.permute.xlu0 %3306
        %vm3308 = vcmask 130048
        %s3309 = scalar_lea.vmem %s45, 1797 [#allocation0]
        %3310 = vst.msk [vmem:[%s3309] ss:$8 sm:$0xf] %vm3308, %v3307
        %s3311 = scalar_lea.vmem %s45, 1797 [#allocation0]
        %3312 = vst.msk [vmem:[%s3311] ss:$8 sm:$0xf0] %vm3308, %v3307
        %s3313 = scalar_lea.vmem %s50, 228
        %v3314 = vld.sshfl [vmem:[%s3313] sm:$0xff pattern:$0xb3a29180]
        %3315 = vrot.lane.b32.xlu0 %v3314, 48
        %v3316 = vpop.permute.xlu0 %3315
        %vm3317 = vcmask 130048
        %s3318 = scalar_lea.vmem %s45, 1861 [#allocation0]
        %3319 = vst.msk [vmem:[%s3318] ss:$8 sm:$0xf] %vm3317, %v3316
        %s3320 = scalar_lea.vmem %s45, 1861 [#allocation0]
        %3321 = vst.msk [vmem:[%s3320] ss:$8 sm:$0xf0] %vm3317, %v3316
        %s3322 = scalar_lea.vmem %s50, 240
        %v3323 = vld.sshfl [vmem:[%s3322] sm:$0xff pattern:$0xb3a29180]
        %3324 = vrot.lane.b32.xlu0 %v3323, 48
        %v3325 = vpop.permute.xlu0 %3324
        %vm3326 = vcmask 130048
        %s3327 = scalar_lea.vmem %s45, 1925 [#allocation0]
        %3328 = vst.msk [vmem:[%s3327] ss:$8 sm:$0xf] %vm3326, %v3325
        %s3329 = scalar_lea.vmem %s45, 1925 [#allocation0]
        %3330 = vst.msk [vmem:[%s3329] ss:$8 sm:$0xf0] %vm3326, %v3325
        %s3331 = scalar_lea.vmem %s50, 244
        %v3332 = vld.sshfl [vmem:[%s3331] sm:$0xff pattern:$0xb3a29180]
        %3333 = vrot.lane.b32.xlu0 %v3332, 48
        %v3334 = vpop.permute.xlu0 %3333
        %vm3335 = vcmask 130048
        %s3336 = scalar_lea.vmem %s45, 1989 [#allocation0]
        %3337 = vst.msk [vmem:[%s3336] ss:$8 sm:$0xf] %vm3335, %v3334
        %s3338 = scalar_lea.vmem %s45, 1989 [#allocation0]
        %3339 = vst.msk [vmem:[%s3338] ss:$8 sm:$0xf0] %vm3335, %v3334
        %s3340 = scalar_lea.vmem %s50, 256
        %v3341 = vld.sshfl [vmem:[%s3340] sm:$0xff pattern:$0xb3a29180]
        %3342 = vrot.lane.b32.xlu0 %v3341, 48
        %v3343 = vpop.permute.xlu0 %3342
        %vm3344 = vcmask 130048
        %s3345 = scalar_lea.vmem %s45, 2053 [#allocation0]
        %3346 = vst.msk [vmem:[%s3345] ss:$8 sm:$0xf] %vm3344, %v3343
        %s3347 = scalar_lea.vmem %s45, 2053 [#allocation0]
        %3348 = vst.msk [vmem:[%s3347] ss:$8 sm:$0xf0] %vm3344, %v3343
        %s3349 = scalar_lea.vmem %s50, 260
        %v3350 = vld.sshfl [vmem:[%s3349] sm:$0xff pattern:$0xb3a29180]
        %3351 = vrot.lane.b32.xlu0 %v3350, 48
        %v3352 = vpop.permute.xlu0 %3351
        %vm3353 = vcmask 130048
        %s3354 = scalar_lea.vmem %s45, 2117 [#allocation0]
        %3355 = vst.msk [vmem:[%s3354] ss:$8 sm:$0xf] %vm3353, %v3352
        %s3356 = scalar_lea.vmem %s45, 2117 [#allocation0]
        %3357 = vst.msk [vmem:[%s3356] ss:$8 sm:$0xf0] %vm3353, %v3352
        %s3358 = scalar_lea.vmem %s50, 272
        %v3359 = vld.sshfl [vmem:[%s3358] sm:$0xff pattern:$0xb3a29180]
        %3360 = vrot.lane.b32.xlu0 %v3359, 48
        %v3361 = vpop.permute.xlu0 %3360
        %vm3362 = vcmask 130048
        %s3363 = scalar_lea.vmem %s45, 2181 [#allocation0]
        %3364 = vst.msk [vmem:[%s3363] ss:$8 sm:$0xf] %vm3362, %v3361
        %s3365 = scalar_lea.vmem %s45, 2181 [#allocation0]
        %3366 = vst.msk [vmem:[%s3365] ss:$8 sm:$0xf0] %vm3362, %v3361
        %s3367 = scalar_lea.vmem %s50, 276
        %v3368 = vld.sshfl [vmem:[%s3367] sm:$0xff pattern:$0xb3a29180]
        %3369 = vrot.lane.b32.xlu0 %v3368, 48
        %v3370 = vpop.permute.xlu0 %3369
        %vm3371 = vcmask 130048
        %s3372 = scalar_lea.vmem %s45, 2245 [#allocation0]
        %3373 = vst.msk [vmem:[%s3372] ss:$8 sm:$0xf] %vm3371, %v3370
        %s3374 = scalar_lea.vmem %s45, 2245 [#allocation0]
        %3375 = vst.msk [vmem:[%s3374] ss:$8 sm:$0xf0] %vm3371, %v3370
        %s3376 = scalar_lea.vmem %s50, 288
        %v3377 = vld.sshfl [vmem:[%s3376] sm:$0xff pattern:$0xb3a29180]
        %3378 = vrot.lane.b32.xlu0 %v3377, 48
        %v3379 = vpop.permute.xlu0 %3378
        %vm3380 = vcmask 130048
        %s3381 = scalar_lea.vmem %s45, 2309 [#allocation0]
        %3382 = vst.msk [vmem:[%s3381] ss:$8 sm:$0xf] %vm3380, %v3379
        %s3383 = scalar_lea.vmem %s45, 2309 [#allocation0]
        %3384 = vst.msk [vmem:[%s3383] ss:$8 sm:$0xf0] %vm3380, %v3379
        %s3385 = scalar_lea.vmem %s50, 292
        %v3386 = vld.sshfl [vmem:[%s3385] sm:$0xff pattern:$0xb3a29180]
        %3387 = vrot.lane.b32.xlu0 %v3386, 48
        %v3388 = vpop.permute.xlu0 %3387
        %vm3389 = vcmask 130048
        %s3390 = scalar_lea.vmem %s45, 2373 [#allocation0]
        %3391 = vst.msk [vmem:[%s3390] ss:$8 sm:$0xf] %vm3389, %v3388
        %s3392 = scalar_lea.vmem %s45, 2373 [#allocation0]
        %3393 = vst.msk [vmem:[%s3392] ss:$8 sm:$0xf0] %vm3389, %v3388
        %s3394 = scalar_lea.vmem %s50, 304
        %v3395 = vld.sshfl [vmem:[%s3394] sm:$0xff pattern:$0xb3a29180]
        %3396 = vrot.lane.b32.xlu0 %v3395, 48
        %v3397 = vpop.permute.xlu0 %3396
        %vm3398 = vcmask 130048
        %s3399 = scalar_lea.vmem %s45, 2437 [#allocation0]
        %3400 = vst.msk [vmem:[%s3399] ss:$8 sm:$0xf] %vm3398, %v3397
        %s3401 = scalar_lea.vmem %s45, 2437 [#allocation0]
        %3402 = vst.msk [vmem:[%s3401] ss:$8 sm:$0xf0] %vm3398, %v3397
        %s3403 = scalar_lea.vmem %s50, 308
        %v3404 = vld.sshfl [vmem:[%s3403] sm:$0xff pattern:$0xb3a29180]
        %3405 = vrot.lane.b32.xlu0 %v3404, 48
        %v3406 = vpop.permute.xlu0 %3405
        %vm3407 = vcmask 130048
        %s3408 = scalar_lea.vmem %s45, 2501 [#allocation0]
        %3409 = vst.msk [vmem:[%s3408] ss:$8 sm:$0xf] %vm3407, %v3406
        %s3410 = scalar_lea.vmem %s45, 2501 [#allocation0]
        %3411 = vst.msk [vmem:[%s3410] ss:$8 sm:$0xf0] %vm3407, %v3406
        %s3412 = scalar_lea.vmem %s50, 320
        %v3413 = vld.sshfl [vmem:[%s3412] sm:$0xff pattern:$0xb3a29180]
        %3414 = vrot.lane.b32.xlu0 %v3413, 48
        %v3415 = vpop.permute.xlu0 %3414
        %vm3416 = vcmask 130048
        %s3417 = scalar_lea.vmem %s45, 2565 [#allocation0]
        %3418 = vst.msk [vmem:[%s3417] ss:$8 sm:$0xf] %vm3416, %v3415
        %s3419 = scalar_lea.vmem %s45, 2565 [#allocation0]
        %3420 = vst.msk [vmem:[%s3419] ss:$8 sm:$0xf0] %vm3416, %v3415
        %s3421 = scalar_lea.vmem %s50, 324
        %v3422 = vld.sshfl [vmem:[%s3421] sm:$0xff pattern:$0xb3a29180]
        %3423 = vrot.lane.b32.xlu0 %v3422, 48
        %v3424 = vpop.permute.xlu0 %3423
        %vm3425 = vcmask 130048
        %s3426 = scalar_lea.vmem %s45, 2629 [#allocation0]
        %3427 = vst.msk [vmem:[%s3426] ss:$8 sm:$0xf] %vm3425, %v3424
        %s3428 = scalar_lea.vmem %s45, 2629 [#allocation0]
        %3429 = vst.msk [vmem:[%s3428] ss:$8 sm:$0xf0] %vm3425, %v3424
        %s3430 = scalar_lea.vmem %s50, 336
        %v3431 = vld.sshfl [vmem:[%s3430] sm:$0xff pattern:$0xb3a29180]
        %3432 = vrot.lane.b32.xlu0 %v3431, 48
        %v3433 = vpop.permute.xlu0 %3432
        %vm3434 = vcmask 130048
        %s3435 = scalar_lea.vmem %s45, 2693 [#allocation0]
        %3436 = vst.msk [vmem:[%s3435] ss:$8 sm:$0xf] %vm3434, %v3433
        %s3437 = scalar_lea.vmem %s45, 2693 [#allocation0]
        %3438 = vst.msk [vmem:[%s3437] ss:$8 sm:$0xf0] %vm3434, %v3433
        %s3439 = scalar_lea.vmem %s50, 340
        %v3440 = vld.sshfl [vmem:[%s3439] sm:$0xff pattern:$0xb3a29180]
        %3441 = vrot.lane.b32.xlu0 %v3440, 48
        %v3442 = vpop.permute.xlu0 %3441
        %vm3443 = vcmask 130048
        %s3444 = scalar_lea.vmem %s45, 2757 [#allocation0]
        %3445 = vst.msk [vmem:[%s3444] ss:$8 sm:$0xf] %vm3443, %v3442
        %s3446 = scalar_lea.vmem %s45, 2757 [#allocation0]
        %3447 = vst.msk [vmem:[%s3446] ss:$8 sm:$0xf0] %vm3443, %v3442
        %s3448 = scalar_lea.vmem %s50, 352
        %v3449 = vld.sshfl [vmem:[%s3448] sm:$0xff pattern:$0xb3a29180]
        %3450 = vrot.lane.b32.xlu0 %v3449, 48
        %v3451 = vpop.permute.xlu0 %3450
        %vm3452 = vcmask 130048
        %s3453 = scalar_lea.vmem %s45, 2821 [#allocation0]
        %3454 = vst.msk [vmem:[%s3453] ss:$8 sm:$0xf] %vm3452, %v3451
        %s3455 = scalar_lea.vmem %s45, 2821 [#allocation0]
        %3456 = vst.msk [vmem:[%s3455] ss:$8 sm:$0xf0] %vm3452, %v3451
        %s3457 = scalar_lea.vmem %s50, 356
        %v3458 = vld.sshfl [vmem:[%s3457] sm:$0xff pattern:$0xb3a29180]
        %3459 = vrot.lane.b32.xlu0 %v3458, 48
        %v3460 = vpop.permute.xlu0 %3459
        %vm3461 = vcmask 130048
        %s3462 = scalar_lea.vmem %s45, 2885 [#allocation0]
        %3463 = vst.msk [vmem:[%s3462] ss:$8 sm:$0xf] %vm3461, %v3460
        %s3464 = scalar_lea.vmem %s45, 2885 [#allocation0]
        %3465 = vst.msk [vmem:[%s3464] ss:$8 sm:$0xf0] %vm3461, %v3460
        %s3466 = scalar_lea.vmem %s50, 368
        %v3467 = vld.sshfl [vmem:[%s3466] sm:$0xff pattern:$0xb3a29180]
        %3468 = vrot.lane.b32.xlu0 %v3467, 48
        %v3469 = vpop.permute.xlu0 %3468
        %vm3470 = vcmask 130048
        %s3471 = scalar_lea.vmem %s45, 2949 [#allocation0]
        %3472 = vst.msk [vmem:[%s3471] ss:$8 sm:$0xf] %vm3470, %v3469
        %s3473 = scalar_lea.vmem %s45, 2949 [#allocation0]
        %3474 = vst.msk [vmem:[%s3473] ss:$8 sm:$0xf0] %vm3470, %v3469
        %s3475 = scalar_lea.vmem %s50, 372
        %v3476 = vld.sshfl [vmem:[%s3475] sm:$0xff pattern:$0xb3a29180]
        %3477 = vrot.lane.b32.xlu0 %v3476, 48
        %v3478 = vpop.permute.xlu0 %3477
        %vm3479 = vcmask 130048
        %s3480 = scalar_lea.vmem %s45, 3013 [#allocation0]
        %3481 = vst.msk [vmem:[%s3480] ss:$8 sm:$0xf] %vm3479, %v3478
        %s3482 = scalar_lea.vmem %s45, 3013 [#allocation0]
        %3483 = vst.msk [vmem:[%s3482] ss:$8 sm:$0xf0] %vm3479, %v3478
        %s3484 = scalar_lea.vmem %s50, 384
        %v3485 = vld.sshfl [vmem:[%s3484] sm:$0xff pattern:$0xb3a29180]
        %3486 = vrot.lane.b32.xlu0 %v3485, 48
        %v3487 = vpop.permute.xlu0 %3486
        %vm3488 = vcmask 130048
        %s3489 = scalar_lea.vmem %s45, 3077 [#allocation0]
        %3490 = vst.msk [vmem:[%s3489] ss:$8 sm:$0xf] %vm3488, %v3487
        %s3491 = scalar_lea.vmem %s45, 3077 [#allocation0]
        %3492 = vst.msk [vmem:[%s3491] ss:$8 sm:$0xf0] %vm3488, %v3487
        %s3493 = scalar_lea.vmem %s50, 388
        %v3494 = vld.sshfl [vmem:[%s3493] sm:$0xff pattern:$0xb3a29180]
        %3495 = vrot.lane.b32.xlu0 %v3494, 48
        %v3496 = vpop.permute.xlu0 %3495
        %vm3497 = vcmask 130048
        %s3498 = scalar_lea.vmem %s45, 3141 [#allocation0]
        %3499 = vst.msk [vmem:[%s3498] ss:$8 sm:$0xf] %vm3497, %v3496
        %s3500 = scalar_lea.vmem %s45, 3141 [#allocation0]
        %3501 = vst.msk [vmem:[%s3500] ss:$8 sm:$0xf0] %vm3497, %v3496
        %s3502 = scalar_lea.vmem %s50, 400
        %v3503 = vld.sshfl [vmem:[%s3502] sm:$0xff pattern:$0xb3a29180]
        %3504 = vrot.lane.b32.xlu0 %v3503, 48
        %v3505 = vpop.permute.xlu0 %3504
        %vm3506 = vcmask 130048
        %s3507 = scalar_lea.vmem %s45, 3205 [#allocation0]
        %3508 = vst.msk [vmem:[%s3507] ss:$8 sm:$0xf] %vm3506, %v3505
        %s3509 = scalar_lea.vmem %s45, 3205 [#allocation0]
        %3510 = vst.msk [vmem:[%s3509] ss:$8 sm:$0xf0] %vm3506, %v3505
        %s3511 = scalar_lea.vmem %s50, 404
        %v3512 = vld.sshfl [vmem:[%s3511] sm:$0xff pattern:$0xb3a29180]
        %3513 = vrot.lane.b32.xlu0 %v3512, 48
        %v3514 = vpop.permute.xlu0 %3513
        %vm3515 = vcmask 130048
        %s3516 = scalar_lea.vmem %s45, 3269 [#allocation0]
        %3517 = vst.msk [vmem:[%s3516] ss:$8 sm:$0xf] %vm3515, %v3514
        %s3518 = scalar_lea.vmem %s45, 3269 [#allocation0]
        %3519 = vst.msk [vmem:[%s3518] ss:$8 sm:$0xf0] %vm3515, %v3514
        %s3520 = scalar_lea.vmem %s50, 416
        %v3521 = vld.sshfl [vmem:[%s3520] sm:$0xff pattern:$0xb3a29180]
        %3522 = vrot.lane.b32.xlu0 %v3521, 48
        %v3523 = vpop.permute.xlu0 %3522
        %vm3524 = vcmask 130048
        %s3525 = scalar_lea.vmem %s45, 3333 [#allocation0]
        %3526 = vst.msk [vmem:[%s3525] ss:$8 sm:$0xf] %vm3524, %v3523
        %s3527 = scalar_lea.vmem %s45, 3333 [#allocation0]
        %3528 = vst.msk [vmem:[%s3527] ss:$8 sm:$0xf0] %vm3524, %v3523
        %s3529 = scalar_lea.vmem %s50, 420
        %v3530 = vld.sshfl [vmem:[%s3529] sm:$0xff pattern:$0xb3a29180]
        %3531 = vrot.lane.b32.xlu0 %v3530, 48
        %v3532 = vpop.permute.xlu0 %3531
        %vm3533 = vcmask 130048
        %s3534 = scalar_lea.vmem %s45, 3397 [#allocation0]
        %3535 = vst.msk [vmem:[%s3534] ss:$8 sm:$0xf] %vm3533, %v3532
        %s3536 = scalar_lea.vmem %s45, 3397 [#allocation0]
        %3537 = vst.msk [vmem:[%s3536] ss:$8 sm:$0xf0] %vm3533, %v3532
        %s3538 = scalar_lea.vmem %s50, 432
        %v3539 = vld.sshfl [vmem:[%s3538] sm:$0xff pattern:$0xb3a29180]
        %3540 = vrot.lane.b32.xlu0 %v3539, 48
        %v3541 = vpop.permute.xlu0 %3540
        %vm3542 = vcmask 130048
        %s3543 = scalar_lea.vmem %s45, 3461 [#allocation0]
        %3544 = vst.msk [vmem:[%s3543] ss:$8 sm:$0xf] %vm3542, %v3541
        %s3545 = scalar_lea.vmem %s45, 3461 [#allocation0]
        %3546 = vst.msk [vmem:[%s3545] ss:$8 sm:$0xf0] %vm3542, %v3541
        %s3547 = scalar_lea.vmem %s50, 436
        %v3548 = vld.sshfl [vmem:[%s3547] sm:$0xff pattern:$0xb3a29180]
        %3549 = vrot.lane.b32.xlu0 %v3548, 48
        %v3550 = vpop.permute.xlu0 %3549
        %vm3551 = vcmask 130048
        %s3552 = scalar_lea.vmem %s45, 3525 [#allocation0]
        %3553 = vst.msk [vmem:[%s3552] ss:$8 sm:$0xf] %vm3551, %v3550
        %s3554 = scalar_lea.vmem %s45, 3525 [#allocation0]
        %3555 = vst.msk [vmem:[%s3554] ss:$8 sm:$0xf0] %vm3551, %v3550
        %s3556 = scalar_lea.vmem %s50, 448
        %v3557 = vld.sshfl [vmem:[%s3556] sm:$0xff pattern:$0xb3a29180]
        %3558 = vrot.lane.b32.xlu0 %v3557, 48
        %v3559 = vpop.permute.xlu0 %3558
        %vm3560 = vcmask 130048
        %s3561 = scalar_lea.vmem %s45, 3589 [#allocation0]
        %3562 = vst.msk [vmem:[%s3561] ss:$8 sm:$0xf] %vm3560, %v3559
        %s3563 = scalar_lea.vmem %s45, 3589 [#allocation0]
        %3564 = vst.msk [vmem:[%s3563] ss:$8 sm:$0xf0] %vm3560, %v3559
        %s3565 = scalar_lea.vmem %s50, 452
        %v3566 = vld.sshfl [vmem:[%s3565] sm:$0xff pattern:$0xb3a29180]
        %3567 = vrot.lane.b32.xlu0 %v3566, 48
        %v3568 = vpop.permute.xlu0 %3567
        %vm3569 = vcmask 130048
        %s3570 = scalar_lea.vmem %s45, 3653 [#allocation0]
        %3571 = vst.msk [vmem:[%s3570] ss:$8 sm:$0xf] %vm3569, %v3568
        %s3572 = scalar_lea.vmem %s45, 3653 [#allocation0]
        %3573 = vst.msk [vmem:[%s3572] ss:$8 sm:$0xf0] %vm3569, %v3568
        %s3574 = scalar_lea.vmem %s50, 464
        %v3575 = vld.sshfl [vmem:[%s3574] sm:$0xff pattern:$0xb3a29180]
        %3576 = vrot.lane.b32.xlu0 %v3575, 48
        %v3577 = vpop.permute.xlu0 %3576
        %vm3578 = vcmask 130048
        %s3579 = scalar_lea.vmem %s45, 3717 [#allocation0]
        %3580 = vst.msk [vmem:[%s3579] ss:$8 sm:$0xf] %vm3578, %v3577
        %s3581 = scalar_lea.vmem %s45, 3717 [#allocation0]
        %3582 = vst.msk [vmem:[%s3581] ss:$8 sm:$0xf0] %vm3578, %v3577
        %s3583 = scalar_lea.vmem %s50, 468
        %v3584 = vld.sshfl [vmem:[%s3583] sm:$0xff pattern:$0xb3a29180]
        %3585 = vrot.lane.b32.xlu0 %v3584, 48
        %v3586 = vpop.permute.xlu0 %3585
        %vm3587 = vcmask 130048
        %s3588 = scalar_lea.vmem %s45, 3781 [#allocation0]
        %3589 = vst.msk [vmem:[%s3588] ss:$8 sm:$0xf] %vm3587, %v3586
        %s3590 = scalar_lea.vmem %s45, 3781 [#allocation0]
        %3591 = vst.msk [vmem:[%s3590] ss:$8 sm:$0xf0] %vm3587, %v3586
        %s3592 = scalar_lea.vmem %s50, 480
        %v3593 = vld.sshfl [vmem:[%s3592] sm:$0xff pattern:$0xb3a29180]
        %3594 = vrot.lane.b32.xlu0 %v3593, 48
        %v3595 = vpop.permute.xlu0 %3594
        %vm3596 = vcmask 130048
        %s3597 = scalar_lea.vmem %s45, 3845 [#allocation0]
        %3598 = vst.msk [vmem:[%s3597] ss:$8 sm:$0xf] %vm3596, %v3595
        %s3599 = scalar_lea.vmem %s45, 3845 [#allocation0]
        %3600 = vst.msk [vmem:[%s3599] ss:$8 sm:$0xf0] %vm3596, %v3595
        %s3601 = scalar_lea.vmem %s50, 484
        %v3602 = vld.sshfl [vmem:[%s3601] sm:$0xff pattern:$0xb3a29180]
        %3603 = vrot.lane.b32.xlu0 %v3602, 48
        %v3604 = vpop.permute.xlu0 %3603
        %vm3605 = vcmask 130048
        %s3606 = scalar_lea.vmem %s45, 3909 [#allocation0]
        %3607 = vst.msk [vmem:[%s3606] ss:$8 sm:$0xf] %vm3605, %v3604
        %s3608 = scalar_lea.vmem %s45, 3909 [#allocation0]
        %3609 = vst.msk [vmem:[%s3608] ss:$8 sm:$0xf0] %vm3605, %v3604
        %s3610 = scalar_lea.vmem %s50, 496
        %v3611 = vld.sshfl [vmem:[%s3610] sm:$0xff pattern:$0xb3a29180]
        %3612 = vrot.lane.b32.xlu0 %v3611, 48
        %v3613 = vpop.permute.xlu0 %3612
        %vm3614 = vcmask 130048
        %s3615 = scalar_lea.vmem %s45, 3973 [#allocation0]
        %3616 = vst.msk [vmem:[%s3615] ss:$8 sm:$0xf] %vm3614, %v3613
        %s3617 = scalar_lea.vmem %s45, 3973 [#allocation0]
        %3618 = vst.msk [vmem:[%s3617] ss:$8 sm:$0xf0] %vm3614, %v3613
        %s3619 = scalar_lea.vmem %s50, 500
        %v3620 = vld.sshfl [vmem:[%s3619] sm:$0xff pattern:$0xb3a29180]
        %3621 = vrot.lane.b32.xlu0 %v3620, 48
        %v3622 = vpop.permute.xlu0 %3621
        %vm3623 = vcmask 130048
        %s3624 = scalar_lea.vmem %s45, 4037 [#allocation0]
        %3625 = vst.msk [vmem:[%s3624] ss:$8 sm:$0xf] %vm3623, %v3622
        %s3626 = scalar_lea.vmem %s45, 4037 [#allocation0]
        %3627 = vst.msk [vmem:[%s3626] ss:$8 sm:$0xf0] %vm3623, %v3622
        %v3628 = vld.sshfl [vmem:[%s50] sm:$0xff pattern:$0xb3a29180]
        %3629 = vrot.lane.b32.xlu0 %v3628, 32
        %v3630 = vpop.permute.xlu0 %3629
        %vm3631 = vcmask 130048
        %s3632 = scalar_lea.vmem %s45, 6 [#allocation0]
        %3633 = vst.msk [vmem:[%s3632] ss:$8 sm:$0xf] %vm3631, %v3630
        %s3634 = scalar_lea.vmem %s45, 6 [#allocation0]
        %3635 = vst.msk [vmem:[%s3634] ss:$8 sm:$0xf0] %vm3631, %v3630
        %s3636 = scalar_lea.vmem %s50, 4
        %v3637 = vld.sshfl [vmem:[%s3636] sm:$0xff pattern:$0xb3a29180]
        %3638 = vrot.lane.b32.xlu0 %v3637, 32
        %v3639 = vpop.permute.xlu0 %3638
        %vm3640 = vcmask 130048
        %s3641 = scalar_lea.vmem %s45, 70 [#allocation0]
        %3642 = vst.msk [vmem:[%s3641] ss:$8 sm:$0xf] %vm3640, %v3639
        %s3643 = scalar_lea.vmem %s45, 70 [#allocation0]
        %3644 = vst.msk [vmem:[%s3643] ss:$8 sm:$0xf0] %vm3640, %v3639
        %s3645 = scalar_lea.vmem %s50, 16
        %v3646 = vld.sshfl [vmem:[%s3645] sm:$0xff pattern:$0xb3a29180]
        %3647 = vrot.lane.b32.xlu0 %v3646, 32
        %v3648 = vpop.permute.xlu0 %3647
        %vm3649 = vcmask 130048
        %s3650 = scalar_lea.vmem %s45, 134 [#allocation0]
        %3651 = vst.msk [vmem:[%s3650] ss:$8 sm:$0xf] %vm3649, %v3648
        %s3652 = scalar_lea.vmem %s45, 134 [#allocation0]
        %3653 = vst.msk [vmem:[%s3652] ss:$8 sm:$0xf0] %vm3649, %v3648
        %s3654 = scalar_lea.vmem %s50, 20
        %v3655 = vld.sshfl [vmem:[%s3654] sm:$0xff pattern:$0xb3a29180]
        %3656 = vrot.lane.b32.xlu0 %v3655, 32
        %v3657 = vpop.permute.xlu0 %3656
        %vm3658 = vcmask 130048
        %s3659 = scalar_lea.vmem %s45, 198 [#allocation0]
        %3660 = vst.msk [vmem:[%s3659] ss:$8 sm:$0xf] %vm3658, %v3657
        %s3661 = scalar_lea.vmem %s45, 198 [#allocation0]
        %3662 = vst.msk [vmem:[%s3661] ss:$8 sm:$0xf0] %vm3658, %v3657
        %s3663 = scalar_lea.vmem %s50, 32
        %v3664 = vld.sshfl [vmem:[%s3663] sm:$0xff pattern:$0xb3a29180]
        %3665 = vrot.lane.b32.xlu0 %v3664, 32
        %v3666 = vpop.permute.xlu0 %3665
        %vm3667 = vcmask 130048
        %s3668 = scalar_lea.vmem %s45, 262 [#allocation0]
        %3669 = vst.msk [vmem:[%s3668] ss:$8 sm:$0xf] %vm3667, %v3666
        %s3670 = scalar_lea.vmem %s45, 262 [#allocation0]
        %3671 = vst.msk [vmem:[%s3670] ss:$8 sm:$0xf0] %vm3667, %v3666
        %s3672 = scalar_lea.vmem %s50, 36
        %v3673 = vld.sshfl [vmem:[%s3672] sm:$0xff pattern:$0xb3a29180]
        %3674 = vrot.lane.b32.xlu0 %v3673, 32
        %v3675 = vpop.permute.xlu0 %3674
        %vm3676 = vcmask 130048
        %s3677 = scalar_lea.vmem %s45, 326 [#allocation0]
        %3678 = vst.msk [vmem:[%s3677] ss:$8 sm:$0xf] %vm3676, %v3675
        %s3679 = scalar_lea.vmem %s45, 326 [#allocation0]
        %3680 = vst.msk [vmem:[%s3679] ss:$8 sm:$0xf0] %vm3676, %v3675
        %s3681 = scalar_lea.vmem %s50, 48
        %v3682 = vld.sshfl [vmem:[%s3681] sm:$0xff pattern:$0xb3a29180]
        %3683 = vrot.lane.b32.xlu0 %v3682, 32
        %v3684 = vpop.permute.xlu0 %3683
        %vm3685 = vcmask 130048
        %s3686 = scalar_lea.vmem %s45, 390 [#allocation0]
        %3687 = vst.msk [vmem:[%s3686] ss:$8 sm:$0xf] %vm3685, %v3684
        %s3688 = scalar_lea.vmem %s45, 390 [#allocation0]
        %3689 = vst.msk [vmem:[%s3688] ss:$8 sm:$0xf0] %vm3685, %v3684
        %s3690 = scalar_lea.vmem %s50, 52
        %v3691 = vld.sshfl [vmem:[%s3690] sm:$0xff pattern:$0xb3a29180]
        %3692 = vrot.lane.b32.xlu0 %v3691, 32
        %v3693 = vpop.permute.xlu0 %3692
        %vm3694 = vcmask 130048
        %s3695 = scalar_lea.vmem %s45, 454 [#allocation0]
        %3696 = vst.msk [vmem:[%s3695] ss:$8 sm:$0xf] %vm3694, %v3693
        %s3697 = scalar_lea.vmem %s45, 454 [#allocation0]
        %3698 = vst.msk [vmem:[%s3697] ss:$8 sm:$0xf0] %vm3694, %v3693
        %s3699 = scalar_lea.vmem %s50, 64
        %v3700 = vld.sshfl [vmem:[%s3699] sm:$0xff pattern:$0xb3a29180]
        %3701 = vrot.lane.b32.xlu0 %v3700, 32
        %v3702 = vpop.permute.xlu0 %3701
        %vm3703 = vcmask 130048
        %s3704 = scalar_lea.vmem %s45, 518 [#allocation0]
        %3705 = vst.msk [vmem:[%s3704] ss:$8 sm:$0xf] %vm3703, %v3702
        %s3706 = scalar_lea.vmem %s45, 518 [#allocation0]
        %3707 = vst.msk [vmem:[%s3706] ss:$8 sm:$0xf0] %vm3703, %v3702
        %s3708 = scalar_lea.vmem %s50, 68
        %v3709 = vld.sshfl [vmem:[%s3708] sm:$0xff pattern:$0xb3a29180]
        %3710 = vrot.lane.b32.xlu0 %v3709, 32
        %v3711 = vpop.permute.xlu0 %3710
        %vm3712 = vcmask 130048
        %s3713 = scalar_lea.vmem %s45, 582 [#allocation0]
        %3714 = vst.msk [vmem:[%s3713] ss:$8 sm:$0xf] %vm3712, %v3711
        %s3715 = scalar_lea.vmem %s45, 582 [#allocation0]
        %3716 = vst.msk [vmem:[%s3715] ss:$8 sm:$0xf0] %vm3712, %v3711
        %s3717 = scalar_lea.vmem %s50, 80
        %v3718 = vld.sshfl [vmem:[%s3717] sm:$0xff pattern:$0xb3a29180]
        %3719 = vrot.lane.b32.xlu0 %v3718, 32
        %v3720 = vpop.permute.xlu0 %3719
        %vm3721 = vcmask 130048
        %s3722 = scalar_lea.vmem %s45, 646 [#allocation0]
        %3723 = vst.msk [vmem:[%s3722] ss:$8 sm:$0xf] %vm3721, %v3720
        %s3724 = scalar_lea.vmem %s45, 646 [#allocation0]
        %3725 = vst.msk [vmem:[%s3724] ss:$8 sm:$0xf0] %vm3721, %v3720
        %s3726 = scalar_lea.vmem %s50, 84
        %v3727 = vld.sshfl [vmem:[%s3726] sm:$0xff pattern:$0xb3a29180]
        %3728 = vrot.lane.b32.xlu0 %v3727, 32
        %v3729 = vpop.permute.xlu0 %3728
        %vm3730 = vcmask 130048
        %s3731 = scalar_lea.vmem %s45, 710 [#allocation0]
        %3732 = vst.msk [vmem:[%s3731] ss:$8 sm:$0xf] %vm3730, %v3729
        %s3733 = scalar_lea.vmem %s45, 710 [#allocation0]
        %3734 = vst.msk [vmem:[%s3733] ss:$8 sm:$0xf0] %vm3730, %v3729
        %s3735 = scalar_lea.vmem %s50, 96
        %v3736 = vld.sshfl [vmem:[%s3735] sm:$0xff pattern:$0xb3a29180]
        %3737 = vrot.lane.b32.xlu0 %v3736, 32
        %v3738 = vpop.permute.xlu0 %3737
        %vm3739 = vcmask 130048
        %s3740 = scalar_lea.vmem %s45, 774 [#allocation0]
        %3741 = vst.msk [vmem:[%s3740] ss:$8 sm:$0xf] %vm3739, %v3738
        %s3742 = scalar_lea.vmem %s45, 774 [#allocation0]
        %3743 = vst.msk [vmem:[%s3742] ss:$8 sm:$0xf0] %vm3739, %v3738
        %s3744 = scalar_lea.vmem %s50, 100
        %v3745 = vld.sshfl [vmem:[%s3744] sm:$0xff pattern:$0xb3a29180]
        %3746 = vrot.lane.b32.xlu0 %v3745, 32
        %v3747 = vpop.permute.xlu0 %3746
        %vm3748 = vcmask 130048
        %s3749 = scalar_lea.vmem %s45, 838 [#allocation0]
        %3750 = vst.msk [vmem:[%s3749] ss:$8 sm:$0xf] %vm3748, %v3747
        %s3751 = scalar_lea.vmem %s45, 838 [#allocation0]
        %3752 = vst.msk [vmem:[%s3751] ss:$8 sm:$0xf0] %vm3748, %v3747
        %s3753 = scalar_lea.vmem %s50, 112
        %v3754 = vld.sshfl [vmem:[%s3753] sm:$0xff pattern:$0xb3a29180]
        %3755 = vrot.lane.b32.xlu0 %v3754, 32
        %v3756 = vpop.permute.xlu0 %3755
        %vm3757 = vcmask 130048
        %s3758 = scalar_lea.vmem %s45, 902 [#allocation0]
        %3759 = vst.msk [vmem:[%s3758] ss:$8 sm:$0xf] %vm3757, %v3756
        %s3760 = scalar_lea.vmem %s45, 902 [#allocation0]
        %3761 = vst.msk [vmem:[%s3760] ss:$8 sm:$0xf0] %vm3757, %v3756
        %s3762 = scalar_lea.vmem %s50, 116
        %v3763 = vld.sshfl [vmem:[%s3762] sm:$0xff pattern:$0xb3a29180]
        %3764 = vrot.lane.b32.xlu0 %v3763, 32
        %v3765 = vpop.permute.xlu0 %3764
        %vm3766 = vcmask 130048
        %s3767 = scalar_lea.vmem %s45, 966 [#allocation0]
        %3768 = vst.msk [vmem:[%s3767] ss:$8 sm:$0xf] %vm3766, %v3765
        %s3769 = scalar_lea.vmem %s45, 966 [#allocation0]
        %3770 = vst.msk [vmem:[%s3769] ss:$8 sm:$0xf0] %vm3766, %v3765
        %s3771 = scalar_lea.vmem %s50, 128
        %v3772 = vld.sshfl [vmem:[%s3771] sm:$0xff pattern:$0xb3a29180]
        %3773 = vrot.lane.b32.xlu0 %v3772, 32
        %v3774 = vpop.permute.xlu0 %3773
        %vm3775 = vcmask 130048
        %s3776 = scalar_lea.vmem %s45, 1030 [#allocation0]
        %3777 = vst.msk [vmem:[%s3776] ss:$8 sm:$0xf] %vm3775, %v3774
        %s3778 = scalar_lea.vmem %s45, 1030 [#allocation0]
        %3779 = vst.msk [vmem:[%s3778] ss:$8 sm:$0xf0] %vm3775, %v3774
        %s3780 = scalar_lea.vmem %s50, 132
        %v3781 = vld.sshfl [vmem:[%s3780] sm:$0xff pattern:$0xb3a29180]
        %3782 = vrot.lane.b32.xlu0 %v3781, 32
        %v3783 = vpop.permute.xlu0 %3782
        %vm3784 = vcmask 130048
        %s3785 = scalar_lea.vmem %s45, 1094 [#allocation0]
        %3786 = vst.msk [vmem:[%s3785] ss:$8 sm:$0xf] %vm3784, %v3783
        %s3787 = scalar_lea.vmem %s45, 1094 [#allocation0]
        %3788 = vst.msk [vmem:[%s3787] ss:$8 sm:$0xf0] %vm3784, %v3783
        %s3789 = scalar_lea.vmem %s50, 144
        %v3790 = vld.sshfl [vmem:[%s3789] sm:$0xff pattern:$0xb3a29180]
        %3791 = vrot.lane.b32.xlu0 %v3790, 32
        %v3792 = vpop.permute.xlu0 %3791
        %vm3793 = vcmask 130048
        %s3794 = scalar_lea.vmem %s45, 1158 [#allocation0]
        %3795 = vst.msk [vmem:[%s3794] ss:$8 sm:$0xf] %vm3793, %v3792
        %s3796 = scalar_lea.vmem %s45, 1158 [#allocation0]
        %3797 = vst.msk [vmem:[%s3796] ss:$8 sm:$0xf0] %vm3793, %v3792
        %s3798 = scalar_lea.vmem %s50, 148
        %v3799 = vld.sshfl [vmem:[%s3798] sm:$0xff pattern:$0xb3a29180]
        %3800 = vrot.lane.b32.xlu0 %v3799, 32
        %v3801 = vpop.permute.xlu0 %3800
        %vm3802 = vcmask 130048
        %s3803 = scalar_lea.vmem %s45, 1222 [#allocation0]
        %3804 = vst.msk [vmem:[%s3803] ss:$8 sm:$0xf] %vm3802, %v3801
        %s3805 = scalar_lea.vmem %s45, 1222 [#allocation0]
        %3806 = vst.msk [vmem:[%s3805] ss:$8 sm:$0xf0] %vm3802, %v3801
        %s3807 = scalar_lea.vmem %s50, 160
        %v3808 = vld.sshfl [vmem:[%s3807] sm:$0xff pattern:$0xb3a29180]
        %3809 = vrot.lane.b32.xlu0 %v3808, 32
        %v3810 = vpop.permute.xlu0 %3809
        %vm3811 = vcmask 130048
        %s3812 = scalar_lea.vmem %s45, 1286 [#allocation0]
        %3813 = vst.msk [vmem:[%s3812] ss:$8 sm:$0xf] %vm3811, %v3810
        %s3814 = scalar_lea.vmem %s45, 1286 [#allocation0]
        %3815 = vst.msk [vmem:[%s3814] ss:$8 sm:$0xf0] %vm3811, %v3810
        %s3816 = scalar_lea.vmem %s50, 164
        %v3817 = vld.sshfl [vmem:[%s3816] sm:$0xff pattern:$0xb3a29180]
        %3818 = vrot.lane.b32.xlu0 %v3817, 32
        %v3819 = vpop.permute.xlu0 %3818
        %vm3820 = vcmask 130048
        %s3821 = scalar_lea.vmem %s45, 1350 [#allocation0]
        %3822 = vst.msk [vmem:[%s3821] ss:$8 sm:$0xf] %vm3820, %v3819
        %s3823 = scalar_lea.vmem %s45, 1350 [#allocation0]
        %3824 = vst.msk [vmem:[%s3823] ss:$8 sm:$0xf0] %vm3820, %v3819
        %s3825 = scalar_lea.vmem %s50, 176
        %v3826 = vld.sshfl [vmem:[%s3825] sm:$0xff pattern:$0xb3a29180]
        %3827 = vrot.lane.b32.xlu0 %v3826, 32
        %v3828 = vpop.permute.xlu0 %3827
        %vm3829 = vcmask 130048
        %s3830 = scalar_lea.vmem %s45, 1414 [#allocation0]
        %3831 = vst.msk [vmem:[%s3830] ss:$8 sm:$0xf] %vm3829, %v3828
        %s3832 = scalar_lea.vmem %s45, 1414 [#allocation0]
        %3833 = vst.msk [vmem:[%s3832] ss:$8 sm:$0xf0] %vm3829, %v3828
        %s3834 = scalar_lea.vmem %s50, 180
        %v3835 = vld.sshfl [vmem:[%s3834] sm:$0xff pattern:$0xb3a29180]
        %3836 = vrot.lane.b32.xlu0 %v3835, 32
        %v3837 = vpop.permute.xlu0 %3836
        %vm3838 = vcmask 130048
        %s3839 = scalar_lea.vmem %s45, 1478 [#allocation0]
        %3840 = vst.msk [vmem:[%s3839] ss:$8 sm:$0xf] %vm3838, %v3837
        %s3841 = scalar_lea.vmem %s45, 1478 [#allocation0]
        %3842 = vst.msk [vmem:[%s3841] ss:$8 sm:$0xf0] %vm3838, %v3837
        %s3843 = scalar_lea.vmem %s50, 192
        %v3844 = vld.sshfl [vmem:[%s3843] sm:$0xff pattern:$0xb3a29180]
        %3845 = vrot.lane.b32.xlu0 %v3844, 32
        %v3846 = vpop.permute.xlu0 %3845
        %vm3847 = vcmask 130048
        %s3848 = scalar_lea.vmem %s45, 1542 [#allocation0]
        %3849 = vst.msk [vmem:[%s3848] ss:$8 sm:$0xf] %vm3847, %v3846
        %s3850 = scalar_lea.vmem %s45, 1542 [#allocation0]
        %3851 = vst.msk [vmem:[%s3850] ss:$8 sm:$0xf0] %vm3847, %v3846
        %s3852 = scalar_lea.vmem %s50, 196
        %v3853 = vld.sshfl [vmem:[%s3852] sm:$0xff pattern:$0xb3a29180]
        %3854 = vrot.lane.b32.xlu0 %v3853, 32
        %v3855 = vpop.permute.xlu0 %3854
        %vm3856 = vcmask 130048
        %s3857 = scalar_lea.vmem %s45, 1606 [#allocation0]
        %3858 = vst.msk [vmem:[%s3857] ss:$8 sm:$0xf] %vm3856, %v3855
        %s3859 = scalar_lea.vmem %s45, 1606 [#allocation0]
        %3860 = vst.msk [vmem:[%s3859] ss:$8 sm:$0xf0] %vm3856, %v3855
        %s3861 = scalar_lea.vmem %s50, 208
        %v3862 = vld.sshfl [vmem:[%s3861] sm:$0xff pattern:$0xb3a29180]
        %3863 = vrot.lane.b32.xlu0 %v3862, 32
        %v3864 = vpop.permute.xlu0 %3863
        %vm3865 = vcmask 130048
        %s3866 = scalar_lea.vmem %s45, 1670 [#allocation0]
        %3867 = vst.msk [vmem:[%s3866] ss:$8 sm:$0xf] %vm3865, %v3864
        %s3868 = scalar_lea.vmem %s45, 1670 [#allocation0]
        %3869 = vst.msk [vmem:[%s3868] ss:$8 sm:$0xf0] %vm3865, %v3864
        %s3870 = scalar_lea.vmem %s50, 212
        %v3871 = vld.sshfl [vmem:[%s3870] sm:$0xff pattern:$0xb3a29180]
        %3872 = vrot.lane.b32.xlu0 %v3871, 32
        %v3873 = vpop.permute.xlu0 %3872
        %vm3874 = vcmask 130048
        %s3875 = scalar_lea.vmem %s45, 1734 [#allocation0]
        %3876 = vst.msk [vmem:[%s3875] ss:$8 sm:$0xf] %vm3874, %v3873
        %s3877 = scalar_lea.vmem %s45, 1734 [#allocation0]
        %3878 = vst.msk [vmem:[%s3877] ss:$8 sm:$0xf0] %vm3874, %v3873
        %s3879 = scalar_lea.vmem %s50, 224
        %v3880 = vld.sshfl [vmem:[%s3879] sm:$0xff pattern:$0xb3a29180]
        %3881 = vrot.lane.b32.xlu0 %v3880, 32
        %v3882 = vpop.permute.xlu0 %3881
        %vm3883 = vcmask 130048
        %s3884 = scalar_lea.vmem %s45, 1798 [#allocation0]
        %3885 = vst.msk [vmem:[%s3884] ss:$8 sm:$0xf] %vm3883, %v3882
        %s3886 = scalar_lea.vmem %s45, 1798 [#allocation0]
        %3887 = vst.msk [vmem:[%s3886] ss:$8 sm:$0xf0] %vm3883, %v3882
        %s3888 = scalar_lea.vmem %s50, 228
        %v3889 = vld.sshfl [vmem:[%s3888] sm:$0xff pattern:$0xb3a29180]
        %3890 = vrot.lane.b32.xlu0 %v3889, 32
        %v3891 = vpop.permute.xlu0 %3890
        %vm3892 = vcmask 130048
        %s3893 = scalar_lea.vmem %s45, 1862 [#allocation0]
        %3894 = vst.msk [vmem:[%s3893] ss:$8 sm:$0xf] %vm3892, %v3891
        %s3895 = scalar_lea.vmem %s45, 1862 [#allocation0]
        %3896 = vst.msk [vmem:[%s3895] ss:$8 sm:$0xf0] %vm3892, %v3891
        %s3897 = scalar_lea.vmem %s50, 240
        %v3898 = vld.sshfl [vmem:[%s3897] sm:$0xff pattern:$0xb3a29180]
        %3899 = vrot.lane.b32.xlu0 %v3898, 32
        %v3900 = vpop.permute.xlu0 %3899
        %vm3901 = vcmask 130048
        %s3902 = scalar_lea.vmem %s45, 1926 [#allocation0]
        %3903 = vst.msk [vmem:[%s3902] ss:$8 sm:$0xf] %vm3901, %v3900
        %s3904 = scalar_lea.vmem %s45, 1926 [#allocation0]
        %3905 = vst.msk [vmem:[%s3904] ss:$8 sm:$0xf0] %vm3901, %v3900
        %s3906 = scalar_lea.vmem %s50, 244
        %v3907 = vld.sshfl [vmem:[%s3906] sm:$0xff pattern:$0xb3a29180]
        %3908 = vrot.lane.b32.xlu0 %v3907, 32
        %v3909 = vpop.permute.xlu0 %3908
        %vm3910 = vcmask 130048
        %s3911 = scalar_lea.vmem %s45, 1990 [#allocation0]
        %3912 = vst.msk [vmem:[%s3911] ss:$8 sm:$0xf] %vm3910, %v3909
        %s3913 = scalar_lea.vmem %s45, 1990 [#allocation0]
        %3914 = vst.msk [vmem:[%s3913] ss:$8 sm:$0xf0] %vm3910, %v3909
        %s3915 = scalar_lea.vmem %s50, 256
        %v3916 = vld.sshfl [vmem:[%s3915] sm:$0xff pattern:$0xb3a29180]
        %3917 = vrot.lane.b32.xlu0 %v3916, 32
        %v3918 = vpop.permute.xlu0 %3917
        %vm3919 = vcmask 130048
        %s3920 = scalar_lea.vmem %s45, 2054 [#allocation0]
        %3921 = vst.msk [vmem:[%s3920] ss:$8 sm:$0xf] %vm3919, %v3918
        %s3922 = scalar_lea.vmem %s45, 2054 [#allocation0]
        %3923 = vst.msk [vmem:[%s3922] ss:$8 sm:$0xf0] %vm3919, %v3918
        %s3924 = scalar_lea.vmem %s50, 260
        %v3925 = vld.sshfl [vmem:[%s3924] sm:$0xff pattern:$0xb3a29180]
        %3926 = vrot.lane.b32.xlu0 %v3925, 32
        %v3927 = vpop.permute.xlu0 %3926
        %vm3928 = vcmask 130048
        %s3929 = scalar_lea.vmem %s45, 2118 [#allocation0]
        %3930 = vst.msk [vmem:[%s3929] ss:$8 sm:$0xf] %vm3928, %v3927
        %s3931 = scalar_lea.vmem %s45, 2118 [#allocation0]
        %3932 = vst.msk [vmem:[%s3931] ss:$8 sm:$0xf0] %vm3928, %v3927
        %s3933 = scalar_lea.vmem %s50, 272
        %v3934 = vld.sshfl [vmem:[%s3933] sm:$0xff pattern:$0xb3a29180]
        %3935 = vrot.lane.b32.xlu0 %v3934, 32
        %v3936 = vpop.permute.xlu0 %3935
        %vm3937 = vcmask 130048
        %s3938 = scalar_lea.vmem %s45, 2182 [#allocation0]
        %3939 = vst.msk [vmem:[%s3938] ss:$8 sm:$0xf] %vm3937, %v3936
        %s3940 = scalar_lea.vmem %s45, 2182 [#allocation0]
        %3941 = vst.msk [vmem:[%s3940] ss:$8 sm:$0xf0] %vm3937, %v3936
        %s3942 = scalar_lea.vmem %s50, 276
        %v3943 = vld.sshfl [vmem:[%s3942] sm:$0xff pattern:$0xb3a29180]
        %3944 = vrot.lane.b32.xlu0 %v3943, 32
        %v3945 = vpop.permute.xlu0 %3944
        %vm3946 = vcmask 130048
        %s3947 = scalar_lea.vmem %s45, 2246 [#allocation0]
        %3948 = vst.msk [vmem:[%s3947] ss:$8 sm:$0xf] %vm3946, %v3945
        %s3949 = scalar_lea.vmem %s45, 2246 [#allocation0]
        %3950 = vst.msk [vmem:[%s3949] ss:$8 sm:$0xf0] %vm3946, %v3945
        %s3951 = scalar_lea.vmem %s50, 288
        %v3952 = vld.sshfl [vmem:[%s3951] sm:$0xff pattern:$0xb3a29180]
        %3953 = vrot.lane.b32.xlu0 %v3952, 32
        %v3954 = vpop.permute.xlu0 %3953
        %vm3955 = vcmask 130048
        %s3956 = scalar_lea.vmem %s45, 2310 [#allocation0]
        %3957 = vst.msk [vmem:[%s3956] ss:$8 sm:$0xf] %vm3955, %v3954
        %s3958 = scalar_lea.vmem %s45, 2310 [#allocation0]
        %3959 = vst.msk [vmem:[%s3958] ss:$8 sm:$0xf0] %vm3955, %v3954
        %s3960 = scalar_lea.vmem %s50, 292
        %v3961 = vld.sshfl [vmem:[%s3960] sm:$0xff pattern:$0xb3a29180]
        %3962 = vrot.lane.b32.xlu0 %v3961, 32
        %v3963 = vpop.permute.xlu0 %3962
        %vm3964 = vcmask 130048
        %s3965 = scalar_lea.vmem %s45, 2374 [#allocation0]
        %3966 = vst.msk [vmem:[%s3965] ss:$8 sm:$0xf] %vm3964, %v3963
        %s3967 = scalar_lea.vmem %s45, 2374 [#allocation0]
        %3968 = vst.msk [vmem:[%s3967] ss:$8 sm:$0xf0] %vm3964, %v3963
        %s3969 = scalar_lea.vmem %s50, 304
        %v3970 = vld.sshfl [vmem:[%s3969] sm:$0xff pattern:$0xb3a29180]
        %3971 = vrot.lane.b32.xlu0 %v3970, 32
        %v3972 = vpop.permute.xlu0 %3971
        %vm3973 = vcmask 130048
        %s3974 = scalar_lea.vmem %s45, 2438 [#allocation0]
        %3975 = vst.msk [vmem:[%s3974] ss:$8 sm:$0xf] %vm3973, %v3972
        %s3976 = scalar_lea.vmem %s45, 2438 [#allocation0]
        %3977 = vst.msk [vmem:[%s3976] ss:$8 sm:$0xf0] %vm3973, %v3972
        %s3978 = scalar_lea.vmem %s50, 308
        %v3979 = vld.sshfl [vmem:[%s3978] sm:$0xff pattern:$0xb3a29180]
        %3980 = vrot.lane.b32.xlu0 %v3979, 32
        %v3981 = vpop.permute.xlu0 %3980
        %vm3982 = vcmask 130048
        %s3983 = scalar_lea.vmem %s45, 2502 [#allocation0]
        %3984 = vst.msk [vmem:[%s3983] ss:$8 sm:$0xf] %vm3982, %v3981
        %s3985 = scalar_lea.vmem %s45, 2502 [#allocation0]
        %3986 = vst.msk [vmem:[%s3985] ss:$8 sm:$0xf0] %vm3982, %v3981
        %s3987 = scalar_lea.vmem %s50, 320
        %v3988 = vld.sshfl [vmem:[%s3987] sm:$0xff pattern:$0xb3a29180]
        %3989 = vrot.lane.b32.xlu0 %v3988, 32
        %v3990 = vpop.permute.xlu0 %3989
        %vm3991 = vcmask 130048
        %s3992 = scalar_lea.vmem %s45, 2566 [#allocation0]
        %3993 = vst.msk [vmem:[%s3992] ss:$8 sm:$0xf] %vm3991, %v3990
        %s3994 = scalar_lea.vmem %s45, 2566 [#allocation0]
        %3995 = vst.msk [vmem:[%s3994] ss:$8 sm:$0xf0] %vm3991, %v3990
        %s3996 = scalar_lea.vmem %s50, 324
        %v3997 = vld.sshfl [vmem:[%s3996] sm:$0xff pattern:$0xb3a29180]
        %3998 = vrot.lane.b32.xlu0 %v3997, 32
        %v3999 = vpop.permute.xlu0 %3998
        %vm4000 = vcmask 130048
        %s4001 = scalar_lea.vmem %s45, 2630 [#allocation0]
        %4002 = vst.msk [vmem:[%s4001] ss:$8 sm:$0xf] %vm4000, %v3999
        %s4003 = scalar_lea.vmem %s45, 2630 [#allocation0]
        %4004 = vst.msk [vmem:[%s4003] ss:$8 sm:$0xf0] %vm4000, %v3999
        %s4005 = scalar_lea.vmem %s50, 336
        %v4006 = vld.sshfl [vmem:[%s4005] sm:$0xff pattern:$0xb3a29180]
        %4007 = vrot.lane.b32.xlu0 %v4006, 32
        %v4008 = vpop.permute.xlu0 %4007
        %vm4009 = vcmask 130048
        %s4010 = scalar_lea.vmem %s45, 2694 [#allocation0]
        %4011 = vst.msk [vmem:[%s4010] ss:$8 sm:$0xf] %vm4009, %v4008
        %s4012 = scalar_lea.vmem %s45, 2694 [#allocation0]
        %4013 = vst.msk [vmem:[%s4012] ss:$8 sm:$0xf0] %vm4009, %v4008
        %s4014 = scalar_lea.vmem %s50, 340
        %v4015 = vld.sshfl [vmem:[%s4014] sm:$0xff pattern:$0xb3a29180]
        %4016 = vrot.lane.b32.xlu0 %v4015, 32
        %v4017 = vpop.permute.xlu0 %4016
        %vm4018 = vcmask 130048
        %s4019 = scalar_lea.vmem %s45, 2758 [#allocation0]
        %4020 = vst.msk [vmem:[%s4019] ss:$8 sm:$0xf] %vm4018, %v4017
        %s4021 = scalar_lea.vmem %s45, 2758 [#allocation0]
        %4022 = vst.msk [vmem:[%s4021] ss:$8 sm:$0xf0] %vm4018, %v4017
        %s4023 = scalar_lea.vmem %s50, 352
        %v4024 = vld.sshfl [vmem:[%s4023] sm:$0xff pattern:$0xb3a29180]
        %4025 = vrot.lane.b32.xlu0 %v4024, 32
        %v4026 = vpop.permute.xlu0 %4025
        %vm4027 = vcmask 130048
        %s4028 = scalar_lea.vmem %s45, 2822 [#allocation0]
        %4029 = vst.msk [vmem:[%s4028] ss:$8 sm:$0xf] %vm4027, %v4026
        %s4030 = scalar_lea.vmem %s45, 2822 [#allocation0]
        %4031 = vst.msk [vmem:[%s4030] ss:$8 sm:$0xf0] %vm4027, %v4026
        %s4032 = scalar_lea.vmem %s50, 356
        %v4033 = vld.sshfl [vmem:[%s4032] sm:$0xff pattern:$0xb3a29180]
        %4034 = vrot.lane.b32.xlu0 %v4033, 32
        %v4035 = vpop.permute.xlu0 %4034
        %vm4036 = vcmask 130048
        %s4037 = scalar_lea.vmem %s45, 2886 [#allocation0]
        %4038 = vst.msk [vmem:[%s4037] ss:$8 sm:$0xf] %vm4036, %v4035
        %s4039 = scalar_lea.vmem %s45, 2886 [#allocation0]
        %4040 = vst.msk [vmem:[%s4039] ss:$8 sm:$0xf0] %vm4036, %v4035
        %s4041 = scalar_lea.vmem %s50, 368
        %v4042 = vld.sshfl [vmem:[%s4041] sm:$0xff pattern:$0xb3a29180]
        %4043 = vrot.lane.b32.xlu0 %v4042, 32
        %v4044 = vpop.permute.xlu0 %4043
        %vm4045 = vcmask 130048
        %s4046 = scalar_lea.vmem %s45, 2950 [#allocation0]
        %4047 = vst.msk [vmem:[%s4046] ss:$8 sm:$0xf] %vm4045, %v4044
        %s4048 = scalar_lea.vmem %s45, 2950 [#allocation0]
        %4049 = vst.msk [vmem:[%s4048] ss:$8 sm:$0xf0] %vm4045, %v4044
        %s4050 = scalar_lea.vmem %s50, 372
        %v4051 = vld.sshfl [vmem:[%s4050] sm:$0xff pattern:$0xb3a29180]
        %4052 = vrot.lane.b32.xlu0 %v4051, 32
        %v4053 = vpop.permute.xlu0 %4052
        %vm4054 = vcmask 130048
        %s4055 = scalar_lea.vmem %s45, 3014 [#allocation0]
        %4056 = vst.msk [vmem:[%s4055] ss:$8 sm:$0xf] %vm4054, %v4053
        %s4057 = scalar_lea.vmem %s45, 3014 [#allocation0]
        %4058 = vst.msk [vmem:[%s4057] ss:$8 sm:$0xf0] %vm4054, %v4053
        %s4059 = scalar_lea.vmem %s50, 384
        %v4060 = vld.sshfl [vmem:[%s4059] sm:$0xff pattern:$0xb3a29180]
        %4061 = vrot.lane.b32.xlu0 %v4060, 32
        %v4062 = vpop.permute.xlu0 %4061
        %vm4063 = vcmask 130048
        %s4064 = scalar_lea.vmem %s45, 3078 [#allocation0]
        %4065 = vst.msk [vmem:[%s4064] ss:$8 sm:$0xf] %vm4063, %v4062
        %s4066 = scalar_lea.vmem %s45, 3078 [#allocation0]
        %4067 = vst.msk [vmem:[%s4066] ss:$8 sm:$0xf0] %vm4063, %v4062
        %s4068 = scalar_lea.vmem %s50, 388
        %v4069 = vld.sshfl [vmem:[%s4068] sm:$0xff pattern:$0xb3a29180]
        %4070 = vrot.lane.b32.xlu0 %v4069, 32
        %v4071 = vpop.permute.xlu0 %4070
        %vm4072 = vcmask 130048
        %s4073 = scalar_lea.vmem %s45, 3142 [#allocation0]
        %4074 = vst.msk [vmem:[%s4073] ss:$8 sm:$0xf] %vm4072, %v4071
        %s4075 = scalar_lea.vmem %s45, 3142 [#allocation0]
        %4076 = vst.msk [vmem:[%s4075] ss:$8 sm:$0xf0] %vm4072, %v4071
        %s4077 = scalar_lea.vmem %s50, 400
        %v4078 = vld.sshfl [vmem:[%s4077] sm:$0xff pattern:$0xb3a29180]
        %4079 = vrot.lane.b32.xlu0 %v4078, 32
        %v4080 = vpop.permute.xlu0 %4079
        %vm4081 = vcmask 130048
        %s4082 = scalar_lea.vmem %s45, 3206 [#allocation0]
        %4083 = vst.msk [vmem:[%s4082] ss:$8 sm:$0xf] %vm4081, %v4080
        %s4084 = scalar_lea.vmem %s45, 3206 [#allocation0]
        %4085 = vst.msk [vmem:[%s4084] ss:$8 sm:$0xf0] %vm4081, %v4080
        %s4086 = scalar_lea.vmem %s50, 404
        %v4087 = vld.sshfl [vmem:[%s4086] sm:$0xff pattern:$0xb3a29180]
        %4088 = vrot.lane.b32.xlu0 %v4087, 32
        %v4089 = vpop.permute.xlu0 %4088
        %vm4090 = vcmask 130048
        %s4091 = scalar_lea.vmem %s45, 3270 [#allocation0]
        %4092 = vst.msk [vmem:[%s4091] ss:$8 sm:$0xf] %vm4090, %v4089
        %s4093 = scalar_lea.vmem %s45, 3270 [#allocation0]
        %4094 = vst.msk [vmem:[%s4093] ss:$8 sm:$0xf0] %vm4090, %v4089
        %s4095 = scalar_lea.vmem %s50, 416
        %v4096 = vld.sshfl [vmem:[%s4095] sm:$0xff pattern:$0xb3a29180]
        %4097 = vrot.lane.b32.xlu0 %v4096, 32
        %v4098 = vpop.permute.xlu0 %4097
        %vm4099 = vcmask 130048
        %s4100 = scalar_lea.vmem %s45, 3334 [#allocation0]
        %4101 = vst.msk [vmem:[%s4100] ss:$8 sm:$0xf] %vm4099, %v4098
        %s4102 = scalar_lea.vmem %s45, 3334 [#allocation0]
        %4103 = vst.msk [vmem:[%s4102] ss:$8 sm:$0xf0] %vm4099, %v4098
        %s4104 = scalar_lea.vmem %s50, 420
        %v4105 = vld.sshfl [vmem:[%s4104] sm:$0xff pattern:$0xb3a29180]
        %4106 = vrot.lane.b32.xlu0 %v4105, 32
        %v4107 = vpop.permute.xlu0 %4106
        %vm4108 = vcmask 130048
        %s4109 = scalar_lea.vmem %s45, 3398 [#allocation0]
        %4110 = vst.msk [vmem:[%s4109] ss:$8 sm:$0xf] %vm4108, %v4107
        %s4111 = scalar_lea.vmem %s45, 3398 [#allocation0]
        %4112 = vst.msk [vmem:[%s4111] ss:$8 sm:$0xf0] %vm4108, %v4107
        %s4113 = scalar_lea.vmem %s50, 432
        %v4114 = vld.sshfl [vmem:[%s4113] sm:$0xff pattern:$0xb3a29180]
        %4115 = vrot.lane.b32.xlu0 %v4114, 32
        %v4116 = vpop.permute.xlu0 %4115
        %vm4117 = vcmask 130048
        %s4118 = scalar_lea.vmem %s45, 3462 [#allocation0]
        %4119 = vst.msk [vmem:[%s4118] ss:$8 sm:$0xf] %vm4117, %v4116
        %s4120 = scalar_lea.vmem %s45, 3462 [#allocation0]
        %4121 = vst.msk [vmem:[%s4120] ss:$8 sm:$0xf0] %vm4117, %v4116
        %s4122 = scalar_lea.vmem %s50, 436
        %v4123 = vld.sshfl [vmem:[%s4122] sm:$0xff pattern:$0xb3a29180]
        %4124 = vrot.lane.b32.xlu0 %v4123, 32
        %v4125 = vpop.permute.xlu0 %4124
        %vm4126 = vcmask 130048
        %s4127 = scalar_lea.vmem %s45, 3526 [#allocation0]
        %4128 = vst.msk [vmem:[%s4127] ss:$8 sm:$0xf] %vm4126, %v4125
        %s4129 = scalar_lea.vmem %s45, 3526 [#allocation0]
        %4130 = vst.msk [vmem:[%s4129] ss:$8 sm:$0xf0] %vm4126, %v4125
        %s4131 = scalar_lea.vmem %s50, 448
        %v4132 = vld.sshfl [vmem:[%s4131] sm:$0xff pattern:$0xb3a29180]
        %4133 = vrot.lane.b32.xlu0 %v4132, 32
        %v4134 = vpop.permute.xlu0 %4133
        %vm4135 = vcmask 130048
        %s4136 = scalar_lea.vmem %s45, 3590 [#allocation0]
        %4137 = vst.msk [vmem:[%s4136] ss:$8 sm:$0xf] %vm4135, %v4134
        %s4138 = scalar_lea.vmem %s45, 3590 [#allocation0]
        %4139 = vst.msk [vmem:[%s4138] ss:$8 sm:$0xf0] %vm4135, %v4134
        %s4140 = scalar_lea.vmem %s50, 452
        %v4141 = vld.sshfl [vmem:[%s4140] sm:$0xff pattern:$0xb3a29180]
        %4142 = vrot.lane.b32.xlu0 %v4141, 32
        %v4143 = vpop.permute.xlu0 %4142
        %vm4144 = vcmask 130048
        %s4145 = scalar_lea.vmem %s45, 3654 [#allocation0]
        %4146 = vst.msk [vmem:[%s4145] ss:$8 sm:$0xf] %vm4144, %v4143
        %s4147 = scalar_lea.vmem %s45, 3654 [#allocation0]
        %4148 = vst.msk [vmem:[%s4147] ss:$8 sm:$0xf0] %vm4144, %v4143
        %s4149 = scalar_lea.vmem %s50, 464
        %v4150 = vld.sshfl [vmem:[%s4149] sm:$0xff pattern:$0xb3a29180]
        %4151 = vrot.lane.b32.xlu0 %v4150, 32
        %v4152 = vpop.permute.xlu0 %4151
        %vm4153 = vcmask 130048
        %s4154 = scalar_lea.vmem %s45, 3718 [#allocation0]
        %4155 = vst.msk [vmem:[%s4154] ss:$8 sm:$0xf] %vm4153, %v4152
        %s4156 = scalar_lea.vmem %s45, 3718 [#allocation0]
        %4157 = vst.msk [vmem:[%s4156] ss:$8 sm:$0xf0] %vm4153, %v4152
        %s4158 = scalar_lea.vmem %s50, 468
        %v4159 = vld.sshfl [vmem:[%s4158] sm:$0xff pattern:$0xb3a29180]
        %4160 = vrot.lane.b32.xlu0 %v4159, 32
        %v4161 = vpop.permute.xlu0 %4160
        %vm4162 = vcmask 130048
        %s4163 = scalar_lea.vmem %s45, 3782 [#allocation0]
        %4164 = vst.msk [vmem:[%s4163] ss:$8 sm:$0xf] %vm4162, %v4161
        %s4165 = scalar_lea.vmem %s45, 3782 [#allocation0]
        %4166 = vst.msk [vmem:[%s4165] ss:$8 sm:$0xf0] %vm4162, %v4161
        %s4167 = scalar_lea.vmem %s50, 480
        %v4168 = vld.sshfl [vmem:[%s4167] sm:$0xff pattern:$0xb3a29180]
        %4169 = vrot.lane.b32.xlu0 %v4168, 32
        %v4170 = vpop.permute.xlu0 %4169
        %vm4171 = vcmask 130048
        %s4172 = scalar_lea.vmem %s45, 3846 [#allocation0]
        %4173 = vst.msk [vmem:[%s4172] ss:$8 sm:$0xf] %vm4171, %v4170
        %s4174 = scalar_lea.vmem %s45, 3846 [#allocation0]
        %4175 = vst.msk [vmem:[%s4174] ss:$8 sm:$0xf0] %vm4171, %v4170
        %s4176 = scalar_lea.vmem %s50, 484
        %v4177 = vld.sshfl [vmem:[%s4176] sm:$0xff pattern:$0xb3a29180]
        %4178 = vrot.lane.b32.xlu0 %v4177, 32
        %v4179 = vpop.permute.xlu0 %4178
        %vm4180 = vcmask 130048
        %s4181 = scalar_lea.vmem %s45, 3910 [#allocation0]
        %4182 = vst.msk [vmem:[%s4181] ss:$8 sm:$0xf] %vm4180, %v4179
        %s4183 = scalar_lea.vmem %s45, 3910 [#allocation0]
        %4184 = vst.msk [vmem:[%s4183] ss:$8 sm:$0xf0] %vm4180, %v4179
        %s4185 = scalar_lea.vmem %s50, 496
        %v4186 = vld.sshfl [vmem:[%s4185] sm:$0xff pattern:$0xb3a29180]
        %4187 = vrot.lane.b32.xlu0 %v4186, 32
        %v4188 = vpop.permute.xlu0 %4187
        %vm4189 = vcmask 130048
        %s4190 = scalar_lea.vmem %s45, 3974 [#allocation0]
        %4191 = vst.msk [vmem:[%s4190] ss:$8 sm:$0xf] %vm4189, %v4188
        %s4192 = scalar_lea.vmem %s45, 3974 [#allocation0]
        %4193 = vst.msk [vmem:[%s4192] ss:$8 sm:$0xf0] %vm4189, %v4188
        %s4194 = scalar_lea.vmem %s50, 500
        %v4195 = vld.sshfl [vmem:[%s4194] sm:$0xff pattern:$0xb3a29180]
        %4196 = vrot.lane.b32.xlu0 %v4195, 32
        %v4197 = vpop.permute.xlu0 %4196
        %vm4198 = vcmask 130048
        %s4199 = scalar_lea.vmem %s45, 4038 [#allocation0]
        %4200 = vst.msk [vmem:[%s4199] ss:$8 sm:$0xf] %vm4198, %v4197
        %s4201 = scalar_lea.vmem %s45, 4038 [#allocation0]
        %4202 = vst.msk [vmem:[%s4201] ss:$8 sm:$0xf0] %vm4198, %v4197
        %v4203 = vld.sshfl [vmem:[%s50] sm:$0xff pattern:$0xb3a29180]
        %4204 = vrot.lane.b32.xlu0 %v4203, 16
        %v4205 = vpop.permute.xlu0 %4204
        %vm4206 = vcmask 130048
        %s4207 = scalar_lea.vmem %s45, 7 [#allocation0]
        %4208 = vst.msk [vmem:[%s4207] ss:$8 sm:$0xf] %vm4206, %v4205
        %s4209 = scalar_lea.vmem %s45, 7 [#allocation0]
        %4210 = vst.msk [vmem:[%s4209] ss:$8 sm:$0xf0] %vm4206, %v4205
        %s4211 = scalar_lea.vmem %s50, 4
        %v4212 = vld.sshfl [vmem:[%s4211] sm:$0xff pattern:$0xb3a29180]
        %4213 = vrot.lane.b32.xlu0 %v4212, 16
        %v4214 = vpop.permute.xlu0 %4213
        %vm4215 = vcmask 130048
        %s4216 = scalar_lea.vmem %s45, 71 [#allocation0]
        %4217 = vst.msk [vmem:[%s4216] ss:$8 sm:$0xf] %vm4215, %v4214
        %s4218 = scalar_lea.vmem %s45, 71 [#allocation0]
        %4219 = vst.msk [vmem:[%s4218] ss:$8 sm:$0xf0] %vm4215, %v4214
        %s4220 = scalar_lea.vmem %s50, 16
        %v4221 = vld.sshfl [vmem:[%s4220] sm:$0xff pattern:$0xb3a29180]
        %4222 = vrot.lane.b32.xlu0 %v4221, 16
        %v4223 = vpop.permute.xlu0 %4222
        %vm4224 = vcmask 130048
        %s4225 = scalar_lea.vmem %s45, 135 [#allocation0]
        %4226 = vst.msk [vmem:[%s4225] ss:$8 sm:$0xf] %vm4224, %v4223
        %s4227 = scalar_lea.vmem %s45, 135 [#allocation0]
        %4228 = vst.msk [vmem:[%s4227] ss:$8 sm:$0xf0] %vm4224, %v4223
        %s4229 = scalar_lea.vmem %s50, 20
        %v4230 = vld.sshfl [vmem:[%s4229] sm:$0xff pattern:$0xb3a29180]
        %4231 = vrot.lane.b32.xlu0 %v4230, 16
        %v4232 = vpop.permute.xlu0 %4231
        %vm4233 = vcmask 130048
        %s4234 = scalar_lea.vmem %s45, 199 [#allocation0]
        %4235 = vst.msk [vmem:[%s4234] ss:$8 sm:$0xf] %vm4233, %v4232
        %s4236 = scalar_lea.vmem %s45, 199 [#allocation0]
        %4237 = vst.msk [vmem:[%s4236] ss:$8 sm:$0xf0] %vm4233, %v4232
        %s4238 = scalar_lea.vmem %s50, 32
        %v4239 = vld.sshfl [vmem:[%s4238] sm:$0xff pattern:$0xb3a29180]
        %4240 = vrot.lane.b32.xlu0 %v4239, 16
        %v4241 = vpop.permute.xlu0 %4240
        %vm4242 = vcmask 130048
        %s4243 = scalar_lea.vmem %s45, 263 [#allocation0]
        %4244 = vst.msk [vmem:[%s4243] ss:$8 sm:$0xf] %vm4242, %v4241
        %s4245 = scalar_lea.vmem %s45, 263 [#allocation0]
        %4246 = vst.msk [vmem:[%s4245] ss:$8 sm:$0xf0] %vm4242, %v4241
        %s4247 = scalar_lea.vmem %s50, 36
        %v4248 = vld.sshfl [vmem:[%s4247] sm:$0xff pattern:$0xb3a29180]
        %4249 = vrot.lane.b32.xlu0 %v4248, 16
        %v4250 = vpop.permute.xlu0 %4249
        %vm4251 = vcmask 130048
        %s4252 = scalar_lea.vmem %s45, 327 [#allocation0]
        %4253 = vst.msk [vmem:[%s4252] ss:$8 sm:$0xf] %vm4251, %v4250
        %s4254 = scalar_lea.vmem %s45, 327 [#allocation0]
        %4255 = vst.msk [vmem:[%s4254] ss:$8 sm:$0xf0] %vm4251, %v4250
        %s4256 = scalar_lea.vmem %s50, 48
        %v4257 = vld.sshfl [vmem:[%s4256] sm:$0xff pattern:$0xb3a29180]
        %4258 = vrot.lane.b32.xlu0 %v4257, 16
        %v4259 = vpop.permute.xlu0 %4258
        %vm4260 = vcmask 130048
        %s4261 = scalar_lea.vmem %s45, 391 [#allocation0]
        %4262 = vst.msk [vmem:[%s4261] ss:$8 sm:$0xf] %vm4260, %v4259
        %s4263 = scalar_lea.vmem %s45, 391 [#allocation0]
        %4264 = vst.msk [vmem:[%s4263] ss:$8 sm:$0xf0] %vm4260, %v4259
        %s4265 = scalar_lea.vmem %s50, 52
        %v4266 = vld.sshfl [vmem:[%s4265] sm:$0xff pattern:$0xb3a29180]
        %4267 = vrot.lane.b32.xlu0 %v4266, 16
        %v4268 = vpop.permute.xlu0 %4267
        %vm4269 = vcmask 130048
        %s4270 = scalar_lea.vmem %s45, 455 [#allocation0]
        %4271 = vst.msk [vmem:[%s4270] ss:$8 sm:$0xf] %vm4269, %v4268
        %s4272 = scalar_lea.vmem %s45, 455 [#allocation0]
        %4273 = vst.msk [vmem:[%s4272] ss:$8 sm:$0xf0] %vm4269, %v4268
        %s4274 = scalar_lea.vmem %s50, 64
        %v4275 = vld.sshfl [vmem:[%s4274] sm:$0xff pattern:$0xb3a29180]
        %4276 = vrot.lane.b32.xlu0 %v4275, 16
        %v4277 = vpop.permute.xlu0 %4276
        %vm4278 = vcmask 130048
        %s4279 = scalar_lea.vmem %s45, 519 [#allocation0]
        %4280 = vst.msk [vmem:[%s4279] ss:$8 sm:$0xf] %vm4278, %v4277
        %s4281 = scalar_lea.vmem %s45, 519 [#allocation0]
        %4282 = vst.msk [vmem:[%s4281] ss:$8 sm:$0xf0] %vm4278, %v4277
        %s4283 = scalar_lea.vmem %s50, 68
        %v4284 = vld.sshfl [vmem:[%s4283] sm:$0xff pattern:$0xb3a29180]
        %4285 = vrot.lane.b32.xlu0 %v4284, 16
        %v4286 = vpop.permute.xlu0 %4285
        %vm4287 = vcmask 130048
        %s4288 = scalar_lea.vmem %s45, 583 [#allocation0]
        %4289 = vst.msk [vmem:[%s4288] ss:$8 sm:$0xf] %vm4287, %v4286
        %s4290 = scalar_lea.vmem %s45, 583 [#allocation0]
        %4291 = vst.msk [vmem:[%s4290] ss:$8 sm:$0xf0] %vm4287, %v4286
        %s4292 = scalar_lea.vmem %s50, 80
        %v4293 = vld.sshfl [vmem:[%s4292] sm:$0xff pattern:$0xb3a29180]
        %4294 = vrot.lane.b32.xlu0 %v4293, 16
        %v4295 = vpop.permute.xlu0 %4294
        %vm4296 = vcmask 130048
        %s4297 = scalar_lea.vmem %s45, 647 [#allocation0]
        %4298 = vst.msk [vmem:[%s4297] ss:$8 sm:$0xf] %vm4296, %v4295
        %s4299 = scalar_lea.vmem %s45, 647 [#allocation0]
        %4300 = vst.msk [vmem:[%s4299] ss:$8 sm:$0xf0] %vm4296, %v4295
        %s4301 = scalar_lea.vmem %s50, 84
        %v4302 = vld.sshfl [vmem:[%s4301] sm:$0xff pattern:$0xb3a29180]
        %4303 = vrot.lane.b32.xlu0 %v4302, 16
        %v4304 = vpop.permute.xlu0 %4303
        %vm4305 = vcmask 130048
        %s4306 = scalar_lea.vmem %s45, 711 [#allocation0]
        %4307 = vst.msk [vmem:[%s4306] ss:$8 sm:$0xf] %vm4305, %v4304
        %s4308 = scalar_lea.vmem %s45, 711 [#allocation0]
        %4309 = vst.msk [vmem:[%s4308] ss:$8 sm:$0xf0] %vm4305, %v4304
        %s4310 = scalar_lea.vmem %s50, 96
        %v4311 = vld.sshfl [vmem:[%s4310] sm:$0xff pattern:$0xb3a29180]
        %4312 = vrot.lane.b32.xlu0 %v4311, 16
        %v4313 = vpop.permute.xlu0 %4312
        %vm4314 = vcmask 130048
        %s4315 = scalar_lea.vmem %s45, 775 [#allocation0]
        %4316 = vst.msk [vmem:[%s4315] ss:$8 sm:$0xf] %vm4314, %v4313
        %s4317 = scalar_lea.vmem %s45, 775 [#allocation0]
        %4318 = vst.msk [vmem:[%s4317] ss:$8 sm:$0xf0] %vm4314, %v4313
        %s4319 = scalar_lea.vmem %s50, 100
        %v4320 = vld.sshfl [vmem:[%s4319] sm:$0xff pattern:$0xb3a29180]
        %4321 = vrot.lane.b32.xlu0 %v4320, 16
        %v4322 = vpop.permute.xlu0 %4321
        %vm4323 = vcmask 130048
        %s4324 = scalar_lea.vmem %s45, 839 [#allocation0]
        %4325 = vst.msk [vmem:[%s4324] ss:$8 sm:$0xf] %vm4323, %v4322
        %s4326 = scalar_lea.vmem %s45, 839 [#allocation0]
        %4327 = vst.msk [vmem:[%s4326] ss:$8 sm:$0xf0] %vm4323, %v4322
        %s4328 = scalar_lea.vmem %s50, 112
        %v4329 = vld.sshfl [vmem:[%s4328] sm:$0xff pattern:$0xb3a29180]
        %4330 = vrot.lane.b32.xlu0 %v4329, 16
        %v4331 = vpop.permute.xlu0 %4330
        %vm4332 = vcmask 130048
        %s4333 = scalar_lea.vmem %s45, 903 [#allocation0]
        %4334 = vst.msk [vmem:[%s4333] ss:$8 sm:$0xf] %vm4332, %v4331
        %s4335 = scalar_lea.vmem %s45, 903 [#allocation0]
        %4336 = vst.msk [vmem:[%s4335] ss:$8 sm:$0xf0] %vm4332, %v4331
        %s4337 = scalar_lea.vmem %s50, 116
        %v4338 = vld.sshfl [vmem:[%s4337] sm:$0xff pattern:$0xb3a29180]
        %4339 = vrot.lane.b32.xlu0 %v4338, 16
        %v4340 = vpop.permute.xlu0 %4339
        %vm4341 = vcmask 130048
        %s4342 = scalar_lea.vmem %s45, 967 [#allocation0]
        %4343 = vst.msk [vmem:[%s4342] ss:$8 sm:$0xf] %vm4341, %v4340
        %s4344 = scalar_lea.vmem %s45, 967 [#allocation0]
        %4345 = vst.msk [vmem:[%s4344] ss:$8 sm:$0xf0] %vm4341, %v4340
        %s4346 = scalar_lea.vmem %s50, 128
        %v4347 = vld.sshfl [vmem:[%s4346] sm:$0xff pattern:$0xb3a29180]
        %4348 = vrot.lane.b32.xlu0 %v4347, 16
        %v4349 = vpop.permute.xlu0 %4348
        %vm4350 = vcmask 130048
        %s4351 = scalar_lea.vmem %s45, 1031 [#allocation0]
        %4352 = vst.msk [vmem:[%s4351] ss:$8 sm:$0xf] %vm4350, %v4349
        %s4353 = scalar_lea.vmem %s45, 1031 [#allocation0]
        %4354 = vst.msk [vmem:[%s4353] ss:$8 sm:$0xf0] %vm4350, %v4349
        %s4355 = scalar_lea.vmem %s50, 132
        %v4356 = vld.sshfl [vmem:[%s4355] sm:$0xff pattern:$0xb3a29180]
        %4357 = vrot.lane.b32.xlu0 %v4356, 16
        %v4358 = vpop.permute.xlu0 %4357
        %vm4359 = vcmask 130048
        %s4360 = scalar_lea.vmem %s45, 1095 [#allocation0]
        %4361 = vst.msk [vmem:[%s4360] ss:$8 sm:$0xf] %vm4359, %v4358
        %s4362 = scalar_lea.vmem %s45, 1095 [#allocation0]
        %4363 = vst.msk [vmem:[%s4362] ss:$8 sm:$0xf0] %vm4359, %v4358
        %s4364 = scalar_lea.vmem %s50, 144
        %v4365 = vld.sshfl [vmem:[%s4364] sm:$0xff pattern:$0xb3a29180]
        %4366 = vrot.lane.b32.xlu0 %v4365, 16
        %v4367 = vpop.permute.xlu0 %4366
        %vm4368 = vcmask 130048
        %s4369 = scalar_lea.vmem %s45, 1159 [#allocation0]
        %4370 = vst.msk [vmem:[%s4369] ss:$8 sm:$0xf] %vm4368, %v4367
        %s4371 = scalar_lea.vmem %s45, 1159 [#allocation0]
        %4372 = vst.msk [vmem:[%s4371] ss:$8 sm:$0xf0] %vm4368, %v4367
        %s4373 = scalar_lea.vmem %s50, 148
        %v4374 = vld.sshfl [vmem:[%s4373] sm:$0xff pattern:$0xb3a29180]
        %4375 = vrot.lane.b32.xlu0 %v4374, 16
        %v4376 = vpop.permute.xlu0 %4375
        %vm4377 = vcmask 130048
        %s4378 = scalar_lea.vmem %s45, 1223 [#allocation0]
        %4379 = vst.msk [vmem:[%s4378] ss:$8 sm:$0xf] %vm4377, %v4376
        %s4380 = scalar_lea.vmem %s45, 1223 [#allocation0]
        %4381 = vst.msk [vmem:[%s4380] ss:$8 sm:$0xf0] %vm4377, %v4376
        %s4382 = scalar_lea.vmem %s50, 160
        %v4383 = vld.sshfl [vmem:[%s4382] sm:$0xff pattern:$0xb3a29180]
        %4384 = vrot.lane.b32.xlu0 %v4383, 16
        %v4385 = vpop.permute.xlu0 %4384
        %vm4386 = vcmask 130048
        %s4387 = scalar_lea.vmem %s45, 1287 [#allocation0]
        %4388 = vst.msk [vmem:[%s4387] ss:$8 sm:$0xf] %vm4386, %v4385
        %s4389 = scalar_lea.vmem %s45, 1287 [#allocation0]
        %4390 = vst.msk [vmem:[%s4389] ss:$8 sm:$0xf0] %vm4386, %v4385
        %s4391 = scalar_lea.vmem %s50, 164
        %v4392 = vld.sshfl [vmem:[%s4391] sm:$0xff pattern:$0xb3a29180]
        %4393 = vrot.lane.b32.xlu0 %v4392, 16
        %v4394 = vpop.permute.xlu0 %4393
        %vm4395 = vcmask 130048
        %s4396 = scalar_lea.vmem %s45, 1351 [#allocation0]
        %4397 = vst.msk [vmem:[%s4396] ss:$8 sm:$0xf] %vm4395, %v4394
        %s4398 = scalar_lea.vmem %s45, 1351 [#allocation0]
        %4399 = vst.msk [vmem:[%s4398] ss:$8 sm:$0xf0] %vm4395, %v4394
        %s4400 = scalar_lea.vmem %s50, 176
        %v4401 = vld.sshfl [vmem:[%s4400] sm:$0xff pattern:$0xb3a29180]
        %4402 = vrot.lane.b32.xlu0 %v4401, 16
        %v4403 = vpop.permute.xlu0 %4402
        %vm4404 = vcmask 130048
        %s4405 = scalar_lea.vmem %s45, 1415 [#allocation0]
        %4406 = vst.msk [vmem:[%s4405] ss:$8 sm:$0xf] %vm4404, %v4403
        %s4407 = scalar_lea.vmem %s45, 1415 [#allocation0]
        %4408 = vst.msk [vmem:[%s4407] ss:$8 sm:$0xf0] %vm4404, %v4403
        %s4409 = scalar_lea.vmem %s50, 180
        %v4410 = vld.sshfl [vmem:[%s4409] sm:$0xff pattern:$0xb3a29180]
        %4411 = vrot.lane.b32.xlu0 %v4410, 16
        %v4412 = vpop.permute.xlu0 %4411
        %vm4413 = vcmask 130048
        %s4414 = scalar_lea.vmem %s45, 1479 [#allocation0]
        %4415 = vst.msk [vmem:[%s4414] ss:$8 sm:$0xf] %vm4413, %v4412
        %s4416 = scalar_lea.vmem %s45, 1479 [#allocation0]
        %4417 = vst.msk [vmem:[%s4416] ss:$8 sm:$0xf0] %vm4413, %v4412
        %s4418 = scalar_lea.vmem %s50, 192
        %v4419 = vld.sshfl [vmem:[%s4418] sm:$0xff pattern:$0xb3a29180]
        %4420 = vrot.lane.b32.xlu0 %v4419, 16
        %v4421 = vpop.permute.xlu0 %4420
        %vm4422 = vcmask 130048
        %s4423 = scalar_lea.vmem %s45, 1543 [#allocation0]
        %4424 = vst.msk [vmem:[%s4423] ss:$8 sm:$0xf] %vm4422, %v4421
        %s4425 = scalar_lea.vmem %s45, 1543 [#allocation0]
        %4426 = vst.msk [vmem:[%s4425] ss:$8 sm:$0xf0] %vm4422, %v4421
        %s4427 = scalar_lea.vmem %s50, 196
        %v4428 = vld.sshfl [vmem:[%s4427] sm:$0xff pattern:$0xb3a29180]
        %4429 = vrot.lane.b32.xlu0 %v4428, 16
        %v4430 = vpop.permute.xlu0 %4429
        %vm4431 = vcmask 130048
        %s4432 = scalar_lea.vmem %s45, 1607 [#allocation0]
        %4433 = vst.msk [vmem:[%s4432] ss:$8 sm:$0xf] %vm4431, %v4430
        %s4434 = scalar_lea.vmem %s45, 1607 [#allocation0]
        %4435 = vst.msk [vmem:[%s4434] ss:$8 sm:$0xf0] %vm4431, %v4430
        %s4436 = scalar_lea.vmem %s50, 208
        %v4437 = vld.sshfl [vmem:[%s4436] sm:$0xff pattern:$0xb3a29180]
        %4438 = vrot.lane.b32.xlu0 %v4437, 16
        %v4439 = vpop.permute.xlu0 %4438
        %vm4440 = vcmask 130048
        %s4441 = scalar_lea.vmem %s45, 1671 [#allocation0]
        %4442 = vst.msk [vmem:[%s4441] ss:$8 sm:$0xf] %vm4440, %v4439
        %s4443 = scalar_lea.vmem %s45, 1671 [#allocation0]
        %4444 = vst.msk [vmem:[%s4443] ss:$8 sm:$0xf0] %vm4440, %v4439
        %s4445 = scalar_lea.vmem %s50, 212
        %v4446 = vld.sshfl [vmem:[%s4445] sm:$0xff pattern:$0xb3a29180]
        %4447 = vrot.lane.b32.xlu0 %v4446, 16
        %v4448 = vpop.permute.xlu0 %4447
        %vm4449 = vcmask 130048
        %s4450 = scalar_lea.vmem %s45, 1735 [#allocation0]
        %4451 = vst.msk [vmem:[%s4450] ss:$8 sm:$0xf] %vm4449, %v4448
        %s4452 = scalar_lea.vmem %s45, 1735 [#allocation0]
        %4453 = vst.msk [vmem:[%s4452] ss:$8 sm:$0xf0] %vm4449, %v4448
        %s4454 = scalar_lea.vmem %s50, 224
        %v4455 = vld.sshfl [vmem:[%s4454] sm:$0xff pattern:$0xb3a29180]
        %4456 = vrot.lane.b32.xlu0 %v4455, 16
        %v4457 = vpop.permute.xlu0 %4456
        %vm4458 = vcmask 130048
        %s4459 = scalar_lea.vmem %s45, 1799 [#allocation0]
        %4460 = vst.msk [vmem:[%s4459] ss:$8 sm:$0xf] %vm4458, %v4457
        %s4461 = scalar_lea.vmem %s45, 1799 [#allocation0]
        %4462 = vst.msk [vmem:[%s4461] ss:$8 sm:$0xf0] %vm4458, %v4457
        %s4463 = scalar_lea.vmem %s50, 228
        %v4464 = vld.sshfl [vmem:[%s4463] sm:$0xff pattern:$0xb3a29180]
        %4465 = vrot.lane.b32.xlu0 %v4464, 16
        %v4466 = vpop.permute.xlu0 %4465
        %vm4467 = vcmask 130048
        %s4468 = scalar_lea.vmem %s45, 1863 [#allocation0]
        %4469 = vst.msk [vmem:[%s4468] ss:$8 sm:$0xf] %vm4467, %v4466
        %s4470 = scalar_lea.vmem %s45, 1863 [#allocation0]
        %4471 = vst.msk [vmem:[%s4470] ss:$8 sm:$0xf0] %vm4467, %v4466
        %s4472 = scalar_lea.vmem %s50, 240
        %v4473 = vld.sshfl [vmem:[%s4472] sm:$0xff pattern:$0xb3a29180]
        %4474 = vrot.lane.b32.xlu0 %v4473, 16
        %v4475 = vpop.permute.xlu0 %4474
        %vm4476 = vcmask 130048
        %s4477 = scalar_lea.vmem %s45, 1927 [#allocation0]
        %4478 = vst.msk [vmem:[%s4477] ss:$8 sm:$0xf] %vm4476, %v4475
        %s4479 = scalar_lea.vmem %s45, 1927 [#allocation0]
        %4480 = vst.msk [vmem:[%s4479] ss:$8 sm:$0xf0] %vm4476, %v4475
        %s4481 = scalar_lea.vmem %s50, 244
        %v4482 = vld.sshfl [vmem:[%s4481] sm:$0xff pattern:$0xb3a29180]
        %4483 = vrot.lane.b32.xlu0 %v4482, 16
        %v4484 = vpop.permute.xlu0 %4483
        %vm4485 = vcmask 130048
        %s4486 = scalar_lea.vmem %s45, 1991 [#allocation0]
        %4487 = vst.msk [vmem:[%s4486] ss:$8 sm:$0xf] %vm4485, %v4484
        %s4488 = scalar_lea.vmem %s45, 1991 [#allocation0]
        %4489 = vst.msk [vmem:[%s4488] ss:$8 sm:$0xf0] %vm4485, %v4484
        %s4490 = scalar_lea.vmem %s50, 256
        %v4491 = vld.sshfl [vmem:[%s4490] sm:$0xff pattern:$0xb3a29180]
        %4492 = vrot.lane.b32.xlu0 %v4491, 16
        %v4493 = vpop.permute.xlu0 %4492
        %vm4494 = vcmask 130048
        %s4495 = scalar_lea.vmem %s45, 2055 [#allocation0]
        %4496 = vst.msk [vmem:[%s4495] ss:$8 sm:$0xf] %vm4494, %v4493
        %s4497 = scalar_lea.vmem %s45, 2055 [#allocation0]
        %4498 = vst.msk [vmem:[%s4497] ss:$8 sm:$0xf0] %vm4494, %v4493
        %s4499 = scalar_lea.vmem %s50, 260
        %v4500 = vld.sshfl [vmem:[%s4499] sm:$0xff pattern:$0xb3a29180]
        %4501 = vrot.lane.b32.xlu0 %v4500, 16
        %v4502 = vpop.permute.xlu0 %4501
        %vm4503 = vcmask 130048
        %s4504 = scalar_lea.vmem %s45, 2119 [#allocation0]
        %4505 = vst.msk [vmem:[%s4504] ss:$8 sm:$0xf] %vm4503, %v4502
        %s4506 = scalar_lea.vmem %s45, 2119 [#allocation0]
        %4507 = vst.msk [vmem:[%s4506] ss:$8 sm:$0xf0] %vm4503, %v4502
        %s4508 = scalar_lea.vmem %s50, 272
        %v4509 = vld.sshfl [vmem:[%s4508] sm:$0xff pattern:$0xb3a29180]
        %4510 = vrot.lane.b32.xlu0 %v4509, 16
        %v4511 = vpop.permute.xlu0 %4510
        %vm4512 = vcmask 130048
        %s4513 = scalar_lea.vmem %s45, 2183 [#allocation0]
        %4514 = vst.msk [vmem:[%s4513] ss:$8 sm:$0xf] %vm4512, %v4511
        %s4515 = scalar_lea.vmem %s45, 2183 [#allocation0]
        %4516 = vst.msk [vmem:[%s4515] ss:$8 sm:$0xf0] %vm4512, %v4511
        %s4517 = scalar_lea.vmem %s50, 276
        %v4518 = vld.sshfl [vmem:[%s4517] sm:$0xff pattern:$0xb3a29180]
        %4519 = vrot.lane.b32.xlu0 %v4518, 16
        %v4520 = vpop.permute.xlu0 %4519
        %vm4521 = vcmask 130048
        %s4522 = scalar_lea.vmem %s45, 2247 [#allocation0]
        %4523 = vst.msk [vmem:[%s4522] ss:$8 sm:$0xf] %vm4521, %v4520
        %s4524 = scalar_lea.vmem %s45, 2247 [#allocation0]
        %4525 = vst.msk [vmem:[%s4524] ss:$8 sm:$0xf0] %vm4521, %v4520
        %s4526 = scalar_lea.vmem %s50, 288
        %v4527 = vld.sshfl [vmem:[%s4526] sm:$0xff pattern:$0xb3a29180]
        %4528 = vrot.lane.b32.xlu0 %v4527, 16
        %v4529 = vpop.permute.xlu0 %4528
        %vm4530 = vcmask 130048
        %s4531 = scalar_lea.vmem %s45, 2311 [#allocation0]
        %4532 = vst.msk [vmem:[%s4531] ss:$8 sm:$0xf] %vm4530, %v4529
        %s4533 = scalar_lea.vmem %s45, 2311 [#allocation0]
        %4534 = vst.msk [vmem:[%s4533] ss:$8 sm:$0xf0] %vm4530, %v4529
        %s4535 = scalar_lea.vmem %s50, 292
        %v4536 = vld.sshfl [vmem:[%s4535] sm:$0xff pattern:$0xb3a29180]
        %4537 = vrot.lane.b32.xlu0 %v4536, 16
        %v4538 = vpop.permute.xlu0 %4537
        %vm4539 = vcmask 130048
        %s4540 = scalar_lea.vmem %s45, 2375 [#allocation0]
        %4541 = vst.msk [vmem:[%s4540] ss:$8 sm:$0xf] %vm4539, %v4538
        %s4542 = scalar_lea.vmem %s45, 2375 [#allocation0]
        %4543 = vst.msk [vmem:[%s4542] ss:$8 sm:$0xf0] %vm4539, %v4538
        %s4544 = scalar_lea.vmem %s50, 304
        %v4545 = vld.sshfl [vmem:[%s4544] sm:$0xff pattern:$0xb3a29180]
        %4546 = vrot.lane.b32.xlu0 %v4545, 16
        %v4547 = vpop.permute.xlu0 %4546
        %vm4548 = vcmask 130048
        %s4549 = scalar_lea.vmem %s45, 2439 [#allocation0]
        %4550 = vst.msk [vmem:[%s4549] ss:$8 sm:$0xf] %vm4548, %v4547
        %s4551 = scalar_lea.vmem %s45, 2439 [#allocation0]
        %4552 = vst.msk [vmem:[%s4551] ss:$8 sm:$0xf0] %vm4548, %v4547
        %s4553 = scalar_lea.vmem %s50, 308
        %v4554 = vld.sshfl [vmem:[%s4553] sm:$0xff pattern:$0xb3a29180]
        %4555 = vrot.lane.b32.xlu0 %v4554, 16
        %v4556 = vpop.permute.xlu0 %4555
        %vm4557 = vcmask 130048
        %s4558 = scalar_lea.vmem %s45, 2503 [#allocation0]
        %4559 = vst.msk [vmem:[%s4558] ss:$8 sm:$0xf] %vm4557, %v4556
        %s4560 = scalar_lea.vmem %s45, 2503 [#allocation0]
        %4561 = vst.msk [vmem:[%s4560] ss:$8 sm:$0xf0] %vm4557, %v4556
        %s4562 = scalar_lea.vmem %s50, 320
        %v4563 = vld.sshfl [vmem:[%s4562] sm:$0xff pattern:$0xb3a29180]
        %4564 = vrot.lane.b32.xlu0 %v4563, 16
        %v4565 = vpop.permute.xlu0 %4564
        %vm4566 = vcmask 130048
        %s4567 = scalar_lea.vmem %s45, 2567 [#allocation0]
        %4568 = vst.msk [vmem:[%s4567] ss:$8 sm:$0xf] %vm4566, %v4565
        %s4569 = scalar_lea.vmem %s45, 2567 [#allocation0]
        %4570 = vst.msk [vmem:[%s4569] ss:$8 sm:$0xf0] %vm4566, %v4565
        %s4571 = scalar_lea.vmem %s50, 324
        %v4572 = vld.sshfl [vmem:[%s4571] sm:$0xff pattern:$0xb3a29180]
        %4573 = vrot.lane.b32.xlu0 %v4572, 16
        %v4574 = vpop.permute.xlu0 %4573
        %vm4575 = vcmask 130048
        %s4576 = scalar_lea.vmem %s45, 2631 [#allocation0]
        %4577 = vst.msk [vmem:[%s4576] ss:$8 sm:$0xf] %vm4575, %v4574
        %s4578 = scalar_lea.vmem %s45, 2631 [#allocation0]
        %4579 = vst.msk [vmem:[%s4578] ss:$8 sm:$0xf0] %vm4575, %v4574
        %s4580 = scalar_lea.vmem %s50, 336
        %v4581 = vld.sshfl [vmem:[%s4580] sm:$0xff pattern:$0xb3a29180]
        %4582 = vrot.lane.b32.xlu0 %v4581, 16
        %v4583 = vpop.permute.xlu0 %4582
        %vm4584 = vcmask 130048
        %s4585 = scalar_lea.vmem %s45, 2695 [#allocation0]
        %4586 = vst.msk [vmem:[%s4585] ss:$8 sm:$0xf] %vm4584, %v4583
        %s4587 = scalar_lea.vmem %s45, 2695 [#allocation0]
        %4588 = vst.msk [vmem:[%s4587] ss:$8 sm:$0xf0] %vm4584, %v4583
        %s4589 = scalar_lea.vmem %s50, 340
        %v4590 = vld.sshfl [vmem:[%s4589] sm:$0xff pattern:$0xb3a29180]
        %4591 = vrot.lane.b32.xlu0 %v4590, 16
        %v4592 = vpop.permute.xlu0 %4591
        %vm4593 = vcmask 130048
        %s4594 = scalar_lea.vmem %s45, 2759 [#allocation0]
        %4595 = vst.msk [vmem:[%s4594] ss:$8 sm:$0xf] %vm4593, %v4592
        %s4596 = scalar_lea.vmem %s45, 2759 [#allocation0]
        %4597 = vst.msk [vmem:[%s4596] ss:$8 sm:$0xf0] %vm4593, %v4592
        %s4598 = scalar_lea.vmem %s50, 352
        %v4599 = vld.sshfl [vmem:[%s4598] sm:$0xff pattern:$0xb3a29180]
        %4600 = vrot.lane.b32.xlu0 %v4599, 16
        %v4601 = vpop.permute.xlu0 %4600
        %vm4602 = vcmask 130048
        %s4603 = scalar_lea.vmem %s45, 2823 [#allocation0]
        %4604 = vst.msk [vmem:[%s4603] ss:$8 sm:$0xf] %vm4602, %v4601
        %s4605 = scalar_lea.vmem %s45, 2823 [#allocation0]
        %4606 = vst.msk [vmem:[%s4605] ss:$8 sm:$0xf0] %vm4602, %v4601
        %s4607 = scalar_lea.vmem %s50, 356
        %v4608 = vld.sshfl [vmem:[%s4607] sm:$0xff pattern:$0xb3a29180]
        %4609 = vrot.lane.b32.xlu0 %v4608, 16
        %v4610 = vpop.permute.xlu0 %4609
        %vm4611 = vcmask 130048
        %s4612 = scalar_lea.vmem %s45, 2887 [#allocation0]
        %4613 = vst.msk [vmem:[%s4612] ss:$8 sm:$0xf] %vm4611, %v4610
        %s4614 = scalar_lea.vmem %s45, 2887 [#allocation0]
        %4615 = vst.msk [vmem:[%s4614] ss:$8 sm:$0xf0] %vm4611, %v4610
        %s4616 = scalar_lea.vmem %s50, 368
        %v4617 = vld.sshfl [vmem:[%s4616] sm:$0xff pattern:$0xb3a29180]
        %4618 = vrot.lane.b32.xlu0 %v4617, 16
        %v4619 = vpop.permute.xlu0 %4618
        %vm4620 = vcmask 130048
        %s4621 = scalar_lea.vmem %s45, 2951 [#allocation0]
        %4622 = vst.msk [vmem:[%s4621] ss:$8 sm:$0xf] %vm4620, %v4619
        %s4623 = scalar_lea.vmem %s45, 2951 [#allocation0]
        %4624 = vst.msk [vmem:[%s4623] ss:$8 sm:$0xf0] %vm4620, %v4619
        %s4625 = scalar_lea.vmem %s50, 372
        %v4626 = vld.sshfl [vmem:[%s4625] sm:$0xff pattern:$0xb3a29180]
        %4627 = vrot.lane.b32.xlu0 %v4626, 16
        %v4628 = vpop.permute.xlu0 %4627
        %vm4629 = vcmask 130048
        %s4630 = scalar_lea.vmem %s45, 3015 [#allocation0]
        %4631 = vst.msk [vmem:[%s4630] ss:$8 sm:$0xf] %vm4629, %v4628
        %s4632 = scalar_lea.vmem %s45, 3015 [#allocation0]
        %4633 = vst.msk [vmem:[%s4632] ss:$8 sm:$0xf0] %vm4629, %v4628
        %s4634 = scalar_lea.vmem %s50, 384
        %v4635 = vld.sshfl [vmem:[%s4634] sm:$0xff pattern:$0xb3a29180]
        %4636 = vrot.lane.b32.xlu0 %v4635, 16
        %v4637 = vpop.permute.xlu0 %4636
        %vm4638 = vcmask 130048
        %s4639 = scalar_lea.vmem %s45, 3079 [#allocation0]
        %4640 = vst.msk [vmem:[%s4639] ss:$8 sm:$0xf] %vm4638, %v4637
        %s4641 = scalar_lea.vmem %s45, 3079 [#allocation0]
        %4642 = vst.msk [vmem:[%s4641] ss:$8 sm:$0xf0] %vm4638, %v4637
        %s4643 = scalar_lea.vmem %s50, 388
        %v4644 = vld.sshfl [vmem:[%s4643] sm:$0xff pattern:$0xb3a29180]
        %4645 = vrot.lane.b32.xlu0 %v4644, 16
        %v4646 = vpop.permute.xlu0 %4645
        %vm4647 = vcmask 130048
        %s4648 = scalar_lea.vmem %s45, 3143 [#allocation0]
        %4649 = vst.msk [vmem:[%s4648] ss:$8 sm:$0xf] %vm4647, %v4646
        %s4650 = scalar_lea.vmem %s45, 3143 [#allocation0]
        %4651 = vst.msk [vmem:[%s4650] ss:$8 sm:$0xf0] %vm4647, %v4646
        %s4652 = scalar_lea.vmem %s50, 400
        %v4653 = vld.sshfl [vmem:[%s4652] sm:$0xff pattern:$0xb3a29180]
        %4654 = vrot.lane.b32.xlu0 %v4653, 16
        %v4655 = vpop.permute.xlu0 %4654
        %vm4656 = vcmask 130048
        %s4657 = scalar_lea.vmem %s45, 3207 [#allocation0]
        %4658 = vst.msk [vmem:[%s4657] ss:$8 sm:$0xf] %vm4656, %v4655
        %s4659 = scalar_lea.vmem %s45, 3207 [#allocation0]
        %4660 = vst.msk [vmem:[%s4659] ss:$8 sm:$0xf0] %vm4656, %v4655
        %s4661 = scalar_lea.vmem %s50, 404
        %v4662 = vld.sshfl [vmem:[%s4661] sm:$0xff pattern:$0xb3a29180]
        %4663 = vrot.lane.b32.xlu0 %v4662, 16
        %v4664 = vpop.permute.xlu0 %4663
        %vm4665 = vcmask 130048
        %s4666 = scalar_lea.vmem %s45, 3271 [#allocation0]
        %4667 = vst.msk [vmem:[%s4666] ss:$8 sm:$0xf] %vm4665, %v4664
        %s4668 = scalar_lea.vmem %s45, 3271 [#allocation0]
        %4669 = vst.msk [vmem:[%s4668] ss:$8 sm:$0xf0] %vm4665, %v4664
        %s4670 = scalar_lea.vmem %s50, 416
        %v4671 = vld.sshfl [vmem:[%s4670] sm:$0xff pattern:$0xb3a29180]
        %4672 = vrot.lane.b32.xlu0 %v4671, 16
        %v4673 = vpop.permute.xlu0 %4672
        %vm4674 = vcmask 130048
        %s4675 = scalar_lea.vmem %s45, 3335 [#allocation0]
        %4676 = vst.msk [vmem:[%s4675] ss:$8 sm:$0xf] %vm4674, %v4673
        %s4677 = scalar_lea.vmem %s45, 3335 [#allocation0]
        %4678 = vst.msk [vmem:[%s4677] ss:$8 sm:$0xf0] %vm4674, %v4673
        %s4679 = scalar_lea.vmem %s50, 420
        %v4680 = vld.sshfl [vmem:[%s4679] sm:$0xff pattern:$0xb3a29180]
        %4681 = vrot.lane.b32.xlu0 %v4680, 16
        %v4682 = vpop.permute.xlu0 %4681
        %vm4683 = vcmask 130048
        %s4684 = scalar_lea.vmem %s45, 3399 [#allocation0]
        %4685 = vst.msk [vmem:[%s4684] ss:$8 sm:$0xf] %vm4683, %v4682
        %s4686 = scalar_lea.vmem %s45, 3399 [#allocation0]
        %4687 = vst.msk [vmem:[%s4686] ss:$8 sm:$0xf0] %vm4683, %v4682
        %s4688 = scalar_lea.vmem %s50, 432
        %v4689 = vld.sshfl [vmem:[%s4688] sm:$0xff pattern:$0xb3a29180]
        %4690 = vrot.lane.b32.xlu0 %v4689, 16
        %v4691 = vpop.permute.xlu0 %4690
        %vm4692 = vcmask 130048
        %s4693 = scalar_lea.vmem %s45, 3463 [#allocation0]
        %4694 = vst.msk [vmem:[%s4693] ss:$8 sm:$0xf] %vm4692, %v4691
        %s4695 = scalar_lea.vmem %s45, 3463 [#allocation0]
        %4696 = vst.msk [vmem:[%s4695] ss:$8 sm:$0xf0] %vm4692, %v4691
        %s4697 = scalar_lea.vmem %s50, 436
        %v4698 = vld.sshfl [vmem:[%s4697] sm:$0xff pattern:$0xb3a29180]
        %4699 = vrot.lane.b32.xlu0 %v4698, 16
        %v4700 = vpop.permute.xlu0 %4699
        %vm4701 = vcmask 130048
        %s4702 = scalar_lea.vmem %s45, 3527 [#allocation0]
        %4703 = vst.msk [vmem:[%s4702] ss:$8 sm:$0xf] %vm4701, %v4700
        %s4704 = scalar_lea.vmem %s45, 3527 [#allocation0]
        %4705 = vst.msk [vmem:[%s4704] ss:$8 sm:$0xf0] %vm4701, %v4700
        %s4706 = scalar_lea.vmem %s50, 448
        %v4707 = vld.sshfl [vmem:[%s4706] sm:$0xff pattern:$0xb3a29180]
        %4708 = vrot.lane.b32.xlu0 %v4707, 16
        %v4709 = vpop.permute.xlu0 %4708
        %vm4710 = vcmask 130048
        %s4711 = scalar_lea.vmem %s45, 3591 [#allocation0]
        %4712 = vst.msk [vmem:[%s4711] ss:$8 sm:$0xf] %vm4710, %v4709
        %s4713 = scalar_lea.vmem %s45, 3591 [#allocation0]
        %4714 = vst.msk [vmem:[%s4713] ss:$8 sm:$0xf0] %vm4710, %v4709
        %s4715 = scalar_lea.vmem %s50, 452
        %v4716 = vld.sshfl [vmem:[%s4715] sm:$0xff pattern:$0xb3a29180]
        %4717 = vrot.lane.b32.xlu0 %v4716, 16
        %v4718 = vpop.permute.xlu0 %4717
        %vm4719 = vcmask 130048
        %s4720 = scalar_lea.vmem %s45, 3655 [#allocation0]
        %4721 = vst.msk [vmem:[%s4720] ss:$8 sm:$0xf] %vm4719, %v4718
        %s4722 = scalar_lea.vmem %s45, 3655 [#allocation0]
        %4723 = vst.msk [vmem:[%s4722] ss:$8 sm:$0xf0] %vm4719, %v4718
        %s4724 = scalar_lea.vmem %s50, 464
        %v4725 = vld.sshfl [vmem:[%s4724] sm:$0xff pattern:$0xb3a29180]
        %4726 = vrot.lane.b32.xlu0 %v4725, 16
        %v4727 = vpop.permute.xlu0 %4726
        %vm4728 = vcmask 130048
        %s4729 = scalar_lea.vmem %s45, 3719 [#allocation0]
        %4730 = vst.msk [vmem:[%s4729] ss:$8 sm:$0xf] %vm4728, %v4727
        %s4731 = scalar_lea.vmem %s45, 3719 [#allocation0]
        %4732 = vst.msk [vmem:[%s4731] ss:$8 sm:$0xf0] %vm4728, %v4727
        %s4733 = scalar_lea.vmem %s50, 468
        %v4734 = vld.sshfl [vmem:[%s4733] sm:$0xff pattern:$0xb3a29180]
        %4735 = vrot.lane.b32.xlu0 %v4734, 16
        %v4736 = vpop.permute.xlu0 %4735
        %vm4737 = vcmask 130048
        %s4738 = scalar_lea.vmem %s45, 3783 [#allocation0]
        %4739 = vst.msk [vmem:[%s4738] ss:$8 sm:$0xf] %vm4737, %v4736
        %s4740 = scalar_lea.vmem %s45, 3783 [#allocation0]
        %4741 = vst.msk [vmem:[%s4740] ss:$8 sm:$0xf0] %vm4737, %v4736
        %s4742 = scalar_lea.vmem %s50, 480
        %v4743 = vld.sshfl [vmem:[%s4742] sm:$0xff pattern:$0xb3a29180]
        %4744 = vrot.lane.b32.xlu0 %v4743, 16
        %v4745 = vpop.permute.xlu0 %4744
        %vm4746 = vcmask 130048
        %s4747 = scalar_lea.vmem %s45, 3847 [#allocation0]
        %4748 = vst.msk [vmem:[%s4747] ss:$8 sm:$0xf] %vm4746, %v4745
        %s4749 = scalar_lea.vmem %s45, 3847 [#allocation0]
        %4750 = vst.msk [vmem:[%s4749] ss:$8 sm:$0xf0] %vm4746, %v4745
        %s4751 = scalar_lea.vmem %s50, 484
        %v4752 = vld.sshfl [vmem:[%s4751] sm:$0xff pattern:$0xb3a29180]
        %4753 = vrot.lane.b32.xlu0 %v4752, 16
        %v4754 = vpop.permute.xlu0 %4753
        %vm4755 = vcmask 130048
        %s4756 = scalar_lea.vmem %s45, 3911 [#allocation0]
        %4757 = vst.msk [vmem:[%s4756] ss:$8 sm:$0xf] %vm4755, %v4754
        %s4758 = scalar_lea.vmem %s45, 3911 [#allocation0]
        %4759 = vst.msk [vmem:[%s4758] ss:$8 sm:$0xf0] %vm4755, %v4754
        %s4760 = scalar_lea.vmem %s50, 496
        %v4761 = vld.sshfl [vmem:[%s4760] sm:$0xff pattern:$0xb3a29180]
        %4762 = vrot.lane.b32.xlu0 %v4761, 16
        %v4763 = vpop.permute.xlu0 %4762
        %vm4764 = vcmask 130048
        %s4765 = scalar_lea.vmem %s45, 3975 [#allocation0]
        %4766 = vst.msk [vmem:[%s4765] ss:$8 sm:$0xf] %vm4764, %v4763
        %s4767 = scalar_lea.vmem %s45, 3975 [#allocation0]
        %4768 = vst.msk [vmem:[%s4767] ss:$8 sm:$0xf0] %vm4764, %v4763
        %s4769 = scalar_lea.vmem %s50, 500
        %v4770 = vld.sshfl [vmem:[%s4769] sm:$0xff pattern:$0xb3a29180]
        %4771 = vrot.lane.b32.xlu0 %v4770, 16
        %v4772 = vpop.permute.xlu0 %4771
        %vm4773 = vcmask 130048
        %s4774 = scalar_lea.vmem %s45, 4039 [#allocation0]
        %4775 = vst.msk [vmem:[%s4774] ss:$8 sm:$0xf] %vm4773, %v4772
        %s4776 = scalar_lea.vmem %s45, 4039 [#allocation0]
        %4777 = vst.msk [vmem:[%s4776] ss:$8 sm:$0xf0] %vm4773, %v4772
        %s4778 = sand.u32 %s11, 1
        %s4779 = scalar_lea.sflag [#allocation1], %s4778
        %s4780 = sand.u32 %s11, 1
        %s4781 = smul.addr %s4780, 4096
        %s4782 = scalar_lea.vmem [#allocation0], %s4781
        %s4783 = smul.u32 4096, %s11
        %s4785 = ssub.s32 65536, 65536
        %4786 = vsyncadd %s4779, %s4785
        %s4787 = smul.addr %s4783, 16
        %s4788 = scalar_lea.hbm %s1, %s4787
        %s4790 = sshll.u32 %s4782, 4
        %s4791 = int_to_ptr.vmem [resolvable:$true] %s4790
        %4793 = dma.vmem_to_hbm [thread:$0]  %s4791, 65536, %s4788, %s4779
      $region20: #{squeeze.65} parent=5 // pred_fallthru
        _
      %p4794 = scmp.le.s32.totalorder 2, %s6
      // Predicated region
      $region21: #{squeeze.65} parent=5 // pred_check
        %p4795 = pneg %p4794
      $region22: #{squeeze.65} parent=5 // pred_check_branch
        %4797 = sbr.rel (%p4795) target = $region24
      $region23: #{squeeze.65} parent=5 // pred_region
        %s4798 = ssub.s32 %s6, 2
        %s4799 = sand.u32 %s12, 1
        %s4800 = scalar_lea.sflag [#allocation1], %s4799
        %s4801 = sand.u32 %s12, 1
        %s4802 = smul.addr %s4801, 4096
        %s4803 = scalar_lea.vmem [#allocation0], %s4802
        %4804 = dma.done %s4800, 65536
      $region24: #{squeeze.65} parent=5 // pred_fallthru
        _
    $region6: #{squeeze.65} parent=1 // loop_footer
      %s10 = sadd.s32 1, %s6
    $region7: #{squeeze.65} parent=1 // loop_footer_branch
      %5 = sbr.rel target = $region3
    $region8: #{squeeze.65} parent=1 // loop_exit
      _
    %4805 = vsyncpa [#allocation1], 1
    %s4806 = scalar_lea.sflag [#allocation1], 1
    %4807 = vsyncpa %s4806, 1

// kernel: contrastive_correlation_loss.3
$region0: #{contrastive_correlation_loss.3}
  #allocation0 [shape = 'u32[]', space=smem, size = 0x4, offset = 0x4, fixed_abs, tag = 'smem constant byte address 0x4 - core index']
  #allocation1 [shape = 'u32[144,128]{1,0:T(1,128)}', space=vmem, size = 0x12000, scoped, tag = 'internal scratch']
  #allocation2 [shape = 's32[1]{0}', space=sflag, size = 0x4, scoped, tag = 'scoped memory for contrastive_correlation_loss.3']
  #allocation3 [shape = 'u8[512]{0}', space=smem, size = 0x200, scoped, tag = 'prefetched SMEM operand 0']
  %s0 = inlined_call_operand.vmem [shape: f32[4], index: 0, kind: input, shape index: {}]
  %s1 = inlined_call_operand.vmem [shape: f32[2,256,32], index: 1, kind: input, shape index: {}]
  %s2 = inlined_call_operand.vmem [shape: f32[2,256,16], index: 2, kind: input, shape index: {}]
  %s3 = inlined_call_operand.vmem [shape: f32[4,2,32,256], index: 3, kind: input, shape index: {}]
  %s4 = inlined_call_operand.vmem [shape: f32[4,2,16,256], index: 4, kind: input, shape index: {}]
  %s5 = inlined_call_operand.vmem [shape: f32[4,2,256,256], index: 5, kind: output, shape index: {0}]
  %s6 = inlined_call_operand.vmem [shape: f32[4,2,256,256], index: 6, kind: output, shape index: {1}]
  %7 = xla_tuple %s5, %s6
  %s8 = sld [smem:[#allocation0]]
  $region57: #{contrastive_correlation_loss.3} parent=0
    _
  %s10 = ssub.s32 1, %s8
  %s11 = scalar_select 0, %s10, %s8
  %s12 = sshll.u32 %s0, 4
  %s13 = int_to_ptr.vmem [resolvable:$true] %s12
  %15 = dma.vmem_to_smem %s13, 16, [#allocation3], [#allocation2]
  %16 = dma.done [#allocation2], 16
  %17 = sfence
  loop: start=0, step=1, limit=6
  $region2: #{contrastive_correlation_loss.3} parent=0 // loop_pre_header
    _
  $region3: #{contrastive_correlation_loss.3} parent=0 // loop_header
    %s19 = sphi 0, %s23
    %p20 = scmp.ge.s32.totalorder %s19, 6
    %s27 = sphi 0, %s27
    %s29 = sphi 0, %s27
    %s30 = sphi 0, %s29
    %s44 = sphi 0, %s30
    %s48 = sphi 0, %s48
    %s50 = sphi 0, %s48
    %s51 = sphi 0, %s50
    %s65 = sphi 0, %s51
    %s71 = sphi 0, %s73
    %s74 = sphi 0, %s71
    %s75 = sphi 0, %s74
    %s91 = sphi 0, %s75
    %s97 = sphi 0, %s99
    %s100 = sphi 0, %s97
    %s101 = sphi 0, %s100
    %s117 = sphi 0, %s101
    %s123 = sphi 0, %s125
    %s126 = sphi 0, %s123
    %s127 = sphi 0, %s126
    %s143 = sphi 0, %s127
    %s149 = sphi 0, %s151
    %s152 = sphi 0, %s149
    %s153 = sphi 0, %s152
    %s169 = sphi 0, %s153
  $region4: #{contrastive_correlation_loss.3} parent=0 // loop_header_branch
    %22 = sbr.rel (%p20) target = $region8
  $region5: #{contrastive_correlation_loss.3} parent=0 // loop_body
    %s24 = ssub.s32 %s19, 1
    %s25 = ssub.s32 %s19, 2
    %s26 = sadd.s32 %s19, 1
    %s28 = sadd.s32 %s27, 1
    %p31 = scmp.eq.s32.totalorder %s19, 3
    %p32 = scmp.ne.s32.totalorder %s27, %s29
    %p33 = scmp.eq.s32.totalorder %s19, 0
    %p34 = por %p32, %p33
    %p35 = scmp.ne.s32.totalorder %s27, %s29
    %p36 = scmp.eq.s32.totalorder %s24, 3
    %p37 = por %p35, %p36
    %p38 = scmp.ne.s32.totalorder %s29, %s30
    %p39 = scmp.eq.s32.totalorder %s24, 0
    %p40 = por %p38, %p39
    %p41 = scmp.ne.s32.totalorder %s29, %s30
    %p42 = scmp.eq.s32.totalorder %s25, 3
    %p43 = por %p41, %p42
    %p45 = scmp.ne.s32.totalorder %s30, %s44
    %p46 = scmp.eq.s32.totalorder %s25, 0
    %p47 = por %p45, %p46
    %s49 = sadd.s32 %s48, 1
    %p52 = scmp.eq.s32.totalorder %s19, 3
    %p53 = scmp.ne.s32.totalorder %s48, %s50
    %p54 = scmp.eq.s32.totalorder %s19, 0
    %p55 = por %p53, %p54
    %p56 = scmp.ne.s32.totalorder %s48, %s50
    %p57 = scmp.eq.s32.totalorder %s24, 3
    %p58 = por %p56, %p57
    %p59 = scmp.ne.s32.totalorder %s50, %s51
    %p60 = scmp.eq.s32.totalorder %s24, 0
    %p61 = por %p59, %p60
    %p62 = scmp.ne.s32.totalorder %s50, %s51
    %p63 = scmp.eq.s32.totalorder %s25, 3
    %p64 = por %p62, %p63
    %p66 = scmp.ne.s32.totalorder %s51, %s65
    %p67 = scmp.eq.s32.totalorder %s25, 0
    %p68 = por %p66, %p67
    %s69 = ssub.s32 %s19, %s26
    %p70 = scmp.eq.s32.totalorder %s69, 0
    %s72 = sadd.s32 %s71, 1
    %s73 = scalar_select %p70, %s71, %s72
    %p76 = pneg %p70
    %p77 = scmp.eq.s32.totalorder %s19, 3
    %p78 = por %p76, %p77
    %p79 = scmp.ne.s32.totalorder %s71, %s74
    %p80 = scmp.eq.s32.totalorder %s19, 0
    %p81 = por %p79, %p80
    %p82 = scmp.ne.s32.totalorder %s71, %s74
    %p83 = scmp.eq.s32.totalorder %s24, 3
    %p84 = por %p82, %p83
    %p85 = scmp.ne.s32.totalorder %s74, %s75
    %p86 = scmp.eq.s32.totalorder %s24, 0
    %p87 = por %p85, %p86
    %p88 = scmp.ne.s32.totalorder %s74, %s75
    %p89 = scmp.eq.s32.totalorder %s25, 3
    %p90 = por %p88, %p89
    %p92 = scmp.ne.s32.totalorder %s75, %s91
    %p93 = scmp.eq.s32.totalorder %s25, 0
    %p94 = por %p92, %p93
    %s95 = ssub.s32 %s19, %s26
    %p96 = scmp.eq.s32.totalorder %s95, 0
    %s98 = sadd.s32 %s97, 1
    %s99 = scalar_select %p96, %s97, %s98
    %p102 = pneg %p96
    %p103 = scmp.eq.s32.totalorder %s19, 3
    %p104 = por %p102, %p103
    %p105 = scmp.ne.s32.totalorder %s97, %s100
    %p106 = scmp.eq.s32.totalorder %s19, 0
    %p107 = por %p105, %p106
    %p108 = scmp.ne.s32.totalorder %s97, %s100
    %p109 = scmp.eq.s32.totalorder %s24, 3
    %p110 = por %p108, %p109
    %p111 = scmp.ne.s32.totalorder %s100, %s101
    %p112 = scmp.eq.s32.totalorder %s24, 0
    %p113 = por %p111, %p112
    %p114 = scmp.ne.s32.totalorder %s100, %s101
    %p115 = scmp.eq.s32.totalorder %s25, 3
    %p116 = por %p114, %p115
    %p118 = scmp.ne.s32.totalorder %s101, %s117
    %p119 = scmp.eq.s32.totalorder %s25, 0
    %p120 = por %p118, %p119
    %s121 = ssub.s32 %s19, %s26
    %p122 = scmp.eq.s32.totalorder %s121, 0
    %s124 = sadd.s32 %s123, 1
    %s125 = scalar_select %p122, %s123, %s124
    %p128 = pneg %p122
    %p129 = scmp.eq.s32.totalorder %s19, 3
    %p130 = por %p128, %p129
    %p131 = scmp.ne.s32.totalorder %s123, %s126
    %p132 = scmp.eq.s32.totalorder %s19, 0
    %p133 = por %p131, %p132
    %p134 = scmp.ne.s32.totalorder %s123, %s126
    %p135 = scmp.eq.s32.totalorder %s24, 3
    %p136 = por %p134, %p135
    %p137 = scmp.ne.s32.totalorder %s126, %s127
    %p138 = scmp.eq.s32.totalorder %s24, 0
    %p139 = por %p137, %p138
    %p140 = scmp.ne.s32.totalorder %s126, %s127
    %p141 = scmp.eq.s32.totalorder %s25, 3
    %p142 = por %p140, %p141
    %p144 = scmp.ne.s32.totalorder %s127, %s143
    %p145 = scmp.eq.s32.totalorder %s25, 0
    %p146 = por %p144, %p145
    %s147 = ssub.s32 %s19, %s26
    %p148 = scmp.eq.s32.totalorder %s147, 0
    %s150 = sadd.s32 %s149, 1
    %s151 = scalar_select %p148, %s149, %s150
    %p154 = pneg %p148
    %p155 = scmp.eq.s32.totalorder %s19, 3
    %p156 = por %p154, %p155
    %p157 = scmp.ne.s32.totalorder %s149, %s152
    %p158 = scmp.eq.s32.totalorder %s19, 0
    %p159 = por %p157, %p158
    %p160 = scmp.ne.s32.totalorder %s149, %s152
    %p161 = scmp.eq.s32.totalorder %s24, 3
    %p162 = por %p160, %p161
    %p163 = scmp.ne.s32.totalorder %s152, %s153
    %p164 = scmp.eq.s32.totalorder %s24, 0
    %p165 = por %p163, %p164
    %p166 = scmp.ne.s32.totalorder %s152, %s153
    %p167 = scmp.eq.s32.totalorder %s25, 3
    %p168 = por %p166, %p167
    %p170 = scmp.ne.s32.totalorder %s153, %s169
    %p171 = scmp.eq.s32.totalorder %s25, 0
    %p172 = por %p170, %p171
    %p173 = scmp.le.s32.totalorder 1, %s19
    %p174 = scmp.lt.s32.totalorder %s19, 5
    %p175 = pnand %p173, %p174
    %p176 = pneg %p175
    // Predicated region
    $region9: #{contrastive_correlation_loss.3} parent=5 // pred_check
      _
    $region10: #{contrastive_correlation_loss.3} parent=5 // pred_check_branch
      %178 = sbr.rel (%p175) target = $region12
    $region11: #{contrastive_correlation_loss.3} parent=5 // pred_region
      %s179 = ssub.s32 %s19, 1
      // Predicated region
      $region13: #{contrastive_correlation_loss.3} parent=11 // pred_check
        %p180 = pneg %p40
      $region14: #{contrastive_correlation_loss.3} parent=11 // pred_check_branch
        %182 = sbr.rel (%p180) target = $region16
      $region15: #{contrastive_correlation_loss.3} parent=11 // pred_region
        _
      $region16: #{contrastive_correlation_loss.3} parent=11 // pred_fallthru
        _
      // Predicated region
      $region17: #{contrastive_correlation_loss.3} parent=11 // pred_check
        %p183 = pneg %p61
      $region18: #{contrastive_correlation_loss.3} parent=11 // pred_check_branch
        %185 = sbr.rel (%p183) target = $region20
      $region19: #{contrastive_correlation_loss.3} parent=11 // pred_region
        _
      $region20: #{contrastive_correlation_loss.3} parent=11 // pred_fallthru
        _
    $region12: #{contrastive_correlation_loss.3} parent=5 // pred_fallthru
      _
    %p186 = scmp.lt.s32.totalorder %s19, 4
    // Predicated region
    $region21: #{contrastive_correlation_loss.3} parent=5 // pred_check
      %p187 = pneg %p186
    $region22: #{contrastive_correlation_loss.3} parent=5 // pred_check_branch
      %189 = sbr.rel (%p187) target = $region24
    $region23: #{contrastive_correlation_loss.3} parent=5 // pred_region
      // Predicated region
      $region25: #{contrastive_correlation_loss.3} parent=23 // pred_check
        %p190 = pneg %p81
      $region26: #{contrastive_correlation_loss.3} parent=23 // pred_check_branch
        %192 = sbr.rel (%p190) target = $region28
      $region27: #{contrastive_correlation_loss.3} parent=23 // pred_region
        %p193 = scmp.lt.s32.totalorder %s19, 3
        %s194 = scalar_select %p193, %s19, 3
        %s195 = smul.addr %s194, 16
        %s196 = smul.addr %s195, 8
        %s197 = scalar_lea.vmem %s3, %s196
      $region28: #{contrastive_correlation_loss.3} parent=23 // pred_fallthru
        _
      // Predicated region
      $region29: #{contrastive_correlation_loss.3} parent=23 // pred_check
        %p198 = pneg %p107
      $region30: #{contrastive_correlation_loss.3} parent=23 // pred_check_branch
        %200 = sbr.rel (%p198) target = $region32
      $region31: #{contrastive_correlation_loss.3} parent=23 // pred_region
        %p201 = scmp.lt.s32.totalorder %s19, 3
        %s202 = scalar_select %p201, %s19, 3
        %s203 = smul.addr %s202, 8
        %s204 = smul.addr %s203, 8
        %s205 = scalar_lea.vmem %s4, %s204
      $region32: #{contrastive_correlation_loss.3} parent=23 // pred_fallthru
        _
    $region24: #{contrastive_correlation_loss.3} parent=5 // pred_fallthru
      _
    %p206 = scmp.le.s32.totalorder 1, %s19
    %p207 = scmp.lt.s32.totalorder %s19, 5
    %p208 = pnand %p206, %p207
    %p209 = pneg %p208
    // Predicated region
    $region33: #{contrastive_correlation_loss.3} parent=5 // pred_check
      _
    $region34: #{contrastive_correlation_loss.3} parent=5 // pred_check_branch
      %211 = sbr.rel (%p208) target = $region36
    $region35: #{contrastive_correlation_loss.3} parent=5 // pred_region
      %s212 = ssub.s32 %s19, 1
      %p213 = pneg %p40
      %p214 = pneg %p37
      %p215 = pneg %p61
      %p216 = pneg %p58
      %p217 = scmp.lt.s32.totalorder %s24, 3
      %s218 = scalar_select %p217, %s24, 3
      %s219 = smul.addr %s218, 16
      %s220 = smul.addr %s219, 8
      %s221 = scalar_lea.vmem %s3, %s220
      %p222 = pneg %p87
      %p223 = pneg %p84
      %p224 = scmp.lt.s32.totalorder %s24, 3
      %s225 = scalar_select %p224, %s24, 3
      %s226 = smul.addr %s225, 8
      %s227 = smul.addr %s226, 8
      %s228 = scalar_lea.vmem %s4, %s227
      %p229 = pneg %p113
      %p230 = pneg %p110
      %p231 = pneg %p139
      %p232 = pneg %p136
      %p233 = scmp.lt.s32.totalorder %s24, 3
      %s234 = scalar_select %p233, %s24, 3
      %s235 = smul.addr %s234, 128
      %s236 = smul.addr %s235, 8
      %s237 = scalar_lea.vmem %s5, %s236
      %p238 = pneg %p165
      %p239 = pneg %p162
      %p240 = scmp.lt.s32.totalorder %s24, 3
      %s241 = scalar_select %p240, %s24, 3
      %s242 = smul.addr %s241, 128
      %s243 = smul.addr %s242, 8
      %s244 = scalar_lea.vmem %s6, %s243
      %p245 = scmp.lt.s32.totalorder %s24, 3
      %s246 = scalar_select %p245, %s24, 3
      %s247 = smul.addr %s246, 16
      %s248 = smul.addr %s247, 8
      %s249 = scalar_lea.vmem %s3, %s248
      %p250 = scmp.lt.s32.totalorder %s24, 3
      %s251 = scalar_select %p250, %s24, 3
      %s252 = smul.addr %s251, 8
      %s253 = smul.addr %s252, 8
      %s254 = scalar_lea.vmem %s4, %s253
      %p255 = scmp.lt.s32.totalorder %s24, 3
      %s256 = scalar_select %p255, %s24, 3
      %s257 = smul.addr %s256, 128
      %s258 = smul.addr %s257, 8
      %s259 = scalar_lea.vmem %s5, %s258
      %p260 = scmp.lt.s32.totalorder %s24, 3
      %s261 = scalar_select %p260, %s24, 3
      %s262 = smul.addr %s261, 128
      %s263 = smul.addr %s262, 8
      %s264 = scalar_lea.vmem %s6, %s263
      %s266 = sld [smem:[#allocation3 + %s24]]
      %v267 = vld [vmem:[%s1] sm:$0xff]
      %v268 = vld [vmem:[%s1 + $0x8] sm:$0xff]
      %v269 = vld [vmem:[%s1 + $0x10] sm:$0xff]
      %v270 = vld [vmem:[%s1 + $0x18] sm:$0xff]
      %v271 = vld [vmem:[%s1 + $0x20] sm:$0xff]
      %v272 = vld [vmem:[%s1 + $0x28] sm:$0xff]
      %v273 = vld [vmem:[%s1 + $0x30] sm:$0xff]
      %v274 = vld [vmem:[%s1 + $0x38] sm:$0xff]
      %v275 = vld [vmem:[%s1 + $0x40] sm:$0xff]
      %v276 = vld [vmem:[%s1 + $0x48] sm:$0xff]
      %v277 = vld [vmem:[%s1 + $0x50] sm:$0xff]
      %v278 = vld [vmem:[%s1 + $0x58] sm:$0xff]
      %v279 = vld [vmem:[%s1 + $0x60] sm:$0xff]
      %v280 = vld [vmem:[%s1 + $0x68] sm:$0xff]
      %v281 = vld [vmem:[%s1 + $0x70] sm:$0xff]
      %v282 = vld [vmem:[%s1 + $0x78] sm:$0xff]
      %v283 = vld [vmem:[%s1 + $0x80] sm:$0xff]
      %v284 = vld [vmem:[%s1 + $0x88] sm:$0xff]
      %v285 = vld [vmem:[%s1 + $0x90] sm:$0xff]
      %v286 = vld [vmem:[%s1 + $0x98] sm:$0xff]
      %v287 = vld [vmem:[%s1 + $0xa0] sm:$0xff]
      %v288 = vld [vmem:[%s1 + $0xa8] sm:$0xff]
      %v289 = vld [vmem:[%s1 + $0xb0] sm:$0xff]
      %v290 = vld [vmem:[%s1 + $0xb8] sm:$0xff]
      %v291 = vld [vmem:[%s1 + $0xc0] sm:$0xff]
      %v292 = vld [vmem:[%s1 + $0xc8] sm:$0xff]
      %v293 = vld [vmem:[%s1 + $0xd0] sm:$0xff]
      %v294 = vld [vmem:[%s1 + $0xd8] sm:$0xff]
      %v295 = vld [vmem:[%s1 + $0xe0] sm:$0xff]
      %v296 = vld [vmem:[%s1 + $0xe8] sm:$0xff]
      %v297 = vld [vmem:[%s1 + $0xf0] sm:$0xff]
      %v298 = vld [vmem:[%s1 + $0xf8] sm:$0xff]
      %v299 = vld [vmem:[%s1 + $0x100] sm:$0xff]
      %v300 = vld [vmem:[%s1 + $0x108] sm:$0xff]
      %v301 = vld [vmem:[%s1 + $0x110] sm:$0xff]
      %v302 = vld [vmem:[%s1 + $0x118] sm:$0xff]
      %v303 = vld [vmem:[%s1 + $0x120] sm:$0xff]
      %v304 = vld [vmem:[%s1 + $0x128] sm:$0xff]
      %v305 = vld [vmem:[%s1 + $0x130] sm:$0xff]
      %v306 = vld [vmem:[%s1 + $0x138] sm:$0xff]
      %v307 = vld [vmem:[%s1 + $0x140] sm:$0xff]
      %v308 = vld [vmem:[%s1 + $0x148] sm:$0xff]
      %v309 = vld [vmem:[%s1 + $0x150] sm:$0xff]
      %v310 = vld [vmem:[%s1 + $0x158] sm:$0xff]
      %v311 = vld [vmem:[%s1 + $0x160] sm:$0xff]
      %v312 = vld [vmem:[%s1 + $0x168] sm:$0xff]
      %v313 = vld [vmem:[%s1 + $0x170] sm:$0xff]
      %v314 = vld [vmem:[%s1 + $0x178] sm:$0xff]
      %v315 = vld [vmem:[%s1 + $0x180] sm:$0xff]
      %v316 = vld [vmem:[%s1 + $0x188] sm:$0xff]
      %v317 = vld [vmem:[%s1 + $0x190] sm:$0xff]
      %v318 = vld [vmem:[%s1 + $0x198] sm:$0xff]
      %v319 = vld [vmem:[%s1 + $0x1a0] sm:$0xff]
      %v320 = vld [vmem:[%s1 + $0x1a8] sm:$0xff]
      %v321 = vld [vmem:[%s1 + $0x1b0] sm:$0xff]
      %v322 = vld [vmem:[%s1 + $0x1b8] sm:$0xff]
      %v323 = vld [vmem:[%s1 + $0x1c0] sm:$0xff]
      %v324 = vld [vmem:[%s1 + $0x1c8] sm:$0xff]
      %v325 = vld [vmem:[%s1 + $0x1d0] sm:$0xff]
      %v326 = vld [vmem:[%s1 + $0x1d8] sm:$0xff]
      %v327 = vld [vmem:[%s1 + $0x1e0] sm:$0xff]
      %v328 = vld [vmem:[%s1 + $0x1e8] sm:$0xff]
      %v329 = vld [vmem:[%s1 + $0x1f0] sm:$0xff]
      %v330 = vld [vmem:[%s1 + $0x1f8] sm:$0xff]
      %v331 = vmul.f32 %v267, %v267
      %v332 = vmul.f32 %v268, %v268
      %v333 = vmul.f32 %v269, %v269
      %v334 = vmul.f32 %v270, %v270
      %v335 = vmul.f32 %v271, %v271
      %v336 = vmul.f32 %v272, %v272
      %v337 = vmul.f32 %v273, %v273
      %v338 = vmul.f32 %v274, %v274
      %v339 = vmul.f32 %v275, %v275
      %v340 = vmul.f32 %v276, %v276
      %v341 = vmul.f32 %v277, %v277
      %v342 = vmul.f32 %v278, %v278
      %v343 = vmul.f32 %v279, %v279
      %v344 = vmul.f32 %v280, %v280
      %v345 = vmul.f32 %v281, %v281
      %v346 = vmul.f32 %v282, %v282
      %v347 = vmul.f32 %v283, %v283
      %v348 = vmul.f32 %v284, %v284
      %v349 = vmul.f32 %v285, %v285
      %v350 = vmul.f32 %v286, %v286
      %v351 = vmul.f32 %v287, %v287
      %v352 = vmul.f32 %v288, %v288
      %v353 = vmul.f32 %v289, %v289
      %v354 = vmul.f32 %v290, %v290
      %v355 = vmul.f32 %v291, %v291
      %v356 = vmul.f32 %v292, %v292
      %v357 = vmul.f32 %v293, %v293
      %v358 = vmul.f32 %v294, %v294
      %v359 = vmul.f32 %v295, %v295
      %v360 = vmul.f32 %v296, %v296
      %v361 = vmul.f32 %v297, %v297
      %v362 = vmul.f32 %v298, %v298
      %v363 = vmul.f32 %v299, %v299
      %v364 = vmul.f32 %v300, %v300
      %v365 = vmul.f32 %v301, %v301
      %v366 = vmul.f32 %v302, %v302
      %v367 = vmul.f32 %v303, %v303
      %v368 = vmul.f32 %v304, %v304
      %v369 = vmul.f32 %v305, %v305
      %v370 = vmul.f32 %v306, %v306
      %v371 = vmul.f32 %v307, %v307
      %v372 = vmul.f32 %v308, %v308
      %v373 = vmul.f32 %v309, %v309
      %v374 = vmul.f32 %v310, %v310
      %v375 = vmul.f32 %v311, %v311
      %v376 = vmul.f32 %v312, %v312
      %v377 = vmul.f32 %v313, %v313
      %v378 = vmul.f32 %v314, %v314
      %v379 = vmul.f32 %v315, %v315
      %v380 = vmul.f32 %v316, %v316
      %v381 = vmul.f32 %v317, %v317
      %v382 = vmul.f32 %v318, %v318
      %v383 = vmul.f32 %v319, %v319
      %v384 = vmul.f32 %v320, %v320
      %v385 = vmul.f32 %v321, %v321
      %v386 = vmul.f32 %v322, %v322
      %v387 = vmul.f32 %v323, %v323
      %v388 = vmul.f32 %v324, %v324
      %v389 = vmul.f32 %v325, %v325
      %v390 = vmul.f32 %v326, %v326
      %v391 = vmul.f32 %v327, %v327
      %v392 = vmul.f32 %v328, %v328
      %v393 = vmul.f32 %v329, %v329
      %v394 = vmul.f32 %v330, %v330
      %vm395 = vcmask 261120
      %v396 = vsel %vm395, %v331, 0.0
      %397 = vadd.xlane.f32.xlu0 %v396
      %v398 = vpop.xlane.xlu0 %397
      %v399 = vsel %vm395, %v332, 0.0
      %400 = vadd.xlane.f32.xlu0 %v399
      %v401 = vpop.xlane.xlu0 %400
      %v402 = vsel %vm395, %v333, 0.0
      %403 = vadd.xlane.f32.xlu0 %v402
      %v404 = vpop.xlane.xlu0 %403
      %v405 = vsel %vm395, %v334, 0.0
      %406 = vadd.xlane.f32.xlu0 %v405
      %v407 = vpop.xlane.xlu0 %406
      %v408 = vsel %vm395, %v335, 0.0
      %409 = vadd.xlane.f32.xlu0 %v408
      %v410 = vpop.xlane.xlu0 %409
      %v411 = vsel %vm395, %v336, 0.0
      %412 = vadd.xlane.f32.xlu0 %v411
      %v413 = vpop.xlane.xlu0 %412
      %v414 = vsel %vm395, %v337, 0.0
      %415 = vadd.xlane.f32.xlu0 %v414
      %v416 = vpop.xlane.xlu0 %415
      %v417 = vsel %vm395, %v338, 0.0
      %418 = vadd.xlane.f32.xlu0 %v417
      %v419 = vpop.xlane.xlu0 %418
      %v420 = vsel %vm395, %v339, 0.0
      %421 = vadd.xlane.f32.xlu0 %v420
      %v422 = vpop.xlane.xlu0 %421
      %v423 = vsel %vm395, %v340, 0.0
      %424 = vadd.xlane.f32.xlu0 %v423
      %v425 = vpop.xlane.xlu0 %424
      %v426 = vsel %vm395, %v341, 0.0
      %427 = vadd.xlane.f32.xlu0 %v426
      %v428 = vpop.xlane.xlu0 %427
      %v429 = vsel %vm395, %v342, 0.0
      %430 = vadd.xlane.f32.xlu0 %v429
      %v431 = vpop.xlane.xlu0 %430
      %v432 = vsel %vm395, %v343, 0.0
      %433 = vadd.xlane.f32.xlu0 %v432
      %v434 = vpop.xlane.xlu0 %433
      %v435 = vsel %vm395, %v344, 0.0
      %436 = vadd.xlane.f32.xlu0 %v435
      %v437 = vpop.xlane.xlu0 %436
      %v438 = vsel %vm395, %v345, 0.0
      %439 = vadd.xlane.f32.xlu0 %v438
      %v440 = vpop.xlane.xlu0 %439
      %v441 = vsel %vm395, %v346, 0.0
      %442 = vadd.xlane.f32.xlu0 %v441
      %v443 = vpop.xlane.xlu0 %442
      %v444 = vsel %vm395, %v347, 0.0
      %445 = vadd.xlane.f32.xlu0 %v444
      %v446 = vpop.xlane.xlu0 %445
      %v447 = vsel %vm395, %v348, 0.0
      %448 = vadd.xlane.f32.xlu0 %v447
      %v449 = vpop.xlane.xlu0 %448
      %v450 = vsel %vm395, %v349, 0.0
      %451 = vadd.xlane.f32.xlu0 %v450
      %v452 = vpop.xlane.xlu0 %451
      %v453 = vsel %vm395, %v350, 0.0
      %454 = vadd.xlane.f32.xlu0 %v453
      %v455 = vpop.xlane.xlu0 %454
      %v456 = vsel %vm395, %v351, 0.0
      %457 = vadd.xlane.f32.xlu0 %v456
      %v458 = vpop.xlane.xlu0 %457
      %v459 = vsel %vm395, %v352, 0.0
      %460 = vadd.xlane.f32.xlu0 %v459
      %v461 = vpop.xlane.xlu0 %460
      %v462 = vsel %vm395, %v353, 0.0
      %463 = vadd.xlane.f32.xlu0 %v462
      %v464 = vpop.xlane.xlu0 %463
      %v465 = vsel %vm395, %v354, 0.0
      %466 = vadd.xlane.f32.xlu0 %v465
      %v467 = vpop.xlane.xlu0 %466
      %v468 = vsel %vm395, %v355, 0.0
      %469 = vadd.xlane.f32.xlu0 %v468
      %v470 = vpop.xlane.xlu0 %469
      %v471 = vsel %vm395, %v356, 0.0
      %472 = vadd.xlane.f32.xlu0 %v471
      %v473 = vpop.xlane.xlu0 %472
      %v474 = vsel %vm395, %v357, 0.0
      %475 = vadd.xlane.f32.xlu0 %v474
      %v476 = vpop.xlane.xlu0 %475
      %v477 = vsel %vm395, %v358, 0.0
      %478 = vadd.xlane.f32.xlu0 %v477
      %v479 = vpop.xlane.xlu0 %478
      %v480 = vsel %vm395, %v359, 0.0
      %481 = vadd.xlane.f32.xlu0 %v480
      %v482 = vpop.xlane.xlu0 %481
      %v483 = vsel %vm395, %v360, 0.0
      %484 = vadd.xlane.f32.xlu0 %v483
      %v485 = vpop.xlane.xlu0 %484
      %v486 = vsel %vm395, %v361, 0.0
      %487 = vadd.xlane.f32.xlu0 %v486
      %v488 = vpop.xlane.xlu0 %487
      %v489 = vsel %vm395, %v362, 0.0
      %490 = vadd.xlane.f32.xlu0 %v489
      %v491 = vpop.xlane.xlu0 %490
      %v492 = vsel %vm395, %v363, 0.0
      %493 = vadd.xlane.f32.xlu0 %v492
      %v494 = vpop.xlane.xlu0 %493
      %v495 = vsel %vm395, %v364, 0.0
      %496 = vadd.xlane.f32.xlu0 %v495
      %v497 = vpop.xlane.xlu0 %496
      %v498 = vsel %vm395, %v365, 0.0
      %499 = vadd.xlane.f32.xlu0 %v498
      %v500 = vpop.xlane.xlu0 %499
      %v501 = vsel %vm395, %v366, 0.0
      %502 = vadd.xlane.f32.xlu0 %v501
      %v503 = vpop.xlane.xlu0 %502
      %v504 = vsel %vm395, %v367, 0.0
      %505 = vadd.xlane.f32.xlu0 %v504
      %v506 = vpop.xlane.xlu0 %505
      %v507 = vsel %vm395, %v368, 0.0
      %508 = vadd.xlane.f32.xlu0 %v507
      %v509 = vpop.xlane.xlu0 %508
      %v510 = vsel %vm395, %v369, 0.0
      %511 = vadd.xlane.f32.xlu0 %v510
      %v512 = vpop.xlane.xlu0 %511
      %v513 = vsel %vm395, %v370, 0.0
      %514 = vadd.xlane.f32.xlu0 %v513
      %v515 = vpop.xlane.xlu0 %514
      %v516 = vsel %vm395, %v371, 0.0
      %517 = vadd.xlane.f32.xlu0 %v516
      %v518 = vpop.xlane.xlu0 %517
      %v519 = vsel %vm395, %v372, 0.0
      %520 = vadd.xlane.f32.xlu0 %v519
      %v521 = vpop.xlane.xlu0 %520
      %v522 = vsel %vm395, %v373, 0.0
      %523 = vadd.xlane.f32.xlu0 %v522
      %v524 = vpop.xlane.xlu0 %523
      %v525 = vsel %vm395, %v374, 0.0
      %526 = vadd.xlane.f32.xlu0 %v525
      %v527 = vpop.xlane.xlu0 %526
      %v528 = vsel %vm395, %v375, 0.0
      %529 = vadd.xlane.f32.xlu0 %v528
      %v530 = vpop.xlane.xlu0 %529
      %v531 = vsel %vm395, %v376, 0.0
      %532 = vadd.xlane.f32.xlu0 %v531
      %v533 = vpop.xlane.xlu0 %532
      %v534 = vsel %vm395, %v377, 0.0
      %535 = vadd.xlane.f32.xlu0 %v534
      %v536 = vpop.xlane.xlu0 %535
      %v537 = vsel %vm395, %v378, 0.0
      %538 = vadd.xlane.f32.xlu0 %v537
      %v539 = vpop.xlane.xlu0 %538
      %v540 = vsel %vm395, %v379, 0.0
      %541 = vadd.xlane.f32.xlu0 %v540
      %v542 = vpop.xlane.xlu0 %541
      %v543 = vsel %vm395, %v380, 0.0
      %544 = vadd.xlane.f32.xlu0 %v543
      %v545 = vpop.xlane.xlu0 %544
      %v546 = vsel %vm395, %v381, 0.0
      %547 = vadd.xlane.f32.xlu0 %v546
      %v548 = vpop.xlane.xlu0 %547
      %v549 = vsel %vm395, %v382, 0.0
      %550 = vadd.xlane.f32.xlu0 %v549
      %v551 = vpop.xlane.xlu0 %550
      %v552 = vsel %vm395, %v383, 0.0
      %553 = vadd.xlane.f32.xlu0 %v552
      %v554 = vpop.xlane.xlu0 %553
      %v555 = vsel %vm395, %v384, 0.0
      %556 = vadd.xlane.f32.xlu0 %v555
      %v557 = vpop.xlane.xlu0 %556
      %v558 = vsel %vm395, %v385, 0.0
      %559 = vadd.xlane.f32.xlu0 %v558
      %v560 = vpop.xlane.xlu0 %559
      %v561 = vsel %vm395, %v386, 0.0
      %562 = vadd.xlane.f32.xlu0 %v561
      %v563 = vpop.xlane.xlu0 %562
      %v564 = vsel %vm395, %v387, 0.0
      %565 = vadd.xlane.f32.xlu0 %v564
      %v566 = vpop.xlane.xlu0 %565
      %v567 = vsel %vm395, %v388, 0.0
      %568 = vadd.xlane.f32.xlu0 %v567
      %v569 = vpop.xlane.xlu0 %568
      %v570 = vsel %vm395, %v389, 0.0
      %571 = vadd.xlane.f32.xlu0 %v570
      %v572 = vpop.xlane.xlu0 %571
      %v573 = vsel %vm395, %v390, 0.0
      %574 = vadd.xlane.f32.xlu0 %v573
      %v575 = vpop.xlane.xlu0 %574
      %v576 = vsel %vm395, %v391, 0.0
      %577 = vadd.xlane.f32.xlu0 %v576
      %v578 = vpop.xlane.xlu0 %577
      %v579 = vsel %vm395, %v392, 0.0
      %580 = vadd.xlane.f32.xlu0 %v579
      %v581 = vpop.xlane.xlu0 %580
      %v582 = vsel %vm395, %v393, 0.0
      %583 = vadd.xlane.f32.xlu0 %v582
      %v584 = vpop.xlane.xlu0 %583
      %v585 = vsel %vm395, %v394, 0.0
      %586 = vadd.xlane.f32.xlu0 %v585
      %v587 = vpop.xlane.xlu0 %586
      %v588 = vmax.f32 %v398, 1e-20
      %v589 = vmax.f32 %v401, 1e-20
      %v590 = vmax.f32 %v404, 1e-20
      %v591 = vmax.f32 %v407, 1e-20
      %v592 = vmax.f32 %v410, 1e-20
      %v593 = vmax.f32 %v413, 1e-20
      %v594 = vmax.f32 %v416, 1e-20
      %v595 = vmax.f32 %v419, 1e-20
      %v596 = vmax.f32 %v422, 1e-20
      %v597 = vmax.f32 %v425, 1e-20
      %v598 = vmax.f32 %v428, 1e-20
      %v599 = vmax.f32 %v431, 1e-20
      %v600 = vmax.f32 %v434, 1e-20
      %v601 = vmax.f32 %v437, 1e-20
      %v602 = vmax.f32 %v440, 1e-20
      %v603 = vmax.f32 %v443, 1e-20
      %v604 = vmax.f32 %v446, 1e-20
      %v605 = vmax.f32 %v449, 1e-20
      %v606 = vmax.f32 %v452, 1e-20
      %v607 = vmax.f32 %v455, 1e-20
      %v608 = vmax.f32 %v458, 1e-20
      %v609 = vmax.f32 %v461, 1e-20
      %v610 = vmax.f32 %v464, 1e-20
      %v611 = vmax.f32 %v467, 1e-20
      %v612 = vmax.f32 %v470, 1e-20
      %v613 = vmax.f32 %v473, 1e-20
      %v614 = vmax.f32 %v476, 1e-20
      %v615 = vmax.f32 %v479, 1e-20
      %v616 = vmax.f32 %v482, 1e-20
      %v617 = vmax.f32 %v485, 1e-20
      %v618 = vmax.f32 %v488, 1e-20
      %v619 = vmax.f32 %v491, 1e-20
      %v620 = vmax.f32 %v494, 1e-20
      %v621 = vmax.f32 %v497, 1e-20
      %v622 = vmax.f32 %v500, 1e-20
      %v623 = vmax.f32 %v503, 1e-20
      %v624 = vmax.f32 %v506, 1e-20
      %v625 = vmax.f32 %v509, 1e-20
      %v626 = vmax.f32 %v512, 1e-20
      %v627 = vmax.f32 %v515, 1e-20
      %v628 = vmax.f32 %v518, 1e-20
      %v629 = vmax.f32 %v521, 1e-20
      %v630 = vmax.f32 %v524, 1e-20
      %v631 = vmax.f32 %v527, 1e-20
      %v632 = vmax.f32 %v530, 1e-20
      %v633 = vmax.f32 %v533, 1e-20
      %v634 = vmax.f32 %v536, 1e-20
      %v635 = vmax.f32 %v539, 1e-20
      %v636 = vmax.f32 %v542, 1e-20
      %v637 = vmax.f32 %v545, 1e-20
      %v638 = vmax.f32 %v548, 1e-20
      %v639 = vmax.f32 %v551, 1e-20
      %v640 = vmax.f32 %v554, 1e-20
      %v641 = vmax.f32 %v557, 1e-20
      %v642 = vmax.f32 %v560, 1e-20
      %v643 = vmax.f32 %v563, 1e-20
      %v644 = vmax.f32 %v566, 1e-20
      %v645 = vmax.f32 %v569, 1e-20
      %v646 = vmax.f32 %v572, 1e-20
      %v647 = vmax.f32 %v575, 1e-20
      %v648 = vmax.f32 %v578, 1e-20
      %v649 = vmax.f32 %v581, 1e-20
      %v650 = vmax.f32 %v584, 1e-20
      %v651 = vmax.f32 %v587, 1e-20
      %v652 = vrsqrt.pop %v588
      %v653 = vrsqrt.pop %v589
      %v654 = vrsqrt.pop %v590
      %v655 = vrsqrt.pop %v591
      %v656 = vrsqrt.pop %v592
      %v657 = vrsqrt.pop %v593
      %v658 = vrsqrt.pop %v594
      %v659 = vrsqrt.pop %v595
      %v660 = vrsqrt.pop %v596
      %v661 = vrsqrt.pop %v597
      %v662 = vrsqrt.pop %v598
      %v663 = vrsqrt.pop %v599
      %v664 = vrsqrt.pop %v600
      %v665 = vrsqrt.pop %v601
      %v666 = vrsqrt.pop %v602
      %v667 = vrsqrt.pop %v603
      %v668 = vrsqrt.pop %v604
      %v669 = vrsqrt.pop %v605
      %v670 = vrsqrt.pop %v606
      %v671 = vrsqrt.pop %v607
      %v672 = vrsqrt.pop %v608
      %v673 = vrsqrt.pop %v609
      %v674 = vrsqrt.pop %v610
      %v675 = vrsqrt.pop %v611
      %v676 = vrsqrt.pop %v612
      %v677 = vrsqrt.pop %v613
      %v678 = vrsqrt.pop %v614
      %v679 = vrsqrt.pop %v615
      %v680 = vrsqrt.pop %v616
      %v681 = vrsqrt.pop %v617
      %v682 = vrsqrt.pop %v618
      %v683 = vrsqrt.pop %v619
      %v684 = vrsqrt.pop %v620
      %v685 = vrsqrt.pop %v621
      %v686 = vrsqrt.pop %v622
      %v687 = vrsqrt.pop %v623
      %v688 = vrsqrt.pop %v624
      %v689 = vrsqrt.pop %v625
      %v690 = vrsqrt.pop %v626
      %v691 = vrsqrt.pop %v627
      %v692 = vrsqrt.pop %v628
      %v693 = vrsqrt.pop %v629
      %v694 = vrsqrt.pop %v630
      %v695 = vrsqrt.pop %v631
      %v696 = vrsqrt.pop %v632
      %v697 = vrsqrt.pop %v633
      %v698 = vrsqrt.pop %v634
      %v699 = vrsqrt.pop %v635
      %v700 = vrsqrt.pop %v636
      %v701 = vrsqrt.pop %v637
      %v702 = vrsqrt.pop %v638
      %v703 = vrsqrt.pop %v639
      %v704 = vrsqrt.pop %v640
      %v705 = vrsqrt.pop %v641
      %v706 = vrsqrt.pop %v642
      %v707 = vrsqrt.pop %v643
      %v708 = vrsqrt.pop %v644
      %v709 = vrsqrt.pop %v645
      %v710 = vrsqrt.pop %v646
      %v711 = vrsqrt.pop %v647
      %v712 = vrsqrt.pop %v648
      %v713 = vrsqrt.pop %v649
      %v714 = vrsqrt.pop %v650
      %v715 = vrsqrt.pop %v651
      %v716 = vmul.f32 %v267, %v652
      %v717 = vmul.f32 %v268, %v653
      %v718 = vmul.f32 %v269, %v654
      %v719 = vmul.f32 %v270, %v655
      %v720 = vmul.f32 %v271, %v656
      %v721 = vmul.f32 %v272, %v657
      %v722 = vmul.f32 %v273, %v658
      %v723 = vmul.f32 %v274, %v659
      %v724 = vmul.f32 %v275, %v660
      %v725 = vmul.f32 %v276, %v661
      %v726 = vmul.f32 %v277, %v662
      %v727 = vmul.f32 %v278, %v663
      %v728 = vmul.f32 %v279, %v664
      %v729 = vmul.f32 %v280, %v665
      %v730 = vmul.f32 %v281, %v666
      %v731 = vmul.f32 %v282, %v667
      %v732 = vmul.f32 %v283, %v668
      %v733 = vmul.f32 %v284, %v669
      %v734 = vmul.f32 %v285, %v670
      %v735 = vmul.f32 %v286, %v671
      %v736 = vmul.f32 %v287, %v672
      %v737 = vmul.f32 %v288, %v673
      %v738 = vmul.f32 %v289, %v674
      %v739 = vmul.f32 %v290, %v675
      %v740 = vmul.f32 %v291, %v676
      %v741 = vmul.f32 %v292, %v677
      %v742 = vmul.f32 %v293, %v678
      %v743 = vmul.f32 %v294, %v679
      %v744 = vmul.f32 %v295, %v680
      %v745 = vmul.f32 %v296, %v681
      %v746 = vmul.f32 %v297, %v682
      %v747 = vmul.f32 %v298, %v683
      %v748 = vmul.f32 %v299, %v684
      %v749 = vmul.f32 %v300, %v685
      %v750 = vmul.f32 %v301, %v686
      %v751 = vmul.f32 %v302, %v687
      %v752 = vmul.f32 %v303, %v688
      %v753 = vmul.f32 %v304, %v689
      %v754 = vmul.f32 %v305, %v690
      %v755 = vmul.f32 %v306, %v691
      %v756 = vmul.f32 %v307, %v692
      %v757 = vmul.f32 %v308, %v693
      %v758 = vmul.f32 %v309, %v694
      %v759 = vmul.f32 %v310, %v695
      %v760 = vmul.f32 %v311, %v696
      %v761 = vmul.f32 %v312, %v697
      %v762 = vmul.f32 %v313, %v698
      %v763 = vmul.f32 %v314, %v699
      %v764 = vmul.f32 %v315, %v700
      %v765 = vmul.f32 %v316, %v701
      %v766 = vmul.f32 %v317, %v702
      %v767 = vmul.f32 %v318, %v703
      %v768 = vmul.f32 %v319, %v704
      %v769 = vmul.f32 %v320, %v705
      %v770 = vmul.f32 %v321, %v706
      %v771 = vmul.f32 %v322, %v707
      %v772 = vmul.f32 %v323, %v708
      %v773 = vmul.f32 %v324, %v709
      %v774 = vmul.f32 %v325, %v710
      %v775 = vmul.f32 %v326, %v711
      %v776 = vmul.f32 %v327, %v712
      %v777 = vmul.f32 %v328, %v713
      %v778 = vmul.f32 %v329, %v714
      %v779 = vmul.f32 %v330, %v715
      %v780 = vpack.c.bf16 %v717, %v716
      %v781 = vpack.c.bf16 %v719, %v718
      %v782 = vpack.c.bf16 %v721, %v720
      %v783 = vpack.c.bf16 %v723, %v722
      %v784 = vpack.c.bf16 %v725, %v724
      %v785 = vpack.c.bf16 %v727, %v726
      %v786 = vpack.c.bf16 %v729, %v728
      %v787 = vpack.c.bf16 %v731, %v730
      %v788 = vpack.c.bf16 %v733, %v732
      %v789 = vpack.c.bf16 %v735, %v734
      %v790 = vpack.c.bf16 %v737, %v736
      %v791 = vpack.c.bf16 %v739, %v738
      %v792 = vpack.c.bf16 %v741, %v740
      %v793 = vpack.c.bf16 %v743, %v742
      %v794 = vpack.c.bf16 %v745, %v744
      %v795 = vpack.c.bf16 %v747, %v746
      %v796 = vpack.c.bf16 %v749, %v748
      %v797 = vpack.c.bf16 %v751, %v750
      %v798 = vpack.c.bf16 %v753, %v752
      %v799 = vpack.c.bf16 %v755, %v754
      %v800 = vpack.c.bf16 %v757, %v756
      %v801 = vpack.c.bf16 %v759, %v758
      %v802 = vpack.c.bf16 %v761, %v760
      %v803 = vpack.c.bf16 %v763, %v762
      %v804 = vpack.c.bf16 %v765, %v764
      %v805 = vpack.c.bf16 %v767, %v766
      %v806 = vpack.c.bf16 %v769, %v768
      %v807 = vpack.c.bf16 %v771, %v770
      %v808 = vpack.c.bf16 %v773, %v772
      %v809 = vpack.c.bf16 %v775, %v774
      %v810 = vpack.c.bf16 %v777, %v776
      %v811 = vpack.c.bf16 %v779, %v778
      %v812 = vld [vmem:[%s2] sm:$0xff]
      %v813 = vld [vmem:[%s2 + $0x8] sm:$0xff]
      %v814 = vld [vmem:[%s2 + $0x10] sm:$0xff]
      %v815 = vld [vmem:[%s2 + $0x18] sm:$0xff]
      %v816 = vld [vmem:[%s2 + $0x20] sm:$0xff]
      %v817 = vld [vmem:[%s2 + $0x28] sm:$0xff]
      %v818 = vld [vmem:[%s2 + $0x30] sm:$0xff]
      %v819 = vld [vmem:[%s2 + $0x38] sm:$0xff]
      %v820 = vld [vmem:[%s2 + $0x40] sm:$0xff]
      %v821 = vld [vmem:[%s2 + $0x48] sm:$0xff]
      %v822 = vld [vmem:[%s2 + $0x50] sm:$0xff]
      %v823 = vld [vmem:[%s2 + $0x58] sm:$0xff]
      %v824 = vld [vmem:[%s2 + $0x60] sm:$0xff]
      %v825 = vld [vmem:[%s2 + $0x68] sm:$0xff]
      %v826 = vld [vmem:[%s2 + $0x70] sm:$0xff]
      %v827 = vld [vmem:[%s2 + $0x78] sm:$0xff]
      %v828 = vld [vmem:[%s2 + $0x80] sm:$0xff]
      %v829 = vld [vmem:[%s2 + $0x88] sm:$0xff]
      %v830 = vld [vmem:[%s2 + $0x90] sm:$0xff]
      %v831 = vld [vmem:[%s2 + $0x98] sm:$0xff]
      %v832 = vld [vmem:[%s2 + $0xa0] sm:$0xff]
      %v833 = vld [vmem:[%s2 + $0xa8] sm:$0xff]
      %v834 = vld [vmem:[%s2 + $0xb0] sm:$0xff]
      %v835 = vld [vmem:[%s2 + $0xb8] sm:$0xff]
      %v836 = vld [vmem:[%s2 + $0xc0] sm:$0xff]
      %v837 = vld [vmem:[%s2 + $0xc8] sm:$0xff]
      %v838 = vld [vmem:[%s2 + $0xd0] sm:$0xff]
      %v839 = vld [vmem:[%s2 + $0xd8] sm:$0xff]
      %v840 = vld [vmem:[%s2 + $0xe0] sm:$0xff]
      %v841 = vld [vmem:[%s2 + $0xe8] sm:$0xff]
      %v842 = vld [vmem:[%s2 + $0xf0] sm:$0xff]
      %v843 = vld [vmem:[%s2 + $0xf8] sm:$0xff]
      %v844 = vld [vmem:[%s2 + $0x100] sm:$0xff]
      %v845 = vld [vmem:[%s2 + $0x108] sm:$0xff]
      %v846 = vld [vmem:[%s2 + $0x110] sm:$0xff]
      %v847 = vld [vmem:[%s2 + $0x118] sm:$0xff]
      %v848 = vld [vmem:[%s2 + $0x120] sm:$0xff]
      %v849 = vld [vmem:[%s2 + $0x128] sm:$0xff]
      %v850 = vld [vmem:[%s2 + $0x130] sm:$0xff]
      %v851 = vld [vmem:[%s2 + $0x138] sm:$0xff]
      %v852 = vld [vmem:[%s2 + $0x140] sm:$0xff]
      %v853 = vld [vmem:[%s2 + $0x148] sm:$0xff]
      %v854 = vld [vmem:[%s2 + $0x150] sm:$0xff]
      %v855 = vld [vmem:[%s2 + $0x158] sm:$0xff]
      %v856 = vld [vmem:[%s2 + $0x160] sm:$0xff]
      %v857 = vld [vmem:[%s2 + $0x168] sm:$0xff]
      %v858 = vld [vmem:[%s2 + $0x170] sm:$0xff]
      %v859 = vld [vmem:[%s2 + $0x178] sm:$0xff]
      %v860 = vld [vmem:[%s2 + $0x180] sm:$0xff]
      %v861 = vld [vmem:[%s2 + $0x188] sm:$0xff]
      %v862 = vld [vmem:[%s2 + $0x190] sm:$0xff]
      %v863 = vld [vmem:[%s2 + $0x198] sm:$0xff]
      %v864 = vld [vmem:[%s2 + $0x1a0] sm:$0xff]
      %v865 = vld [vmem:[%s2 + $0x1a8] sm:$0xff]
      %v866 = vld [vmem:[%s2 + $0x1b0] sm:$0xff]
      %v867 = vld [vmem:[%s2 + $0x1b8] sm:$0xff]
      %v868 = vld [vmem:[%s2 + $0x1c0] sm:$0xff]
      %v869 = vld [vmem:[%s2 + $0x1c8] sm:$0xff]
      %v870 = vld [vmem:[%s2 + $0x1d0] sm:$0xff]
      %v871 = vld [vmem:[%s2 + $0x1d8] sm:$0xff]
      %v872 = vld [vmem:[%s2 + $0x1e0] sm:$0xff]
      %v873 = vld [vmem:[%s2 + $0x1e8] sm:$0xff]
      %v874 = vld [vmem:[%s2 + $0x1f0] sm:$0xff]
      %v875 = vld [vmem:[%s2 + $0x1f8] sm:$0xff]
      %v876 = vmul.f32 %v812, %v812
      %v877 = vmul.f32 %v813, %v813
      %v878 = vmul.f32 %v814, %v814
      %v879 = vmul.f32 %v815, %v815
      %v880 = vmul.f32 %v816, %v816
      %v881 = vmul.f32 %v817, %v817
      %v882 = vmul.f32 %v818, %v818
      %v883 = vmul.f32 %v819, %v819
      %v884 = vmul.f32 %v820, %v820
      %v885 = vmul.f32 %v821, %v821
      %v886 = vmul.f32 %v822, %v822
      %v887 = vmul.f32 %v823, %v823
      %v888 = vmul.f32 %v824, %v824
      %v889 = vmul.f32 %v825, %v825
      %v890 = vmul.f32 %v826, %v826
      %v891 = vmul.f32 %v827, %v827
      %v892 = vmul.f32 %v828, %v828
      %v893 = vmul.f32 %v829, %v829
      %v894 = vmul.f32 %v830, %v830
      %v895 = vmul.f32 %v831, %v831
      %v896 = vmul.f32 %v832, %v832
      %v897 = vmul.f32 %v833, %v833
      %v898 = vmul.f32 %v834, %v834
      %v899 = vmul.f32 %v835, %v835
      %v900 = vmul.f32 %v836, %v836
      %v901 = vmul.f32 %v837, %v837
      %v902 = vmul.f32 %v838, %v838
      %v903 = vmul.f32 %v839, %v839
      %v904 = vmul.f32 %v840, %v840
      %v905 = vmul.f32 %v841, %v841
      %v906 = vmul.f32 %v842, %v842
      %v907 = vmul.f32 %v843, %v843
      %v908 = vmul.f32 %v844, %v844
      %v909 = vmul.f32 %v845, %v845
      %v910 = vmul.f32 %v846, %v846
      %v911 = vmul.f32 %v847, %v847
      %v912 = vmul.f32 %v848, %v848
      %v913 = vmul.f32 %v849, %v849
      %v914 = vmul.f32 %v850, %v850
      %v915 = vmul.f32 %v851, %v851
      %v916 = vmul.f32 %v852, %v852
      %v917 = vmul.f32 %v853, %v853
      %v918 = vmul.f32 %v854, %v854
      %v919 = vmul.f32 %v855, %v855
      %v920 = vmul.f32 %v856, %v856
      %v921 = vmul.f32 %v857, %v857
      %v922 = vmul.f32 %v858, %v858
      %v923 = vmul.f32 %v859, %v859
      %v924 = vmul.f32 %v860, %v860
      %v925 = vmul.f32 %v861, %v861
      %v926 = vmul.f32 %v862, %v862
      %v927 = vmul.f32 %v863, %v863
      %v928 = vmul.f32 %v864, %v864
      %v929 = vmul.f32 %v865, %v865
      %v930 = vmul.f32 %v866, %v866
      %v931 = vmul.f32 %v867, %v867
      %v932 = vmul.f32 %v868, %v868
      %v933 = vmul.f32 %v869, %v869
      %v934 = vmul.f32 %v870, %v870
      %v935 = vmul.f32 %v871, %v871
      %v936 = vmul.f32 %v872, %v872
      %v937 = vmul.f32 %v873, %v873
      %v938 = vmul.f32 %v874, %v874
      %v939 = vmul.f32 %v875, %v875
      %vm940 = vcmask 130048
      %v941 = vsel %vm940, %v876, 0.0
      %942 = vadd.xlane.f32.xlu0 %v941
      %v943 = vpop.xlane.xlu0 %942
      %v944 = vsel %vm940, %v877, 0.0
      %945 = vadd.xlane.f32.xlu0 %v944
      %v946 = vpop.xlane.xlu0 %945
      %v947 = vsel %vm940, %v878, 0.0
      %948 = vadd.xlane.f32.xlu0 %v947
      %v949 = vpop.xlane.xlu0 %948
      %v950 = vsel %vm940, %v879, 0.0
      %951 = vadd.xlane.f32.xlu0 %v950
      %v952 = vpop.xlane.xlu0 %951
      %v953 = vsel %vm940, %v880, 0.0
      %954 = vadd.xlane.f32.xlu0 %v953
      %v955 = vpop.xlane.xlu0 %954
      %v956 = vsel %vm940, %v881, 0.0
      %957 = vadd.xlane.f32.xlu0 %v956
      %v958 = vpop.xlane.xlu0 %957
      %v959 = vsel %vm940, %v882, 0.0
      %960 = vadd.xlane.f32.xlu0 %v959
      %v961 = vpop.xlane.xlu0 %960
      %v962 = vsel %vm940, %v883, 0.0
      %963 = vadd.xlane.f32.xlu0 %v962
      %v964 = vpop.xlane.xlu0 %963
      %v965 = vsel %vm940, %v884, 0.0
      %966 = vadd.xlane.f32.xlu0 %v965
      %v967 = vpop.xlane.xlu0 %966
      %v968 = vsel %vm940, %v885, 0.0
      %969 = vadd.xlane.f32.xlu0 %v968
      %v970 = vpop.xlane.xlu0 %969
      %v971 = vsel %vm940, %v886, 0.0
      %972 = vadd.xlane.f32.xlu0 %v971
      %v973 = vpop.xlane.xlu0 %972
      %v974 = vsel %vm940, %v887, 0.0
      %975 = vadd.xlane.f32.xlu0 %v974
      %v976 = vpop.xlane.xlu0 %975
      %v977 = vsel %vm940, %v888, 0.0
      %978 = vadd.xlane.f32.xlu0 %v977
      %v979 = vpop.xlane.xlu0 %978
      %v980 = vsel %vm940, %v889, 0.0
      %981 = vadd.xlane.f32.xlu0 %v980
      %v982 = vpop.xlane.xlu0 %981
      %v983 = vsel %vm940, %v890, 0.0
      %984 = vadd.xlane.f32.xlu0 %v983
      %v985 = vpop.xlane.xlu0 %984
      %v986 = vsel %vm940, %v891, 0.0
      %987 = vadd.xlane.f32.xlu0 %v986
      %v988 = vpop.xlane.xlu0 %987
      %v989 = vsel %vm940, %v892, 0.0
      %990 = vadd.xlane.f32.xlu0 %v989
      %v991 = vpop.xlane.xlu0 %990
      %v992 = vsel %vm940, %v893, 0.0
      %993 = vadd.xlane.f32.xlu0 %v992
      %v994 = vpop.xlane.xlu0 %993
      %v995 = vsel %vm940, %v894, 0.0
      %996 = vadd.xlane.f32.xlu0 %v995
      %v997 = vpop.xlane.xlu0 %996
      %v998 = vsel %vm940, %v895, 0.0
      %999 = vadd.xlane.f32.xlu0 %v998
      %v1000 = vpop.xlane.xlu0 %999
      %v1001 = vsel %vm940, %v896, 0.0
      %1002 = vadd.xlane.f32.xlu0 %v1001
      %v1003 = vpop.xlane.xlu0 %1002
      %v1004 = vsel %vm940, %v897, 0.0
      %1005 = vadd.xlane.f32.xlu0 %v1004
      %v1006 = vpop.xlane.xlu0 %1005
      %v1007 = vsel %vm940, %v898, 0.0
      %1008 = vadd.xlane.f32.xlu0 %v1007
      %v1009 = vpop.xlane.xlu0 %1008
      %v1010 = vsel %vm940, %v899, 0.0
      %1011 = vadd.xlane.f32.xlu0 %v1010
      %v1012 = vpop.xlane.xlu0 %1011
      %v1013 = vsel %vm940, %v900, 0.0
      %1014 = vadd.xlane.f32.xlu0 %v1013
      %v1015 = vpop.xlane.xlu0 %1014
      %v1016 = vsel %vm940, %v901, 0.0
      %1017 = vadd.xlane.f32.xlu0 %v1016
      %v1018 = vpop.xlane.xlu0 %1017
      %v1019 = vsel %vm940, %v902, 0.0
      %1020 = vadd.xlane.f32.xlu0 %v1019
      %v1021 = vpop.xlane.xlu0 %1020
      %v1022 = vsel %vm940, %v903, 0.0
      %1023 = vadd.xlane.f32.xlu0 %v1022
      %v1024 = vpop.xlane.xlu0 %1023
      %v1025 = vsel %vm940, %v904, 0.0
      %1026 = vadd.xlane.f32.xlu0 %v1025
      %v1027 = vpop.xlane.xlu0 %1026
      %v1028 = vsel %vm940, %v905, 0.0
      %1029 = vadd.xlane.f32.xlu0 %v1028
      %v1030 = vpop.xlane.xlu0 %1029
      %v1031 = vsel %vm940, %v906, 0.0
      %1032 = vadd.xlane.f32.xlu0 %v1031
      %v1033 = vpop.xlane.xlu0 %1032
      %v1034 = vsel %vm940, %v907, 0.0
      %1035 = vadd.xlane.f32.xlu0 %v1034
      %v1036 = vpop.xlane.xlu0 %1035
      %v1037 = vsel %vm940, %v908, 0.0
      %1038 = vadd.xlane.f32.xlu0 %v1037
      %v1039 = vpop.xlane.xlu0 %1038
      %v1040 = vsel %vm940, %v909, 0.0
      %1041 = vadd.xlane.f32.xlu0 %v1040
      %v1042 = vpop.xlane.xlu0 %1041
      %v1043 = vsel %vm940, %v910, 0.0
      %1044 = vadd.xlane.f32.xlu0 %v1043
      %v1045 = vpop.xlane.xlu0 %1044
      %v1046 = vsel %vm940, %v911, 0.0
      %1047 = vadd.xlane.f32.xlu0 %v1046
      %v1048 = vpop.xlane.xlu0 %1047
      %v1049 = vsel %vm940, %v912, 0.0
      %1050 = vadd.xlane.f32.xlu0 %v1049
      %v1051 = vpop.xlane.xlu0 %1050
      %v1052 = vsel %vm940, %v913, 0.0
      %1053 = vadd.xlane.f32.xlu0 %v1052
      %v1054 = vpop.xlane.xlu0 %1053
      %v1055 = vsel %vm940, %v914, 0.0
      %1056 = vadd.xlane.f32.xlu0 %v1055
      %v1057 = vpop.xlane.xlu0 %1056
      %v1058 = vsel %vm940, %v915, 0.0
      %1059 = vadd.xlane.f32.xlu0 %v1058
      %v1060 = vpop.xlane.xlu0 %1059
      %v1061 = vsel %vm940, %v916, 0.0
      %1062 = vadd.xlane.f32.xlu0 %v1061
      %v1063 = vpop.xlane.xlu0 %1062
      %v1064 = vsel %vm940, %v917, 0.0
      %1065 = vadd.xlane.f32.xlu0 %v1064
      %v1066 = vpop.xlane.xlu0 %1065
      %v1067 = vsel %vm940, %v918, 0.0
      %1068 = vadd.xlane.f32.xlu0 %v1067
      %v1069 = vpop.xlane.xlu0 %1068
      %v1070 = vsel %vm940, %v919, 0.0
      %1071 = vadd.xlane.f32.xlu0 %v1070
      %v1072 = vpop.xlane.xlu0 %1071
      %v1073 = vsel %vm940, %v920, 0.0
      %1074 = vadd.xlane.f32.xlu0 %v1073
      %v1075 = vpop.xlane.xlu0 %1074
      %v1076 = vsel %vm940, %v921, 0.0
      %1077 = vadd.xlane.f32.xlu0 %v1076
      %v1078 = vpop.xlane.xlu0 %1077
      %v1079 = vsel %vm940, %v922, 0.0
      %1080 = vadd.xlane.f32.xlu0 %v1079
      %v1081 = vpop.xlane.xlu0 %1080
      %v1082 = vsel %vm940, %v923, 0.0
      %1083 = vadd.xlane.f32.xlu0 %v1082
      %v1084 = vpop.xlane.xlu0 %1083
      %v1085 = vsel %vm940, %v924, 0.0
      %1086 = vadd.xlane.f32.xlu0 %v1085
      %v1087 = vpop.xlane.xlu0 %1086
      %v1088 = vsel %vm940, %v925, 0.0
      %1089 = vadd.xlane.f32.xlu0 %v1088
      %v1090 = vpop.xlane.xlu0 %1089
      %v1091 = vsel %vm940, %v926, 0.0
      %1092 = vadd.xlane.f32.xlu0 %v1091
      %v1093 = vpop.xlane.xlu0 %1092
      %v1094 = vsel %vm940, %v927, 0.0
      %1095 = vadd.xlane.f32.xlu0 %v1094
      %v1096 = vpop.xlane.xlu0 %1095
      %v1097 = vsel %vm940, %v928, 0.0
      %1098 = vadd.xlane.f32.xlu0 %v1097
      %v1099 = vpop.xlane.xlu0 %1098
      %v1100 = vsel %vm940, %v929, 0.0
      %1101 = vadd.xlane.f32.xlu0 %v1100
      %v1102 = vpop.xlane.xlu0 %1101
      %v1103 = vsel %vm940, %v930, 0.0
      %1104 = vadd.xlane.f32.xlu0 %v1103
      %v1105 = vpop.xlane.xlu0 %1104
      %v1106 = vsel %vm940, %v931, 0.0
      %1107 = vadd.xlane.f32.xlu0 %v1106
      %v1108 = vpop.xlane.xlu0 %1107
      %v1109 = vsel %vm940, %v932, 0.0
      %1110 = vadd.xlane.f32.xlu0 %v1109
      %v1111 = vpop.xlane.xlu0 %1110
      %v1112 = vsel %vm940, %v933, 0.0
      %1113 = vadd.xlane.f32.xlu0 %v1112
      %v1114 = vpop.xlane.xlu0 %1113
      %v1115 = vsel %vm940, %v934, 0.0
      %1116 = vadd.xlane.f32.xlu0 %v1115
      %v1117 = vpop.xlane.xlu0 %1116
      %v1118 = vsel %vm940, %v935, 0.0
      %1119 = vadd.xlane.f32.xlu0 %v1118
      %v1120 = vpop.xlane.xlu0 %1119
      %v1121 = vsel %vm940, %v936, 0.0
      %1122 = vadd.xlane.f32.xlu0 %v1121
      %v1123 = vpop.xlane.xlu0 %1122
      %v1124 = vsel %vm940, %v937, 0.0
      %1125 = vadd.xlane.f32.xlu0 %v1124
      %v1126 = vpop.xlane.xlu0 %1125
      %v1127 = vsel %vm940, %v938, 0.0
      %1128 = vadd.xlane.f32.xlu0 %v1127
      %v1129 = vpop.xlane.xlu0 %1128
      %v1130 = vsel %vm940, %v939, 0.0
      %1131 = vadd.xlane.f32.xlu0 %v1130
      %v1132 = vpop.xlane.xlu0 %1131
      %v1133 = vmax.f32 %v943, 1e-20
      %v1134 = vmax.f32 %v946, 1e-20
      %v1135 = vmax.f32 %v949, 1e-20
      %v1136 = vmax.f32 %v952, 1e-20
      %v1137 = vmax.f32 %v955, 1e-20
      %v1138 = vmax.f32 %v958, 1e-20
      %v1139 = vmax.f32 %v961, 1e-20
      %v1140 = vmax.f32 %v964, 1e-20
      %v1141 = vmax.f32 %v967, 1e-20
      %v1142 = vmax.f32 %v970, 1e-20
      %v1143 = vmax.f32 %v973, 1e-20
      %v1144 = vmax.f32 %v976, 1e-20
      %v1145 = vmax.f32 %v979, 1e-20
      %v1146 = vmax.f32 %v982, 1e-20
      %v1147 = vmax.f32 %v985, 1e-20
      %v1148 = vmax.f32 %v988, 1e-20
      %v1149 = vmax.f32 %v991, 1e-20
      %v1150 = vmax.f32 %v994, 1e-20
      %v1151 = vmax.f32 %v997, 1e-20
      %v1152 = vmax.f32 %v1000, 1e-20
      %v1153 = vmax.f32 %v1003, 1e-20
      %v1154 = vmax.f32 %v1006, 1e-20
      %v1155 = vmax.f32 %v1009, 1e-20
      %v1156 = vmax.f32 %v1012, 1e-20
      %v1157 = vmax.f32 %v1015, 1e-20
      %v1158 = vmax.f32 %v1018, 1e-20
      %v1159 = vmax.f32 %v1021, 1e-20
      %v1160 = vmax.f32 %v1024, 1e-20
      %v1161 = vmax.f32 %v1027, 1e-20
      %v1162 = vmax.f32 %v1030, 1e-20
      %v1163 = vmax.f32 %v1033, 1e-20
      %v1164 = vmax.f32 %v1036, 1e-20
      %v1165 = vmax.f32 %v1039, 1e-20
      %v1166 = vmax.f32 %v1042, 1e-20
      %v1167 = vmax.f32 %v1045, 1e-20
      %v1168 = vmax.f32 %v1048, 1e-20
      %v1169 = vmax.f32 %v1051, 1e-20
      %v1170 = vmax.f32 %v1054, 1e-20
      %v1171 = vmax.f32 %v1057, 1e-20
      %v1172 = vmax.f32 %v1060, 1e-20
      %v1173 = vmax.f32 %v1063, 1e-20
      %v1174 = vmax.f32 %v1066, 1e-20
      %v1175 = vmax.f32 %v1069, 1e-20
      %v1176 = vmax.f32 %v1072, 1e-20
      %v1177 = vmax.f32 %v1075, 1e-20
      %v1178 = vmax.f32 %v1078, 1e-20
      %v1179 = vmax.f32 %v1081, 1e-20
      %v1180 = vmax.f32 %v1084, 1e-20
      %v1181 = vmax.f32 %v1087, 1e-20
      %v1182 = vmax.f32 %v1090, 1e-20
      %v1183 = vmax.f32 %v1093, 1e-20
      %v1184 = vmax.f32 %v1096, 1e-20
      %v1185 = vmax.f32 %v1099, 1e-20
      %v1186 = vmax.f32 %v1102, 1e-20
      %v1187 = vmax.f32 %v1105, 1e-20
      %v1188 = vmax.f32 %v1108, 1e-20
      %v1189 = vmax.f32 %v1111, 1e-20
      %v1190 = vmax.f32 %v1114, 1e-20
      %v1191 = vmax.f32 %v1117, 1e-20
      %v1192 = vmax.f32 %v1120, 1e-20
      %v1193 = vmax.f32 %v1123, 1e-20
      %v1194 = vmax.f32 %v1126, 1e-20
      %v1195 = vmax.f32 %v1129, 1e-20
      %v1196 = vmax.f32 %v1132, 1e-20
      %v1197 = vrsqrt.pop %v1133
      %v1198 = vrsqrt.pop %v1134
      %v1199 = vrsqrt.pop %v1135
      %v1200 = vrsqrt.pop %v1136
      %v1201 = vrsqrt.pop %v1137
      %v1202 = vrsqrt.pop %v1138
      %v1203 = vrsqrt.pop %v1139
      %v1204 = vrsqrt.pop %v1140
      %v1205 = vrsqrt.pop %v1141
      %v1206 = vrsqrt.pop %v1142
      %v1207 = vrsqrt.pop %v1143
      %v1208 = vrsqrt.pop %v1144
      %v1209 = vrsqrt.pop %v1145
      %v1210 = vrsqrt.pop %v1146
      %v1211 = vrsqrt.pop %v1147
      %v1212 = vrsqrt.pop %v1148
      %v1213 = vrsqrt.pop %v1149
      %v1214 = vrsqrt.pop %v1150
      %v1215 = vrsqrt.pop %v1151
      %v1216 = vrsqrt.pop %v1152
      %v1217 = vrsqrt.pop %v1153
      %v1218 = vrsqrt.pop %v1154
      %v1219 = vrsqrt.pop %v1155
      %v1220 = vrsqrt.pop %v1156
      %v1221 = vrsqrt.pop %v1157
      %v1222 = vrsqrt.pop %v1158
      %v1223 = vrsqrt.pop %v1159
      %v1224 = vrsqrt.pop %v1160
      %v1225 = vrsqrt.pop %v1161
      %v1226 = vrsqrt.pop %v1162
      %v1227 = vrsqrt.pop %v1163
      %v1228 = vrsqrt.pop %v1164
      %v1229 = vrsqrt.pop %v1165
      %v1230 = vrsqrt.pop %v1166
      %v1231 = vrsqrt.pop %v1167
      %v1232 = vrsqrt.pop %v1168
      %v1233 = vrsqrt.pop %v1169
      %v1234 = vrsqrt.pop %v1170
      %v1235 = vrsqrt.pop %v1171
      %v1236 = vrsqrt.pop %v1172
      %v1237 = vrsqrt.pop %v1173
      %v1238 = vrsqrt.pop %v1174
      %v1239 = vrsqrt.pop %v1175
      %v1240 = vrsqrt.pop %v1176
      %v1241 = vrsqrt.pop %v1177
      %v1242 = vrsqrt.pop %v1178
      %v1243 = vrsqrt.pop %v1179
      %v1244 = vrsqrt.pop %v1180
      %v1245 = vrsqrt.pop %v1181
      %v1246 = vrsqrt.pop %v1182
      %v1247 = vrsqrt.pop %v1183
      %v1248 = vrsqrt.pop %v1184
      %v1249 = vrsqrt.pop %v1185
      %v1250 = vrsqrt.pop %v1186
      %v1251 = vrsqrt.pop %v1187
      %v1252 = vrsqrt.pop %v1188
      %v1253 = vrsqrt.pop %v1189
      %v1254 = vrsqrt.pop %v1190
      %v1255 = vrsqrt.pop %v1191
      %v1256 = vrsqrt.pop %v1192
      %v1257 = vrsqrt.pop %v1193
      %v1258 = vrsqrt.pop %v1194
      %v1259 = vrsqrt.pop %v1195
      %v1260 = vrsqrt.pop %v1196
      %v1261 = vmul.f32 %v812, %v1197
      %v1262 = vmul.f32 %v813, %v1198
      %v1263 = vmul.f32 %v814, %v1199
      %v1264 = vmul.f32 %v815, %v1200
      %v1265 = vmul.f32 %v816, %v1201
      %v1266 = vmul.f32 %v817, %v1202
      %v1267 = vmul.f32 %v818, %v1203
      %v1268 = vmul.f32 %v819, %v1204
      %v1269 = vmul.f32 %v820, %v1205
      %v1270 = vmul.f32 %v821, %v1206
      %v1271 = vmul.f32 %v822, %v1207
      %v1272 = vmul.f32 %v823, %v1208
      %v1273 = vmul.f32 %v824, %v1209
      %v1274 = vmul.f32 %v825, %v1210
      %v1275 = vmul.f32 %v826, %v1211
      %v1276 = vmul.f32 %v827, %v1212
      %v1277 = vmul.f32 %v828, %v1213
      %v1278 = vmul.f32 %v829, %v1214
      %v1279 = vmul.f32 %v830, %v1215
      %v1280 = vmul.f32 %v831, %v1216
      %v1281 = vmul.f32 %v832, %v1217
      %v1282 = vmul.f32 %v833, %v1218
      %v1283 = vmul.f32 %v834, %v1219
      %v1284 = vmul.f32 %v835, %v1220
      %v1285 = vmul.f32 %v836, %v1221
      %v1286 = vmul.f32 %v837, %v1222
      %v1287 = vmul.f32 %v838, %v1223
      %v1288 = vmul.f32 %v839, %v1224
      %v1289 = vmul.f32 %v840, %v1225
      %v1290 = vmul.f32 %v841, %v1226
      %v1291 = vmul.f32 %v842, %v1227
      %v1292 = vmul.f32 %v843, %v1228
      %v1293 = vmul.f32 %v844, %v1229
      %v1294 = vmul.f32 %v845, %v1230
      %v1295 = vmul.f32 %v846, %v1231
      %v1296 = vmul.f32 %v847, %v1232
      %v1297 = vmul.f32 %v848, %v1233
      %v1298 = vmul.f32 %v849, %v1234
      %v1299 = vmul.f32 %v850, %v1235
      %v1300 = vmul.f32 %v851, %v1236
      %v1301 = vmul.f32 %v852, %v1237
      %v1302 = vmul.f32 %v853, %v1238
      %v1303 = vmul.f32 %v854, %v1239
      %v1304 = vmul.f32 %v855, %v1240
      %v1305 = vmul.f32 %v856, %v1241
      %v1306 = vmul.f32 %v857, %v1242
      %v1307 = vmul.f32 %v858, %v1243
      %v1308 = vmul.f32 %v859, %v1244
      %v1309 = vmul.f32 %v860, %v1245
      %v1310 = vmul.f32 %v861, %v1246
      %v1311 = vmul.f32 %v862, %v1247
      %v1312 = vmul.f32 %v863, %v1248
      %v1313 = vmul.f32 %v864, %v1249
      %v1314 = vmul.f32 %v865, %v1250
      %v1315 = vmul.f32 %v866, %v1251
      %v1316 = vmul.f32 %v867, %v1252
      %v1317 = vmul.f32 %v868, %v1253
      %v1318 = vmul.f32 %v869, %v1254
      %v1319 = vmul.f32 %v870, %v1255
      %v1320 = vmul.f32 %v871, %v1256
      %v1321 = vmul.f32 %v872, %v1257
      %v1322 = vmul.f32 %v873, %v1258
      %v1323 = vmul.f32 %v874, %v1259
      %v1324 = vmul.f32 %v875, %v1260
      %v1325 = vpack.c.bf16 %v1262, %v1261
      %v1326 = vpack.c.bf16 %v1264, %v1263
      %v1327 = vpack.c.bf16 %v1266, %v1265
      %v1328 = vpack.c.bf16 %v1268, %v1267
      %v1329 = vpack.c.bf16 %v1270, %v1269
      %v1330 = vpack.c.bf16 %v1272, %v1271
      %v1331 = vpack.c.bf16 %v1274, %v1273
      %v1332 = vpack.c.bf16 %v1276, %v1275
      %v1333 = vpack.c.bf16 %v1278, %v1277
      %v1334 = vpack.c.bf16 %v1280, %v1279
      %v1335 = vpack.c.bf16 %v1282, %v1281
      %v1336 = vpack.c.bf16 %v1284, %v1283
      %v1337 = vpack.c.bf16 %v1286, %v1285
      %v1338 = vpack.c.bf16 %v1288, %v1287
      %v1339 = vpack.c.bf16 %v1290, %v1289
      %v1340 = vpack.c.bf16 %v1292, %v1291
      %v1341 = vpack.c.bf16 %v1294, %v1293
      %v1342 = vpack.c.bf16 %v1296, %v1295
      %v1343 = vpack.c.bf16 %v1298, %v1297
      %v1344 = vpack.c.bf16 %v1300, %v1299
      %v1345 = vpack.c.bf16 %v1302, %v1301
      %v1346 = vpack.c.bf16 %v1304, %v1303
      %v1347 = vpack.c.bf16 %v1306, %v1305
      %v1348 = vpack.c.bf16 %v1308, %v1307
      %v1349 = vpack.c.bf16 %v1310, %v1309
      %v1350 = vpack.c.bf16 %v1312, %v1311
      %v1351 = vpack.c.bf16 %v1314, %v1313
      %v1352 = vpack.c.bf16 %v1316, %v1315
      %v1353 = vpack.c.bf16 %v1318, %v1317
      %v1354 = vpack.c.bf16 %v1320, %v1319
      %v1355 = vpack.c.bf16 %v1322, %v1321
      %v1356 = vpack.c.bf16 %v1324, %v1323
      %v1357 = vld [vmem:[%s249] sm:$0xff]
      %v1358 = vld [vmem:[%s249 + $0x8] sm:$0xff]
      %v1359 = vld [vmem:[%s249 + $0x10] sm:$0xff]
      %v1360 = vld [vmem:[%s249 + $0x18] sm:$0xff]
      %v1361 = vld [vmem:[%s249 + $0x20] sm:$0xff]
      %v1362 = vld [vmem:[%s249 + $0x28] sm:$0xff]
      %v1363 = vld [vmem:[%s249 + $0x30] sm:$0xff]
      %v1364 = vld [vmem:[%s249 + $0x38] sm:$0xff]
      %v1365 = vld [vmem:[%s249 + $0x40] sm:$0xff]
      %v1366 = vld [vmem:[%s249 + $0x48] sm:$0xff]
      %v1367 = vld [vmem:[%s249 + $0x50] sm:$0xff]
      %v1368 = vld [vmem:[%s249 + $0x58] sm:$0xff]
      %v1369 = vld [vmem:[%s249 + $0x60] sm:$0xff]
      %v1370 = vld [vmem:[%s249 + $0x68] sm:$0xff]
      %v1371 = vld [vmem:[%s249 + $0x70] sm:$0xff]
      %v1372 = vld [vmem:[%s249 + $0x78] sm:$0xff]
      %v1373 = vmul.f32 %v1357, %v1357
      %v1374 = vmul.f32 %v1358, %v1358
      %v1375 = vmul.f32 %v1359, %v1359
      %v1376 = vmul.f32 %v1360, %v1360
      %v1377 = vmul.f32 %v1361, %v1361
      %v1378 = vmul.f32 %v1362, %v1362
      %v1379 = vmul.f32 %v1363, %v1363
      %v1380 = vmul.f32 %v1364, %v1364
      %v1381 = vmul.f32 %v1365, %v1365
      %v1382 = vmul.f32 %v1366, %v1366
      %v1383 = vmul.f32 %v1367, %v1367
      %v1384 = vmul.f32 %v1368, %v1368
      %v1385 = vmul.f32 %v1369, %v1369
      %v1386 = vmul.f32 %v1370, %v1370
      %v1387 = vmul.f32 %v1371, %v1371
      %v1388 = vmul.f32 %v1372, %v1372
      %v1389 = vadd.f32 %v1373, %v1375
      %v1390 = vadd.f32 %v1389, %v1377
      %v1391 = vadd.f32 %v1390, %v1379
      %v1392 = vrot.slane %v1391, 4
      %v1393 = vadd.f32 %v1391, %v1392
      %v1394 = vrot.slane %v1393, 2
      %v1395 = vadd.f32 %v1393, %v1394
      %v1396 = vrot.slane %v1395, 1
      %v1397 = vadd.f32 %v1395, %v1396
      %v1398 = vadd.f32 %v1374, %v1376
      %v1399 = vadd.f32 %v1398, %v1378
      %v1400 = vadd.f32 %v1399, %v1380
      %v1401 = vrot.slane %v1400, 4
      %v1402 = vadd.f32 %v1400, %v1401
      %v1403 = vrot.slane %v1402, 2
      %v1404 = vadd.f32 %v1402, %v1403
      %v1405 = vrot.slane %v1404, 1
      %v1406 = vadd.f32 %v1404, %v1405
      %v1407 = vadd.f32 %v1381, %v1383
      %v1408 = vadd.f32 %v1407, %v1385
      %v1409 = vadd.f32 %v1408, %v1387
      %v1410 = vrot.slane %v1409, 4
      %v1411 = vadd.f32 %v1409, %v1410
      %v1412 = vrot.slane %v1411, 2
      %v1413 = vadd.f32 %v1411, %v1412
      %v1414 = vrot.slane %v1413, 1
      %v1415 = vadd.f32 %v1413, %v1414
      %v1416 = vadd.f32 %v1382, %v1384
      %v1417 = vadd.f32 %v1416, %v1386
      %v1418 = vadd.f32 %v1417, %v1388
      %v1419 = vrot.slane %v1418, 4
      %v1420 = vadd.f32 %v1418, %v1419
      %v1421 = vrot.slane %v1420, 2
      %v1422 = vadd.f32 %v1420, %v1421
      %v1423 = vrot.slane %v1422, 1
      %v1424 = vadd.f32 %v1422, %v1423
      %v1425 = vmax.f32 %v1397, 1e-20
      %v1426 = vmax.f32 %v1406, 1e-20
      %v1427 = vmax.f32 %v1415, 1e-20
      %v1428 = vmax.f32 %v1424, 1e-20
      %v1429 = vrsqrt.pop %v1425
      %v1430 = vrsqrt.pop %v1426
      %v1431 = vrsqrt.pop %v1427
      %v1432 = vrsqrt.pop %v1428
      %v1433 = vmul.f32 %v1357, %v1429
      %v1434 = vmul.f32 %v1358, %v1430
      %v1435 = vmul.f32 %v1359, %v1429
      %v1436 = vmul.f32 %v1360, %v1430
      %v1437 = vmul.f32 %v1361, %v1429
      %v1438 = vmul.f32 %v1362, %v1430
      %v1439 = vmul.f32 %v1363, %v1429
      %v1440 = vmul.f32 %v1364, %v1430
      %v1441 = vmul.f32 %v1365, %v1431
      %v1442 = vmul.f32 %v1366, %v1432
      %v1443 = vmul.f32 %v1367, %v1431
      %v1444 = vmul.f32 %v1368, %v1432
      %v1445 = vmul.f32 %v1369, %v1431
      %v1446 = vmul.f32 %v1370, %v1432
      %v1447 = vmul.f32 %v1371, %v1431
      %v1448 = vmul.f32 %v1372, %v1432
      %v1449 = vpack.c.bf16 %v1435, %v1433
      %v1450 = vpack.c.bf16 %v1436, %v1434
      %v1451 = vpack.c.bf16 %v1439, %v1437
      %v1452 = vpack.c.bf16 %v1440, %v1438
      %v1453 = vpack.c.bf16 %v1443, %v1441
      %v1454 = vpack.c.bf16 %v1444, %v1442
      %v1455 = vpack.c.bf16 %v1447, %v1445
      %v1456 = vpack.c.bf16 %v1448, %v1446
      %v1457 = vld [vmem:[%s254] sm:$0xff]
      %v1458 = vld [vmem:[%s254 + $0x8] sm:$0xff]
      %v1459 = vld [vmem:[%s254 + $0x10] sm:$0xff]
      %v1460 = vld [vmem:[%s254 + $0x18] sm:$0xff]
      %v1461 = vld [vmem:[%s254 + $0x20] sm:$0xff]
      %v1462 = vld [vmem:[%s254 + $0x28] sm:$0xff]
      %v1463 = vld [vmem:[%s254 + $0x30] sm:$0xff]
      %v1464 = vld [vmem:[%s254 + $0x38] sm:$0xff]
      %v1465 = vmul.f32 %v1457, %v1457
      %v1466 = vmul.f32 %v1458, %v1458
      %v1467 = vmul.f32 %v1459, %v1459
      %v1468 = vmul.f32 %v1460, %v1460
      %v1469 = vmul.f32 %v1461, %v1461
      %v1470 = vmul.f32 %v1462, %v1462
      %v1471 = vmul.f32 %v1463, %v1463
      %v1472 = vmul.f32 %v1464, %v1464
      %v1473 = vadd.f32 %v1465, %v1467
      %v1474 = vrot.slane %v1473, 4
      %v1475 = vadd.f32 %v1473, %v1474
      %v1476 = vrot.slane %v1475, 2
      %v1477 = vadd.f32 %v1475, %v1476
      %v1478 = vrot.slane %v1477, 1
      %v1479 = vadd.f32 %v1477, %v1478
      %v1480 = vadd.f32 %v1466, %v1468
      %v1481 = vrot.slane %v1480, 4
      %v1482 = vadd.f32 %v1480, %v1481
      %v1483 = vrot.slane %v1482, 2
      %v1484 = vadd.f32 %v1482, %v1483
      %v1485 = vrot.slane %v1484, 1
      %v1486 = vadd.f32 %v1484, %v1485
      %v1487 = vadd.f32 %v1469, %v1471
      %v1488 = vrot.slane %v1487, 4
      %v1489 = vadd.f32 %v1487, %v1488
      %v1490 = vrot.slane %v1489, 2
      %v1491 = vadd.f32 %v1489, %v1490
      %v1492 = vrot.slane %v1491, 1
      %v1493 = vadd.f32 %v1491, %v1492
      %v1494 = vadd.f32 %v1470, %v1472
      %v1495 = vrot.slane %v1494, 4
      %v1496 = vadd.f32 %v1494, %v1495
      %v1497 = vrot.slane %v1496, 2
      %v1498 = vadd.f32 %v1496, %v1497
      %v1499 = vrot.slane %v1498, 1
      %v1500 = vadd.f32 %v1498, %v1499
      %v1501 = vmax.f32 %v1479, 1e-20
      %v1502 = vmax.f32 %v1486, 1e-20
      %v1503 = vmax.f32 %v1493, 1e-20
      %v1504 = vmax.f32 %v1500, 1e-20
      %v1505 = vrsqrt.pop %v1501
      %v1506 = vrsqrt.pop %v1502
      %v1507 = vrsqrt.pop %v1503
      %v1508 = vrsqrt.pop %v1504
      %v1509 = vmul.f32 %v1457, %v1505
      %v1510 = vmul.f32 %v1458, %v1506
      %v1511 = vmul.f32 %v1459, %v1505
      %v1512 = vmul.f32 %v1460, %v1506
      %v1513 = vmul.f32 %v1461, %v1507
      %v1514 = vmul.f32 %v1462, %v1508
      %v1515 = vmul.f32 %v1463, %v1507
      %v1516 = vmul.f32 %v1464, %v1508
      %v1517 = vpack.c.bf16 %v1511, %v1509
      %v1518 = vpack.c.bf16 %v1512, %v1510
      %v1519 = vpack.c.bf16 %v1515, %v1513
      %v1520 = vpack.c.bf16 %v1516, %v1514
      %v1522 = vsel %vm395, %v780, 0
      %v1525 = vsel %vm395, %v781, 0
      %v1528 = vsel %vm395, %v782, 0
      %v1531 = vsel %vm395, %v783, 0
      %v1534 = vsel %vm395, %v784, 0
      %v1537 = vsel %vm395, %v785, 0
      %v1540 = vsel %vm395, %v786, 0
      %v1543 = vsel %vm395, %v787, 0
      %v1546 = vsel %vm395, %v788, 0
      %v1549 = vsel %vm395, %v789, 0
      %v1552 = vsel %vm395, %v790, 0
      %v1555 = vsel %vm395, %v791, 0
      %v1558 = vsel %vm395, %v792, 0
      %v1561 = vsel %vm395, %v793, 0
      %v1564 = vsel %vm395, %v794, 0
      %v1567 = vsel %vm395, %v795, 0
      %1569 = vmatprep.subr.bf16.mxu0 %v1450
      %1570 = vmatpush1.bf16.msra.mxu0 %v1449
      %1571 = vmatprep.subr.bf16.mxu0 %v1452
      %1572 = vmatpush1.bf16.msra.mxu0 %v1451
      %1573 = vmatprep.subr.bf16.mxu0 0
      %1574 = vmatpush1.bf16.msra.mxu0 0
      %1575 = vmatprep.subr.bf16.mxu0 0
      %1576 = vmatpush1.bf16.msra.mxu0 0
      %1577 = vmatprep.subr.bf16.mxu0 0
      %1578 = vmatpush1.bf16.msra.mxu0 0
      %1579 = vmatprep.subr.bf16.mxu0 0
      %1580 = vmatpush1.bf16.msra.mxu0 0
      %1581 = vmatprep.subr.bf16.mxu0 0
      %1582 = vmatpush1.bf16.msra.mxu0 0
      %1583 = vmatprep.subr.bf16.mxu0 0
      %1584 = vmatpush1.bf16.msra.mxu0 0
      %1585 = vmatprep.subr.bf16.mxu0 0
      %1586 = vmatpush1.bf16.msra.mxu0 0
      %1587 = vmatprep.subr.bf16.mxu0 0
      %1588 = vmatpush1.bf16.msra.mxu0 0
      %1589 = vmatprep.subr.bf16.mxu0 0
      %1590 = vmatpush1.bf16.msra.mxu0 0
      %1591 = vmatprep.subr.bf16.mxu0 0
      %1592 = vmatpush1.bf16.msra.mxu0 0
      %1593 = vmatprep.subr.bf16.mxu0 0
      %1594 = vmatpush1.bf16.msra.mxu0 0
      %1595 = vmatprep.subr.bf16.mxu0 0
      %1596 = vmatpush1.bf16.msra.mxu0 0
      %1597 = vmatprep.subr.bf16.mxu0 0
      %1598 = vmatpush1.bf16.msra.mxu0 0
      %1599 = vmatprep.subr.bf16.mxu0 0
      %1600 = vmatpush1.bf16.msra.mxu0 0
      %1601 = vmatprep.mubr.bf16.mxu0 0
      %1602 = vmatmul.mubr.bf16.gmra.mrb[0].mxu0 %v1522
      %v1603 = vpop.f32.mrb[0].mxu0
      %v1604 = vadd.f32 0.0, %v1603
      %v1605 = vpop.f32.mrb[0].mxu0
      %v1606 = vadd.f32 0.0, %v1605
      %v1607 = vpop.f32.mrb[0].mxu0
      %v1608 = vadd.f32 0.0, %v1607
      %v1609 = vpop.f32.mrb[0].mxu0
      %v1610 = vadd.f32 0.0, %v1609
      %1611 = vmatprep.mubr.bf16.mxu0 0
      %1612 = vmatmul.mubr.bf16.gmra.mrb[0].mxu0 %v1525
      %v1613 = vpop.f32.mrb[0].mxu0
      %v1614 = vadd.f32 0.0, %v1613
      %v1615 = vpop.f32.mrb[0].mxu0
      %v1616 = vadd.f32 0.0, %v1615
      %v1617 = vpop.f32.mrb[0].mxu0
      %v1618 = vadd.f32 0.0, %v1617
      %v1619 = vpop.f32.mrb[0].mxu0
      %v1620 = vadd.f32 0.0, %v1619
      %1621 = vmatprep.mubr.bf16.mxu0 0
      %1622 = vmatmul.mubr.bf16.gmra.mrb[0].mxu0 %v1528
      %v1623 = vpop.f32.mrb[0].mxu0
      %v1624 = vadd.f32 0.0, %v1623
      %v1625 = vpop.f32.mrb[0].mxu0
      %v1626 = vadd.f32 0.0, %v1625
      %v1627 = vpop.f32.mrb[0].mxu0
      %v1628 = vadd.f32 0.0, %v1627
      %v1629 = vpop.f32.mrb[0].mxu0
      %v1630 = vadd.f32 0.0, %v1629
      %1631 = vmatprep.mubr.bf16.mxu0 0
      %1632 = vmatmul.mubr.bf16.gmra.mrb[0].mxu0 %v1531
      %v1633 = vpop.f32.mrb[0].mxu0
      %v1634 = vadd.f32 0.0, %v1633
      %v1635 = vpop.f32.mrb[0].mxu0
      %v1636 = vadd.f32 0.0, %v1635
      %v1637 = vpop.f32.mrb[0].mxu0
      %v1638 = vadd.f32 0.0, %v1637
      %v1639 = vpop.f32.mrb[0].mxu0
      %v1640 = vadd.f32 0.0, %v1639
      %1641 = vmatprep.mubr.bf16.mxu0 0
      %1642 = vmatmul.mubr.bf16.gmra.mrb[0].mxu0 %v1534
      %v1643 = vpop.f32.mrb[0].mxu0
      %v1644 = vadd.f32 0.0, %v1643
      %v1645 = vpop.f32.mrb[0].mxu0
      %v1646 = vadd.f32 0.0, %v1645
      %v1647 = vpop.f32.mrb[0].mxu0
      %v1648 = vadd.f32 0.0, %v1647
      %v1649 = vpop.f32.mrb[0].mxu0
      %v1650 = vadd.f32 0.0, %v1649
      %1651 = vmatprep.mubr.bf16.mxu0 0
      %1652 = vmatmul.mubr.bf16.gmra.mrb[0].mxu0 %v1537
      %v1653 = vpop.f32.mrb[0].mxu0
      %v1654 = vadd.f32 0.0, %v1653
      %v1655 = vpop.f32.mrb[0].mxu0
      %v1656 = vadd.f32 0.0, %v1655
      %v1657 = vpop.f32.mrb[0].mxu0
      %v1658 = vadd.f32 0.0, %v1657
      %v1659 = vpop.f32.mrb[0].mxu0
      %v1660 = vadd.f32 0.0, %v1659
      %1661 = vmatprep.mubr.bf16.mxu0 0
      %1662 = vmatmul.mubr.bf16.gmra.mrb[0].mxu0 %v1540
      %v1663 = vpop.f32.mrb[0].mxu0
      %v1664 = vadd.f32 0.0, %v1663
      %v1665 = vpop.f32.mrb[0].mxu0
      %v1666 = vadd.f32 0.0, %v1665
      %v1667 = vpop.f32.mrb[0].mxu0
      %v1668 = vadd.f32 0.0, %v1667
      %v1669 = vpop.f32.mrb[0].mxu0
      %v1670 = vadd.f32 0.0, %v1669
      %1671 = vmatprep.mubr.bf16.mxu0 0
      %1672 = vmatmul.mubr.bf16.gmra.mrb[0].mxu0 %v1543
      %v1673 = vpop.f32.mrb[0].mxu0
      %v1674 = vadd.f32 0.0, %v1673
      %v1675 = vpop.f32.mrb[0].mxu0
      %v1676 = vadd.f32 0.0, %v1675
      %v1677 = vpop.f32.mrb[0].mxu0
      %v1678 = vadd.f32 0.0, %v1677
      %v1679 = vpop.f32.mrb[0].mxu0
      %v1680 = vadd.f32 0.0, %v1679
      %1681 = vmatprep.mubr.bf16.mxu0 0
      %1682 = vmatmul.mubr.bf16.gmra.mrb[0].mxu0 %v1546
      %v1683 = vpop.f32.mrb[0].mxu0
      %v1684 = vadd.f32 0.0, %v1683
      %v1685 = vpop.f32.mrb[0].mxu0
      %v1686 = vadd.f32 0.0, %v1685
      %v1687 = vpop.f32.mrb[0].mxu0
      %v1688 = vadd.f32 0.0, %v1687
      %v1689 = vpop.f32.mrb[0].mxu0
      %v1690 = vadd.f32 0.0, %v1689
      %1691 = vmatprep.mubr.bf16.mxu0 0
      %1692 = vmatmul.mubr.bf16.gmra.mrb[0].mxu0 %v1549
      %v1693 = vpop.f32.mrb[0].mxu0
      %v1694 = vadd.f32 0.0, %v1693
      %v1695 = vpop.f32.mrb[0].mxu0
      %v1696 = vadd.f32 0.0, %v1695
      %v1697 = vpop.f32.mrb[0].mxu0
      %v1698 = vadd.f32 0.0, %v1697
      %v1699 = vpop.f32.mrb[0].mxu0
      %v1700 = vadd.f32 0.0, %v1699
      %1701 = vmatprep.mubr.bf16.mxu0 0
      %1702 = vmatmul.mubr.bf16.gmra.mrb[0].mxu0 %v1552
      %v1703 = vpop.f32.mrb[0].mxu0
      %v1704 = vadd.f32 0.0, %v1703
      %v1705 = vpop.f32.mrb[0].mxu0
      %v1706 = vadd.f32 0.0, %v1705
      %v1707 = vpop.f32.mrb[0].mxu0
      %v1708 = vadd.f32 0.0, %v1707
      %v1709 = vpop.f32.mrb[0].mxu0
      %v1710 = vadd.f32 0.0, %v1709
      %1711 = vmatprep.mubr.bf16.mxu0 0
      %1712 = vmatmul.mubr.bf16.gmra.mrb[0].mxu0 %v1555
      %v1713 = vpop.f32.mrb[0].mxu0
      %v1714 = vadd.f32 0.0, %v1713
      %v1715 = vpop.f32.mrb[0].mxu0
      %v1716 = vadd.f32 0.0, %v1715
      %v1717 = vpop.f32.mrb[0].mxu0
      %v1718 = vadd.f32 0.0, %v1717
      %v1719 = vpop.f32.mrb[0].mxu0
      %v1720 = vadd.f32 0.0, %v1719
      %1721 = vmatprep.mubr.bf16.mxu0 0
      %1722 = vmatmul.mubr.bf16.gmra.mrb[0].mxu0 %v1558
      %v1723 = vpop.f32.mrb[0].mxu0
      %v1724 = vadd.f32 0.0, %v1723
      %v1725 = vpop.f32.mrb[0].mxu0
      %v1726 = vadd.f32 0.0, %v1725
      %v1727 = vpop.f32.mrb[0].mxu0
      %v1728 = vadd.f32 0.0, %v1727
      %v1729 = vpop.f32.mrb[0].mxu0
      %v1730 = vadd.f32 0.0, %v1729
      %1731 = vmatprep.mubr.bf16.mxu0 0
      %1732 = vmatmul.mubr.bf16.gmra.mrb[0].mxu0 %v1561
      %v1733 = vpop.f32.mrb[0].mxu0
      %v1734 = vadd.f32 0.0, %v1733
      %v1735 = vpop.f32.mrb[0].mxu0
      %v1736 = vadd.f32 0.0, %v1735
      %v1737 = vpop.f32.mrb[0].mxu0
      %v1738 = vadd.f32 0.0, %v1737
      %v1739 = vpop.f32.mrb[0].mxu0
      %v1740 = vadd.f32 0.0, %v1739
      %1741 = vmatprep.mubr.bf16.mxu0 0
      %1742 = vmatmul.mubr.bf16.gmra.mrb[0].mxu0 %v1564
      %v1743 = vpop.f32.mrb[0].mxu0
      %v1744 = vadd.f32 0.0, %v1743
      %v1745 = vpop.f32.mrb[0].mxu0
      %v1746 = vadd.f32 0.0, %v1745
      %v1747 = vpop.f32.mrb[0].mxu0
      %v1748 = vadd.f32 0.0, %v1747
      %v1749 = vpop.f32.mrb[0].mxu0
      %v1750 = vadd.f32 0.0, %v1749
      %1751 = vmatprep.mubr.bf16.mxu0 0
      %1752 = vmatmul.mubr.bf16.gmra.mrb[0].mxu0 %v1567
      %v1753 = vpop.f32.mrb[0].mxu0
      %v1754 = vadd.f32 0.0, %v1753
      %v1755 = vpop.f32.mrb[0].mxu0
      %v1756 = vadd.f32 0.0, %v1755
      %v1757 = vpop.f32.mrb[0].mxu0
      %v1758 = vadd.f32 0.0, %v1757
      %v1759 = vpop.f32.mrb[0].mxu0
      %v1760 = vadd.f32 0.0, %v1759
      %1761 = vdwg.mxu0
      %v1763 = vsel %vm395, %v796, 0
      %v1766 = vsel %vm395, %v797, 0
      %v1769 = vsel %vm395, %v798, 0
      %v1772 = vsel %vm395, %v799, 0
      %v1775 = vsel %vm395, %v800, 0
      %v1778 = vsel %vm395, %v801, 0
      %v1781 = vsel %vm395, %v802, 0
      %v1784 = vsel %vm395, %v803, 0
      %v1787 = vsel %vm395, %v804, 0
      %v1790 = vsel %vm395, %v805, 0
      %v1793 = vsel %vm395, %v806, 0
      %v1796 = vsel %vm395, %v807, 0
      %v1799 = vsel %vm395, %v808, 0
      %v1802 = vsel %vm395, %v809, 0
      %v1805 = vsel %vm395, %v810, 0
      %v1808 = vsel %vm395, %v811, 0
      %1810 = vmatprep.subr.bf16.mxu0 %v1454
      %1811 = vmatpush1.bf16.msra.mxu0 %v1453
      %1812 = vmatprep.subr.bf16.mxu0 %v1456
      %1813 = vmatpush1.bf16.msra.mxu0 %v1455
      %1814 = vmatprep.subr.bf16.mxu0 0
      %1815 = vmatpush1.bf16.msra.mxu0 0
      %1816 = vmatprep.subr.bf16.mxu0 0
      %1817 = vmatpush1.bf16.msra.mxu0 0
      %1818 = vmatprep.subr.bf16.mxu0 0
      %1819 = vmatpush1.bf16.msra.mxu0 0
      %1820 = vmatprep.subr.bf16.mxu0 0
      %1821 = vmatpush1.bf16.msra.mxu0 0
      %1822 = vmatprep.subr.bf16.mxu0 0
      %1823 = vmatpush1.bf16.msra.mxu0 0
      %1824 = vmatprep.subr.bf16.mxu0 0
      %1825 = vmatpush1.bf16.msra.mxu0 0
      %1826 = vmatprep.subr.bf16.mxu0 0
      %1827 = vmatpush1.bf16.msra.mxu0 0
      %1828 = vmatprep.subr.bf16.mxu0 0
      %1829 = vmatpush1.bf16.msra.mxu0 0
      %1830 = vmatprep.subr.bf16.mxu0 0
      %1831 = vmatpush1.bf16.msra.mxu0 0
      %1832 = vmatprep.subr.bf16.mxu0 0
      %1833 = vmatpush1.bf16.msra.mxu0 0
      %1834 = vmatprep.subr.bf16.mxu0 0
      %1835 = vmatpush1.bf16.msra.mxu0 0
      %1836 = vmatprep.subr.bf16.mxu0 0
      %1837 = vmatpush1.bf16.msra.mxu0 0
      %1838 = vmatprep.subr.bf16.mxu0 0
      %1839 = vmatpush1.bf16.msra.mxu0 0
      %1840 = vmatprep.subr.bf16.mxu0 0
      %1841 = vmatpush1.bf16.msra.mxu0 0
      %1842 = vmatprep.mubr.bf16.mxu0 0
      %1843 = vmatmul.mubr.bf16.gmra.mrb[0].mxu0 %v1763
      %v1844 = vpop.f32.mrb[0].mxu0
      %v1845 = vadd.f32 0.0, %v1844
      %v1846 = vpop.f32.mrb[0].mxu0
      %v1847 = vadd.f32 0.0, %v1846
      %v1848 = vpop.f32.mrb[0].mxu0
      %v1849 = vadd.f32 0.0, %v1848
      %v1850 = vpop.f32.mrb[0].mxu0
      %v1851 = vadd.f32 0.0, %v1850
      %1852 = vmatprep.mubr.bf16.mxu0 0
      %1853 = vmatmul.mubr.bf16.gmra.mrb[0].mxu0 %v1766
      %v1854 = vpop.f32.mrb[0].mxu0
      %v1855 = vadd.f32 0.0, %v1854
      %v1856 = vpop.f32.mrb[0].mxu0
      %v1857 = vadd.f32 0.0, %v1856
      %v1858 = vpop.f32.mrb[0].mxu0
      %v1859 = vadd.f32 0.0, %v1858
      %v1860 = vpop.f32.mrb[0].mxu0
      %v1861 = vadd.f32 0.0, %v1860
      %1862 = vmatprep.mubr.bf16.mxu0 0
      %1863 = vmatmul.mubr.bf16.gmra.mrb[0].mxu0 %v1769
      %v1864 = vpop.f32.mrb[0].mxu0
      %v1865 = vadd.f32 0.0, %v1864
      %v1866 = vpop.f32.mrb[0].mxu0
      %v1867 = vadd.f32 0.0, %v1866
      %v1868 = vpop.f32.mrb[0].mxu0
      %v1869 = vadd.f32 0.0, %v1868
      %v1870 = vpop.f32.mrb[0].mxu0
      %v1871 = vadd.f32 0.0, %v1870
      %1872 = vmatprep.mubr.bf16.mxu0 0
      %1873 = vmatmul.mubr.bf16.gmra.mrb[0].mxu0 %v1772
      %v1874 = vpop.f32.mrb[0].mxu0
      %v1875 = vadd.f32 0.0, %v1874
      %v1876 = vpop.f32.mrb[0].mxu0
      %v1877 = vadd.f32 0.0, %v1876
      %v1878 = vpop.f32.mrb[0].mxu0
      %v1879 = vadd.f32 0.0, %v1878
      %v1880 = vpop.f32.mrb[0].mxu0
      %v1881 = vadd.f32 0.0, %v1880
      %1882 = vmatprep.mubr.bf16.mxu0 0
      %1883 = vmatmul.mubr.bf16.gmra.mrb[0].mxu0 %v1775
      %v1884 = vpop.f32.mrb[0].mxu0
      %v1885 = vadd.f32 0.0, %v1884
      %v1886 = vpop.f32.mrb[0].mxu0
      %v1887 = vadd.f32 0.0, %v1886
      %v1888 = vpop.f32.mrb[0].mxu0
      %v1889 = vadd.f32 0.0, %v1888
      %v1890 = vpop.f32.mrb[0].mxu0
      %v1891 = vadd.f32 0.0, %v1890
      %1892 = vmatprep.mubr.bf16.mxu0 0
      %1893 = vmatmul.mubr.bf16.gmra.mrb[0].mxu0 %v1778
      %v1894 = vpop.f32.mrb[0].mxu0
      %v1895 = vadd.f32 0.0, %v1894
      %v1896 = vpop.f32.mrb[0].mxu0
      %v1897 = vadd.f32 0.0, %v1896
      %v1898 = vpop.f32.mrb[0].mxu0
      %v1899 = vadd.f32 0.0, %v1898
      %v1900 = vpop.f32.mrb[0].mxu0
      %v1901 = vadd.f32 0.0, %v1900
      %1902 = vmatprep.mubr.bf16.mxu0 0
      %1903 = vmatmul.mubr.bf16.gmra.mrb[0].mxu0 %v1781
      %v1904 = vpop.f32.mrb[0].mxu0
      %v1905 = vadd.f32 0.0, %v1904
      %v1906 = vpop.f32.mrb[0].mxu0
      %v1907 = vadd.f32 0.0, %v1906
      %v1908 = vpop.f32.mrb[0].mxu0
      %v1909 = vadd.f32 0.0, %v1908
      %v1910 = vpop.f32.mrb[0].mxu0
      %v1911 = vadd.f32 0.0, %v1910
      %1912 = vmatprep.mubr.bf16.mxu0 0
      %1913 = vmatmul.mubr.bf16.gmra.mrb[0].mxu0 %v1784
      %v1914 = vpop.f32.mrb[0].mxu0
      %v1915 = vadd.f32 0.0, %v1914
      %v1916 = vpop.f32.mrb[0].mxu0
      %v1917 = vadd.f32 0.0, %v1916
      %v1918 = vpop.f32.mrb[0].mxu0
      %v1919 = vadd.f32 0.0, %v1918
      %v1920 = vpop.f32.mrb[0].mxu0
      %v1921 = vadd.f32 0.0, %v1920
      %1922 = vmatprep.mubr.bf16.mxu0 0
      %1923 = vmatmul.mubr.bf16.gmra.mrb[0].mxu0 %v1787
      %v1924 = vpop.f32.mrb[0].mxu0
      %v1925 = vadd.f32 0.0, %v1924
      %v1926 = vpop.f32.mrb[0].mxu0
      %v1927 = vadd.f32 0.0, %v1926
      %v1928 = vpop.f32.mrb[0].mxu0
      %v1929 = vadd.f32 0.0, %v1928
      %v1930 = vpop.f32.mrb[0].mxu0
      %v1931 = vadd.f32 0.0, %v1930
      %1932 = vmatprep.mubr.bf16.mxu0 0
      %1933 = vmatmul.mubr.bf16.gmra.mrb[0].mxu0 %v1790
      %v1934 = vpop.f32.mrb[0].mxu0
      %v1935 = vadd.f32 0.0, %v1934
      %v1936 = vpop.f32.mrb[0].mxu0
      %v1937 = vadd.f32 0.0, %v1936
      %v1938 = vpop.f32.mrb[0].mxu0
      %v1939 = vadd.f32 0.0, %v1938
      %v1940 = vpop.f32.mrb[0].mxu0
      %v1941 = vadd.f32 0.0, %v1940
      %1942 = vmatprep.mubr.bf16.mxu0 0
      %1943 = vmatmul.mubr.bf16.gmra.mrb[0].mxu0 %v1793
      %v1944 = vpop.f32.mrb[0].mxu0
      %v1945 = vadd.f32 0.0, %v1944
      %v1946 = vpop.f32.mrb[0].mxu0
      %v1947 = vadd.f32 0.0, %v1946
      %v1948 = vpop.f32.mrb[0].mxu0
      %v1949 = vadd.f32 0.0, %v1948
      %v1950 = vpop.f32.mrb[0].mxu0
      %v1951 = vadd.f32 0.0, %v1950
      %1952 = vmatprep.mubr.bf16.mxu0 0
      %1953 = vmatmul.mubr.bf16.gmra.mrb[0].mxu0 %v1796
      %v1954 = vpop.f32.mrb[0].mxu0
      %v1955 = vadd.f32 0.0, %v1954
      %v1956 = vpop.f32.mrb[0].mxu0
      %v1957 = vadd.f32 0.0, %v1956
      %v1958 = vpop.f32.mrb[0].mxu0
      %v1959 = vadd.f32 0.0, %v1958
      %v1960 = vpop.f32.mrb[0].mxu0
      %v1961 = vadd.f32 0.0, %v1960
      %1962 = vmatprep.mubr.bf16.mxu0 0
      %1963 = vmatmul.mubr.bf16.gmra.mrb[0].mxu0 %v1799
      %v1964 = vpop.f32.mrb[0].mxu0
      %v1965 = vadd.f32 0.0, %v1964
      %v1966 = vpop.f32.mrb[0].mxu0
      %v1967 = vadd.f32 0.0, %v1966
      %v1968 = vpop.f32.mrb[0].mxu0
      %v1969 = vadd.f32 0.0, %v1968
      %v1970 = vpop.f32.mrb[0].mxu0
      %v1971 = vadd.f32 0.0, %v1970
      %1972 = vmatprep.mubr.bf16.mxu0 0
      %1973 = vmatmul.mubr.bf16.gmra.mrb[0].mxu0 %v1802
      %v1974 = vpop.f32.mrb[0].mxu0
      %v1975 = vadd.f32 0.0, %v1974
      %v1976 = vpop.f32.mrb[0].mxu0
      %v1977 = vadd.f32 0.0, %v1976
      %v1978 = vpop.f32.mrb[0].mxu0
      %v1979 = vadd.f32 0.0, %v1978
      %v1980 = vpop.f32.mrb[0].mxu0
      %v1981 = vadd.f32 0.0, %v1980
      %1982 = vmatprep.mubr.bf16.mxu0 0
      %1983 = vmatmul.mubr.bf16.gmra.mrb[0].mxu0 %v1805
      %v1984 = vpop.f32.mrb[0].mxu0
      %v1985 = vadd.f32 0.0, %v1984
      %v1986 = vpop.f32.mrb[0].mxu0
      %v1987 = vadd.f32 0.0, %v1986
      %v1988 = vpop.f32.mrb[0].mxu0
      %v1989 = vadd.f32 0.0, %v1988
      %v1990 = vpop.f32.mrb[0].mxu0
      %v1991 = vadd.f32 0.0, %v1990
      %1992 = vmatprep.mubr.bf16.mxu0 0
      %1993 = vmatmul.mubr.bf16.gmra.mrb[0].mxu0 %v1808
      %v1994 = vpop.f32.mrb[0].mxu0
      %v1995 = vadd.f32 0.0, %v1994
      %v1996 = vpop.f32.mrb[0].mxu0
      %v1997 = vadd.f32 0.0, %v1996
      %v1998 = vpop.f32.mrb[0].mxu0
      %v1999 = vadd.f32 0.0, %v1998
      %v2000 = vpop.f32.mrb[0].mxu0
      %v2001 = vadd.f32 0.0, %v2000
      %2002 = vdwg.mxu0
      %v2004 = vsel %vm940, %v1325, 0
      %v2007 = vsel %vm940, %v1326, 0
      %v2010 = vsel %vm940, %v1327, 0
      %v2013 = vsel %vm940, %v1328, 0
      %v2016 = vsel %vm940, %v1329, 0
      %v2019 = vsel %vm940, %v1330, 0
      %v2022 = vsel %vm940, %v1331, 0
      %v2025 = vsel %vm940, %v1332, 0
      %v2028 = vsel %vm940, %v1333, 0
      %v2031 = vsel %vm940, %v1334, 0
      %v2034 = vsel %vm940, %v1335, 0
      %v2037 = vsel %vm940, %v1336, 0
      %v2040 = vsel %vm940, %v1337, 0
      %v2043 = vsel %vm940, %v1338, 0
      %v2046 = vsel %vm940, %v1339, 0
      %v2049 = vsel %vm940, %v1340, 0
      %2051 = vmatprep.subr.bf16.mxu0 %v1518
      %2052 = vmatpush1.bf16.msra.mxu0 %v1517
      %2053 = vmatprep.subr.bf16.mxu0 0
      %2054 = vmatpush1.bf16.msra.mxu0 0
      %2055 = vmatprep.subr.bf16.mxu0 0
      %2056 = vmatpush1.bf16.msra.mxu0 0
      %2057 = vmatprep.subr.bf16.mxu0 0
      %2058 = vmatpush1.bf16.msra.mxu0 0
      %2059 = vmatprep.subr.bf16.mxu0 0
      %2060 = vmatpush1.bf16.msra.mxu0 0
      %2061 = vmatprep.subr.bf16.mxu0 0
      %2062 = vmatpush1.bf16.msra.mxu0 0
      %2063 = vmatprep.subr.bf16.mxu0 0
      %2064 = vmatpush1.bf16.msra.mxu0 0
      %2065 = vmatprep.subr.bf16.mxu0 0
      %2066 = vmatpush1.bf16.msra.mxu0 0
      %2067 = vmatprep.subr.bf16.mxu0 0
      %2068 = vmatpush1.bf16.msra.mxu0 0
      %2069 = vmatprep.subr.bf16.mxu0 0
      %2070 = vmatpush1.bf16.msra.mxu0 0
      %2071 = vmatprep.subr.bf16.mxu0 0
      %2072 = vmatpush1.bf16.msra.mxu0 0
      %2073 = vmatprep.subr.bf16.mxu0 0
      %2074 = vmatpush1.bf16.msra.mxu0 0
      %2075 = vmatprep.subr.bf16.mxu0 0
      %2076 = vmatpush1.bf16.msra.mxu0 0
      %2077 = vmatprep.subr.bf16.mxu0 0
      %2078 = vmatpush1.bf16.msra.mxu0 0
      %2079 = vmatprep.subr.bf16.mxu0 0
      %2080 = vmatpush1.bf16.msra.mxu0 0
      %2081 = vmatprep.subr.bf16.mxu0 0
      %2082 = vmatpush1.bf16.msra.mxu0 0
      %2083 = vmatprep.mubr.bf16.mxu0 0
      %2084 = vmatmul.mubr.bf16.gmra.mrb[0].mxu0 %v2004
      %v2085 = vpop.f32.mrb[0].mxu0
      %v2086 = vadd.f32 0.0, %v2085
      %v2087 = vpop.f32.mrb[0].mxu0
      %v2088 = vadd.f32 0.0, %v2087
      %v2089 = vpop.f32.mrb[0].mxu0
      %v2090 = vadd.f32 0.0, %v2089
      %v2091 = vpop.f32.mrb[0].mxu0
      %v2092 = vadd.f32 0.0, %v2091
      %2093 = vmatprep.mubr.bf16.mxu0 0
      %2094 = vmatmul.mubr.bf16.gmra.mrb[0].mxu0 %v2007
      %v2095 = vpop.f32.mrb[0].mxu0
      %v2096 = vadd.f32 0.0, %v2095
      %v2097 = vpop.f32.mrb[0].mxu0
      %v2098 = vadd.f32 0.0, %v2097
      %v2099 = vpop.f32.mrb[0].mxu0
      %v2100 = vadd.f32 0.0, %v2099
      %v2101 = vpop.f32.mrb[0].mxu0
      %v2102 = vadd.f32 0.0, %v2101
      %2103 = vmatprep.mubr.bf16.mxu0 0
      %2104 = vmatmul.mubr.bf16.gmra.mrb[0].mxu0 %v2010
      %v2105 = vpop.f32.mrb[0].mxu0
      %v2106 = vadd.f32 0.0, %v2105
      %v2107 = vpop.f32.mrb[0].mxu0
      %v2108 = vadd.f32 0.0, %v2107
      %v2109 = vpop.f32.mrb[0].mxu0
      %v2110 = vadd.f32 0.0, %v2109
      %v2111 = vpop.f32.mrb[0].mxu0
      %v2112 = vadd.f32 0.0, %v2111
      %2113 = vmatprep.mubr.bf16.mxu0 0
      %2114 = vmatmul.mubr.bf16.gmra.mrb[0].mxu0 %v2013
      %v2115 = vpop.f32.mrb[0].mxu0
      %v2116 = vadd.f32 0.0, %v2115
      %v2117 = vpop.f32.mrb[0].mxu0
      %v2118 = vadd.f32 0.0, %v2117
      %v2119 = vpop.f32.mrb[0].mxu0
      %v2120 = vadd.f32 0.0, %v2119
      %v2121 = vpop.f32.mrb[0].mxu0
      %v2122 = vadd.f32 0.0, %v2121
      %2123 = vmatprep.mubr.bf16.mxu0 0
      %2124 = vmatmul.mubr.bf16.gmra.mrb[0].mxu0 %v2016
      %v2125 = vpop.f32.mrb[0].mxu0
      %v2126 = vadd.f32 0.0, %v2125
      %v2127 = vpop.f32.mrb[0].mxu0
      %v2128 = vadd.f32 0.0, %v2127
      %v2129 = vpop.f32.mrb[0].mxu0
      %v2130 = vadd.f32 0.0, %v2129
      %v2131 = vpop.f32.mrb[0].mxu0
      %v2132 = vadd.f32 0.0, %v2131
      %2133 = vmatprep.mubr.bf16.mxu0 0
      %2134 = vmatmul.mubr.bf16.gmra.mrb[0].mxu0 %v2019
      %v2135 = vpop.f32.mrb[0].mxu0
      %v2136 = vadd.f32 0.0, %v2135
      %v2137 = vpop.f32.mrb[0].mxu0
      %v2138 = vadd.f32 0.0, %v2137
      %v2139 = vpop.f32.mrb[0].mxu0
      %v2140 = vadd.f32 0.0, %v2139
      %v2141 = vpop.f32.mrb[0].mxu0
      %v2142 = vadd.f32 0.0, %v2141
      %2143 = vmatprep.mubr.bf16.mxu0 0
      %2144 = vmatmul.mubr.bf16.gmra.mrb[0].mxu0 %v2022
      %v2145 = vpop.f32.mrb[0].mxu0
      %v2146 = vadd.f32 0.0, %v2145
      %v2147 = vpop.f32.mrb[0].mxu0
      %v2148 = vadd.f32 0.0, %v2147
      %v2149 = vpop.f32.mrb[0].mxu0
      %v2150 = vadd.f32 0.0, %v2149
      %v2151 = vpop.f32.mrb[0].mxu0
      %v2152 = vadd.f32 0.0, %v2151
      %2153 = vmatprep.mubr.bf16.mxu0 0
      %2154 = vmatmul.mubr.bf16.gmra.mrb[0].mxu0 %v2025
      %v2155 = vpop.f32.mrb[0].mxu0
      %v2156 = vadd.f32 0.0, %v2155
      %v2157 = vpop.f32.mrb[0].mxu0
      %v2158 = vadd.f32 0.0, %v2157
      %v2159 = vpop.f32.mrb[0].mxu0
      %v2160 = vadd.f32 0.0, %v2159
      %v2161 = vpop.f32.mrb[0].mxu0
      %v2162 = vadd.f32 0.0, %v2161
      %2163 = vmatprep.mubr.bf16.mxu0 0
      %2164 = vmatmul.mubr.bf16.gmra.mrb[0].mxu0 %v2028
      %v2165 = vpop.f32.mrb[0].mxu0
      %v2166 = vadd.f32 0.0, %v2165
      %v2167 = vpop.f32.mrb[0].mxu0
      %v2168 = vadd.f32 0.0, %v2167
      %v2169 = vpop.f32.mrb[0].mxu0
      %v2170 = vadd.f32 0.0, %v2169
      %v2171 = vpop.f32.mrb[0].mxu0
      %v2172 = vadd.f32 0.0, %v2171
      %2173 = vmatprep.mubr.bf16.mxu0 0
      %2174 = vmatmul.mubr.bf16.gmra.mrb[0].mxu0 %v2031
      %v2175 = vpop.f32.mrb[0].mxu0
      %v2176 = vadd.f32 0.0, %v2175
      %v2177 = vpop.f32.mrb[0].mxu0
      %v2178 = vadd.f32 0.0, %v2177
      %v2179 = vpop.f32.mrb[0].mxu0
      %v2180 = vadd.f32 0.0, %v2179
      %v2181 = vpop.f32.mrb[0].mxu0
      %v2182 = vadd.f32 0.0, %v2181
      %2183 = vmatprep.mubr.bf16.mxu0 0
      %2184 = vmatmul.mubr.bf16.gmra.mrb[0].mxu0 %v2034
      %v2185 = vpop.f32.mrb[0].mxu0
      %v2186 = vadd.f32 0.0, %v2185
      %v2187 = vpop.f32.mrb[0].mxu0
      %v2188 = vadd.f32 0.0, %v2187
      %v2189 = vpop.f32.mrb[0].mxu0
      %v2190 = vadd.f32 0.0, %v2189
      %v2191 = vpop.f32.mrb[0].mxu0
      %v2192 = vadd.f32 0.0, %v2191
      %2193 = vmatprep.mubr.bf16.mxu0 0
      %2194 = vmatmul.mubr.bf16.gmra.mrb[0].mxu0 %v2037
      %v2195 = vpop.f32.mrb[0].mxu0
      %v2196 = vadd.f32 0.0, %v2195
      %v2197 = vpop.f32.mrb[0].mxu0
      %v2198 = vadd.f32 0.0, %v2197
      %v2199 = vpop.f32.mrb[0].mxu0
      %v2200 = vadd.f32 0.0, %v2199
      %v2201 = vpop.f32.mrb[0].mxu0
      %v2202 = vadd.f32 0.0, %v2201
      %2203 = vmatprep.mubr.bf16.mxu0 0
      %2204 = vmatmul.mubr.bf16.gmra.mrb[0].mxu0 %v2040
      %v2205 = vpop.f32.mrb[0].mxu0
      %v2206 = vadd.f32 0.0, %v2205
      %v2207 = vpop.f32.mrb[0].mxu0
      %v2208 = vadd.f32 0.0, %v2207
      %v2209 = vpop.f32.mrb[0].mxu0
      %v2210 = vadd.f32 0.0, %v2209
      %v2211 = vpop.f32.mrb[0].mxu0
      %v2212 = vadd.f32 0.0, %v2211
      %2213 = vmatprep.mubr.bf16.mxu0 0
      %2214 = vmatmul.mubr.bf16.gmra.mrb[0].mxu0 %v2043
      %v2215 = vpop.f32.mrb[0].mxu0
      %v2216 = vadd.f32 0.0, %v2215
      %v2217 = vpop.f32.mrb[0].mxu0
      %v2218 = vadd.f32 0.0, %v2217
      %v2219 = vpop.f32.mrb[0].mxu0
      %v2220 = vadd.f32 0.0, %v2219
      %v2221 = vpop.f32.mrb[0].mxu0
      %v2222 = vadd.f32 0.0, %v2221
      %2223 = vmatprep.mubr.bf16.mxu0 0
      %2224 = vmatmul.mubr.bf16.gmra.mrb[0].mxu0 %v2046
      %v2225 = vpop.f32.mrb[0].mxu0
      %v2226 = vadd.f32 0.0, %v2225
      %v2227 = vpop.f32.mrb[0].mxu0
      %v2228 = vadd.f32 0.0, %v2227
      %v2229 = vpop.f32.mrb[0].mxu0
      %v2230 = vadd.f32 0.0, %v2229
      %v2231 = vpop.f32.mrb[0].mxu0
      %v2232 = vadd.f32 0.0, %v2231
      %2233 = vmatprep.mubr.bf16.mxu0 0
      %2234 = vmatmul.mubr.bf16.gmra.mrb[0].mxu0 %v2049
      %v2235 = vpop.f32.mrb[0].mxu0
      %v2236 = vadd.f32 0.0, %v2235
      %v2237 = vpop.f32.mrb[0].mxu0
      %v2238 = vadd.f32 0.0, %v2237
      %v2239 = vpop.f32.mrb[0].mxu0
      %v2240 = vadd.f32 0.0, %v2239
      %v2241 = vpop.f32.mrb[0].mxu0
      %v2242 = vadd.f32 0.0, %v2241
      %2243 = vdwg.mxu0
      %v2245 = vsel %vm940, %v1341, 0
      %v2248 = vsel %vm940, %v1342, 0
      %v2251 = vsel %vm940, %v1343, 0
      %v2254 = vsel %vm940, %v1344, 0
      %v2257 = vsel %vm940, %v1345, 0
      %v2260 = vsel %vm940, %v1346, 0
      %v2263 = vsel %vm940, %v1347, 0
      %v2266 = vsel %vm940, %v1348, 0
      %v2269 = vsel %vm940, %v1349, 0
      %v2272 = vsel %vm940, %v1350, 0
      %v2275 = vsel %vm940, %v1351, 0
      %v2278 = vsel %vm940, %v1352, 0
      %v2281 = vsel %vm940, %v1353, 0
      %v2284 = vsel %vm940, %v1354, 0
      %v2287 = vsel %vm940, %v1355, 0
      %v2290 = vsel %vm940, %v1356, 0
      %2292 = vmatprep.subr.bf16.mxu0 %v1520
      %2293 = vmatpush1.bf16.msra.mxu0 %v1519
      %2294 = vmatprep.subr.bf16.mxu0 0
      %2295 = vmatpush1.bf16.msra.mxu0 0
      %2296 = vmatprep.subr.bf16.mxu0 0
      %2297 = vmatpush1.bf16.msra.mxu0 0
      %2298 = vmatprep.subr.bf16.mxu0 0
      %2299 = vmatpush1.bf16.msra.mxu0 0
      %2300 = vmatprep.subr.bf16.mxu0 0
      %2301 = vmatpush1.bf16.msra.mxu0 0
      %2302 = vmatprep.subr.bf16.mxu0 0
      %2303 = vmatpush1.bf16.msra.mxu0 0
      %2304 = vmatprep.subr.bf16.mxu0 0
      %2305 = vmatpush1.bf16.msra.mxu0 0
      %2306 = vmatprep.subr.bf16.mxu0 0
      %2307 = vmatpush1.bf16.msra.mxu0 0
      %2308 = vmatprep.subr.bf16.mxu0 0
      %2309 = vmatpush1.bf16.msra.mxu0 0
      %2310 = vmatprep.subr.bf16.mxu0 0
      %2311 = vmatpush1.bf16.msra.mxu0 0
      %2312 = vmatprep.subr.bf16.mxu0 0
      %2313 = vmatpush1.bf16.msra.mxu0 0
      %2314 = vmatprep.subr.bf16.mxu0 0
      %2315 = vmatpush1.bf16.msra.mxu0 0
      %2316 = vmatprep.subr.bf16.mxu0 0
      %2317 = vmatpush1.bf16.msra.mxu0 0
      %2318 = vmatprep.subr.bf16.mxu0 0
      %2319 = vmatpush1.bf16.msra.mxu0 0
      %2320 = vmatprep.subr.bf16.mxu0 0
      %2321 = vmatpush1.bf16.msra.mxu0 0
      %2322 = vmatprep.subr.bf16.mxu0 0
      %2323 = vmatpush1.bf16.msra.mxu0 0
      %2324 = vmatprep.mubr.bf16.mxu0 0
      %2325 = vmatmul.mubr.bf16.gmra.mrb[0].mxu0 %v2245
      %v2326 = vpop.f32.mrb[0].mxu0
      %v2327 = vadd.f32 0.0, %v2326
      %v2328 = vpop.f32.mrb[0].mxu0
      %v2329 = vadd.f32 0.0, %v2328
      %v2330 = vpop.f32.mrb[0].mxu0
      %v2331 = vadd.f32 0.0, %v2330
      %v2332 = vpop.f32.mrb[0].mxu0
      %v2333 = vadd.f32 0.0, %v2332
      %2334 = vmatprep.mubr.bf16.mxu0 0
      %2335 = vmatmul.mubr.bf16.gmra.mrb[0].mxu0 %v2248
      %v2336 = vpop.f32.mrb[0].mxu0
      %v2337 = vadd.f32 0.0, %v2336
      %v2338 = vpop.f32.mrb[0].mxu0
      %v2339 = vadd.f32 0.0, %v2338
      %v2340 = vpop.f32.mrb[0].mxu0
      %v2341 = vadd.f32 0.0, %v2340
      %v2342 = vpop.f32.mrb[0].mxu0
      %v2343 = vadd.f32 0.0, %v2342
      %2344 = vmatprep.mubr.bf16.mxu0 0
      %2345 = vmatmul.mubr.bf16.gmra.mrb[0].mxu0 %v2251
      %v2346 = vpop.f32.mrb[0].mxu0
      %v2347 = vadd.f32 0.0, %v2346
      %v2348 = vpop.f32.mrb[0].mxu0
      %v2349 = vadd.f32 0.0, %v2348
      %v2350 = vpop.f32.mrb[0].mxu0
      %v2351 = vadd.f32 0.0, %v2350
      %v2352 = vpop.f32.mrb[0].mxu0
      %v2353 = vadd.f32 0.0, %v2352
      %2354 = vmatprep.mubr.bf16.mxu0 0
      %2355 = vmatmul.mubr.bf16.gmra.mrb[0].mxu0 %v2254
      %v2356 = vpop.f32.mrb[0].mxu0
      %v2357 = vadd.f32 0.0, %v2356
      %v2358 = vpop.f32.mrb[0].mxu0
      %v2359 = vadd.f32 0.0, %v2358
      %v2360 = vpop.f32.mrb[0].mxu0
      %v2361 = vadd.f32 0.0, %v2360
      %v2362 = vpop.f32.mrb[0].mxu0
      %v2363 = vadd.f32 0.0, %v2362
      %2364 = vmatprep.mubr.bf16.mxu0 0
      %2365 = vmatmul.mubr.bf16.gmra.mrb[0].mxu0 %v2257
      %v2366 = vpop.f32.mrb[0].mxu0
      %v2367 = vadd.f32 0.0, %v2366
      %v2368 = vpop.f32.mrb[0].mxu0
      %v2369 = vadd.f32 0.0, %v2368
      %v2370 = vpop.f32.mrb[0].mxu0
      %v2371 = vadd.f32 0.0, %v2370
      %v2372 = vpop.f32.mrb[0].mxu0
      %v2373 = vadd.f32 0.0, %v2372
      %2374 = vmatprep.mubr.bf16.mxu0 0
      %2375 = vmatmul.mubr.bf16.gmra.mrb[0].mxu0 %v2260
      %v2376 = vpop.f32.mrb[0].mxu0
      %v2377 = vadd.f32 0.0, %v2376
      %v2378 = vpop.f32.mrb[0].mxu0
      %v2379 = vadd.f32 0.0, %v2378
      %v2380 = vpop.f32.mrb[0].mxu0
      %v2381 = vadd.f32 0.0, %v2380
      %v2382 = vpop.f32.mrb[0].mxu0
      %v2383 = vadd.f32 0.0, %v2382
      %2384 = vmatprep.mubr.bf16.mxu0 0
      %2385 = vmatmul.mubr.bf16.gmra.mrb[0].mxu0 %v2263
      %v2386 = vpop.f32.mrb[0].mxu0
      %v2387 = vadd.f32 0.0, %v2386
      %v2388 = vpop.f32.mrb[0].mxu0
      %v2389 = vadd.f32 0.0, %v2388
      %v2390 = vpop.f32.mrb[0].mxu0
      %v2391 = vadd.f32 0.0, %v2390
      %v2392 = vpop.f32.mrb[0].mxu0
      %v2393 = vadd.f32 0.0, %v2392
      %2394 = vmatprep.mubr.bf16.mxu0 0
      %2395 = vmatmul.mubr.bf16.gmra.mrb[0].mxu0 %v2266
      %v2396 = vpop.f32.mrb[0].mxu0
      %v2397 = vadd.f32 0.0, %v2396
      %v2398 = vpop.f32.mrb[0].mxu0
      %v2399 = vadd.f32 0.0, %v2398
      %v2400 = vpop.f32.mrb[0].mxu0
      %v2401 = vadd.f32 0.0, %v2400
      %v2402 = vpop.f32.mrb[0].mxu0
      %v2403 = vadd.f32 0.0, %v2402
      %2404 = vmatprep.mubr.bf16.mxu0 0
      %2405 = vmatmul.mubr.bf16.gmra.mrb[0].mxu0 %v2269
      %v2406 = vpop.f32.mrb[0].mxu0
      %v2407 = vadd.f32 0.0, %v2406
      %v2408 = vpop.f32.mrb[0].mxu0
      %v2409 = vadd.f32 0.0, %v2408
      %v2410 = vpop.f32.mrb[0].mxu0
      %v2411 = vadd.f32 0.0, %v2410
      %v2412 = vpop.f32.mrb[0].mxu0
      %v2413 = vadd.f32 0.0, %v2412
      %2414 = vmatprep.mubr.bf16.mxu0 0
      %2415 = vmatmul.mubr.bf16.gmra.mrb[0].mxu0 %v2272
      %v2416 = vpop.f32.mrb[0].mxu0
      %v2417 = vadd.f32 0.0, %v2416
      %v2418 = vpop.f32.mrb[0].mxu0
      %v2419 = vadd.f32 0.0, %v2418
      %v2420 = vpop.f32.mrb[0].mxu0
      %v2421 = vadd.f32 0.0, %v2420
      %v2422 = vpop.f32.mrb[0].mxu0
      %v2423 = vadd.f32 0.0, %v2422
      %2424 = vmatprep.mubr.bf16.mxu0 0
      %2425 = vmatmul.mubr.bf16.gmra.mrb[0].mxu0 %v2275
      %v2426 = vpop.f32.mrb[0].mxu0
      %v2427 = vadd.f32 0.0, %v2426
      %v2428 = vpop.f32.mrb[0].mxu0
      %v2429 = vadd.f32 0.0, %v2428
      %v2430 = vpop.f32.mrb[0].mxu0
      %v2431 = vadd.f32 0.0, %v2430
      %v2432 = vpop.f32.mrb[0].mxu0
      %v2433 = vadd.f32 0.0, %v2432
      %2434 = vmatprep.mubr.bf16.mxu0 0
      %2435 = vmatmul.mubr.bf16.gmra.mrb[0].mxu0 %v2278
      %v2436 = vpop.f32.mrb[0].mxu0
      %v2437 = vadd.f32 0.0, %v2436
      %v2438 = vpop.f32.mrb[0].mxu0
      %v2439 = vadd.f32 0.0, %v2438
      %v2440 = vpop.f32.mrb[0].mxu0
      %v2441 = vadd.f32 0.0, %v2440
      %v2442 = vpop.f32.mrb[0].mxu0
      %v2443 = vadd.f32 0.0, %v2442
      %2444 = vmatprep.mubr.bf16.mxu0 0
      %2445 = vmatmul.mubr.bf16.gmra.mrb[0].mxu0 %v2281
      %v2446 = vpop.f32.mrb[0].mxu0
      %v2447 = vadd.f32 0.0, %v2446
      %v2448 = vpop.f32.mrb[0].mxu0
      %v2449 = vadd.f32 0.0, %v2448
      %v2450 = vpop.f32.mrb[0].mxu0
      %v2451 = vadd.f32 0.0, %v2450
      %v2452 = vpop.f32.mrb[0].mxu0
      %v2453 = vadd.f32 0.0, %v2452
      %2454 = vmatprep.mubr.bf16.mxu0 0
      %2455 = vmatmul.mubr.bf16.gmra.mrb[0].mxu0 %v2284
      %v2456 = vpop.f32.mrb[0].mxu0
      %v2457 = vadd.f32 0.0, %v2456
      %v2458 = vpop.f32.mrb[0].mxu0
      %v2459 = vadd.f32 0.0, %v2458
      %v2460 = vpop.f32.mrb[0].mxu0
      %v2461 = vadd.f32 0.0, %v2460
      %v2462 = vpop.f32.mrb[0].mxu0
      %v2463 = vadd.f32 0.0, %v2462
      %2464 = vmatprep.mubr.bf16.mxu0 0
      %2465 = vmatmul.mubr.bf16.gmra.mrb[0].mxu0 %v2287
      %v2466 = vpop.f32.mrb[0].mxu0
      %v2467 = vadd.f32 0.0, %v2466
      %v2468 = vpop.f32.mrb[0].mxu0
      %v2469 = vadd.f32 0.0, %v2468
      %v2470 = vpop.f32.mrb[0].mxu0
      %v2471 = vadd.f32 0.0, %v2470
      %v2472 = vpop.f32.mrb[0].mxu0
      %v2473 = vadd.f32 0.0, %v2472
      %2474 = vmatprep.mubr.bf16.mxu0 0
      %2475 = vmatmul.mubr.bf16.gmra.mrb[0].mxu0 %v2290
      %v2476 = vpop.f32.mrb[0].mxu0
      %v2477 = vadd.f32 0.0, %v2476
      %v2478 = vpop.f32.mrb[0].mxu0
      %v2479 = vadd.f32 0.0, %v2478
      %v2480 = vpop.f32.mrb[0].mxu0
      %v2481 = vadd.f32 0.0, %v2480
      %v2482 = vpop.f32.mrb[0].mxu0
      %v2483 = vadd.f32 0.0, %v2482
      %2484 = vdwg.mxu0
      %v2485 = vadd.f32 %v1604, %v1606
      %2486 = vadd.xlane.f32.xlu0 %v2485
      %v2487 = vpop.xlane.xlu0 %2486
      %v2488 = vadd.f32 %v1608, %v1610
      %2489 = vadd.xlane.f32.xlu0 %v2488
      %v2490 = vpop.xlane.xlu0 %2489
      %v2491 = vadd.f32 %v1614, %v1616
      %2492 = vadd.xlane.f32.xlu0 %v2491
      %v2493 = vpop.xlane.xlu0 %2492
      %v2494 = vadd.f32 %v1618, %v1620
      %2495 = vadd.xlane.f32.xlu0 %v2494
      %v2496 = vpop.xlane.xlu0 %2495
      %v2497 = vadd.f32 %v1624, %v1626
      %2498 = vadd.xlane.f32.xlu0 %v2497
      %v2499 = vpop.xlane.xlu0 %2498
      %v2500 = vadd.f32 %v1628, %v1630
      %2501 = vadd.xlane.f32.xlu0 %v2500
      %v2502 = vpop.xlane.xlu0 %2501
      %v2503 = vadd.f32 %v1634, %v1636
      %2504 = vadd.xlane.f32.xlu0 %v2503
      %v2505 = vpop.xlane.xlu0 %2504
      %v2506 = vadd.f32 %v1638, %v1640
      %2507 = vadd.xlane.f32.xlu0 %v2506
      %v2508 = vpop.xlane.xlu0 %2507
      %v2509 = vadd.f32 %v1644, %v1646
      %2510 = vadd.xlane.f32.xlu0 %v2509
      %v2511 = vpop.xlane.xlu0 %2510
      %v2512 = vadd.f32 %v1648, %v1650
      %2513 = vadd.xlane.f32.xlu0 %v2512
      %v2514 = vpop.xlane.xlu0 %2513
      %v2515 = vadd.f32 %v1654, %v1656
      %2516 = vadd.xlane.f32.xlu0 %v2515
      %v2517 = vpop.xlane.xlu0 %2516
      %v2518 = vadd.f32 %v1658, %v1660
      %2519 = vadd.xlane.f32.xlu0 %v2518
      %v2520 = vpop.xlane.xlu0 %2519
      %v2521 = vadd.f32 %v1664, %v1666
      %2522 = vadd.xlane.f32.xlu0 %v2521
      %v2523 = vpop.xlane.xlu0 %2522
      %v2524 = vadd.f32 %v1668, %v1670
      %2525 = vadd.xlane.f32.xlu0 %v2524
      %v2526 = vpop.xlane.xlu0 %2525
      %v2527 = vadd.f32 %v1674, %v1676
      %2528 = vadd.xlane.f32.xlu0 %v2527
      %v2529 = vpop.xlane.xlu0 %2528
      %v2530 = vadd.f32 %v1678, %v1680
      %2531 = vadd.xlane.f32.xlu0 %v2530
      %v2532 = vpop.xlane.xlu0 %2531
      %v2533 = vadd.f32 %v1684, %v1686
      %2534 = vadd.xlane.f32.xlu0 %v2533
      %v2535 = vpop.xlane.xlu0 %2534
      %v2536 = vadd.f32 %v1688, %v1690
      %2537 = vadd.xlane.f32.xlu0 %v2536
      %v2538 = vpop.xlane.xlu0 %2537
      %v2539 = vadd.f32 %v1694, %v1696
      %2540 = vadd.xlane.f32.xlu0 %v2539
      %v2541 = vpop.xlane.xlu0 %2540
      %v2542 = vadd.f32 %v1698, %v1700
      %2543 = vadd.xlane.f32.xlu0 %v2542
      %v2544 = vpop.xlane.xlu0 %2543
      %v2545 = vadd.f32 %v1704, %v1706
      %2546 = vadd.xlane.f32.xlu0 %v2545
      %v2547 = vpop.xlane.xlu0 %2546
      %v2548 = vadd.f32 %v1708, %v1710
      %2549 = vadd.xlane.f32.xlu0 %v2548
      %v2550 = vpop.xlane.xlu0 %2549
      %v2551 = vadd.f32 %v1714, %v1716
      %2552 = vadd.xlane.f32.xlu0 %v2551
      %v2553 = vpop.xlane.xlu0 %2552
      %v2554 = vadd.f32 %v1718, %v1720
      %2555 = vadd.xlane.f32.xlu0 %v2554
      %v2556 = vpop.xlane.xlu0 %2555
      %v2557 = vadd.f32 %v1724, %v1726
      %2558 = vadd.xlane.f32.xlu0 %v2557
      %v2559 = vpop.xlane.xlu0 %2558
      %v2560 = vadd.f32 %v1728, %v1730
      %2561 = vadd.xlane.f32.xlu0 %v2560
      %v2562 = vpop.xlane.xlu0 %2561
      %v2563 = vadd.f32 %v1734, %v1736
      %2564 = vadd.xlane.f32.xlu0 %v2563
      %v2565 = vpop.xlane.xlu0 %2564
      %v2566 = vadd.f32 %v1738, %v1740
      %2567 = vadd.xlane.f32.xlu0 %v2566
      %v2568 = vpop.xlane.xlu0 %2567
      %v2569 = vadd.f32 %v1744, %v1746
      %2570 = vadd.xlane.f32.xlu0 %v2569
      %v2571 = vpop.xlane.xlu0 %2570
      %v2572 = vadd.f32 %v1748, %v1750
      %2573 = vadd.xlane.f32.xlu0 %v2572
      %v2574 = vpop.xlane.xlu0 %2573
      %v2575 = vadd.f32 %v1754, %v1756
      %2576 = vadd.xlane.f32.xlu0 %v2575
      %v2577 = vpop.xlane.xlu0 %2576
      %v2578 = vadd.f32 %v1758, %v1760
      %2579 = vadd.xlane.f32.xlu0 %v2578
      %v2580 = vpop.xlane.xlu0 %2579
      %v2581 = vadd.f32 %v1845, %v1847
      %2582 = vadd.xlane.f32.xlu0 %v2581
      %v2583 = vpop.xlane.xlu0 %2582
      %v2584 = vadd.f32 %v1849, %v1851
      %2585 = vadd.xlane.f32.xlu0 %v2584
      %v2586 = vpop.xlane.xlu0 %2585
      %v2587 = vadd.f32 %v1855, %v1857
      %2588 = vadd.xlane.f32.xlu0 %v2587
      %v2589 = vpop.xlane.xlu0 %2588
      %v2590 = vadd.f32 %v1859, %v1861
      %2591 = vadd.xlane.f32.xlu0 %v2590
      %v2592 = vpop.xlane.xlu0 %2591
      %v2593 = vadd.f32 %v1865, %v1867
      %2594 = vadd.xlane.f32.xlu0 %v2593
      %v2595 = vpop.xlane.xlu0 %2594
      %v2596 = vadd.f32 %v1869, %v1871
      %2597 = vadd.xlane.f32.xlu0 %v2596
      %v2598 = vpop.xlane.xlu0 %2597
      %v2599 = vadd.f32 %v1875, %v1877
      %2600 = vadd.xlane.f32.xlu0 %v2599
      %v2601 = vpop.xlane.xlu0 %2600
      %v2602 = vadd.f32 %v1879, %v1881
      %2603 = vadd.xlane.f32.xlu0 %v2602
      %v2604 = vpop.xlane.xlu0 %2603
      %v2605 = vadd.f32 %v1885, %v1887
      %2606 = vadd.xlane.f32.xlu0 %v2605
      %v2607 = vpop.xlane.xlu0 %2606
      %v2608 = vadd.f32 %v1889, %v1891
      %2609 = vadd.xlane.f32.xlu0 %v2608
      %v2610 = vpop.xlane.xlu0 %2609
      %v2611 = vadd.f32 %v1895, %v1897
      %2612 = vadd.xlane.f32.xlu0 %v2611
      %v2613 = vpop.xlane.xlu0 %2612
      %v2614 = vadd.f32 %v1899, %v1901
      %2615 = vadd.xlane.f32.xlu0 %v2614
      %v2616 = vpop.xlane.xlu0 %2615
      %v2617 = vadd.f32 %v1905, %v1907
      %2618 = vadd.xlane.f32.xlu0 %v2617
      %v2619 = vpop.xlane.xlu0 %2618
      %v2620 = vadd.f32 %v1909, %v1911
      %2621 = vadd.xlane.f32.xlu0 %v2620
      %v2622 = vpop.xlane.xlu0 %2621
      %v2623 = vadd.f32 %v1915, %v1917
      %2624 = vadd.xlane.f32.xlu0 %v2623
      %v2625 = vpop.xlane.xlu0 %2624
      %v2626 = vadd.f32 %v1919, %v1921
      %2627 = vadd.xlane.f32.xlu0 %v2626
      %v2628 = vpop.xlane.xlu0 %2627
      %v2629 = vadd.f32 %v1925, %v1927
      %2630 = vadd.xlane.f32.xlu0 %v2629
      %v2631 = vpop.xlane.xlu0 %2630
      %v2632 = vadd.f32 %v1929, %v1931
      %2633 = vadd.xlane.f32.xlu0 %v2632
      %v2634 = vpop.xlane.xlu0 %2633
      %v2635 = vadd.f32 %v1935, %v1937
      %2636 = vadd.xlane.f32.xlu0 %v2635
      %v2637 = vpop.xlane.xlu0 %2636
      %v2638 = vadd.f32 %v1939, %v1941
      %2639 = vadd.xlane.f32.xlu0 %v2638
      %v2640 = vpop.xlane.xlu0 %2639
      %v2641 = vadd.f32 %v1945, %v1947
      %2642 = vadd.xlane.f32.xlu0 %v2641
      %v2643 = vpop.xlane.xlu0 %2642
      %v2644 = vadd.f32 %v1949, %v1951
      %2645 = vadd.xlane.f32.xlu0 %v2644
      %v2646 = vpop.xlane.xlu0 %2645
      %v2647 = vadd.f32 %v1955, %v1957
      %2648 = vadd.xlane.f32.xlu0 %v2647
      %v2649 = vpop.xlane.xlu0 %2648
      %v2650 = vadd.f32 %v1959, %v1961
      %2651 = vadd.xlane.f32.xlu0 %v2650
      %v2652 = vpop.xlane.xlu0 %2651
      %v2653 = vadd.f32 %v1965, %v1967
      %2654 = vadd.xlane.f32.xlu0 %v2653
      %v2655 = vpop.xlane.xlu0 %2654
      %v2656 = vadd.f32 %v1969, %v1971
      %2657 = vadd.xlane.f32.xlu0 %v2656
      %v2658 = vpop.xlane.xlu0 %2657
      %v2659 = vadd.f32 %v1975, %v1977
      %2660 = vadd.xlane.f32.xlu0 %v2659
      %v2661 = vpop.xlane.xlu0 %2660
      %v2662 = vadd.f32 %v1979, %v1981
      %2663 = vadd.xlane.f32.xlu0 %v2662
      %v2664 = vpop.xlane.xlu0 %2663
      %v2665 = vadd.f32 %v1985, %v1987
      %2666 = vadd.xlane.f32.xlu0 %v2665
      %v2667 = vpop.xlane.xlu0 %2666
      %v2668 = vadd.f32 %v1989, %v1991
      %2669 = vadd.xlane.f32.xlu0 %v2668
      %v2670 = vpop.xlane.xlu0 %2669
      %v2671 = vadd.f32 %v1995, %v1997
      %2672 = vadd.xlane.f32.xlu0 %v2671
      %v2673 = vpop.xlane.xlu0 %2672
      %v2674 = vadd.f32 %v1999, %v2001
      %2675 = vadd.xlane.f32.xlu0 %v2674
      %v2676 = vpop.xlane.xlu0 %2675
      %v2677 = vrcp.pop 256.0
      %v2678 = vmul.f32 %v2487, %v2677
      %v2679 = vmul.f32 %v2490, %v2677
      %v2680 = vmul.f32 %v2493, %v2677
      %v2681 = vmul.f32 %v2496, %v2677
      %v2682 = vmul.f32 %v2499, %v2677
      %v2683 = vmul.f32 %v2502, %v2677
      %v2684 = vmul.f32 %v2505, %v2677
      %v2685 = vmul.f32 %v2508, %v2677
      %v2686 = vmul.f32 %v2511, %v2677
      %v2687 = vmul.f32 %v2514, %v2677
      %v2688 = vmul.f32 %v2517, %v2677
      %v2689 = vmul.f32 %v2520, %v2677
      %v2690 = vmul.f32 %v2523, %v2677
      %v2691 = vmul.f32 %v2526, %v2677
      %v2692 = vmul.f32 %v2529, %v2677
      %v2693 = vmul.f32 %v2532, %v2677
      %v2694 = vmul.f32 %v2535, %v2677
      %v2695 = vmul.f32 %v2538, %v2677
      %v2696 = vmul.f32 %v2541, %v2677
      %v2697 = vmul.f32 %v2544, %v2677
      %v2698 = vmul.f32 %v2547, %v2677
      %v2699 = vmul.f32 %v2550, %v2677
      %v2700 = vmul.f32 %v2553, %v2677
      %v2701 = vmul.f32 %v2556, %v2677
      %v2702 = vmul.f32 %v2559, %v2677
      %v2703 = vmul.f32 %v2562, %v2677
      %v2704 = vmul.f32 %v2565, %v2677
      %v2705 = vmul.f32 %v2568, %v2677
      %v2706 = vmul.f32 %v2571, %v2677
      %v2707 = vmul.f32 %v2574, %v2677
      %v2708 = vmul.f32 %v2577, %v2677
      %v2709 = vmul.f32 %v2580, %v2677
      %v2710 = vmul.f32 %v2583, %v2677
      %v2711 = vmul.f32 %v2586, %v2677
      %v2712 = vmul.f32 %v2589, %v2677
      %v2713 = vmul.f32 %v2592, %v2677
      %v2714 = vmul.f32 %v2595, %v2677
      %v2715 = vmul.f32 %v2598, %v2677
      %v2716 = vmul.f32 %v2601, %v2677
      %v2717 = vmul.f32 %v2604, %v2677
      %v2718 = vmul.f32 %v2607, %v2677
      %v2719 = vmul.f32 %v2610, %v2677
      %v2720 = vmul.f32 %v2613, %v2677
      %v2721 = vmul.f32 %v2616, %v2677
      %v2722 = vmul.f32 %v2619, %v2677
      %v2723 = vmul.f32 %v2622, %v2677
      %v2724 = vmul.f32 %v2625, %v2677
      %v2725 = vmul.f32 %v2628, %v2677
      %v2726 = vmul.f32 %v2631, %v2677
      %v2727 = vmul.f32 %v2634, %v2677
      %v2728 = vmul.f32 %v2637, %v2677
      %v2729 = vmul.f32 %v2640, %v2677
      %v2730 = vmul.f32 %v2643, %v2677
      %v2731 = vmul.f32 %v2646, %v2677
      %v2732 = vmul.f32 %v2649, %v2677
      %v2733 = vmul.f32 %v2652, %v2677
      %v2734 = vmul.f32 %v2655, %v2677
      %v2735 = vmul.f32 %v2658, %v2677
      %v2736 = vmul.f32 %v2661, %v2677
      %v2737 = vmul.f32 %v2664, %v2677
      %v2738 = vmul.f32 %v2667, %v2677
      %v2739 = vmul.f32 %v2670, %v2677
      %v2740 = vmul.f32 %v2673, %v2677
      %v2741 = vmul.f32 %v2676, %v2677
      %v2742 = vsub.f32 %v1604, %v2678
      %v2743 = vsub.f32 %v1606, %v2678
      %v2744 = vsub.f32 %v1608, %v2679
      %v2745 = vsub.f32 %v1610, %v2679
      %v2746 = vsub.f32 %v1614, %v2680
      %v2747 = vsub.f32 %v1616, %v2680
      %v2748 = vsub.f32 %v1618, %v2681
      %v2749 = vsub.f32 %v1620, %v2681
      %v2750 = vsub.f32 %v1624, %v2682
      %v2751 = vsub.f32 %v1626, %v2682
      %v2752 = vsub.f32 %v1628, %v2683
      %v2753 = vsub.f32 %v1630, %v2683
      %v2754 = vsub.f32 %v1634, %v2684
      %v2755 = vsub.f32 %v1636, %v2684
      %v2756 = vsub.f32 %v1638, %v2685
      %v2757 = vsub.f32 %v1640, %v2685
      %v2758 = vsub.f32 %v1644, %v2686
      %v2759 = vsub.f32 %v1646, %v2686
      %v2760 = vsub.f32 %v1648, %v2687
      %v2761 = vsub.f32 %v1650, %v2687
      %v2762 = vsub.f32 %v1654, %v2688
      %v2763 = vsub.f32 %v1656, %v2688
      %v2764 = vsub.f32 %v1658, %v2689
      %v2765 = vsub.f32 %v1660, %v2689
      %v2766 = vsub.f32 %v1664, %v2690
      %v2767 = vsub.f32 %v1666, %v2690
      %v2768 = vsub.f32 %v1668, %v2691
      %v2769 = vsub.f32 %v1670, %v2691
      %v2770 = vsub.f32 %v1674, %v2692
      %v2771 = vsub.f32 %v1676, %v2692
      %v2772 = vsub.f32 %v1678, %v2693
      %v2773 = vsub.f32 %v1680, %v2693
      %v2774 = vsub.f32 %v1684, %v2694
      %v2775 = vsub.f32 %v1686, %v2694
      %v2776 = vsub.f32 %v1688, %v2695
      %v2777 = vsub.f32 %v1690, %v2695
      %v2778 = vsub.f32 %v1694, %v2696
      %v2779 = vsub.f32 %v1696, %v2696
      %v2780 = vsub.f32 %v1698, %v2697
      %v2781 = vsub.f32 %v1700, %v2697
      %v2782 = vsub.f32 %v1704, %v2698
      %v2783 = vsub.f32 %v1706, %v2698
      %v2784 = vsub.f32 %v1708, %v2699
      %v2785 = vsub.f32 %v1710, %v2699
      %v2786 = vsub.f32 %v1714, %v2700
      %v2787 = vsub.f32 %v1716, %v2700
      %v2788 = vsub.f32 %v1718, %v2701
      %v2789 = vsub.f32 %v1720, %v2701
      %v2790 = vsub.f32 %v1724, %v2702
      %v2791 = vsub.f32 %v1726, %v2702
      %v2792 = vsub.f32 %v1728, %v2703
      %v2793 = vsub.f32 %v1730, %v2703
      %v2794 = vsub.f32 %v1734, %v2704
      %v2795 = vsub.f32 %v1736, %v2704
      %v2796 = vsub.f32 %v1738, %v2705
      %v2797 = vsub.f32 %v1740, %v2705
      %v2798 = vsub.f32 %v1744, %v2706
      %v2799 = vsub.f32 %v1746, %v2706
      %v2800 = vsub.f32 %v1748, %v2707
      %v2801 = vsub.f32 %v1750, %v2707
      %v2802 = vsub.f32 %v1754, %v2708
      %v2803 = vsub.f32 %v1756, %v2708
      %v2804 = vsub.f32 %v1758, %v2709
      %v2805 = vsub.f32 %v1760, %v2709
      %v2806 = vsub.f32 %v1845, %v2710
      %v2807 = vsub.f32 %v1847, %v2710
      %v2808 = vsub.f32 %v1849, %v2711
      %v2809 = vsub.f32 %v1851, %v2711
      %v2810 = vsub.f32 %v1855, %v2712
      %v2811 = vsub.f32 %v1857, %v2712
      %v2812 = vsub.f32 %v1859, %v2713
      %v2813 = vsub.f32 %v1861, %v2713
      %v2814 = vsub.f32 %v1865, %v2714
      %v2815 = vsub.f32 %v1867, %v2714
      %v2816 = vsub.f32 %v1869, %v2715
      %v2817 = vsub.f32 %v1871, %v2715
      %v2818 = vsub.f32 %v1875, %v2716
      %v2819 = vsub.f32 %v1877, %v2716
      %v2820 = vsub.f32 %v1879, %v2717
      %v2821 = vsub.f32 %v1881, %v2717
      %v2822 = vsub.f32 %v1885, %v2718
      %v2823 = vsub.f32 %v1887, %v2718
      %v2824 = vsub.f32 %v1889, %v2719
      %v2825 = vsub.f32 %v1891, %v2719
      %v2826 = vsub.f32 %v1895, %v2720
      %v2827 = vsub.f32 %v1897, %v2720
      %v2828 = vsub.f32 %v1899, %v2721
      %v2829 = vsub.f32 %v1901, %v2721
      %v2830 = vsub.f32 %v1905, %v2722
      %v2831 = vsub.f32 %v1907, %v2722
      %v2832 = vsub.f32 %v1909, %v2723
      %v2833 = vsub.f32 %v1911, %v2723
      %v2834 = vsub.f32 %v1915, %v2724
      %v2835 = vsub.f32 %v1917, %v2724
      %v2836 = vsub.f32 %v1919, %v2725
      %v2837 = vsub.f32 %v1921, %v2725
      %v2838 = vsub.f32 %v1925, %v2726
      %v2839 = vsub.f32 %v1927, %v2726
      %v2840 = vsub.f32 %v1929, %v2727
      %v2841 = vsub.f32 %v1931, %v2727
      %v2842 = vsub.f32 %v1935, %v2728
      %v2843 = vsub.f32 %v1937, %v2728
      %v2844 = vsub.f32 %v1939, %v2729
      %v2845 = vsub.f32 %v1941, %v2729
      %v2846 = vsub.f32 %v1945, %v2730
      %v2847 = vsub.f32 %v1947, %v2730
      %v2848 = vsub.f32 %v1949, %v2731
      %v2849 = vsub.f32 %v1951, %v2731
      %v2850 = vsub.f32 %v1955, %v2732
      %v2851 = vsub.f32 %v1957, %v2732
      %v2852 = vsub.f32 %v1959, %v2733
      %v2853 = vsub.f32 %v1961, %v2733
      %v2854 = vsub.f32 %v1965, %v2734
      %v2855 = vsub.f32 %v1967, %v2734
      %v2856 = vsub.f32 %v1969, %v2735
      %v2857 = vsub.f32 %v1971, %v2735
      %v2858 = vsub.f32 %v1975, %v2736
      %v2859 = vsub.f32 %v1977, %v2736
      %v2860 = vsub.f32 %v1979, %v2737
      %v2861 = vsub.f32 %v1981, %v2737
      %v2862 = vsub.f32 %v1985, %v2738
      %v2863 = vsub.f32 %v1987, %v2738
      %v2864 = vsub.f32 %v1989, %v2739
      %v2865 = vsub.f32 %v1991, %v2739
      %v2866 = vsub.f32 %v1995, %v2740
      %v2867 = vsub.f32 %v1997, %v2740
      %v2868 = vsub.f32 %v1999, %v2741
      %v2869 = vsub.f32 %v2001, %v2741
      %vm2870 = vcmask 7168
      %v2871 = vsel %vm2870, %v2678, 0.0
      %v2872 = vsel %vm2870, %v2679, 0.0
      %v2873 = vadd.f32 %v2871, %v2872
      %v2874 = vsel %vm2870, %v2680, 0.0
      %v2875 = vadd.f32 %v2873, %v2874
      %v2876 = vsel %vm2870, %v2681, 0.0
      %v2877 = vadd.f32 %v2875, %v2876
      %v2878 = vsel %vm2870, %v2682, 0.0
      %v2879 = vadd.f32 %v2877, %v2878
      %v2880 = vsel %vm2870, %v2683, 0.0
      %v2881 = vadd.f32 %v2879, %v2880
      %v2882 = vsel %vm2870, %v2684, 0.0
      %v2883 = vadd.f32 %v2881, %v2882
      %v2884 = vsel %vm2870, %v2685, 0.0
      %v2885 = vadd.f32 %v2883, %v2884
      %v2886 = vsel %vm2870, %v2686, 0.0
      %v2887 = vadd.f32 %v2885, %v2886
      %v2888 = vsel %vm2870, %v2687, 0.0
      %v2889 = vadd.f32 %v2887, %v2888
      %v2890 = vsel %vm2870, %v2688, 0.0
      %v2891 = vadd.f32 %v2889, %v2890
      %v2892 = vsel %vm2870, %v2689, 0.0
      %v2893 = vadd.f32 %v2891, %v2892
      %v2894 = vsel %vm2870, %v2690, 0.0
      %v2895 = vadd.f32 %v2893, %v2894
      %v2896 = vsel %vm2870, %v2691, 0.0
      %v2897 = vadd.f32 %v2895, %v2896
      %v2898 = vsel %vm2870, %v2692, 0.0
      %v2899 = vadd.f32 %v2897, %v2898
      %v2900 = vsel %vm2870, %v2693, 0.0
      %v2901 = vadd.f32 %v2899, %v2900
      %v2902 = vsel %vm2870, %v2694, 0.0
      %v2903 = vadd.f32 %v2901, %v2902
      %v2904 = vsel %vm2870, %v2695, 0.0
      %v2905 = vadd.f32 %v2903, %v2904
      %v2906 = vsel %vm2870, %v2696, 0.0
      %v2907 = vadd.f32 %v2905, %v2906
      %v2908 = vsel %vm2870, %v2697, 0.0
      %v2909 = vadd.f32 %v2907, %v2908
      %v2910 = vsel %vm2870, %v2698, 0.0
      %v2911 = vadd.f32 %v2909, %v2910
      %v2912 = vsel %vm2870, %v2699, 0.0
      %v2913 = vadd.f32 %v2911, %v2912
      %v2914 = vsel %vm2870, %v2700, 0.0
      %v2915 = vadd.f32 %v2913, %v2914
      %v2916 = vsel %vm2870, %v2701, 0.0
      %v2917 = vadd.f32 %v2915, %v2916
      %v2918 = vsel %vm2870, %v2702, 0.0
      %v2919 = vadd.f32 %v2917, %v2918
      %v2920 = vsel %vm2870, %v2703, 0.0
      %v2921 = vadd.f32 %v2919, %v2920
      %v2922 = vsel %vm2870, %v2704, 0.0
      %v2923 = vadd.f32 %v2921, %v2922
      %v2924 = vsel %vm2870, %v2705, 0.0
      %v2925 = vadd.f32 %v2923, %v2924
      %v2926 = vsel %vm2870, %v2706, 0.0
      %v2927 = vadd.f32 %v2925, %v2926
      %v2928 = vsel %vm2870, %v2707, 0.0
      %v2929 = vadd.f32 %v2927, %v2928
      %v2930 = vsel %vm2870, %v2708, 0.0
      %v2931 = vadd.f32 %v2929, %v2930
      %v2932 = vsel %vm2870, %v2709, 0.0
      %v2933 = vadd.f32 %v2931, %v2932
      %v2934 = vsel %vm2870, %v2710, 0.0
      %v2935 = vadd.f32 %v2933, %v2934
      %v2936 = vsel %vm2870, %v2711, 0.0
      %v2937 = vadd.f32 %v2935, %v2936
      %v2938 = vsel %vm2870, %v2712, 0.0
      %v2939 = vadd.f32 %v2937, %v2938
      %v2940 = vsel %vm2870, %v2713, 0.0
      %v2941 = vadd.f32 %v2939, %v2940
      %v2942 = vsel %vm2870, %v2714, 0.0
      %v2943 = vadd.f32 %v2941, %v2942
      %v2944 = vsel %vm2870, %v2715, 0.0
      %v2945 = vadd.f32 %v2943, %v2944
      %v2946 = vsel %vm2870, %v2716, 0.0
      %v2947 = vadd.f32 %v2945, %v2946
      %v2948 = vsel %vm2870, %v2717, 0.0
      %v2949 = vadd.f32 %v2947, %v2948
      %v2950 = vsel %vm2870, %v2718, 0.0
      %v2951 = vadd.f32 %v2949, %v2950
      %v2952 = vsel %vm2870, %v2719, 0.0
      %v2953 = vadd.f32 %v2951, %v2952
      %v2954 = vsel %vm2870, %v2720, 0.0
      %v2955 = vadd.f32 %v2953, %v2954
      %v2956 = vsel %vm2870, %v2721, 0.0
      %v2957 = vadd.f32 %v2955, %v2956
      %v2958 = vsel %vm2870, %v2722, 0.0
      %v2959 = vadd.f32 %v2957, %v2958
      %v2960 = vsel %vm2870, %v2723, 0.0
      %v2961 = vadd.f32 %v2959, %v2960
      %v2962 = vsel %vm2870, %v2724, 0.0
      %v2963 = vadd.f32 %v2961, %v2962
      %v2964 = vsel %vm2870, %v2725, 0.0
      %v2965 = vadd.f32 %v2963, %v2964
      %v2966 = vsel %vm2870, %v2726, 0.0
      %v2967 = vadd.f32 %v2965, %v2966
      %v2968 = vsel %vm2870, %v2727, 0.0
      %v2969 = vadd.f32 %v2967, %v2968
      %v2970 = vsel %vm2870, %v2728, 0.0
      %v2971 = vadd.f32 %v2969, %v2970
      %v2972 = vsel %vm2870, %v2729, 0.0
      %v2973 = vadd.f32 %v2971, %v2972
      %v2974 = vsel %vm2870, %v2730, 0.0
      %v2975 = vadd.f32 %v2973, %v2974
      %v2976 = vsel %vm2870, %v2731, 0.0
      %v2977 = vadd.f32 %v2975, %v2976
      %v2978 = vsel %vm2870, %v2732, 0.0
      %v2979 = vadd.f32 %v2977, %v2978
      %v2980 = vsel %vm2870, %v2733, 0.0
      %v2981 = vadd.f32 %v2979, %v2980
      %v2982 = vsel %vm2870, %v2734, 0.0
      %v2983 = vadd.f32 %v2981, %v2982
      %v2984 = vsel %vm2870, %v2735, 0.0
      %v2985 = vadd.f32 %v2983, %v2984
      %v2986 = vsel %vm2870, %v2736, 0.0
      %v2987 = vadd.f32 %v2985, %v2986
      %v2988 = vsel %vm2870, %v2737, 0.0
      %v2989 = vadd.f32 %v2987, %v2988
      %v2990 = vsel %vm2870, %v2738, 0.0
      %v2991 = vadd.f32 %v2989, %v2990
      %v2992 = vsel %vm2870, %v2739, 0.0
      %v2993 = vadd.f32 %v2991, %v2992
      %v2994 = vsel %vm2870, %v2740, 0.0
      %v2995 = vadd.f32 %v2993, %v2994
      %v2996 = vsel %vm2870, %v2741, 0.0
      %v2997 = vadd.f32 %v2995, %v2996
      %2998 = vadd.xlane.f32.xlu0 %v2997
      %v2999 = vpop.xlane.xlu0 %2998
      %v3000 = vrot.slane %v2999, 4
      %v3001 = vadd.f32 %v2999, %v3000
      %v3002 = vrot.slane %v3001, 2
      %v3003 = vadd.f32 %v3001, %v3002
      %v3004 = vrot.slane %v3003, 1
      %v3005 = vadd.f32 %v3003, %v3004
      %s3006 = vtos %v3005
      %v3007 = vrcp.pop 512.0
      %s3008 = vtos %v3007
      %s3009 = smul.f32 %s3006, %s3008
      %v3010 = vstv %s3009
      %v3011 = vadd.f32 %v2742, %v3010
      %v3012 = vadd.f32 %v2743, %v3010
      %v3013 = vadd.f32 %v2744, %v3010
      %v3014 = vadd.f32 %v2745, %v3010
      %v3015 = vadd.f32 %v2746, %v3010
      %v3016 = vadd.f32 %v2747, %v3010
      %v3017 = vadd.f32 %v2748, %v3010
      %v3018 = vadd.f32 %v2749, %v3010
      %v3019 = vadd.f32 %v2750, %v3010
      %v3020 = vadd.f32 %v2751, %v3010
      %v3021 = vadd.f32 %v2752, %v3010
      %v3022 = vadd.f32 %v2753, %v3010
      %v3023 = vadd.f32 %v2754, %v3010
      %v3024 = vadd.f32 %v2755, %v3010
      %v3025 = vadd.f32 %v2756, %v3010
      %v3026 = vadd.f32 %v2757, %v3010
      %v3027 = vadd.f32 %v2758, %v3010
      %v3028 = vadd.f32 %v2759, %v3010
      %v3029 = vadd.f32 %v2760, %v3010
      %v3030 = vadd.f32 %v2761, %v3010
      %v3031 = vadd.f32 %v2762, %v3010
      %v3032 = vadd.f32 %v2763, %v3010
      %v3033 = vadd.f32 %v2764, %v3010
      %v3034 = vadd.f32 %v2765, %v3010
      %v3035 = vadd.f32 %v2766, %v3010
      %v3036 = vadd.f32 %v2767, %v3010
      %v3037 = vadd.f32 %v2768, %v3010
      %v3038 = vadd.f32 %v2769, %v3010
      %v3039 = vadd.f32 %v2770, %v3010
      %v3040 = vadd.f32 %v2771, %v3010
      %v3041 = vadd.f32 %v2772, %v3010
      %v3042 = vadd.f32 %v2773, %v3010
      %v3043 = vadd.f32 %v2774, %v3010
      %v3044 = vadd.f32 %v2775, %v3010
      %v3045 = vadd.f32 %v2776, %v3010
      %v3046 = vadd.f32 %v2777, %v3010
      %v3047 = vadd.f32 %v2778, %v3010
      %v3048 = vadd.f32 %v2779, %v3010
      %v3049 = vadd.f32 %v2780, %v3010
      %v3050 = vadd.f32 %v2781, %v3010
      %v3051 = vadd.f32 %v2782, %v3010
      %v3052 = vadd.f32 %v2783, %v3010
      %v3053 = vadd.f32 %v2784, %v3010
      %v3054 = vadd.f32 %v2785, %v3010
      %v3055 = vadd.f32 %v2786, %v3010
      %v3056 = vadd.f32 %v2787, %v3010
      %v3057 = vadd.f32 %v2788, %v3010
      %v3058 = vadd.f32 %v2789, %v3010
      %v3059 = vadd.f32 %v2790, %v3010
      %v3060 = vadd.f32 %v2791, %v3010
      %v3061 = vadd.f32 %v2792, %v3010
      %v3062 = vadd.f32 %v2793, %v3010
      %v3063 = vadd.f32 %v2794, %v3010
      %v3064 = vadd.f32 %v2795, %v3010
      %v3065 = vadd.f32 %v2796, %v3010
      %v3066 = vadd.f32 %v2797, %v3010
      %v3067 = vadd.f32 %v2798, %v3010
      %v3068 = vadd.f32 %v2799, %v3010
      %v3069 = vadd.f32 %v2800, %v3010
      %v3070 = vadd.f32 %v2801, %v3010
      %v3071 = vadd.f32 %v2802, %v3010
      %v3072 = vadd.f32 %v2803, %v3010
      %v3073 = vadd.f32 %v2804, %v3010
      %v3074 = vadd.f32 %v2805, %v3010
      %v3075 = vadd.f32 %v2806, %v3010
      %v3076 = vadd.f32 %v2807, %v3010
      %v3077 = vadd.f32 %v2808, %v3010
      %v3078 = vadd.f32 %v2809, %v3010
      %v3079 = vadd.f32 %v2810, %v3010
      %v3080 = vadd.f32 %v2811, %v3010
      %v3081 = vadd.f32 %v2812, %v3010
      %v3082 = vadd.f32 %v2813, %v3010
      %v3083 = vadd.f32 %v2814, %v3010
      %v3084 = vadd.f32 %v2815, %v3010
      %v3085 = vadd.f32 %v2816, %v3010
      %v3086 = vadd.f32 %v2817, %v3010
      %v3087 = vadd.f32 %v2818, %v3010
      %v3088 = vadd.f32 %v2819, %v3010
      %v3089 = vadd.f32 %v2820, %v3010
      %v3090 = vadd.f32 %v2821, %v3010
      %v3091 = vadd.f32 %v2822, %v3010
      %v3092 = vadd.f32 %v2823, %v3010
      %v3093 = vadd.f32 %v2824, %v3010
      %v3094 = vadd.f32 %v2825, %v3010
      %v3095 = vadd.f32 %v2826, %v3010
      %v3096 = vadd.f32 %v2827, %v3010
      %v3097 = vadd.f32 %v2828, %v3010
      %v3098 = vadd.f32 %v2829, %v3010
      %v3099 = vadd.f32 %v2830, %v3010
      %v3100 = vadd.f32 %v2831, %v3010
      %v3101 = vadd.f32 %v2832, %v3010
      %v3102 = vadd.f32 %v2833, %v3010
      %v3103 = vadd.f32 %v2834, %v3010
      %v3104 = vadd.f32 %v2835, %v3010
      %v3105 = vadd.f32 %v2836, %v3010
      %v3106 = vadd.f32 %v2837, %v3010
      %v3107 = vadd.f32 %v2838, %v3010
      %v3108 = vadd.f32 %v2839, %v3010
      %v3109 = vadd.f32 %v2840, %v3010
      %v3110 = vadd.f32 %v2841, %v3010
      %v3111 = vadd.f32 %v2842, %v3010
      %v3112 = vadd.f32 %v2843, %v3010
      %v3113 = vadd.f32 %v2844, %v3010
      %v3114 = vadd.f32 %v2845, %v3010
      %v3115 = vadd.f32 %v2846, %v3010
      %v3116 = vadd.f32 %v2847, %v3010
      %v3117 = vadd.f32 %v2848, %v3010
      %v3118 = vadd.f32 %v2849, %v3010
      %v3119 = vadd.f32 %v2850, %v3010
      %v3120 = vadd.f32 %v2851, %v3010
      %v3121 = vadd.f32 %v2852, %v3010
      %v3122 = vadd.f32 %v2853, %v3010
      %v3123 = vadd.f32 %v2854, %v3010
      %v3124 = vadd.f32 %v2855, %v3010
      %v3125 = vadd.f32 %v2856, %v3010
      %v3126 = vadd.f32 %v2857, %v3010
      %v3127 = vadd.f32 %v2858, %v3010
      %v3128 = vadd.f32 %v2859, %v3010
      %v3129 = vadd.f32 %v2860, %v3010
      %v3130 = vadd.f32 %v2861, %v3010
      %v3131 = vadd.f32 %v2862, %v3010
      %v3132 = vadd.f32 %v2863, %v3010
      %v3133 = vadd.f32 %v2864, %v3010
      %v3134 = vadd.f32 %v2865, %v3010
      %v3135 = vadd.f32 %v2866, %v3010
      %v3136 = vadd.f32 %v2867, %v3010
      %v3137 = vadd.f32 %v2868, %v3010
      %v3138 = vadd.f32 %v2869, %v3010
      %v3139 = vmax.f32 %v2086, 0.0
      %v3140 = vmax.f32 %v2088, 0.0
      %v3141 = vmax.f32 %v2090, 0.0
      %v3142 = vmax.f32 %v2092, 0.0
      %v3143 = vmax.f32 %v2096, 0.0
      %v3144 = vmax.f32 %v2098, 0.0
      %v3145 = vmax.f32 %v2100, 0.0
      %v3146 = vmax.f32 %v2102, 0.0
      %v3147 = vmax.f32 %v2106, 0.0
      %v3148 = vmax.f32 %v2108, 0.0
      %v3149 = vmax.f32 %v2110, 0.0
      %v3150 = vmax.f32 %v2112, 0.0
      %v3151 = vmax.f32 %v2116, 0.0
      %v3152 = vmax.f32 %v2118, 0.0
      %v3153 = vmax.f32 %v2120, 0.0
      %v3154 = vmax.f32 %v2122, 0.0
      %v3155 = vmax.f32 %v2126, 0.0
      %v3156 = vmax.f32 %v2128, 0.0
      %v3157 = vmax.f32 %v2130, 0.0
      %v3158 = vmax.f32 %v2132, 0.0
      %v3159 = vmax.f32 %v2136, 0.0
      %v3160 = vmax.f32 %v2138, 0.0
      %v3161 = vmax.f32 %v2140, 0.0
      %v3162 = vmax.f32 %v2142, 0.0
      %v3163 = vmax.f32 %v2146, 0.0
      %v3164 = vmax.f32 %v2148, 0.0
      %v3165 = vmax.f32 %v2150, 0.0
      %v3166 = vmax.f32 %v2152, 0.0
      %v3167 = vmax.f32 %v2156, 0.0
      %v3168 = vmax.f32 %v2158, 0.0
      %v3169 = vmax.f32 %v2160, 0.0
      %v3170 = vmax.f32 %v2162, 0.0
      %v3171 = vmax.f32 %v2166, 0.0
      %v3172 = vmax.f32 %v2168, 0.0
      %v3173 = vmax.f32 %v2170, 0.0
      %v3174 = vmax.f32 %v2172, 0.0
      %v3175 = vmax.f32 %v2176, 0.0
      %v3176 = vmax.f32 %v2178, 0.0
      %v3177 = vmax.f32 %v2180, 0.0
      %v3178 = vmax.f32 %v2182, 0.0
      %v3179 = vmax.f32 %v2186, 0.0
      %v3180 = vmax.f32 %v2188, 0.0
      %v3181 = vmax.f32 %v2190, 0.0
      %v3182 = vmax.f32 %v2192, 0.0
      %v3183 = vmax.f32 %v2196, 0.0
      %v3184 = vmax.f32 %v2198, 0.0
      %v3185 = vmax.f32 %v2200, 0.0
      %v3186 = vmax.f32 %v2202, 0.0
      %v3187 = vmax.f32 %v2206, 0.0
      %v3188 = vmax.f32 %v2208, 0.0
      %v3189 = vmax.f32 %v2210, 0.0
      %v3190 = vmax.f32 %v2212, 0.0
      %v3191 = vmax.f32 %v2216, 0.0
      %v3192 = vmax.f32 %v2218, 0.0
      %v3193 = vmax.f32 %v2220, 0.0
      %v3194 = vmax.f32 %v2222, 0.0
      %v3195 = vmax.f32 %v2226, 0.0
      %v3196 = vmax.f32 %v2228, 0.0
      %v3197 = vmax.f32 %v2230, 0.0
      %v3198 = vmax.f32 %v2232, 0.0
      %v3199 = vmax.f32 %v2236, 0.0
      %v3200 = vmax.f32 %v2238, 0.0
      %v3201 = vmax.f32 %v2240, 0.0
      %v3202 = vmax.f32 %v2242, 0.0
      %v3203 = vmax.f32 %v2327, 0.0
      %v3204 = vmax.f32 %v2329, 0.0
      %v3205 = vmax.f32 %v2331, 0.0
      %v3206 = vmax.f32 %v2333, 0.0
      %v3207 = vmax.f32 %v2337, 0.0
      %v3208 = vmax.f32 %v2339, 0.0
      %v3209 = vmax.f32 %v2341, 0.0
      %v3210 = vmax.f32 %v2343, 0.0
      %v3211 = vmax.f32 %v2347, 0.0
      %v3212 = vmax.f32 %v2349, 0.0
      %v3213 = vmax.f32 %v2351, 0.0
      %v3214 = vmax.f32 %v2353, 0.0
      %v3215 = vmax.f32 %v2357, 0.0
      %v3216 = vmax.f32 %v2359, 0.0
      %v3217 = vmax.f32 %v2361, 0.0
      %v3218 = vmax.f32 %v2363, 0.0
      %v3219 = vmax.f32 %v2367, 0.0
      %v3220 = vmax.f32 %v2369, 0.0
      %v3221 = vmax.f32 %v2371, 0.0
      %v3222 = vmax.f32 %v2373, 0.0
      %v3223 = vmax.f32 %v2377, 0.0
      %v3224 = vmax.f32 %v2379, 0.0
      %v3225 = vmax.f32 %v2381, 0.0
      %v3226 = vmax.f32 %v2383, 0.0
      %v3227 = vmax.f32 %v2387, 0.0
      %v3228 = vmax.f32 %v2389, 0.0
      %v3229 = vmax.f32 %v2391, 0.0
      %v3230 = vmax.f32 %v2393, 0.0
      %v3231 = vmax.f32 %v2397, 0.0
      %v3232 = vmax.f32 %v2399, 0.0
      %v3233 = vmax.f32 %v2401, 0.0
      %v3234 = vmax.f32 %v2403, 0.0
      %v3235 = vmax.f32 %v2407, 0.0
      %v3236 = vmax.f32 %v2409, 0.0
      %v3237 = vmax.f32 %v2411, 0.0
      %v3238 = vmax.f32 %v2413, 0.0
      %v3239 = vmax.f32 %v2417, 0.0
      %v3240 = vmax.f32 %v2419, 0.0
      %v3241 = vmax.f32 %v2421, 0.0
      %v3242 = vmax.f32 %v2423, 0.0
      %v3243 = vmax.f32 %v2427, 0.0
      %v3244 = vmax.f32 %v2429, 0.0
      %v3245 = vmax.f32 %v2431, 0.0
      %v3246 = vmax.f32 %v2433, 0.0
      %v3247 = vmax.f32 %v2437, 0.0
      %v3248 = vmax.f32 %v2439, 0.0
      %v3249 = vmax.f32 %v2441, 0.0
      %v3250 = vmax.f32 %v2443, 0.0
      %v3251 = vmax.f32 %v2447, 0.0
      %v3252 = vmax.f32 %v2449, 0.0
      %v3253 = vmax.f32 %v2451, 0.0
      %v3254 = vmax.f32 %v2453, 0.0
      %v3255 = vmax.f32 %v2457, 0.0
      %v3256 = vmax.f32 %v2459, 0.0
      %v3257 = vmax.f32 %v2461, 0.0
      %v3258 = vmax.f32 %v2463, 0.0
      %v3259 = vmax.f32 %v2467, 0.0
      %v3260 = vmax.f32 %v2469, 0.0
      %v3261 = vmax.f32 %v2471, 0.0
      %v3262 = vmax.f32 %v2473, 0.0
      %v3263 = vmax.f32 %v2477, 0.0
      %v3264 = vmax.f32 %v2479, 0.0
      %v3265 = vmax.f32 %v2481, 0.0
      %v3266 = vmax.f32 %v2483, 0.0
      %v3267 = vsub.f32 0.0, %v3139
      %v3268 = vsub.f32 0.0, %v3140
      %v3269 = vsub.f32 0.0, %v3141
      %v3270 = vsub.f32 0.0, %v3142
      %v3271 = vsub.f32 0.0, %v3143
      %v3272 = vsub.f32 0.0, %v3144
      %v3273 = vsub.f32 0.0, %v3145
      %v3274 = vsub.f32 0.0, %v3146
      %v3275 = vsub.f32 0.0, %v3147
      %v3276 = vsub.f32 0.0, %v3148
      %v3277 = vsub.f32 0.0, %v3149
      %v3278 = vsub.f32 0.0, %v3150
      %v3279 = vsub.f32 0.0, %v3151
      %v3280 = vsub.f32 0.0, %v3152
      %v3281 = vsub.f32 0.0, %v3153
      %v3282 = vsub.f32 0.0, %v3154
      %v3283 = vsub.f32 0.0, %v3155
      %v3284 = vsub.f32 0.0, %v3156
      %v3285 = vsub.f32 0.0, %v3157
      %v3286 = vsub.f32 0.0, %v3158
      %v3287 = vsub.f32 0.0, %v3159
      %v3288 = vsub.f32 0.0, %v3160
      %v3289 = vsub.f32 0.0, %v3161
      %v3290 = vsub.f32 0.0, %v3162
      %v3291 = vsub.f32 0.0, %v3163
      %v3292 = vsub.f32 0.0, %v3164
      %v3293 = vsub.f32 0.0, %v3165
      %v3294 = vsub.f32 0.0, %v3166
      %v3295 = vsub.f32 0.0, %v3167
      %v3296 = vsub.f32 0.0, %v3168
      %v3297 = vsub.f32 0.0, %v3169
      %v3298 = vsub.f32 0.0, %v3170
      %v3299 = vsub.f32 0.0, %v3171
      %v3300 = vsub.f32 0.0, %v3172
      %v3301 = vsub.f32 0.0, %v3173
      %v3302 = vsub.f32 0.0, %v3174
      %v3303 = vsub.f32 0.0, %v3175
      %v3304 = vsub.f32 0.0, %v3176
      %v3305 = vsub.f32 0.0, %v3177
      %v3306 = vsub.f32 0.0, %v3178
      %v3307 = vsub.f32 0.0, %v3179
      %v3308 = vsub.f32 0.0, %v3180
      %v3309 = vsub.f32 0.0, %v3181
      %v3310 = vsub.f32 0.0, %v3182
      %v3311 = vsub.f32 0.0, %v3183
      %v3312 = vsub.f32 0.0, %v3184
      %v3313 = vsub.f32 0.0, %v3185
      %v3314 = vsub.f32 0.0, %v3186
      %v3315 = vsub.f32 0.0, %v3187
      %v3316 = vsub.f32 0.0, %v3188
      %v3317 = vsub.f32 0.0, %v3189
      %v3318 = vsub.f32 0.0, %v3190
      %v3319 = vsub.f32 0.0, %v3191
      %v3320 = vsub.f32 0.0, %v3192
      %v3321 = vsub.f32 0.0, %v3193
      %v3322 = vsub.f32 0.0, %v3194
      %v3323 = vsub.f32 0.0, %v3195
      %v3324 = vsub.f32 0.0, %v3196
      %v3325 = vsub.f32 0.0, %v3197
      %v3326 = vsub.f32 0.0, %v3198
      %v3327 = vsub.f32 0.0, %v3199
      %v3328 = vsub.f32 0.0, %v3200
      %v3329 = vsub.f32 0.0, %v3201
      %v3330 = vsub.f32 0.0, %v3202
      %v3331 = vsub.f32 0.0, %v3203
      %v3332 = vsub.f32 0.0, %v3204
      %v3333 = vsub.f32 0.0, %v3205
      %v3334 = vsub.f32 0.0, %v3206
      %v3335 = vsub.f32 0.0, %v3207
      %v3336 = vsub.f32 0.0, %v3208
      %v3337 = vsub.f32 0.0, %v3209
      %v3338 = vsub.f32 0.0, %v3210
      %v3339 = vsub.f32 0.0, %v3211
      %v3340 = vsub.f32 0.0, %v3212
      %v3341 = vsub.f32 0.0, %v3213
      %v3342 = vsub.f32 0.0, %v3214
      %v3343 = vsub.f32 0.0, %v3215
      %v3344 = vsub.f32 0.0, %v3216
      %v3345 = vsub.f32 0.0, %v3217
      %v3346 = vsub.f32 0.0, %v3218
      %v3347 = vsub.f32 0.0, %v3219
      %v3348 = vsub.f32 0.0, %v3220
      %v3349 = vsub.f32 0.0, %v3221
      %v3350 = vsub.f32 0.0, %v3222
      %v3351 = vsub.f32 0.0, %v3223
      %v3352 = vsub.f32 0.0, %v3224
      %v3353 = vsub.f32 0.0, %v3225
      %v3354 = vsub.f32 0.0, %v3226
      %v3355 = vsub.f32 0.0, %v3227
      %v3356 = vsub.f32 0.0, %v3228
      %v3357 = vsub.f32 0.0, %v3229
      %v3358 = vsub.f32 0.0, %v3230
      %v3359 = vsub.f32 0.0, %v3231
      %v3360 = vsub.f32 0.0, %v3232
      %v3361 = vsub.f32 0.0, %v3233
      %v3362 = vsub.f32 0.0, %v3234
      %v3363 = vsub.f32 0.0, %v3235
      %v3364 = vsub.f32 0.0, %v3236
      %v3365 = vsub.f32 0.0, %v3237
      %v3366 = vsub.f32 0.0, %v3238
      %v3367 = vsub.f32 0.0, %v3239
      %v3368 = vsub.f32 0.0, %v3240
      %v3369 = vsub.f32 0.0, %v3241
      %v3370 = vsub.f32 0.0, %v3242
      %v3371 = vsub.f32 0.0, %v3243
      %v3372 = vsub.f32 0.0, %v3244
      %v3373 = vsub.f32 0.0, %v3245
      %v3374 = vsub.f32 0.0, %v3246
      %v3375 = vsub.f32 0.0, %v3247
      %v3376 = vsub.f32 0.0, %v3248
      %v3377 = vsub.f32 0.0, %v3249
      %v3378 = vsub.f32 0.0, %v3250
      %v3379 = vsub.f32 0.0, %v3251
      %v3380 = vsub.f32 0.0, %v3252
      %v3381 = vsub.f32 0.0, %v3253
      %v3382 = vsub.f32 0.0, %v3254
      %v3383 = vsub.f32 0.0, %v3255
      %v3384 = vsub.f32 0.0, %v3256
      %v3385 = vsub.f32 0.0, %v3257
      %v3386 = vsub.f32 0.0, %v3258
      %v3387 = vsub.f32 0.0, %v3259
      %v3388 = vsub.f32 0.0, %v3260
      %v3389 = vsub.f32 0.0, %v3261
      %v3390 = vsub.f32 0.0, %v3262
      %v3391 = vsub.f32 0.0, %v3263
      %v3392 = vsub.f32 0.0, %v3264
      %v3393 = vsub.f32 0.0, %v3265
      %v3394 = vsub.f32 0.0, %v3266
      %v3395 = vstv %s266
      %v3396 = vsub.f32 %v3011, %v3395
      %v3397 = vsub.f32 %v3012, %v3395
      %v3398 = vsub.f32 %v3013, %v3395
      %v3399 = vsub.f32 %v3014, %v3395
      %v3400 = vsub.f32 %v3015, %v3395
      %v3401 = vsub.f32 %v3016, %v3395
      %v3402 = vsub.f32 %v3017, %v3395
      %v3403 = vsub.f32 %v3018, %v3395
      %v3404 = vsub.f32 %v3019, %v3395
      %v3405 = vsub.f32 %v3020, %v3395
      %v3406 = vsub.f32 %v3021, %v3395
      %v3407 = vsub.f32 %v3022, %v3395
      %v3408 = vsub.f32 %v3023, %v3395
      %v3409 = vsub.f32 %v3024, %v3395
      %v3410 = vsub.f32 %v3025, %v3395
      %v3411 = vsub.f32 %v3026, %v3395
      %v3412 = vsub.f32 %v3027, %v3395
      %v3413 = vsub.f32 %v3028, %v3395
      %v3414 = vsub.f32 %v3029, %v3395
      %v3415 = vsub.f32 %v3030, %v3395
      %v3416 = vsub.f32 %v3031, %v3395
      %v3417 = vsub.f32 %v3032, %v3395
      %v3418 = vsub.f32 %v3033, %v3395
      %v3419 = vsub.f32 %v3034, %v3395
      %v3420 = vsub.f32 %v3035, %v3395
      %v3421 = vsub.f32 %v3036, %v3395
      %v3422 = vsub.f32 %v3037, %v3395
      %v3423 = vsub.f32 %v3038, %v3395
      %v3424 = vsub.f32 %v3039, %v3395
      %v3425 = vsub.f32 %v3040, %v3395
      %v3426 = vsub.f32 %v3041, %v3395
      %v3427 = vsub.f32 %v3042, %v3395
      %v3428 = vsub.f32 %v3043, %v3395
      %v3429 = vsub.f32 %v3044, %v3395
      %v3430 = vsub.f32 %v3045, %v3395
      %v3431 = vsub.f32 %v3046, %v3395
      %v3432 = vsub.f32 %v3047, %v3395
      %v3433 = vsub.f32 %v3048, %v3395
      %v3434 = vsub.f32 %v3049, %v3395
      %v3435 = vsub.f32 %v3050, %v3395
      %v3436 = vsub.f32 %v3051, %v3395
      %v3437 = vsub.f32 %v3052, %v3395
      %v3438 = vsub.f32 %v3053, %v3395
      %v3439 = vsub.f32 %v3054, %v3395
      %v3440 = vsub.f32 %v3055, %v3395
      %v3441 = vsub.f32 %v3056, %v3395
      %v3442 = vsub.f32 %v3057, %v3395
      %v3443 = vsub.f32 %v3058, %v3395
      %v3444 = vsub.f32 %v3059, %v3395
      %v3445 = vsub.f32 %v3060, %v3395
      %v3446 = vsub.f32 %v3061, %v3395
      %v3447 = vsub.f32 %v3062, %v3395
      %v3448 = vsub.f32 %v3063, %v3395
      %v3449 = vsub.f32 %v3064, %v3395
      %v3450 = vsub.f32 %v3065, %v3395
      %v3451 = vsub.f32 %v3066, %v3395
      %v3452 = vsub.f32 %v3067, %v3395
      %v3453 = vsub.f32 %v3068, %v3395
      %v3454 = vsub.f32 %v3069, %v3395
      %v3455 = vsub.f32 %v3070, %v3395
      %v3456 = vsub.f32 %v3071, %v3395
      %v3457 = vsub.f32 %v3072, %v3395
      %v3458 = vsub.f32 %v3073, %v3395
      %v3459 = vsub.f32 %v3074, %v3395
      %v3460 = vsub.f32 %v3075, %v3395
      %v3461 = vsub.f32 %v3076, %v3395
      %v3462 = vsub.f32 %v3077, %v3395
      %v3463 = vsub.f32 %v3078, %v3395
      %v3464 = vsub.f32 %v3079, %v3395
      %v3465 = vsub.f32 %v3080, %v3395
      %v3466 = vsub.f32 %v3081, %v3395
      %v3467 = vsub.f32 %v3082, %v3395
      %v3468 = vsub.f32 %v3083, %v3395
      %v3469 = vsub.f32 %v3084, %v3395
      %v3470 = vsub.f32 %v3085, %v3395
      %v3471 = vsub.f32 %v3086, %v3395
      %v3472 = vsub.f32 %v3087, %v3395
      %v3473 = vsub.f32 %v3088, %v3395
      %v3474 = vsub.f32 %v3089, %v3395
      %v3475 = vsub.f32 %v3090, %v3395
      %v3476 = vsub.f32 %v3091, %v3395
      %v3477 = vsub.f32 %v3092, %v3395
      %v3478 = vsub.f32 %v3093, %v3395
      %v3479 = vsub.f32 %v3094, %v3395
      %v3480 = vsub.f32 %v3095, %v3395
      %v3481 = vsub.f32 %v3096, %v3395
      %v3482 = vsub.f32 %v3097, %v3395
      %v3483 = vsub.f32 %v3098, %v3395
      %v3484 = vsub.f32 %v3099, %v3395
      %v3485 = vsub.f32 %v3100, %v3395
      %v3486 = vsub.f32 %v3101, %v3395
      %v3487 = vsub.f32 %v3102, %v3395
      %v3488 = vsub.f32 %v3103, %v3395
      %v3489 = vsub.f32 %v3104, %v3395
      %v3490 = vsub.f32 %v3105, %v3395
      %v3491 = vsub.f32 %v3106, %v3395
      %v3492 = vsub.f32 %v3107, %v3395
      %v3493 = vsub.f32 %v3108, %v3395
      %v3494 = vsub.f32 %v3109, %v3395
      %v3495 = vsub.f32 %v3110, %v3395
      %v3496 = vsub.f32 %v3111, %v3395
      %v3497 = vsub.f32 %v3112, %v3395
      %v3498 = vsub.f32 %v3113, %v3395
      %v3499 = vsub.f32 %v3114, %v3395
      %v3500 = vsub.f32 %v3115, %v3395
      %v3501 = vsub.f32 %v3116, %v3395
      %v3502 = vsub.f32 %v3117, %v3395
      %v3503 = vsub.f32 %v3118, %v3395
      %v3504 = vsub.f32 %v3119, %v3395
      %v3505 = vsub.f32 %v3120, %v3395
      %v3506 = vsub.f32 %v3121, %v3395
      %v3507 = vsub.f32 %v3122, %v3395
      %v3508 = vsub.f32 %v3123, %v3395
      %v3509 = vsub.f32 %v3124, %v3395
      %v3510 = vsub.f32 %v3125, %v3395
      %v3511 = vsub.f32 %v3126, %v3395
      %v3512 = vsub.f32 %v3127, %v3395
      %v3513 = vsub.f32 %v3128, %v3395
      %v3514 = vsub.f32 %v3129, %v3395
      %v3515 = vsub.f32 %v3130, %v3395
      %v3516 = vsub.f32 %v3131, %v3395
      %v3517 = vsub.f32 %v3132, %v3395
      %v3518 = vsub.f32 %v3133, %v3395
      %v3519 = vsub.f32 %v3134, %v3395
      %v3520 = vsub.f32 %v3135, %v3395
      %v3521 = vsub.f32 %v3136, %v3395
      %v3522 = vsub.f32 %v3137, %v3395
      %v3523 = vsub.f32 %v3138, %v3395
      %v3524 = vmul.f32 %v3267, %v3396
      %v3525 = vmul.f32 %v3268, %v3397
      %v3526 = vmul.f32 %v3269, %v3398
      %v3527 = vmul.f32 %v3270, %v3399
      %v3528 = vmul.f32 %v3271, %v3400
      %v3529 = vmul.f32 %v3272, %v3401
      %v3530 = vmul.f32 %v3273, %v3402
      %v3531 = vmul.f32 %v3274, %v3403
      %v3532 = vmul.f32 %v3275, %v3404
      %v3533 = vmul.f32 %v3276, %v3405
      %v3534 = vmul.f32 %v3277, %v3406
      %v3535 = vmul.f32 %v3278, %v3407
      %v3536 = vmul.f32 %v3279, %v3408
      %v3537 = vmul.f32 %v3280, %v3409
      %v3538 = vmul.f32 %v3281, %v3410
      %v3539 = vmul.f32 %v3282, %v3411
      %v3540 = vmul.f32 %v3283, %v3412
      %v3541 = vmul.f32 %v3284, %v3413
      %v3542 = vmul.f32 %v3285, %v3414
      %v3543 = vmul.f32 %v3286, %v3415
      %v3544 = vmul.f32 %v3287, %v3416
      %v3545 = vmul.f32 %v3288, %v3417
      %v3546 = vmul.f32 %v3289, %v3418
      %v3547 = vmul.f32 %v3290, %v3419
      %v3548 = vmul.f32 %v3291, %v3420
      %v3549 = vmul.f32 %v3292, %v3421
      %v3550 = vmul.f32 %v3293, %v3422
      %v3551 = vmul.f32 %v3294, %v3423
      %v3552 = vmul.f32 %v3295, %v3424
      %v3553 = vmul.f32 %v3296, %v3425
      %v3554 = vmul.f32 %v3297, %v3426
      %v3555 = vmul.f32 %v3298, %v3427
      %v3556 = vmul.f32 %v3299, %v3428
      %v3557 = vmul.f32 %v3300, %v3429
      %v3558 = vmul.f32 %v3301, %v3430
      %v3559 = vmul.f32 %v3302, %v3431
      %v3560 = vmul.f32 %v3303, %v3432
      %v3561 = vmul.f32 %v3304, %v3433
      %v3562 = vmul.f32 %v3305, %v3434
      %v3563 = vmul.f32 %v3306, %v3435
      %v3564 = vmul.f32 %v3307, %v3436
      %v3565 = vmul.f32 %v3308, %v3437
      %v3566 = vmul.f32 %v3309, %v3438
      %v3567 = vmul.f32 %v3310, %v3439
      %v3568 = vmul.f32 %v3311, %v3440
      %v3569 = vmul.f32 %v3312, %v3441
      %v3570 = vmul.f32 %v3313, %v3442
      %v3571 = vmul.f32 %v3314, %v3443
      %v3572 = vmul.f32 %v3315, %v3444
      %v3573 = vmul.f32 %v3316, %v3445
      %v3574 = vmul.f32 %v3317, %v3446
      %v3575 = vmul.f32 %v3318, %v3447
      %v3576 = vmul.f32 %v3319, %v3448
      %v3577 = vmul.f32 %v3320, %v3449
      %v3578 = vmul.f32 %v3321, %v3450
      %v3579 = vmul.f32 %v3322, %v3451
      %v3580 = vmul.f32 %v3323, %v3452
      %v3581 = vmul.f32 %v3324, %v3453
      %v3582 = vmul.f32 %v3325, %v3454
      %v3583 = vmul.f32 %v3326, %v3455
      %v3584 = vmul.f32 %v3327, %v3456
      %v3585 = vmul.f32 %v3328, %v3457
      %v3586 = vmul.f32 %v3329, %v3458
      %v3587 = vmul.f32 %v3330, %v3459
      %v3588 = vmul.f32 %v3331, %v3460
      %v3589 = vmul.f32 %v3332, %v3461
      %v3590 = vmul.f32 %v3333, %v3462
      %v3591 = vmul.f32 %v3334, %v3463
      %v3592 = vmul.f32 %v3335, %v3464
      %v3593 = vmul.f32 %v3336, %v3465
      %v3594 = vmul.f32 %v3337, %v3466
      %v3595 = vmul.f32 %v3338, %v3467
      %v3596 = vmul.f32 %v3339, %v3468
      %v3597 = vmul.f32 %v3340, %v3469
      %v3598 = vmul.f32 %v3341, %v3470
      %v3599 = vmul.f32 %v3342, %v3471
      %v3600 = vmul.f32 %v3343, %v3472
      %v3601 = vmul.f32 %v3344, %v3473
      %v3602 = vmul.f32 %v3345, %v3474
      %v3603 = vmul.f32 %v3346, %v3475
      %v3604 = vmul.f32 %v3347, %v3476
      %v3605 = vmul.f32 %v3348, %v3477
      %v3606 = vmul.f32 %v3349, %v3478
      %v3607 = vmul.f32 %v3350, %v3479
      %v3608 = vmul.f32 %v3351, %v3480
      %v3609 = vmul.f32 %v3352, %v3481
      %v3610 = vmul.f32 %v3353, %v3482
      %v3611 = vmul.f32 %v3354, %v3483
      %v3612 = vmul.f32 %v3355, %v3484
      %v3613 = vmul.f32 %v3356, %v3485
      %v3614 = vmul.f32 %v3357, %v3486
      %v3615 = vmul.f32 %v3358, %v3487
      %v3616 = vmul.f32 %v3359, %v3488
      %v3617 = vmul.f32 %v3360, %v3489
      %v3618 = vmul.f32 %v3361, %v3490
      %v3619 = vmul.f32 %v3362, %v3491
      %v3620 = vmul.f32 %v3363, %v3492
      %v3621 = vmul.f32 %v3364, %v3493
      %v3622 = vmul.f32 %v3365, %v3494
      %v3623 = vmul.f32 %v3366, %v3495
      %v3624 = vmul.f32 %v3367, %v3496
      %v3625 = vmul.f32 %v3368, %v3497
      %v3626 = vmul.f32 %v3369, %v3498
      %v3627 = vmul.f32 %v3370, %v3499
      %v3628 = vmul.f32 %v3371, %v3500
      %v3629 = vmul.f32 %v3372, %v3501
      %v3630 = vmul.f32 %v3373, %v3502
      %v3631 = vmul.f32 %v3374, %v3503
      %v3632 = vmul.f32 %v3375, %v3504
      %v3633 = vmul.f32 %v3376, %v3505
      %v3634 = vmul.f32 %v3377, %v3506
      %v3635 = vmul.f32 %v3378, %v3507
      %v3636 = vmul.f32 %v3379, %v3508
      %v3637 = vmul.f32 %v3380, %v3509
      %v3638 = vmul.f32 %v3381, %v3510
      %v3639 = vmul.f32 %v3382, %v3511
      %v3640 = vmul.f32 %v3383, %v3512
      %v3641 = vmul.f32 %v3384, %v3513
      %v3642 = vmul.f32 %v3385, %v3514
      %v3643 = vmul.f32 %v3386, %v3515
      %v3644 = vmul.f32 %v3387, %v3516
      %v3645 = vmul.f32 %v3388, %v3517
      %v3646 = vmul.f32 %v3389, %v3518
      %v3647 = vmul.f32 %v3390, %v3519
      %v3648 = vmul.f32 %v3391, %v3520
      %v3649 = vmul.f32 %v3392, %v3521
      %v3650 = vmul.f32 %v3393, %v3522
      %v3651 = vmul.f32 %v3394, %v3523
      %3652 = vst [vmem:[%s259] sm:$0xff] %v3524
      %3653 = vst [vmem:[%s259 + $0x8] sm:$0xff] %v3525
      %3654 = vst [vmem:[%s259 + $0x10] sm:$0xff] %v3526
      %3655 = vst [vmem:[%s259 + $0x18] sm:$0xff] %v3527
      %3656 = vst [vmem:[%s259 + $0x20] sm:$0xff] %v3528
      %3657 = vst [vmem:[%s259 + $0x28] sm:$0xff] %v3529
      %3658 = vst [vmem:[%s259 + $0x30] sm:$0xff] %v3530
      %3659 = vst [vmem:[%s259 + $0x38] sm:$0xff] %v3531
      %3660 = vst [vmem:[%s259 + $0x40] sm:$0xff] %v3532
      %3661 = vst [vmem:[%s259 + $0x48] sm:$0xff] %v3533
      %3662 = vst [vmem:[%s259 + $0x50] sm:$0xff] %v3534
      %3663 = vst [vmem:[%s259 + $0x58] sm:$0xff] %v3535
      %3664 = vst [vmem:[%s259 + $0x60] sm:$0xff] %v3536
      %3665 = vst [vmem:[%s259 + $0x68] sm:$0xff] %v3537
      %3666 = vst [vmem:[%s259 + $0x70] sm:$0xff] %v3538
      %3667 = vst [vmem:[%s259 + $0x78] sm:$0xff] %v3539
      %3668 = vst [vmem:[%s259 + $0x80] sm:$0xff] %v3540
      %3669 = vst [vmem:[%s259 + $0x88] sm:$0xff] %v3541
      %3670 = vst [vmem:[%s259 + $0x90] sm:$0xff] %v3542
      %3671 = vst [vmem:[%s259 + $0x98] sm:$0xff] %v3543
      %3672 = vst [vmem:[%s259 + $0xa0] sm:$0xff] %v3544
      %3673 = vst [vmem:[%s259 + $0xa8] sm:$0xff] %v3545
      %3674 = vst [vmem:[%s259 + $0xb0] sm:$0xff] %v3546
      %3675 = vst [vmem:[%s259 + $0xb8] sm:$0xff] %v3547
      %3676 = vst [vmem:[%s259 + $0xc0] sm:$0xff] %v3548
      %3677 = vst [vmem:[%s259 + $0xc8] sm:$0xff] %v3549
      %3678 = vst [vmem:[%s259 + $0xd0] sm:$0xff] %v3550
      %3679 = vst [vmem:[%s259 + $0xd8] sm:$0xff] %v3551
      %3680 = vst [vmem:[%s259 + $0xe0] sm:$0xff] %v3552
      %3681 = vst [vmem:[%s259 + $0xe8] sm:$0xff] %v3553
      %3682 = vst [vmem:[%s259 + $0xf0] sm:$0xff] %v3554
      %3683 = vst [vmem:[%s259 + $0xf8] sm:$0xff] %v3555
      %3684 = vst [vmem:[%s259 + $0x100] sm:$0xff] %v3556
      %3685 = vst [vmem:[%s259 + $0x108] sm:$0xff] %v3557
      %3686 = vst [vmem:[%s259 + $0x110] sm:$0xff] %v3558
      %3687 = vst [vmem:[%s259 + $0x118] sm:$0xff] %v3559
      %3688 = vst [vmem:[%s259 + $0x120] sm:$0xff] %v3560
      %3689 = vst [vmem:[%s259 + $0x128] sm:$0xff] %v3561
      %3690 = vst [vmem:[%s259 + $0x130] sm:$0xff] %v3562
      %3691 = vst [vmem:[%s259 + $0x138] sm:$0xff] %v3563
      %3692 = vst [vmem:[%s259 + $0x140] sm:$0xff] %v3564
      %3693 = vst [vmem:[%s259 + $0x148] sm:$0xff] %v3565
      %3694 = vst [vmem:[%s259 + $0x150] sm:$0xff] %v3566
      %3695 = vst [vmem:[%s259 + $0x158] sm:$0xff] %v3567
      %3696 = vst [vmem:[%s259 + $0x160] sm:$0xff] %v3568
      %3697 = vst [vmem:[%s259 + $0x168] sm:$0xff] %v3569
      %3698 = vst [vmem:[%s259 + $0x170] sm:$0xff] %v3570
      %3699 = vst [vmem:[%s259 + $0x178] sm:$0xff] %v3571
      %3700 = vst [vmem:[%s259 + $0x180] sm:$0xff] %v3572
      %3701 = vst [vmem:[%s259 + $0x188] sm:$0xff] %v3573
      %3702 = vst [vmem:[%s259 + $0x190] sm:$0xff] %v3574
      %3703 = vst [vmem:[%s259 + $0x198] sm:$0xff] %v3575
      %3704 = vst [vmem:[%s259 + $0x1a0] sm:$0xff] %v3576
      %3705 = vst [vmem:[%s259 + $0x1a8] sm:$0xff] %v3577
      %3706 = vst [vmem:[%s259 + $0x1b0] sm:$0xff] %v3578
      %3707 = vst [vmem:[%s259 + $0x1b8] sm:$0xff] %v3579
      %3708 = vst [vmem:[%s259 + $0x1c0] sm:$0xff] %v3580
      %3709 = vst [vmem:[%s259 + $0x1c8] sm:$0xff] %v3581
      %3710 = vst [vmem:[%s259 + $0x1d0] sm:$0xff] %v3582
      %3711 = vst [vmem:[%s259 + $0x1d8] sm:$0xff] %v3583
      %3712 = vst [vmem:[%s259 + $0x1e0] sm:$0xff] %v3584
      %3713 = vst [vmem:[%s259 + $0x1e8] sm:$0xff] %v3585
      %3714 = vst [vmem:[%s259 + $0x1f0] sm:$0xff] %v3586
      %3715 = vst [vmem:[%s259 + $0x1f8] sm:$0xff] %v3587
      %3716 = vst [vmem:[%s259 + $0x200] sm:$0xff] %v3588
      %3717 = vst [vmem:[%s259 + $0x208] sm:$0xff] %v3589
      %3718 = vst [vmem:[%s259 + $0x210] sm:$0xff] %v3590
      %3719 = vst [vmem:[%s259 + $0x218] sm:$0xff] %v3591
      %3720 = vst [vmem:[%s259 + $0x220] sm:$0xff] %v3592
      %3721 = vst [vmem:[%s259 + $0x228] sm:$0xff] %v3593
      %3722 = vst [vmem:[%s259 + $0x230] sm:$0xff] %v3594
      %3723 = vst [vmem:[%s259 + $0x238] sm:$0xff] %v3595
      %3724 = vst [vmem:[%s259 + $0x240] sm:$0xff] %v3596
      %3725 = vst [vmem:[%s259 + $0x248] sm:$0xff] %v3597
      %3726 = vst [vmem:[%s259 + $0x250] sm:$0xff] %v3598
      %3727 = vst [vmem:[%s259 + $0x258] sm:$0xff] %v3599
      %3728 = vst [vmem:[%s259 + $0x260] sm:$0xff] %v3600
      %3729 = vst [vmem:[%s259 + $0x268] sm:$0xff] %v3601
      %3730 = vst [vmem:[%s259 + $0x270] sm:$0xff] %v3602
      %3731 = vst [vmem:[%s259 + $0x278] sm:$0xff] %v3603
      %3732 = vst [vmem:[%s259 + $0x280] sm:$0xff] %v3604
      %3733 = vst [vmem:[%s259 + $0x288] sm:$0xff] %v3605
      %3734 = vst [vmem:[%s259 + $0x290] sm:$0xff] %v3606
      %3735 = vst [vmem:[%s259 + $0x298] sm:$0xff] %v3607
      %3736 = vst [vmem:[%s259 + $0x2a0] sm:$0xff] %v3608
      %3737 = vst [vmem:[%s259 + $0x2a8] sm:$0xff] %v3609
      %3738 = vst [vmem:[%s259 + $0x2b0] sm:$0xff] %v3610
      %3739 = vst [vmem:[%s259 + $0x2b8] sm:$0xff] %v3611
      %3740 = vst [vmem:[%s259 + $0x2c0] sm:$0xff] %v3612
      %3741 = vst [vmem:[%s259 + $0x2c8] sm:$0xff] %v3613
      %3742 = vst [vmem:[%s259 + $0x2d0] sm:$0xff] %v3614
      %3743 = vst [vmem:[%s259 + $0x2d8] sm:$0xff] %v3615
      %3744 = vst [vmem:[%s259 + $0x2e0] sm:$0xff] %v3616
      %3745 = vst [vmem:[%s259 + $0x2e8] sm:$0xff] %v3617
      %3746 = vst [vmem:[%s259 + $0x2f0] sm:$0xff] %v3618
      %3747 = vst [vmem:[%s259 + $0x2f8] sm:$0xff] %v3619
      %3748 = vst [vmem:[%s259 + $0x300] sm:$0xff] %v3620
      %3749 = vst [vmem:[%s259 + $0x308] sm:$0xff] %v3621
      %3750 = vst [vmem:[%s259 + $0x310] sm:$0xff] %v3622
      %3751 = vst [vmem:[%s259 + $0x318] sm:$0xff] %v3623
      %3752 = vst [vmem:[%s259 + $0x320] sm:$0xff] %v3624
      %3753 = vst [vmem:[%s259 + $0x328] sm:$0xff] %v3625
      %3754 = vst [vmem:[%s259 + $0x330] sm:$0xff] %v3626
      %3755 = vst [vmem:[%s259 + $0x338] sm:$0xff] %v3627
      %3756 = vst [vmem:[%s259 + $0x340] sm:$0xff] %v3628
      %3757 = vst [vmem:[%s259 + $0x348] sm:$0xff] %v3629
      %3758 = vst [vmem:[%s259 + $0x350] sm:$0xff] %v3630
      %3759 = vst [vmem:[%s259 + $0x358] sm:$0xff] %v3631
      %3760 = vst [vmem:[%s259 + $0x360] sm:$0xff] %v3632
      %3761 = vst [vmem:[%s259 + $0x368] sm:$0xff] %v3633
      %3762 = vst [vmem:[%s259 + $0x370] sm:$0xff] %v3634
      %3763 = vst [vmem:[%s259 + $0x378] sm:$0xff] %v3635
      %3764 = vst [vmem:[%s259 + $0x380] sm:$0xff] %v3636
      %3765 = vst [vmem:[%s259 + $0x388] sm:$0xff] %v3637
      %3766 = vst [vmem:[%s259 + $0x390] sm:$0xff] %v3638
      %3767 = vst [vmem:[%s259 + $0x398] sm:$0xff] %v3639
      %3768 = vst [vmem:[%s259 + $0x3a0] sm:$0xff] %v3640
      %3769 = vst [vmem:[%s259 + $0x3a8] sm:$0xff] %v3641
      %3770 = vst [vmem:[%s259 + $0x3b0] sm:$0xff] %v3642
      %3771 = vst [vmem:[%s259 + $0x3b8] sm:$0xff] %v3643
      %3772 = vst [vmem:[%s259 + $0x3c0] sm:$0xff] %v3644
      %3773 = vst [vmem:[%s259 + $0x3c8] sm:$0xff] %v3645
      %3774 = vst [vmem:[%s259 + $0x3d0] sm:$0xff] %v3646
      %3775 = vst [vmem:[%s259 + $0x3d8] sm:$0xff] %v3647
      %3776 = vst [vmem:[%s259 + $0x3e0] sm:$0xff] %v3648
      %3777 = vst [vmem:[%s259 + $0x3e8] sm:$0xff] %v3649
      %3778 = vst [vmem:[%s259 + $0x3f0] sm:$0xff] %v3650
      %3779 = vst [vmem:[%s259 + $0x3f8] sm:$0xff] %v3651
      %3780 = vst [vmem:[%s264] sm:$0xff] %v2086
      %3781 = vst [vmem:[%s264 + $0x8] sm:$0xff] %v2088
      %3782 = vst [vmem:[%s264 + $0x10] sm:$0xff] %v2090
      %3783 = vst [vmem:[%s264 + $0x18] sm:$0xff] %v2092
      %3784 = vst [vmem:[%s264 + $0x20] sm:$0xff] %v2096
      %3785 = vst [vmem:[%s264 + $0x28] sm:$0xff] %v2098
      %3786 = vst [vmem:[%s264 + $0x30] sm:$0xff] %v2100
      %3787 = vst [vmem:[%s264 + $0x38] sm:$0xff] %v2102
      %3788 = vst [vmem:[%s264 + $0x40] sm:$0xff] %v2106
      %3789 = vst [vmem:[%s264 + $0x48] sm:$0xff] %v2108
      %3790 = vst [vmem:[%s264 + $0x50] sm:$0xff] %v2110
      %3791 = vst [vmem:[%s264 + $0x58] sm:$0xff] %v2112
      %3792 = vst [vmem:[%s264 + $0x60] sm:$0xff] %v2116
      %3793 = vst [vmem:[%s264 + $0x68] sm:$0xff] %v2118
      %3794 = vst [vmem:[%s264 + $0x70] sm:$0xff] %v2120
      %3795 = vst [vmem:[%s264 + $0x78] sm:$0xff] %v2122
      %3796 = vst [vmem:[%s264 + $0x80] sm:$0xff] %v2126
      %3797 = vst [vmem:[%s264 + $0x88] sm:$0xff] %v2128
      %3798 = vst [vmem:[%s264 + $0x90] sm:$0xff] %v2130
      %3799 = vst [vmem:[%s264 + $0x98] sm:$0xff] %v2132
      %3800 = vst [vmem:[%s264 + $0xa0] sm:$0xff] %v2136
      %3801 = vst [vmem:[%s264 + $0xa8] sm:$0xff] %v2138
      %3802 = vst [vmem:[%s264 + $0xb0] sm:$0xff] %v2140
      %3803 = vst [vmem:[%s264 + $0xb8] sm:$0xff] %v2142
      %3804 = vst [vmem:[%s264 + $0xc0] sm:$0xff] %v2146
      %3805 = vst [vmem:[%s264 + $0xc8] sm:$0xff] %v2148
      %3806 = vst [vmem:[%s264 + $0xd0] sm:$0xff] %v2150
      %3807 = vst [vmem:[%s264 + $0xd8] sm:$0xff] %v2152
      %3808 = vst [vmem:[%s264 + $0xe0] sm:$0xff] %v2156
      %3809 = vst [vmem:[%s264 + $0xe8] sm:$0xff] %v2158
      %3810 = vst [vmem:[%s264 + $0xf0] sm:$0xff] %v2160
      %3811 = vst [vmem:[%s264 + $0xf8] sm:$0xff] %v2162
      %3812 = vst [vmem:[%s264 + $0x100] sm:$0xff] %v2166
      %3813 = vst [vmem:[%s264 + $0x108] sm:$0xff] %v2168
      %3814 = vst [vmem:[%s264 + $0x110] sm:$0xff] %v2170
      %3815 = vst [vmem:[%s264 + $0x118] sm:$0xff] %v2172
      %3816 = vst [vmem:[%s264 + $0x120] sm:$0xff] %v2176
      %3817 = vst [vmem:[%s264 + $0x128] sm:$0xff] %v2178
      %3818 = vst [vmem:[%s264 + $0x130] sm:$0xff] %v2180
      %3819 = vst [vmem:[%s264 + $0x138] sm:$0xff] %v2182
      %3820 = vst [vmem:[%s264 + $0x140] sm:$0xff] %v2186
      %3821 = vst [vmem:[%s264 + $0x148] sm:$0xff] %v2188
      %3822 = vst [vmem:[%s264 + $0x150] sm:$0xff] %v2190
      %3823 = vst [vmem:[%s264 + $0x158] sm:$0xff] %v2192
      %3824 = vst [vmem:[%s264 + $0x160] sm:$0xff] %v2196
      %3825 = vst [vmem:[%s264 + $0x168] sm:$0xff] %v2198
      %3826 = vst [vmem:[%s264 + $0x170] sm:$0xff] %v2200
      %3827 = vst [vmem:[%s264 + $0x178] sm:$0xff] %v2202
      %3828 = vst [vmem:[%s264 + $0x180] sm:$0xff] %v2206
      %3829 = vst [vmem:[%s264 + $0x188] sm:$0xff] %v2208
      %3830 = vst [vmem:[%s264 + $0x190] sm:$0xff] %v2210
      %3831 = vst [vmem:[%s264 + $0x198] sm:$0xff] %v2212
      %3832 = vst [vmem:[%s264 + $0x1a0] sm:$0xff] %v2216
      %3833 = vst [vmem:[%s264 + $0x1a8] sm:$0xff] %v2218
      %3834 = vst [vmem:[%s264 + $0x1b0] sm:$0xff] %v2220
      %3835 = vst [vmem:[%s264 + $0x1b8] sm:$0xff] %v2222
      %3836 = vst [vmem:[%s264 + $0x1c0] sm:$0xff] %v2226
      %3837 = vst [vmem:[%s264 + $0x1c8] sm:$0xff] %v2228
      %3838 = vst [vmem:[%s264 + $0x1d0] sm:$0xff] %v2230
      %3839 = vst [vmem:[%s264 + $0x1d8] sm:$0xff] %v2232
      %3840 = vst [vmem:[%s264 + $0x1e0] sm:$0xff] %v2236
      %3841 = vst [vmem:[%s264 + $0x1e8] sm:$0xff] %v2238
      %3842 = vst [vmem:[%s264 + $0x1f0] sm:$0xff] %v2240
      %3843 = vst [vmem:[%s264 + $0x1f8] sm:$0xff] %v2242
      %3844 = vst [vmem:[%s264 + $0x200] sm:$0xff] %v2327
      %3845 = vst [vmem:[%s264 + $0x208] sm:$0xff] %v2329
      %3846 = vst [vmem:[%s264 + $0x210] sm:$0xff] %v2331
      %3847 = vst [vmem:[%s264 + $0x218] sm:$0xff] %v2333
      %3848 = vst [vmem:[%s264 + $0x220] sm:$0xff] %v2337
      %3849 = vst [vmem:[%s264 + $0x228] sm:$0xff] %v2339
      %3850 = vst [vmem:[%s264 + $0x230] sm:$0xff] %v2341
      %3851 = vst [vmem:[%s264 + $0x238] sm:$0xff] %v2343
      %3852 = vst [vmem:[%s264 + $0x240] sm:$0xff] %v2347
      %3853 = vst [vmem:[%s264 + $0x248] sm:$0xff] %v2349
      %3854 = vst [vmem:[%s264 + $0x250] sm:$0xff] %v2351
      %3855 = vst [vmem:[%s264 + $0x258] sm:$0xff] %v2353
      %3856 = vst [vmem:[%s264 + $0x260] sm:$0xff] %v2357
      %3857 = vst [vmem:[%s264 + $0x268] sm:$0xff] %v2359
      %3858 = vst [vmem:[%s264 + $0x270] sm:$0xff] %v2361
      %3859 = vst [vmem:[%s264 + $0x278] sm:$0xff] %v2363
      %3860 = vst [vmem:[%s264 + $0x280] sm:$0xff] %v2367
      %3861 = vst [vmem:[%s264 + $0x288] sm:$0xff] %v2369
      %3862 = vst [vmem:[%s264 + $0x290] sm:$0xff] %v2371
      %3863 = vst [vmem:[%s264 + $0x298] sm:$0xff] %v2373
      %3864 = vst [vmem:[%s264 + $0x2a0] sm:$0xff] %v2377
      %3865 = vst [vmem:[%s264 + $0x2a8] sm:$0xff] %v2379
      %3866 = vst [vmem:[%s264 + $0x2b0] sm:$0xff] %v2381
      %3867 = vst [vmem:[%s264 + $0x2b8] sm:$0xff] %v2383
      %3868 = vst [vmem:[%s264 + $0x2c0] sm:$0xff] %v2387
      %3869 = vst [vmem:[%s264 + $0x2c8] sm:$0xff] %v2389
      %3870 = vst [vmem:[%s264 + $0x2d0] sm:$0xff] %v2391
      %3871 = vst [vmem:[%s264 + $0x2d8] sm:$0xff] %v2393
      %3872 = vst [vmem:[%s264 + $0x2e0] sm:$0xff] %v2397
      %3873 = vst [vmem:[%s264 + $0x2e8] sm:$0xff] %v2399
      %3874 = vst [vmem:[%s264 + $0x2f0] sm:$0xff] %v2401
      %3875 = vst [vmem:[%s264 + $0x2f8] sm:$0xff] %v2403
      %3876 = vst [vmem:[%s264 + $0x300] sm:$0xff] %v2407
      %3877 = vst [vmem:[%s264 + $0x308] sm:$0xff] %v2409
      %3878 = vst [vmem:[%s264 + $0x310] sm:$0xff] %v2411
      %3879 = vst [vmem:[%s264 + $0x318] sm:$0xff] %v2413
      %3880 = vst [vmem:[%s264 + $0x320] sm:$0xff] %v2417
      %3881 = vst [vmem:[%s264 + $0x328] sm:$0xff] %v2419
      %3882 = vst [vmem:[%s264 + $0x330] sm:$0xff] %v2421
      %3883 = vst [vmem:[%s264 + $0x338] sm:$0xff] %v2423
      %3884 = vst [vmem:[%s264 + $0x340] sm:$0xff] %v2427
      %3885 = vst [vmem:[%s264 + $0x348] sm:$0xff] %v2429
      %3886 = vst [vmem:[%s264 + $0x350] sm:$0xff] %v2431
      %3887 = vst [vmem:[%s264 + $0x358] sm:$0xff] %v2433
      %3888 = vst [vmem:[%s264 + $0x360] sm:$0xff] %v2437
      %3889 = vst [vmem:[%s264 + $0x368] sm:$0xff] %v2439
      %3890 = vst [vmem:[%s264 + $0x370] sm:$0xff] %v2441
      %3891 = vst [vmem:[%s264 + $0x378] sm:$0xff] %v2443
      %3892 = vst [vmem:[%s264 + $0x380] sm:$0xff] %v2447
      %3893 = vst [vmem:[%s264 + $0x388] sm:$0xff] %v2449
      %3894 = vst [vmem:[%s264 + $0x390] sm:$0xff] %v2451
      %3895 = vst [vmem:[%s264 + $0x398] sm:$0xff] %v2453
      %3896 = vst [vmem:[%s264 + $0x3a0] sm:$0xff] %v2457
      %3897 = vst [vmem:[%s264 + $0x3a8] sm:$0xff] %v2459
      %3898 = vst [vmem:[%s264 + $0x3b0] sm:$0xff] %v2461
      %3899 = vst [vmem:[%s264 + $0x3b8] sm:$0xff] %v2463
      %3900 = vst [vmem:[%s264 + $0x3c0] sm:$0xff] %v2467
      %3901 = vst [vmem:[%s264 + $0x3c8] sm:$0xff] %v2469
      %3902 = vst [vmem:[%s264 + $0x3d0] sm:$0xff] %v2471
      %3903 = vst [vmem:[%s264 + $0x3d8] sm:$0xff] %v2473
      %3904 = vst [vmem:[%s264 + $0x3e0] sm:$0xff] %v2477
      %3905 = vst [vmem:[%s264 + $0x3e8] sm:$0xff] %v2479
      %3906 = vst [vmem:[%s264 + $0x3f0] sm:$0xff] %v2481
      %3907 = vst [vmem:[%s264 + $0x3f8] sm:$0xff] %v2483
      %p3908 = scmp.lt.s32.totalorder %s24, 3
      %s3909 = scalar_select %p3908, %s24, 3
      %s3910 = smul.addr %s3909, 128
      %s3911 = smul.addr %s3910, 8
      %s3912 = scalar_lea.vmem %s5, %s3911
      %p3913 = scmp.lt.s32.totalorder %s24, 3
      %s3914 = scalar_select %p3913, %s24, 3
      %s3915 = smul.addr %s3914, 128
      %s3916 = smul.addr %s3915, 8
      %s3917 = scalar_lea.vmem %s6, %s3916
      // Predicated region
      $region37: #{contrastive_correlation_loss.3} parent=35 // pred_check
        %p3918 = pneg %p136
      $region38: #{contrastive_correlation_loss.3} parent=35 // pred_check_branch
        %3920 = sbr.rel (%p3918) target = $region40
      $region39: #{contrastive_correlation_loss.3} parent=35 // pred_region
        _
      $region40: #{contrastive_correlation_loss.3} parent=35 // pred_fallthru
        _
      // Predicated region
      $region41: #{contrastive_correlation_loss.3} parent=35 // pred_check
        %p3921 = pneg %p162
      $region42: #{contrastive_correlation_loss.3} parent=35 // pred_check_branch
        %3923 = sbr.rel (%p3921) target = $region44
      $region43: #{contrastive_correlation_loss.3} parent=35 // pred_region
        _
      $region44: #{contrastive_correlation_loss.3} parent=35 // pred_fallthru
        _
    $region36: #{contrastive_correlation_loss.3} parent=5 // pred_fallthru
      _
    %p3924 = scmp.le.s32.totalorder 2, %s19
    // Predicated region
    $region45: #{contrastive_correlation_loss.3} parent=5 // pred_check
      %p3925 = pneg %p3924
    $region46: #{contrastive_correlation_loss.3} parent=5 // pred_check_branch
      %3927 = sbr.rel (%p3925) target = $region48
    $region47: #{contrastive_correlation_loss.3} parent=5 // pred_region
      %s3928 = ssub.s32 %s19, 2
      // Predicated region
      $region49: #{contrastive_correlation_loss.3} parent=47 // pred_check
        %p3929 = pneg %p142
      $region50: #{contrastive_correlation_loss.3} parent=47 // pred_check_branch
        %3931 = sbr.rel (%p3929) target = $region52
      $region51: #{contrastive_correlation_loss.3} parent=47 // pred_region
        %p3932 = scmp.lt.s32.totalorder %s25, 3
        %s3933 = scalar_select %p3932, %s25, 3
        %s3934 = smul.addr %s3933, 128
        %s3935 = smul.addr %s3934, 8
        %s3936 = scalar_lea.vmem %s5, %s3935
      $region52: #{contrastive_correlation_loss.3} parent=47 // pred_fallthru
        _
      // Predicated region
      $region53: #{contrastive_correlation_loss.3} parent=47 // pred_check
        %p3937 = pneg %p168
      $region54: #{contrastive_correlation_loss.3} parent=47 // pred_check_branch
        %3939 = sbr.rel (%p3937) target = $region56
      $region55: #{contrastive_correlation_loss.3} parent=47 // pred_region
        %p3940 = scmp.lt.s32.totalorder %s25, 3
        %s3941 = scalar_select %p3940, %s25, 3
        %s3942 = smul.addr %s3941, 128
        %s3943 = smul.addr %s3942, 8
        %s3944 = scalar_lea.vmem %s6, %s3943
      $region56: #{contrastive_correlation_loss.3} parent=47 // pred_fallthru
        _
    $region48: #{contrastive_correlation_loss.3} parent=5 // pred_fallthru
      _
  $region6: #{contrastive_correlation_loss.3} parent=0 // loop_footer
    %s23 = sadd.s32 1, %s19
  $region7: #{contrastive_correlation_loss.3} parent=0 // loop_footer_branch
    %18 = sbr.rel target = $region3
  $region8: #{contrastive_correlation_loss.3} parent=0 // loop_exit
    _

</llo_original>
